<compile_context>
chip_gen: v7x
topology: tpu7x:2x2x1
jax: 0.10.0
libtpu: 0.0.40
codegen_flags: <defaults>
</compile_context>

<pallas_src>
import jax
import jax.numpy as jnp
from jax.experimental import pallas as pl
from jax.experimental.pallas import tpu as pltpu


# ---------------------------------------------------------------------------
# Pallas kernels
# ---------------------------------------------------------------------------
def _conv_bias_lrelu_kernel(xe_ref, xo_ref, w_ref, bias_ref, o_ref):
    """Fused Conv(4x4, s=2, p=1) + bias + LeakyReLU(0.2).

    xe_ref/xo_ref : (TN, Ho+1, Wp*Cin)  even / odd padded input rows, bf16
    w_ref         : (4, Wp*Cin, Wo*Cout) banded per-kernel-row weights, bf16
    bias_ref      : (1, Wo*Cout)  f32 (per-channel bias tiled over wo)
    o_ref         : (TN, Ho, Wo*Cout) bf16  (lane-dense output)
    """
    tn, ho, _ = o_ref.shape
    bias = bias_ref[...]
    for n in range(tn):  # static unroll: a few images per grid step
        xe = xe_ref[n]
        xo = xo_ref[n]
        acc = jnp.dot(xe[0:ho], w_ref[0], preferred_element_type=jnp.float32)
        acc += jnp.dot(xo[0:ho], w_ref[1], preferred_element_type=jnp.float32)
        acc += jnp.dot(xe[1:ho + 1], w_ref[2], preferred_element_type=jnp.float32)
        acc += jnp.dot(xo[1:ho + 1], w_ref[3], preferred_element_type=jnp.float32)
        y = acc + bias
        o_ref[n] = jnp.where(y >= 0, y, 0.2 * y).astype(o_ref.dtype)


def _conv_stats_kernel(xe_ref, xo_ref, w_ref, o_ref, stats_ref):
    """BN pass 1: fused conv (no bias) -> bf16 pre-BN out + per-tile f32 sum/ssq."""
    tn, ho, lout = o_ref.shape
    s = jnp.zeros((1, lout), jnp.float32)
    q = jnp.zeros((1, lout), jnp.float32)
    for n in range(tn):
        xe = xe_ref[n]
        xo = xo_ref[n]
        acc = jnp.dot(xe[0:ho], w_ref[0], preferred_element_type=jnp.float32)
        acc += jnp.dot(xo[0:ho], w_ref[1], preferred_element_type=jnp.float32)
        acc += jnp.dot(xe[1:ho + 1], w_ref[2], preferred_element_type=jnp.float32)
        acc += jnp.dot(xo[1:ho + 1], w_ref[3], preferred_element_type=jnp.float32)
        o_ref[n] = acc.astype(o_ref.dtype)  # bf16 intermediate (halves HBM round trip)
        s = s + jnp.sum(acc, axis=0, keepdims=True)       # f32 statistics
        q = q + jnp.sum(acc * acc, axis=0, keepdims=True)
    stats_ref[...] = jnp.concatenate([s, q], axis=0)[None]  # (1, 2, Lout)


def _affine_lrelu_kernel(x_ref, scale_ref, shift_ref, o_ref):
    """BN pass 2: y = scale * x + shift, then LeakyReLU(0.2)."""
    scale = scale_ref[...]
    shift = shift_ref[...]
    for n in range(x_ref.shape[0]):
        y = x_ref[n].astype(jnp.float32) * scale + shift
        o_ref[n] = jnp.where(y >= 0, y, 0.2 * y).astype(o_ref.dtype)


def _head_sigmoid_kernel(x_ref, w_ref, b_ref, o_ref):
    """Conv(8fd -> 1, 4x4, pad 0) on a 4x4 map == per-image dot + exact sigmoid."""
    x = x_ref[...].astype(jnp.float32)          # (TM, K) per-tile cast
    w = w_ref[...].astype(jnp.float32)          # (1, K)
    z = jnp.sum(x * w, axis=1, keepdims=True) + b_ref[0, 0]
    o_ref[...] = 1.0 / (1.0 + jnp.exp(-z))      # exact sigmoid


# ---------------------------------------------------------------------------
# Glue helpers (fused under the same jit; ~1x activation traffic, no im2col)
# ---------------------------------------------------------------------------
def _pick_tn(n, cap=8):
    """Images per grid step (bigger DMAs, fewer ~0.35us grid steps); must divide n."""
    for cand in range(min(cap, n), 0, -1):
        if n % cand == 0:
            return cand
    return 1


def _head_tile(n):
    for cand in (256, 128, 64, 32, 16, 8):
        if n % cand == 0:
            return cand
    return n


def _pad_and_split(x, cin):
    """Zero-pad 1 pixel in H and W (W lives packed as W*Cin lanes), then split
    padded rows into even / odd planes so kernel-row offsets become contiguous
    static slices inside the kernel (no strided gathers, no patch matrix)."""
    xp = jnp.pad(x, ((0, 0), (1, 1), (cin, cin)))
    return xp[:, 0::2, :], xp[:, 1::2, :]


def _banded_weights(w_oihw, wp, wo, stride=2):
    """Fold the kw/stride column gather into the GEMM weight:
    B[di, w_in*Cin + ci, wo*Cout + co] = W[co, ci, di, w_in - stride*wo] (else 0)."""
    cout, cin, kh, kw = w_oihw.shape
    w_in = jnp.arange(wp)[:, None]
    wo_i = jnp.arange(wo)[None, :]
    dj = w_in - stride * wo_i
    valid = (dj >= 0) & (dj < kw)
    djc = jnp.clip(dj, 0, kw - 1)
    w_perm = jnp.transpose(w_oihw, (2, 3, 1, 0))            # (kh, kw, cin, cout)
    b = w_perm[:, djc] * valid[None, :, :, None, None]      # (kh, wp, wo, cin, cout)
    b = jnp.transpose(b, (0, 1, 3, 2, 4))                   # (kh, wp, cin, wo, cout)
    return b.reshape(kh, wp * cin, wo * cout).astype(jnp.bfloat16)


# ---------------------------------------------------------------------------
# Layer wrappers
# ---------------------------------------------------------------------------
def conv_bias_lrelu(x, w_oihw, bias):
    n, hin, wc = x.shape
    cout, cin = w_oihw.shape[0], w_oihw.shape[1]
    win = wc // cin
    ho, wo = hin // 2, win // 2
    lout = wo * cout
    xe, xo = _pad_and_split(x, cin)
    kp = xe.shape[2]
    bmat = _banded_weights(w_oihw, win + 2, wo)
    bias_row = jnp.tile(bias.astype(jnp.float32), wo).reshape(1, lout)
    tn = _pick_tn(n)

    return pl.pallas_call(
        _conv_bias_lrelu_kernel,
        out_shape=jax.ShapeDtypeStruct((n, ho, lout), jnp.bfloat16),
        grid=(n // tn,),
        in_specs=[
            pl.BlockSpec((tn, ho + 1, kp), lambda i: (i, 0, 0)),
            pl.BlockSpec((tn, ho + 1, kp), lambda i: (i, 0, 0)),
            pl.BlockSpec((4, kp, lout), lambda i: (0, 0, 0)),
            pl.BlockSpec((1, lout), lambda i: (0, 0)),
        ],
        out_specs=pl.BlockSpec((tn, ho, lout), lambda i: (i, 0, 0)),
        compiler_params=pltpu.CompilerParams(dimension_semantics=("parallel",)),
    )(xe, xo, bmat, bias_row)


def conv_bn_lrelu(x, w_oihw, gamma, beta, eps=1e-5):
    n, hin, wc = x.shape
    cout, cin = w_oihw.shape[0], w_oihw.shape[1]
    win = wc // cin
    ho, wo = hin // 2, win // 2
    lout = wo * cout
    xe, xo = _pad_and_split(x, cin)
    kp = xe.shape[2]
    bmat = _banded_weights(w_oihw, win + 2, wo)
    tn = _pick_tn(n)
    grid_n = n // tn

    # Pass 1: fused conv + per-tile channel statistics ("parallel" axis).
    conv_out, stats = pl.pallas_call(
        _conv_stats_kernel,
        out_shape=(
            jax.ShapeDtypeStruct((n, ho, lout), jnp.bfloat16),
            jax.ShapeDtypeStruct((grid_n, 2, lout), jnp.float32),
        ),
        grid=(grid_n,),
        in_specs=[
            pl.BlockSpec((tn, ho + 1, kp), lambda i: (i, 0, 0)),
            pl.BlockSpec((tn, ho + 1, kp), lambda i: (i, 0, 0)),
            pl.BlockSpec((4, kp, lout), lambda i: (0, 0, 0)),
        ],
        out_specs=(
            pl.BlockSpec((tn, ho, lout), lambda i: (i, 0, 0)),
            pl.BlockSpec((1, 2, lout), lambda i: (i, 0, 0)),
        ),
        compiler_params=pltpu.CompilerParams(dimension_semantics=("parallel",)),
    )(xe, xo, bmat)

    # Tiny per-channel finalize in glue (train-mode nn.BatchNorm2d batch stats,
    # biased variance clamped >= 0 against E[x^2]-E[x]^2 cancellation).
    m = jnp.float32(n * ho * wo)
    ch_sum = stats[:, 0, :].sum(axis=0).reshape(wo, cout).sum(axis=0)
    ch_ssq = stats[:, 1, :].sum(axis=0).reshape(wo, cout).sum(axis=0)
    mean = ch_sum / m
    var = jnp.maximum(ch_ssq / m - mean * mean, 0.0)
    scale_c = gamma.astype(jnp.float32) * jax.lax.rsqrt(var + eps)
    shift_c = beta.astype(jnp.float32) - mean * scale_c
    scale = jnp.tile(scale_c, wo).reshape(1, lout)
    shift = jnp.tile(shift_c, wo).reshape(1, lout)

    # Pass 2: tiled affine + LeakyReLU over the bf16 intermediate.
    return pl.pallas_call(
        _affine_lrelu_kernel,
        out_shape=jax.ShapeDtypeStruct((n, ho, lout), jnp.bfloat16),
        grid=(grid_n,),
        in_specs=[
            pl.BlockSpec((tn, ho, lout), lambda i: (i, 0, 0)),
            pl.BlockSpec((1, lout), lambda i: (0, 0)),
            pl.BlockSpec((1, lout), lambda i: (0, 0)),
        ],
        out_specs=pl.BlockSpec((tn, ho, lout), lambda i: (i, 0, 0)),
        compiler_params=pltpu.CompilerParams(dimension_semantics=("parallel",)),
    )(conv_out, scale, shift)


def conv_head_sigmoid(x, w_oihw, bias):
    # x: (N, 4, 4*Cin) lane-packed 4x4 map; Conv(4x4, s=2, p=0) -> (N, 1).
    n, h, wc = x.shape
    k = h * wc
    x2 = x.reshape(n, k)
    # w[0, ci, di, dj] arranged to match the flattened layout index di*wc + dj*Cin + ci.
    wh = jnp.transpose(w_oihw[0], (1, 2, 0)).reshape(1, k).astype(jnp.bfloat16)
    tm = _head_tile(n)

    return pl.pallas_call(
        _head_sigmoid_kernel,
        out_shape=jax.ShapeDtypeStruct((n, 1), jnp.float32),
        grid=(n // tm,),
        in_specs=[
            pl.BlockSpec((tm, k), lambda i: (i, 0)),
            pl.BlockSpec((1, k), lambda i: (0, 0)),
            pl.BlockSpec(memory_space=pltpu.MemorySpace.SMEM),
        ],
        out_specs=pl.BlockSpec((tm, 1), lambda i: (i, 0)),
        compiler_params=pltpu.CompilerParams(dimension_semantics=("parallel",)),
    )(x2, wh, bias.reshape(1, 1).astype(jnp.float32))


# ---------------------------------------------------------------------------
# Discriminator forward
# ---------------------------------------------------------------------------
def discriminator_forward(params, X_nchw, labels, img_size):
    # Embedding lookup + channel concat (glue), then lane-packed NHWC layout.
    emb = params["embed"][labels].reshape(-1, 1, img_size, img_size)
    X = jnp.concatenate([X_nchw, emb], axis=1)                     # (N, Ci+1, H, W)
    N, C, H, W = X.shape
    x = jnp.transpose(X, (0, 2, 3, 1)).reshape(N, H, W * C).astype(jnp.bfloat16)

    # Conv(ci+1 -> fd) + bias + LeakyReLU
    x = conv_bias_lrelu(x, params["w1"], params["b1"])
    # _block x3: Conv(no bias) + BatchNorm(train-mode batch stats) + LeakyReLU
    x = conv_bn_lrelu(x, params["w2"], params["g2"], params["be2"])
    x = conv_bn_lrelu(x, params["w3"], params["g3"], params["be3"])
    x = conv_bn_lrelu(x, params["w4"], params["g4"], params["be4"])
    # Conv(8fd -> 1, 4, 2, 0) + bias + Sigmoid
    y = conv_head_sigmoid(x, params["w5"], params["b5"])           # (N, 1)

    return y.reshape(N, 1, 1, 1)


# ---------------------------------------------------------------------------
# Pure-JAX f32 reference (mirrors the PyTorch module) for a correctness check
# ---------------------------------------------------------------------------
def reference_forward(params, X_nchw, labels, img_size, eps=1e-5):
    emb = params["embed"][labels].reshape(-1, 1, img_size, img_size)
    x = jnp.concatenate([X_nchw, emb], axis=1)

    def conv(x, w, stride, pad):
        return jax.lax.conv_general_dilated(
            x, w, (stride, stride), [(pad, pad), (pad, pad)],
            dimension_numbers=("NCHW", "OIHW", "NCHW"))

    def lrelu(v):
        return jnp.where(v >= 0, v, 0.2 * v)

    def bn(v, g, b):
        mean = v.mean(axis=(0, 2, 3), keepdims=True)
        var = v.var(axis=(0, 2, 3), keepdims=True)  # biased, like torch train mode
        vn = (v - mean) * jax.lax.rsqrt(var + eps)
        return g.reshape(1, -1, 1, 1) * vn + b.reshape(1, -1, 1, 1)

    x = lrelu(conv(x, params["w1"], 2, 1) + params["b1"].reshape(1, -1, 1, 1))
    x = lrelu(bn(conv(x, params["w2"], 2, 1), params["g2"], params["be2"]))
    x = lrelu(bn(conv(x, params["w3"], 2, 1), params["g3"], params["be3"]))
    x = lrelu(bn(conv(x, params["w4"], 2, 1), params["g4"], params["be4"]))
    x = conv(x, params["w5"], 2, 0) + params["b5"].reshape(1, -1, 1, 1)
    return jax.nn.sigmoid(x)


def init_params(key, channels_img, features_d, num_classes, img_size):
    ks = jax.random.split(key, 6)
    fd, ci, s = features_d, channels_img, 0.05
    return {
        "embed": jax.random.normal(ks[0], (num_classes, img_size * img_size), jnp.float32),
        "w1": s * jax.random.normal(ks[1], (fd, ci + 1, 4, 4), jnp.float32),
        "b1": jnp.zeros((fd,), jnp.float32),
        "w2": s * jax.random.normal(ks[2], (2 * fd, fd, 4, 4), jnp.float32),
        "g2": jnp.ones((2 * fd,), jnp.float32),
        "be2": jnp.zeros((2 * fd,), jnp.float32),
        "w3": s * jax.random.normal(ks[3], (4 * fd, 2 * fd, 4, 4), jnp.float32),
        "g3": jnp.ones((4 * fd,), jnp.float32),
        "be3": jnp.zeros((4 * fd,), jnp.float32),
        "w4": s * jax.random.normal(ks[4], (8 * fd, 4 * fd, 4, 4), jnp.float32),
        "g4": jnp.ones((8 * fd,), jnp.float32),
        "be4": jnp.zeros((8 * fd,), jnp.float32),
        "w5": s * jax.random.normal(ks[5], (1, 8 * fd, 4, 4), jnp.float32),
        "b5": jnp.zeros((1,), jnp.float32),
    }


if __name__ == "__main__":
    # img_size must be 64 so the five stride-2 convs reduce 64->32->16->8->4->1.
    batch, channels_img, features_d, num_classes, img_size = 2, 1, 8, 10, 64

    key = jax.random.PRNGKey(0)
    kx, kl, kp = jax.random.split(key, 3)
    X = jax.random.normal(kx, (batch, channels_img, img_size, img_size), jnp.float32)
    labels = jax.random.randint(kl, (batch,), 0, num_classes)
    params = init_params(kp, channels_img, features_d, num_classes, img_size)

    fwd = jax.jit(discriminator_forward, static_argnums=(3,))
    out = jax.block_until_ready(fwd(params, X, labels, img_size))

    assert out.shape == (batch, 1, 1, 1)
    assert bool(jnp.all(jnp.isfinite(out)))
    assert bool(jnp.all((out >= 0.0) & (out <= 1.0)))

    # Compare against the f32 reference (kernels run bf16 activations/weights).
    ref = jax.jit(reference_forward, static_argnums=(3,))(params, X, labels, img_size)
    max_err = float(jnp.max(jnp.abs(out - ref)))
    assert max_err < 1e-1, f"max |kernel - reference| = {max_err}"

    print("KERNEL_OK")
</pallas_src>

<mosaic_0001>
module attributes {stable_mosaic.version = 11 : i64} {
  func.func @_conv_bias_lrelu_kernel(%arg0: i32, %arg1: memref<2x33x132xbf16, #tpu.memory_space<vmem>>, %arg2: memref<2x33x132xbf16, #tpu.memory_space<vmem>>, %arg3: memref<4x132x256xbf16, #tpu.memory_space<vmem>>, %arg4: memref<1x256xf32, #tpu.memory_space<vmem>>, %arg5: memref<2x32x256xbf16, #tpu.memory_space<vmem>>) attributes {dimension_semantics = [#tpu.dimension_semantics<parallel>], iteration_bounds = array<i64: 1>, scalar_prefetch = 0 : i64, scratch_operands = 0 : i64, tpu.core_type = #tpu.core_type<tc>, window_params = [{transform_indices = @transform_0, window_bounds = array<i64: 2, 33, 132>}, {transform_indices = @transform_1, window_bounds = array<i64: 2, 33, 132>}, {pipeline_mode = #tpu.pipeline_mode<synchronous>, transform_indices = @transform_2, window_bounds = array<i64: 4, 132, 256>}, {pipeline_mode = #tpu.pipeline_mode<synchronous>, transform_indices = @transform_3, window_bounds = array<i64: 1, 256>}, {transform_indices = @transform_4, window_bounds = array<i64: 2, 32, 256>}]} {
    %c0 = arith.constant 0 : index
    %c0_0 = arith.constant 0 : index
    %0 = vector.load %arg4[%c0, %c0_0] : memref<1x256xf32, #tpu.memory_space<vmem>>, vector<1x256xf32>
    %c0_1 = arith.constant 0 : index
    %c0_2 = arith.constant 0 : index
    %c0_3 = arith.constant 0 : index
    %1 = vector.load %arg1[%c0_1, %c0_2, %c0_3] : memref<2x33x132xbf16, #tpu.memory_space<vmem>>, vector<1x33x132xbf16>
    %2 = vector.shape_cast %1 : vector<1x33x132xbf16> to vector<33x132xbf16>
    %c0_4 = arith.constant 0 : index
    %c0_5 = arith.constant 0 : index
    %c0_6 = arith.constant 0 : index
    %3 = vector.load %arg2[%c0_4, %c0_5, %c0_6] : memref<2x33x132xbf16, #tpu.memory_space<vmem>>, vector<1x33x132xbf16>
    %4 = vector.shape_cast %3 : vector<1x33x132xbf16> to vector<33x132xbf16>
    %5 = vector.extract_strided_slice %2 {offsets = [0, 0], sizes = [32, 132], strides = [1, 1]} : vector<33x132xbf16> to vector<32x132xbf16>
    %c0_7 = arith.constant 0 : index
    %c0_8 = arith.constant 0 : index
    %c0_9 = arith.constant 0 : index
    %6 = vector.load %arg3[%c0_7, %c0_8, %c0_9] : memref<4x132x256xbf16, #tpu.memory_space<vmem>>, vector<1x132x256xbf16>
    %7 = vector.shape_cast %6 : vector<1x132x256xbf16> to vector<132x256xbf16>
    %cst = arith.constant dense<0.000000e+00> : vector<32x256xf32>
    %8 = tpu.matmul %5, %7, %cst {dimension_numbers = #tpu.dot_dimension_numbers<[1], [0], [0], [1], [0, 0, 1, 1], [], []>} : vector<32x132xbf16>, vector<132x256xbf16>, vector<32x256xf32> -> vector<32x256xf32>
    %9 = vector.extract_strided_slice %4 {offsets = [0, 0], sizes = [32, 132], strides = [1, 1]} : vector<33x132xbf16> to vector<32x132xbf16>
    %c1 = arith.constant 1 : index
    %c0_10 = arith.constant 0 : index
    %c0_11 = arith.constant 0 : index
    %10 = vector.load %arg3[%c1, %c0_10, %c0_11] : memref<4x132x256xbf16, #tpu.memory_space<vmem>>, vector<1x132x256xbf16>
    %11 = vector.shape_cast %10 : vector<1x132x256xbf16> to vector<132x256xbf16>
    %cst_12 = arith.constant dense<0.000000e+00> : vector<32x256xf32>
    %12 = tpu.matmul %9, %11, %cst_12 {dimension_numbers = #tpu.dot_dimension_numbers<[1], [0], [0], [1], [0, 0, 1, 1], [], []>} : vector<32x132xbf16>, vector<132x256xbf16>, vector<32x256xf32> -> vector<32x256xf32>
    %13 = arith.addf %8, %12 : vector<32x256xf32>
    %14 = vector.extract_strided_slice %2 {offsets = [1, 0], sizes = [32, 132], strides = [1, 1]} : vector<33x132xbf16> to vector<32x132xbf16>
    %c2 = arith.constant 2 : index
    %c0_13 = arith.constant 0 : index
    %c0_14 = arith.constant 0 : index
    %15 = vector.load %arg3[%c2, %c0_13, %c0_14] : memref<4x132x256xbf16, #tpu.memory_space<vmem>>, vector<1x132x256xbf16>
    %16 = vector.shape_cast %15 : vector<1x132x256xbf16> to vector<132x256xbf16>
    %cst_15 = arith.constant dense<0.000000e+00> : vector<32x256xf32>
    %17 = tpu.matmul %14, %16, %cst_15 {dimension_numbers = #tpu.dot_dimension_numbers<[1], [0], [0], [1], [0, 0, 1, 1], [], []>} : vector<32x132xbf16>, vector<132x256xbf16>, vector<32x256xf32> -> vector<32x256xf32>
    %18 = arith.addf %13, %17 : vector<32x256xf32>
    %19 = vector.extract_strided_slice %4 {offsets = [1, 0], sizes = [32, 132], strides = [1, 1]} : vector<33x132xbf16> to vector<32x132xbf16>
    %c3 = arith.constant 3 : index
    %c0_16 = arith.constant 0 : index
    %c0_17 = arith.constant 0 : index
    %20 = vector.load %arg3[%c3, %c0_16, %c0_17] : memref<4x132x256xbf16, #tpu.memory_space<vmem>>, vector<1x132x256xbf16>
    %21 = vector.shape_cast %20 : vector<1x132x256xbf16> to vector<132x256xbf16>
    %cst_18 = arith.constant dense<0.000000e+00> : vector<32x256xf32>
    %22 = tpu.matmul %19, %21, %cst_18 {dimension_numbers = #tpu.dot_dimension_numbers<[1], [0], [0], [1], [0, 0, 1, 1], [], []>} : vector<32x132xbf16>, vector<132x256xbf16>, vector<32x256xf32> -> vector<32x256xf32>
    %23 = arith.addf %18, %22 : vector<32x256xf32>
    %24 = vector.broadcast %0 : vector<1x256xf32> to vector<32x256xf32>
    %25 = arith.addf %23, %24 : vector<32x256xf32>
    %cst_19 = arith.constant 0.000000e+00 : f32
    %26 = vector.broadcast %cst_19 : f32 to vector<32x256xf32>
    %27 = arith.cmpf oge, %25, %26 : vector<32x256xf32>
    %cst_20 = arith.constant 2.000000e-01 : f32
    %28 = vector.broadcast %cst_20 : f32 to vector<32x256xf32>
    %29 = arith.mulf %28, %25 : vector<32x256xf32>
    %30 = arith.select %27, %25, %29 : vector<32x256xi1>, vector<32x256xf32>
    %31 = arith.truncf %30 : vector<32x256xf32> to vector<32x256xbf16>
    %c0_21 = arith.constant 0 : index
    %c0_22 = arith.constant 0 : index
    %c0_23 = arith.constant 0 : index
    %32 = vector.load %arg5[%c0_21, %c0_22, %c0_23] : memref<2x32x256xbf16, #tpu.memory_space<vmem>>, vector<1x32x256xbf16>
    %33 = vector.shape_cast %32 : vector<1x32x256xbf16> to vector<32x256xbf16>
    %34 = vector.shape_cast %31 : vector<32x256xbf16> to vector<1x32x256xbf16>
    tpu.vector_store %arg5[%c0_21, %c0_22, %c0_23], %34 {strides = array<i32>} : memref<2x32x256xbf16, #tpu.memory_space<vmem>>, vector<1x32x256xbf16>,
    %c1_24 = arith.constant 1 : index
    %c0_25 = arith.constant 0 : index
    %c0_26 = arith.constant 0 : index
    %35 = vector.load %arg1[%c1_24, %c0_25, %c0_26] : memref<2x33x132xbf16, #tpu.memory_space<vmem>>, vector<1x33x132xbf16>
    %36 = vector.shape_cast %35 : vector<1x33x132xbf16> to vector<33x132xbf16>
    %c1_27 = arith.constant 1 : index
    %c0_28 = arith.constant 0 : index
    %c0_29 = arith.constant 0 : index
    %37 = vector.load %arg2[%c1_27, %c0_28, %c0_29] : memref<2x33x132xbf16, #tpu.memory_space<vmem>>, vector<1x33x132xbf16>
    %38 = vector.shape_cast %37 : vector<1x33x132xbf16> to vector<33x132xbf16>
    %39 = vector.extract_strided_slice %36 {offsets = [0, 0], sizes = [32, 132], strides = [1, 1]} : vector<33x132xbf16> to vector<32x132xbf16>
    %c0_30 = arith.constant 0 : index
    %c0_31 = arith.constant 0 : index
    %c0_32 = arith.constant 0 : index
    %40 = vector.load %arg3[%c0_30, %c0_31, %c0_32] : memref<4x132x256xbf16, #tpu.memory_space<vmem>>, vector<1x132x256xbf16>
    %41 = vector.shape_cast %40 : vector<1x132x256xbf16> to vector<132x256xbf16>
    %cst_33 = arith.constant dense<0.000000e+00> : vector<32x256xf32>
    %42 = tpu.matmul %39, %41, %cst_33 {dimension_numbers = #tpu.dot_dimension_numbers<[1], [0], [0], [1], [0, 0, 1, 1], [], []>} : vector<32x132xbf16>, vector<132x256xbf16>, vector<32x256xf32> -> vector<32x256xf32>
    %43 = vector.extract_strided_slice %38 {offsets = [0, 0], sizes = [32, 132], strides = [1, 1]} : vector<33x132xbf16> to vector<32x132xbf16>
    %c1_34 = arith.constant 1 : index
    %c0_35 = arith.constant 0 : index
    %c0_36 = arith.constant 0 : index
    %44 = vector.load %arg3[%c1_34, %c0_35, %c0_36] : memref<4x132x256xbf16, #tpu.memory_space<vmem>>, vector<1x132x256xbf16>
    %45 = vector.shape_cast %44 : vector<1x132x256xbf16> to vector<132x256xbf16>
    %cst_37 = arith.constant dense<0.000000e+00> : vector<32x256xf32>
    %46 = tpu.matmul %43, %45, %cst_37 {dimension_numbers = #tpu.dot_dimension_numbers<[1], [0], [0], [1], [0, 0, 1, 1], [], []>} : vector<32x132xbf16>, vector<132x256xbf16>, vector<32x256xf32> -> vector<32x256xf32>
    %47 = arith.addf %42, %46 : vector<32x256xf32>
    %48 = vector.extract_strided_slice %36 {offsets = [1, 0], sizes = [32, 132], strides = [1, 1]} : vector<33x132xbf16> to vector<32x132xbf16>
    %c2_38 = arith.constant 2 : index
    %c0_39 = arith.constant 0 : index
    %c0_40 = arith.constant 0 : index
    %49 = vector.load %arg3[%c2_38, %c0_39, %c0_40] : memref<4x132x256xbf16, #tpu.memory_space<vmem>>, vector<1x132x256xbf16>
    %50 = vector.shape_cast %49 : vector<1x132x256xbf16> to vector<132x256xbf16>
    %cst_41 = arith.constant dense<0.000000e+00> : vector<32x256xf32>
    %51 = tpu.matmul %48, %50, %cst_41 {dimension_numbers = #tpu.dot_dimension_numbers<[1], [0], [0], [1], [0, 0, 1, 1], [], []>} : vector<32x132xbf16>, vector<132x256xbf16>, vector<32x256xf32> -> vector<32x256xf32>
    %52 = arith.addf %47, %51 : vector<32x256xf32>
    %53 = vector.extract_strided_slice %38 {offsets = [1, 0], sizes = [32, 132], strides = [1, 1]} : vector<33x132xbf16> to vector<32x132xbf16>
    %c3_42 = arith.constant 3 : index
    %c0_43 = arith.constant 0 : index
    %c0_44 = arith.constant 0 : index
    %54 = vector.load %arg3[%c3_42, %c0_43, %c0_44] : memref<4x132x256xbf16, #tpu.memory_space<vmem>>, vector<1x132x256xbf16>
    %55 = vector.shape_cast %54 : vector<1x132x256xbf16> to vector<132x256xbf16>
    %cst_45 = arith.constant dense<0.000000e+00> : vector<32x256xf32>
    %56 = tpu.matmul %53, %55, %cst_45 {dimension_numbers = #tpu.dot_dimension_numbers<[1], [0], [0], [1], [0, 0, 1, 1], [], []>} : vector<32x132xbf16>, vector<132x256xbf16>, vector<32x256xf32> -> vector<32x256xf32>
    %57 = arith.addf %52, %56 : vector<32x256xf32>
    %58 = vector.broadcast %0 : vector<1x256xf32> to vector<32x256xf32>
    %59 = arith.addf %57, %58 : vector<32x256xf32>
    %cst_46 = arith.constant 0.000000e+00 : f32
    %60 = vector.broadcast %cst_46 : f32 to vector<32x256xf32>
    %61 = arith.cmpf oge, %59, %60 : vector<32x256xf32>
    %cst_47 = arith.constant 2.000000e-01 : f32
    %62 = vector.broadcast %cst_47 : f32 to vector<32x256xf32>
    %63 = arith.mulf %62, %59 : vector<32x256xf32>
    %64 = arith.select %61, %59, %63 : vector<32x256xi1>, vector<32x256xf32>
    %65 = arith.truncf %64 : vector<32x256xf32> to vector<32x256xbf16>
    %c1_48 = arith.constant 1 : index
    %c0_49 = arith.constant 0 : index
    %c0_50 = arith.constant 0 : index
    %66 = vector.load %arg5[%c1_48, %c0_49, %c0_50] : memref<2x32x256xbf16, #tpu.memory_space<vmem>>, vector<1x32x256xbf16>
    %67 = vector.shape_cast %66 : vector<1x32x256xbf16> to vector<32x256xbf16>
    %68 = vector.shape_cast %65 : vector<32x256xbf16> to vector<1x32x256xbf16>
    tpu.vector_store %arg5[%c1_48, %c0_49, %c0_50], %68 {strides = array<i32>} : memref<2x32x256xbf16, #tpu.memory_space<vmem>>, vector<1x32x256xbf16>,
    return
  }
  func.func @transform_0(%arg0: i32) -> (i32, i32, i32) {
    %c0_i32 = arith.constant 0 : i32
    %c0_i32_0 = arith.constant 0 : i32
    %c0_i32_1 = arith.constant 0 : i32
    return %arg0, %c0_i32, %c0_i32_0 : i32, i32, i32
  }
  func.func @transform_1(%arg0: i32) -> (i32, i32, i32) {
    %c0_i32 = arith.constant 0 : i32
    %c0_i32_0 = arith.constant 0 : i32
    %c0_i32_1 = arith.constant 0 : i32
    return %arg0, %c0_i32, %c0_i32_0 : i32, i32, i32
  }
  func.func @transform_2(%arg0: i32) -> (i32, i32, i32) {
    %c0_i32 = arith.constant 0 : i32
    %c0_i32_0 = arith.constant 0 : i32
    %c0_i32_1 = arith.constant 0 : i32
    %c0_i32_2 = arith.constant 0 : i32
    return %c0_i32, %c0_i32_0, %c0_i32_1 : i32, i32, i32
  }
  func.func @transform_3(%arg0: i32) -> (i32, i32) {
    %c0_i32 = arith.constant 0 : i32
    %c0_i32_0 = arith.constant 0 : i32
    %c0_i32_1 = arith.constant 0 : i32
    return %c0_i32, %c0_i32_0 : i32, i32
  }
  func.func @transform_4(%arg0: i32) -> (i32, i32, i32) {
    %c0_i32 = arith.constant 0 : i32
    %c0_i32_0 = arith.constant 0 : i32
    %c0_i32_1 = arith.constant 0 : i32
    return %arg0, %c0_i32, %c0_i32_0 : i32, i32, i32
  }
}

module attributes {stable_mosaic.version = 11 : i64} {
  func.func @_conv_stats_kernel(%arg0: i32, %arg1: memref<2x17x272xbf16, #tpu.memory_space<vmem>>, %arg2: memref<2x17x272xbf16, #tpu.memory_space<vmem>>, %arg3: memref<4x272x256xbf16, #tpu.memory_space<vmem>>, %arg4: memref<2x16x256xbf16, #tpu.memory_space<vmem>>, %arg5: memref<1x2x256xf32, #tpu.memory_space<vmem>>) attributes {dimension_semantics = [#tpu.dimension_semantics<parallel>], iteration_bounds = array<i64: 1>, scalar_prefetch = 0 : i64, scratch_operands = 0 : i64, tpu.core_type = #tpu.core_type<tc>, window_params = [{transform_indices = @transform_0, window_bounds = array<i64: 2, 17, 272>}, {transform_indices = @transform_1, window_bounds = array<i64: 2, 17, 272>}, {pipeline_mode = #tpu.pipeline_mode<synchronous>, transform_indices = @transform_2, window_bounds = array<i64: 4, 272, 256>}, {transform_indices = @transform_3, window_bounds = array<i64: 2, 16, 256>}, {transform_indices = @transform_4, window_bounds = array<i64: 1, 2, 256>}]} {
    %cst = arith.constant 0.000000e+00 : f32
    %0 = vector.broadcast %cst : f32 to vector<1x256xf32>
    %cst_0 = arith.constant 0.000000e+00 : f32
    %1 = vector.broadcast %cst_0 : f32 to vector<1x256xf32>
    %c0 = arith.constant 0 : index
    %c0_1 = arith.constant 0 : index
    %c0_2 = arith.constant 0 : index
    %2 = vector.load %arg1[%c0, %c0_1, %c0_2] : memref<2x17x272xbf16, #tpu.memory_space<vmem>>, vector<1x17x272xbf16>
    %3 = vector.shape_cast %2 : vector<1x17x272xbf16> to vector<17x272xbf16>
    %c0_3 = arith.constant 0 : index
    %c0_4 = arith.constant 0 : index
    %c0_5 = arith.constant 0 : index
    %4 = vector.load %arg2[%c0_3, %c0_4, %c0_5] : memref<2x17x272xbf16, #tpu.memory_space<vmem>>, vector<1x17x272xbf16>
    %5 = vector.shape_cast %4 : vector<1x17x272xbf16> to vector<17x272xbf16>
    %6 = vector.extract_strided_slice %3 {offsets = [0, 0], sizes = [16, 272], strides = [1, 1]} : vector<17x272xbf16> to vector<16x272xbf16>
    %c0_6 = arith.constant 0 : index
    %c0_7 = arith.constant 0 : index
    %c0_8 = arith.constant 0 : index
    %7 = vector.load %arg3[%c0_6, %c0_7, %c0_8] : memref<4x272x256xbf16, #tpu.memory_space<vmem>>, vector<1x272x256xbf16>
    %8 = vector.shape_cast %7 : vector<1x272x256xbf16> to vector<272x256xbf16>
    %cst_9 = arith.constant dense<0.000000e+00> : vector<16x256xf32>
    %9 = tpu.matmul %6, %8, %cst_9 {dimension_numbers = #tpu.dot_dimension_numbers<[1], [0], [0], [1], [0, 0, 1, 1], [], []>} : vector<16x272xbf16>, vector<272x256xbf16>, vector<16x256xf32> -> vector<16x256xf32>
    %10 = vector.extract_strided_slice %5 {offsets = [0, 0], sizes = [16, 272], strides = [1, 1]} : vector<17x272xbf16> to vector<16x272xbf16>
    %c1 = arith.constant 1 : index
    %c0_10 = arith.constant 0 : index
    %c0_11 = arith.constant 0 : index
    %11 = vector.load %arg3[%c1, %c0_10, %c0_11] : memref<4x272x256xbf16, #tpu.memory_space<vmem>>, vector<1x272x256xbf16>
    %12 = vector.shape_cast %11 : vector<1x272x256xbf16> to vector<272x256xbf16>
    %cst_12 = arith.constant dense<0.000000e+00> : vector<16x256xf32>
    %13 = tpu.matmul %10, %12, %cst_12 {dimension_numbers = #tpu.dot_dimension_numbers<[1], [0], [0], [1], [0, 0, 1, 1], [], []>} : vector<16x272xbf16>, vector<272x256xbf16>, vector<16x256xf32> -> vector<16x256xf32>
    %14 = arith.addf %9, %13 : vector<16x256xf32>
    %15 = vector.extract_strided_slice %3 {offsets = [1, 0], sizes = [16, 272], strides = [1, 1]} : vector<17x272xbf16> to vector<16x272xbf16>
    %c2 = arith.constant 2 : index
    %c0_13 = arith.constant 0 : index
    %c0_14 = arith.constant 0 : index
    %16 = vector.load %arg3[%c2, %c0_13, %c0_14] : memref<4x272x256xbf16, #tpu.memory_space<vmem>>, vector<1x272x256xbf16>
    %17 = vector.shape_cast %16 : vector<1x272x256xbf16> to vector<272x256xbf16>
    %cst_15 = arith.constant dense<0.000000e+00> : vector<16x256xf32>
    %18 = tpu.matmul %15, %17, %cst_15 {dimension_numbers = #tpu.dot_dimension_numbers<[1], [0], [0], [1], [0, 0, 1, 1], [], []>} : vector<16x272xbf16>, vector<272x256xbf16>, vector<16x256xf32> -> vector<16x256xf32>
    %19 = arith.addf %14, %18 : vector<16x256xf32>
    %20 = vector.extract_strided_slice %5 {offsets = [1, 0], sizes = [16, 272], strides = [1, 1]} : vector<17x272xbf16> to vector<16x272xbf16>
    %c3 = arith.constant 3 : index
    %c0_16 = arith.constant 0 : index
    %c0_17 = arith.constant 0 : index
    %21 = vector.load %arg3[%c3, %c0_16, %c0_17] : memref<4x272x256xbf16, #tpu.memory_space<vmem>>, vector<1x272x256xbf16>
    %22 = vector.shape_cast %21 : vector<1x272x256xbf16> to vector<272x256xbf16>
    %cst_18 = arith.constant dense<0.000000e+00> : vector<16x256xf32>
    %23 = tpu.matmul %20, %22, %cst_18 {dimension_numbers = #tpu.dot_dimension_numbers<[1], [0], [0], [1], [0, 0, 1, 1], [], []>} : vector<16x272xbf16>, vector<272x256xbf16>, vector<16x256xf32> -> vector<16x256xf32>
    %24 = arith.addf %19, %23 : vector<16x256xf32>
    %25 = arith.truncf %24 : vector<16x256xf32> to vector<16x256xbf16>
    %c0_19 = arith.constant 0 : index
    %c0_20 = arith.constant 0 : index
    %c0_21 = arith.constant 0 : index
    %26 = vector.load %arg4[%c0_19, %c0_20, %c0_21] : memref<2x16x256xbf16, #tpu.memory_space<vmem>>, vector<1x16x256xbf16>
    %27 = vector.shape_cast %26 : vector<1x16x256xbf16> to vector<16x256xbf16>
    %28 = vector.shape_cast %25 : vector<16x256xbf16> to vector<1x16x256xbf16>
    tpu.vector_store %arg4[%c0_19, %c0_20, %c0_21], %28 {strides = array<i32>} : memref<2x16x256xbf16, #tpu.memory_space<vmem>>, vector<1x16x256xbf16>,
    %cst_22 = arith.constant dense<0.000000e+00> : vector<256xf32>
    %29 = vector.multi_reduction <add>, %24, %cst_22 [0] : vector<16x256xf32> to vector<256xf32>
    %30 = vector.shape_cast %29 : vector<256xf32> to vector<1x256xf32>
    %31 = arith.addf %0, %30 : vector<1x256xf32>
    %32 = arith.mulf %24, %24 : vector<16x256xf32>
    %cst_23 = arith.constant dense<0.000000e+00> : vector<256xf32>
    %33 = vector.multi_reduction <add>, %32, %cst_23 [0] : vector<16x256xf32> to vector<256xf32>
    %34 = vector.shape_cast %33 : vector<256xf32> to vector<1x256xf32>
    %35 = arith.addf %1, %34 : vector<1x256xf32>
    %c1_24 = arith.constant 1 : index
    %c0_25 = arith.constant 0 : index
    %c0_26 = arith.constant 0 : index
    %36 = vector.load %arg1[%c1_24, %c0_25, %c0_26] : memref<2x17x272xbf16, #tpu.memory_space<vmem>>, vector<1x17x272xbf16>
    %37 = vector.shape_cast %36 : vector<1x17x272xbf16> to vector<17x272xbf16>
    %c1_27 = arith.constant 1 : index
    %c0_28 = arith.constant 0 : index
    %c0_29 = arith.constant 0 : index
    %38 = vector.load %arg2[%c1_27, %c0_28, %c0_29] : memref<2x17x272xbf16, #tpu.memory_space<vmem>>, vector<1x17x272xbf16>
    %39 = vector.shape_cast %38 : vector<1x17x272xbf16> to vector<17x272xbf16>
    %40 = vector.extract_strided_slice %37 {offsets = [0, 0], sizes = [16, 272], strides = [1, 1]} : vector<17x272xbf16> to vector<16x272xbf16>
    %c0_30 = arith.constant 0 : index
    %c0_31 = arith.constant 0 : index
    %c0_32 = arith.constant 0 : index
    %41 = vector.load %arg3[%c0_30, %c0_31, %c0_32] : memref<4x272x256xbf16, #tpu.memory_space<vmem>>, vector<1x272x256xbf16>
    %42 = vector.shape_cast %41 : vector<1x272x256xbf16> to vector<272x256xbf16>
    %cst_33 = arith.constant dense<0.000000e+00> : vector<16x256xf32>
    %43 = tpu.matmul %40, %42, %cst_33 {dimension_numbers = #tpu.dot_dimension_numbers<[1], [0], [0], [1], [0, 0, 1, 1], [], []>} : vector<16x272xbf16>, vector<272x256xbf16>, vector<16x256xf32> -> vector<16x256xf32>
    %44 = vector.extract_strided_slice %39 {offsets = [0, 0], sizes = [16, 272], strides = [1, 1]} : vector<17x272xbf16> to vector<16x272xbf16>
    %c1_34 = arith.constant 1 : index
    %c0_35 = arith.constant 0 : index
    %c0_36 = arith.constant 0 : index
    %45 = vector.load %arg3[%c1_34, %c0_35, %c0_36] : memref<4x272x256xbf16, #tpu.memory_space<vmem>>, vector<1x272x256xbf16>
    %46 = vector.shape_cast %45 : vector<1x272x256xbf16> to vector<272x256xbf16>
    %cst_37 = arith.constant dense<0.000000e+00> : vector<16x256xf32>
    %47 = tpu.matmul %44, %46, %cst_37 {dimension_numbers = #tpu.dot_dimension_numbers<[1], [0], [0], [1], [0, 0, 1, 1], [], []>} : vector<16x272xbf16>, vector<272x256xbf16>, vector<16x256xf32> -> vector<16x256xf32>
    %48 = arith.addf %43, %47 : vector<16x256xf32>
    %49 = vector.extract_strided_slice %37 {offsets = [1, 0], sizes = [16, 272], strides = [1, 1]} : vector<17x272xbf16> to vector<16x272xbf16>
    %c2_38 = arith.constant 2 : index
    %c0_39 = arith.constant 0 : index
    %c0_40 = arith.constant 0 : index
    %50 = vector.load %arg3[%c2_38, %c0_39, %c0_40] : memref<4x272x256xbf16, #tpu.memory_space<vmem>>, vector<1x272x256xbf16>
    %51 = vector.shape_cast %50 : vector<1x272x256xbf16> to vector<272x256xbf16>
    %cst_41 = arith.constant dense<0.000000e+00> : vector<16x256xf32>
    %52 = tpu.matmul %49, %51, %cst_41 {dimension_numbers = #tpu.dot_dimension_numbers<[1], [0], [0], [1], [0, 0, 1, 1], [], []>} : vector<16x272xbf16>, vector<272x256xbf16>, vector<16x256xf32> -> vector<16x256xf32>
    %53 = arith.addf %48, %52 : vector<16x256xf32>
    %54 = vector.extract_strided_slice %39 {offsets = [1, 0], sizes = [16, 272], strides = [1, 1]} : vector<17x272xbf16> to vector<16x272xbf16>
    %c3_42 = arith.constant 3 : index
    %c0_43 = arith.constant 0 : index
    %c0_44 = arith.constant 0 : index
    %55 = vector.load %arg3[%c3_42, %c0_43, %c0_44] : memref<4x272x256xbf16, #tpu.memory_space<vmem>>, vector<1x272x256xbf16>
    %56 = vector.shape_cast %55 : vector<1x272x256xbf16> to vector<272x256xbf16>
    %cst_45 = arith.constant dense<0.000000e+00> : vector<16x256xf32>
    %57 = tpu.matmul %54, %56, %cst_45 {dimension_numbers = #tpu.dot_dimension_numbers<[1], [0], [0], [1], [0, 0, 1, 1], [], []>} : vector<16x272xbf16>, vector<272x256xbf16>, vector<16x256xf32> -> vector<16x256xf32>
    %58 = arith.addf %53, %57 : vector<16x256xf32>
    %59 = arith.truncf %58 : vector<16x256xf32> to vector<16x256xbf16>
    %c1_46 = arith.constant 1 : index
    %c0_47 = arith.constant 0 : index
    %c0_48 = arith.constant 0 : index
    %60 = vector.load %arg4[%c1_46, %c0_47, %c0_48] : memref<2x16x256xbf16, #tpu.memory_space<vmem>>, vector<1x16x256xbf16>
    %61 = vector.shape_cast %60 : vector<1x16x256xbf16> to vector<16x256xbf16>
    %62 = vector.shape_cast %59 : vector<16x256xbf16> to vector<1x16x256xbf16>
    tpu.vector_store %arg4[%c1_46, %c0_47, %c0_48], %62 {strides = array<i32>} : memref<2x16x256xbf16, #tpu.memory_space<vmem>>, vector<1x16x256xbf16>,
    %cst_49 = arith.constant dense<0.000000e+00> : vector<256xf32>
    %63 = vector.multi_reduction <add>, %58, %cst_49 [0] : vector<16x256xf32> to vector<256xf32>
    %64 = vector.shape_cast %63 : vector<256xf32> to vector<1x256xf32>
    %65 = arith.addf %31, %64 : vector<1x256xf32>
    %66 = arith.mulf %58, %58 : vector<16x256xf32>
    %cst_50 = arith.constant dense<0.000000e+00> : vector<256xf32>
    %67 = vector.multi_reduction <add>, %66, %cst_50 [0] : vector<16x256xf32> to vector<256xf32>
    %68 = vector.shape_cast %67 : vector<256xf32> to vector<1x256xf32>
    %69 = arith.addf %35, %68 : vector<1x256xf32>
    %70 = tpu.concatenate %65, %69 in 0 : vector<1x256xf32>, vector<1x256xf32> -> vector<2x256xf32>
    %71 = vector.shape_cast %70 : vector<2x256xf32> to vector<1x2x256xf32>
    %c0_51 = arith.constant 0 : index
    %c0_52 = arith.constant 0 : index
    %c0_53 = arith.constant 0 : index
    %72 = vector.load %arg5[%c0_51, %c0_52, %c0_53] : memref<1x2x256xf32, #tpu.memory_space<vmem>>, vector<1x2x256xf32>
    tpu.vector_store %arg5[%c0_51, %c0_52, %c0_53], %71 {strides = array<i32>} : memref<1x2x256xf32, #tpu.memory_space<vmem>>, vector<1x2x256xf32>,
    return
  }
  func.func @transform_0(%arg0: i32) -> (i32, i32, i32) {
    %c0_i32 = arith.constant 0 : i32
    %c0_i32_0 = arith.constant 0 : i32
    %c0_i32_1 = arith.constant 0 : i32
    return %arg0, %c0_i32, %c0_i32_0 : i32, i32, i32
  }
  func.func @transform_1(%arg0: i32) -> (i32, i32, i32) {
    %c0_i32 = arith.constant 0 : i32
    %c0_i32_0 = arith.constant 0 : i32
    %c0_i32_1 = arith.constant 0 : i32
    return %arg0, %c0_i32, %c0_i32_0 : i32, i32, i32
  }
  func.func @transform_2(%arg0: i32) -> (i32, i32, i32) {
    %c0_i32 = arith.constant 0 : i32
    %c0_i32_0 = arith.constant 0 : i32
    %c0_i32_1 = arith.constant 0 : i32
    %c0_i32_2 = arith.constant 0 : i32
    return %c0_i32, %c0_i32_0, %c0_i32_1 : i32, i32, i32
  }
  func.func @transform_3(%arg0: i32) -> (i32, i32, i32) {
    %c0_i32 = arith.constant 0 : i32
    %c0_i32_0 = arith.constant 0 : i32
    %c0_i32_1 = arith.constant 0 : i32
    return %arg0, %c0_i32, %c0_i32_0 : i32, i32, i32
  }
  func.func @transform_4(%arg0: i32) -> (i32, i32, i32) {
    %c0_i32 = arith.constant 0 : i32
    %c0_i32_0 = arith.constant 0 : i32
    %c0_i32_1 = arith.constant 0 : i32
    return %arg0, %c0_i32, %c0_i32_0 : i32, i32, i32
  }
}

module attributes {stable_mosaic.version = 11 : i64} {
  func.func @_affine_lrelu_kernel(%arg0: i32, %arg1: memref<2x16x256xbf16, #tpu.memory_space<vmem>>, %arg2: memref<1x256xf32, #tpu.memory_space<vmem>>, %arg3: memref<1x256xf32, #tpu.memory_space<vmem>>, %arg4: memref<2x16x256xbf16, #tpu.memory_space<vmem>>) attributes {dimension_semantics = [#tpu.dimension_semantics<parallel>], iteration_bounds = array<i64: 1>, scalar_prefetch = 0 : i64, scratch_operands = 0 : i64, tpu.core_type = #tpu.core_type<tc>, window_params = [{transform_indices = @transform_0, window_bounds = array<i64: 2, 16, 256>}, {pipeline_mode = #tpu.pipeline_mode<synchronous>, transform_indices = @transform_1, window_bounds = array<i64: 1, 256>}, {pipeline_mode = #tpu.pipeline_mode<synchronous>, transform_indices = @transform_2, window_bounds = array<i64: 1, 256>}, {transform_indices = @transform_3, window_bounds = array<i64: 2, 16, 256>}]} {
    %c0 = arith.constant 0 : index
    %c0_0 = arith.constant 0 : index
    %0 = vector.load %arg2[%c0, %c0_0] : memref<1x256xf32, #tpu.memory_space<vmem>>, vector<1x256xf32>
    %c0_1 = arith.constant 0 : index
    %c0_2 = arith.constant 0 : index
    %1 = vector.load %arg3[%c0_1, %c0_2] : memref<1x256xf32, #tpu.memory_space<vmem>>, vector<1x256xf32>
    %c0_3 = arith.constant 0 : index
    %c0_4 = arith.constant 0 : index
    %c0_5 = arith.constant 0 : index
    %2 = vector.load %arg1[%c0_3, %c0_4, %c0_5] : memref<2x16x256xbf16, #tpu.memory_space<vmem>>, vector<1x16x256xbf16>
    %3 = vector.shape_cast %2 : vector<1x16x256xbf16> to vector<16x256xbf16>
    %4 = arith.extf %3 : vector<16x256xbf16> to vector<16x256xf32>
    %5 = vector.broadcast %0 : vector<1x256xf32> to vector<16x256xf32>
    %6 = arith.mulf %4, %5 : vector<16x256xf32>
    %7 = vector.broadcast %1 : vector<1x256xf32> to vector<16x256xf32>
    %8 = arith.addf %6, %7 : vector<16x256xf32>
    %cst = arith.constant 0.000000e+00 : f32
    %9 = vector.broadcast %cst : f32 to vector<16x256xf32>
    %10 = arith.cmpf oge, %8, %9 : vector<16x256xf32>
    %cst_6 = arith.constant 2.000000e-01 : f32
    %11 = vector.broadcast %cst_6 : f32 to vector<16x256xf32>
    %12 = arith.mulf %11, %8 : vector<16x256xf32>
    %13 = arith.select %10, %8, %12 : vector<16x256xi1>, vector<16x256xf32>
    %14 = arith.truncf %13 : vector<16x256xf32> to vector<16x256xbf16>
    %c0_7 = arith.constant 0 : index
    %c0_8 = arith.constant 0 : index
    %c0_9 = arith.constant 0 : index
    %15 = vector.load %arg4[%c0_7, %c0_8, %c0_9] : memref<2x16x256xbf16, #tpu.memory_space<vmem>>, vector<1x16x256xbf16>
    %16 = vector.shape_cast %15 : vector<1x16x256xbf16> to vector<16x256xbf16>
    %17 = vector.shape_cast %14 : vector<16x256xbf16> to vector<1x16x256xbf16>
    tpu.vector_store %arg4[%c0_7, %c0_8, %c0_9], %17 {strides = array<i32>} : memref<2x16x256xbf16, #tpu.memory_space<vmem>>, vector<1x16x256xbf16>,
    %c1 = arith.constant 1 : index
    %c0_10 = arith.constant 0 : index
    %c0_11 = arith.constant 0 : index
    %18 = vector.load %arg1[%c1, %c0_10, %c0_11] : memref<2x16x256xbf16, #tpu.memory_space<vmem>>, vector<1x16x256xbf16>
    %19 = vector.shape_cast %18 : vector<1x16x256xbf16> to vector<16x256xbf16>
    %20 = arith.extf %19 : vector<16x256xbf16> to vector<16x256xf32>
    %21 = vector.broadcast %0 : vector<1x256xf32> to vector<16x256xf32>
    %22 = arith.mulf %20, %21 : vector<16x256xf32>
    %23 = vector.broadcast %1 : vector<1x256xf32> to vector<16x256xf32>
    %24 = arith.addf %22, %23 : vector<16x256xf32>
    %cst_12 = arith.constant 0.000000e+00 : f32
    %25 = vector.broadcast %cst_12 : f32 to vector<16x256xf32>
    %26 = arith.cmpf oge, %24, %25 : vector<16x256xf32>
    %cst_13 = arith.constant 2.000000e-01 : f32
    %27 = vector.broadcast %cst_13 : f32 to vector<16x256xf32>
    %28 = arith.mulf %27, %24 : vector<16x256xf32>
    %29 = arith.select %26, %24, %28 : vector<16x256xi1>, vector<16x256xf32>
    %30 = arith.truncf %29 : vector<16x256xf32> to vector<16x256xbf16>
    %c1_14 = arith.constant 1 : index
    %c0_15 = arith.constant 0 : index
    %c0_16 = arith.constant 0 : index
    %31 = vector.load %arg4[%c1_14, %c0_15, %c0_16] : memref<2x16x256xbf16, #tpu.memory_space<vmem>>, vector<1x16x256xbf16>
    %32 = vector.shape_cast %31 : vector<1x16x256xbf16> to vector<16x256xbf16>
    %33 = vector.shape_cast %30 : vector<16x256xbf16> to vector<1x16x256xbf16>
    tpu.vector_store %arg4[%c1_14, %c0_15, %c0_16], %33 {strides = array<i32>} : memref<2x16x256xbf16, #tpu.memory_space<vmem>>, vector<1x16x256xbf16>,
    return
  }
  func.func @transform_0(%arg0: i32) -> (i32, i32, i32) {
    %c0_i32 = arith.constant 0 : i32
    %c0_i32_0 = arith.constant 0 : i32
    %c0_i32_1 = arith.constant 0 : i32
    return %arg0, %c0_i32, %c0_i32_0 : i32, i32, i32
  }
  func.func @transform_1(%arg0: i32) -> (i32, i32) {
    %c0_i32 = arith.constant 0 : i32
    %c0_i32_0 = arith.constant 0 : i32
    %c0_i32_1 = arith.constant 0 : i32
    return %c0_i32, %c0_i32_0 : i32, i32
  }
  func.func @transform_2(%arg0: i32) -> (i32, i32) {
    %c0_i32 = arith.constant 0 : i32
    %c0_i32_0 = arith.constant 0 : i32
    %c0_i32_1 = arith.constant 0 : i32
    return %c0_i32, %c0_i32_0 : i32, i32
  }
  func.func @transform_3(%arg0: i32) -> (i32, i32, i32) {
    %c0_i32 = arith.constant 0 : i32
    %c0_i32_0 = arith.constant 0 : i32
    %c0_i32_1 = arith.constant 0 : i32
    return %arg0, %c0_i32, %c0_i32_0 : i32, i32, i32
  }
}

module attributes {stable_mosaic.version = 11 : i64} {
  func.func @_conv_stats_kernel(%arg0: i32, %arg1: memref<2x9x288xbf16, #tpu.memory_space<vmem>>, %arg2: memref<2x9x288xbf16, #tpu.memory_space<vmem>>, %arg3: memref<4x288x256xbf16, #tpu.memory_space<vmem>>, %arg4: memref<2x8x256xbf16, #tpu.memory_space<vmem>>, %arg5: memref<1x2x256xf32, #tpu.memory_space<vmem>>) attributes {dimension_semantics = [#tpu.dimension_semantics<parallel>], iteration_bounds = array<i64: 1>, scalar_prefetch = 0 : i64, scratch_operands = 0 : i64, tpu.core_type = #tpu.core_type<tc>, window_params = [{transform_indices = @transform_0, window_bounds = array<i64: 2, 9, 288>}, {transform_indices = @transform_1, window_bounds = array<i64: 2, 9, 288>}, {pipeline_mode = #tpu.pipeline_mode<synchronous>, transform_indices = @transform_2, window_bounds = array<i64: 4, 288, 256>}, {transform_indices = @transform_3, window_bounds = array<i64: 2, 8, 256>}, {transform_indices = @transform_4, window_bounds = array<i64: 1, 2, 256>}]} {
    %cst = arith.constant 0.000000e+00 : f32
    %0 = vector.broadcast %cst : f32 to vector<1x256xf32>
    %cst_0 = arith.constant 0.000000e+00 : f32
    %1 = vector.broadcast %cst_0 : f32 to vector<1x256xf32>
    %c0 = arith.constant 0 : index
    %c0_1 = arith.constant 0 : index
    %c0_2 = arith.constant 0 : index
    %2 = vector.load %arg1[%c0, %c0_1, %c0_2] : memref<2x9x288xbf16, #tpu.memory_space<vmem>>, vector<1x9x288xbf16>
    %3 = vector.shape_cast %2 : vector<1x9x288xbf16> to vector<9x288xbf16>
    %c0_3 = arith.constant 0 : index
    %c0_4 = arith.constant 0 : index
    %c0_5 = arith.constant 0 : index
    %4 = vector.load %arg2[%c0_3, %c0_4, %c0_5] : memref<2x9x288xbf16, #tpu.memory_space<vmem>>, vector<1x9x288xbf16>
    %5 = vector.shape_cast %4 : vector<1x9x288xbf16> to vector<9x288xbf16>
    %6 = vector.extract_strided_slice %3 {offsets = [0, 0], sizes = [8, 288], strides = [1, 1]} : vector<9x288xbf16> to vector<8x288xbf16>
    %c0_6 = arith.constant 0 : index
    %c0_7 = arith.constant 0 : index
    %c0_8 = arith.constant 0 : index
    %7 = vector.load %arg3[%c0_6, %c0_7, %c0_8] : memref<4x288x256xbf16, #tpu.memory_space<vmem>>, vector<1x288x256xbf16>
    %8 = vector.shape_cast %7 : vector<1x288x256xbf16> to vector<288x256xbf16>
    %cst_9 = arith.constant dense<0.000000e+00> : vector<8x256xf32>
    %9 = tpu.matmul %6, %8, %cst_9 {dimension_numbers = #tpu.dot_dimension_numbers<[1], [0], [0], [1], [0, 0, 1, 1], [], []>} : vector<8x288xbf16>, vector<288x256xbf16>, vector<8x256xf32> -> vector<8x256xf32>
    %10 = vector.extract_strided_slice %5 {offsets = [0, 0], sizes = [8, 288], strides = [1, 1]} : vector<9x288xbf16> to vector<8x288xbf16>
    %c1 = arith.constant 1 : index
    %c0_10 = arith.constant 0 : index
    %c0_11 = arith.constant 0 : index
    %11 = vector.load %arg3[%c1, %c0_10, %c0_11] : memref<4x288x256xbf16, #tpu.memory_space<vmem>>, vector<1x288x256xbf16>
    %12 = vector.shape_cast %11 : vector<1x288x256xbf16> to vector<288x256xbf16>
    %cst_12 = arith.constant dense<0.000000e+00> : vector<8x256xf32>
    %13 = tpu.matmul %10, %12, %cst_12 {dimension_numbers = #tpu.dot_dimension_numbers<[1], [0], [0], [1], [0, 0, 1, 1], [], []>} : vector<8x288xbf16>, vector<288x256xbf16>, vector<8x256xf32> -> vector<8x256xf32>
    %14 = arith.addf %9, %13 : vector<8x256xf32>
    %15 = vector.extract_strided_slice %3 {offsets = [1, 0], sizes = [8, 288], strides = [1, 1]} : vector<9x288xbf16> to vector<8x288xbf16>
    %c2 = arith.constant 2 : index
    %c0_13 = arith.constant 0 : index
    %c0_14 = arith.constant 0 : index
    %16 = vector.load %arg3[%c2, %c0_13, %c0_14] : memref<4x288x256xbf16, #tpu.memory_space<vmem>>, vector<1x288x256xbf16>
    %17 = vector.shape_cast %16 : vector<1x288x256xbf16> to vector<288x256xbf16>
    %cst_15 = arith.constant dense<0.000000e+00> : vector<8x256xf32>
    %18 = tpu.matmul %15, %17, %cst_15 {dimension_numbers = #tpu.dot_dimension_numbers<[1], [0], [0], [1], [0, 0, 1, 1], [], []>} : vector<8x288xbf16>, vector<288x256xbf16>, vector<8x256xf32> -> vector<8x256xf32>
    %19 = arith.addf %14, %18 : vector<8x256xf32>
    %20 = vector.extract_strided_slice %5 {offsets = [1, 0], sizes = [8, 288], strides = [1, 1]} : vector<9x288xbf16> to vector<8x288xbf16>
    %c3 = arith.constant 3 : index
    %c0_16 = arith.constant 0 : index
    %c0_17 = arith.constant 0 : index
    %21 = vector.load %arg3[%c3, %c0_16, %c0_17] : memref<4x288x256xbf16, #tpu.memory_space<vmem>>, vector<1x288x256xbf16>
    %22 = vector.shape_cast %21 : vector<1x288x256xbf16> to vector<288x256xbf16>
    %cst_18 = arith.constant dense<0.000000e+00> : vector<8x256xf32>
    %23 = tpu.matmul %20, %22, %cst_18 {dimension_numbers = #tpu.dot_dimension_numbers<[1], [0], [0], [1], [0, 0, 1, 1], [], []>} : vector<8x288xbf16>, vector<288x256xbf16>, vector<8x256xf32> -> vector<8x256xf32>
    %24 = arith.addf %19, %23 : vector<8x256xf32>
    %25 = arith.truncf %24 : vector<8x256xf32> to vector<8x256xbf16>
    %c0_19 = arith.constant 0 : index
    %c0_20 = arith.constant 0 : index
    %c0_21 = arith.constant 0 : index
    %26 = vector.load %arg4[%c0_19, %c0_20, %c0_21] : memref<2x8x256xbf16, #tpu.memory_space<vmem>>, vector<1x8x256xbf16>
    %27 = vector.shape_cast %26 : vector<1x8x256xbf16> to vector<8x256xbf16>
    %28 = vector.shape_cast %25 : vector<8x256xbf16> to vector<1x8x256xbf16>
    tpu.vector_store %arg4[%c0_19, %c0_20, %c0_21], %28 {strides = array<i32>} : memref<2x8x256xbf16, #tpu.memory_space<vmem>>, vector<1x8x256xbf16>,
    %cst_22 = arith.constant dense<0.000000e+00> : vector<256xf32>
    %29 = vector.multi_reduction <add>, %24, %cst_22 [0] : vector<8x256xf32> to vector<256xf32>
    %30 = vector.shape_cast %29 : vector<256xf32> to vector<1x256xf32>
    %31 = arith.addf %0, %30 : vector<1x256xf32>
    %32 = arith.mulf %24, %24 : vector<8x256xf32>
    %cst_23 = arith.constant dense<0.000000e+00> : vector<256xf32>
    %33 = vector.multi_reduction <add>, %32, %cst_23 [0] : vector<8x256xf32> to vector<256xf32>
    %34 = vector.shape_cast %33 : vector<256xf32> to vector<1x256xf32>
    %35 = arith.addf %1, %34 : vector<1x256xf32>
    %c1_24 = arith.constant 1 : index
    %c0_25 = arith.constant 0 : index
    %c0_26 = arith.constant 0 : index
    %36 = vector.load %arg1[%c1_24, %c0_25, %c0_26] : memref<2x9x288xbf16, #tpu.memory_space<vmem>>, vector<1x9x288xbf16>
    %37 = vector.shape_cast %36 : vector<1x9x288xbf16> to vector<9x288xbf16>
    %c1_27 = arith.constant 1 : index
    %c0_28 = arith.constant 0 : index
    %c0_29 = arith.constant 0 : index
    %38 = vector.load %arg2[%c1_27, %c0_28, %c0_29] : memref<2x9x288xbf16, #tpu.memory_space<vmem>>, vector<1x9x288xbf16>
    %39 = vector.shape_cast %38 : vector<1x9x288xbf16> to vector<9x288xbf16>
    %40 = vector.extract_strided_slice %37 {offsets = [0, 0], sizes = [8, 288], strides = [1, 1]} : vector<9x288xbf16> to vector<8x288xbf16>
    %c0_30 = arith.constant 0 : index
    %c0_31 = arith.constant 0 : index
    %c0_32 = arith.constant 0 : index
    %41 = vector.load %arg3[%c0_30, %c0_31, %c0_32] : memref<4x288x256xbf16, #tpu.memory_space<vmem>>, vector<1x288x256xbf16>
    %42 = vector.shape_cast %41 : vector<1x288x256xbf16> to vector<288x256xbf16>
    %cst_33 = arith.constant dense<0.000000e+00> : vector<8x256xf32>
    %43 = tpu.matmul %40, %42, %cst_33 {dimension_numbers = #tpu.dot_dimension_numbers<[1], [0], [0], [1], [0, 0, 1, 1], [], []>} : vector<8x288xbf16>, vector<288x256xbf16>, vector<8x256xf32> -> vector<8x256xf32>
    %44 = vector.extract_strided_slice %39 {offsets = [0, 0], sizes = [8, 288], strides = [1, 1]} : vector<9x288xbf16> to vector<8x288xbf16>
    %c1_34 = arith.constant 1 : index
    %c0_35 = arith.constant 0 : index
    %c0_36 = arith.constant 0 : index
    %45 = vector.load %arg3[%c1_34, %c0_35, %c0_36] : memref<4x288x256xbf16, #tpu.memory_space<vmem>>, vector<1x288x256xbf16>
    %46 = vector.shape_cast %45 : vector<1x288x256xbf16> to vector<288x256xbf16>
    %cst_37 = arith.constant dense<0.000000e+00> : vector<8x256xf32>
    %47 = tpu.matmul %44, %46, %cst_37 {dimension_numbers = #tpu.dot_dimension_numbers<[1], [0], [0], [1], [0, 0, 1, 1], [], []>} : vector<8x288xbf16>, vector<288x256xbf16>, vector<8x256xf32> -> vector<8x256xf32>
    %48 = arith.addf %43, %47 : vector<8x256xf32>
    %49 = vector.extract_strided_slice %37 {offsets = [1, 0], sizes = [8, 288], strides = [1, 1]} : vector<9x288xbf16> to vector<8x288xbf16>
    %c2_38 = arith.constant 2 : index
    %c0_39 = arith.constant 0 : index
    %c0_40 = arith.constant 0 : index
    %50 = vector.load %arg3[%c2_38, %c0_39, %c0_40] : memref<4x288x256xbf16, #tpu.memory_space<vmem>>, vector<1x288x256xbf16>
    %51 = vector.shape_cast %50 : vector<1x288x256xbf16> to vector<288x256xbf16>
    %cst_41 = arith.constant dense<0.000000e+00> : vector<8x256xf32>
    %52 = tpu.matmul %49, %51, %cst_41 {dimension_numbers = #tpu.dot_dimension_numbers<[1], [0], [0], [1], [0, 0, 1, 1], [], []>} : vector<8x288xbf16>, vector<288x256xbf16>, vector<8x256xf32> -> vector<8x256xf32>
    %53 = arith.addf %48, %52 : vector<8x256xf32>
    %54 = vector.extract_strided_slice %39 {offsets = [1, 0], sizes = [8, 288], strides = [1, 1]} : vector<9x288xbf16> to vector<8x288xbf16>
    %c3_42 = arith.constant 3 : index
    %c0_43 = arith.constant 0 : index
    %c0_44 = arith.constant 0 : index
    %55 = vector.load %arg3[%c3_42, %c0_43, %c0_44] : memref<4x288x256xbf16, #tpu.memory_space<vmem>>, vector<1x288x256xbf16>
    %56 = vector.shape_cast %55 : vector<1x288x256xbf16> to vector<288x256xbf16>
    %cst_45 = arith.constant dense<0.000000e+00> : vector<8x256xf32>
    %57 = tpu.matmul %54, %56, %cst_45 {dimension_numbers = #tpu.dot_dimension_numbers<[1], [0], [0], [1], [0, 0, 1, 1], [], []>} : vector<8x288xbf16>, vector<288x256xbf16>, vector<8x256xf32> -> vector<8x256xf32>
    %58 = arith.addf %53, %57 : vector<8x256xf32>
    %59 = arith.truncf %58 : vector<8x256xf32> to vector<8x256xbf16>
    %c1_46 = arith.constant 1 : index
    %c0_47 = arith.constant 0 : index
    %c0_48 = arith.constant 0 : index
    %60 = vector.load %arg4[%c1_46, %c0_47, %c0_48] : memref<2x8x256xbf16, #tpu.memory_space<vmem>>, vector<1x8x256xbf16>
    %61 = vector.shape_cast %60 : vector<1x8x256xbf16> to vector<8x256xbf16>
    %62 = vector.shape_cast %59 : vector<8x256xbf16> to vector<1x8x256xbf16>
    tpu.vector_store %arg4[%c1_46, %c0_47, %c0_48], %62 {strides = array<i32>} : memref<2x8x256xbf16, #tpu.memory_space<vmem>>, vector<1x8x256xbf16>,
    %cst_49 = arith.constant dense<0.000000e+00> : vector<256xf32>
    %63 = vector.multi_reduction <add>, %58, %cst_49 [0] : vector<8x256xf32> to vector<256xf32>
    %64 = vector.shape_cast %63 : vector<256xf32> to vector<1x256xf32>
    %65 = arith.addf %31, %64 : vector<1x256xf32>
    %66 = arith.mulf %58, %58 : vector<8x256xf32>
    %cst_50 = arith.constant dense<0.000000e+00> : vector<256xf32>
    %67 = vector.multi_reduction <add>, %66, %cst_50 [0] : vector<8x256xf32> to vector<256xf32>
    %68 = vector.shape_cast %67 : vector<256xf32> to vector<1x256xf32>
    %69 = arith.addf %35, %68 : vector<1x256xf32>
    %70 = tpu.concatenate %65, %69 in 0 : vector<1x256xf32>, vector<1x256xf32> -> vector<2x256xf32>
    %71 = vector.shape_cast %70 : vector<2x256xf32> to vector<1x2x256xf32>
    %c0_51 = arith.constant 0 : index
    %c0_52 = arith.constant 0 : index
    %c0_53 = arith.constant 0 : index
    %72 = vector.load %arg5[%c0_51, %c0_52, %c0_53] : memref<1x2x256xf32, #tpu.memory_space<vmem>>, vector<1x2x256xf32>
    tpu.vector_store %arg5[%c0_51, %c0_52, %c0_53], %71 {strides = array<i32>} : memref<1x2x256xf32, #tpu.memory_space<vmem>>, vector<1x2x256xf32>,
    return
  }
  func.func @transform_0(%arg0: i32) -> (i32, i32, i32) {
    %c0_i32 = arith.constant 0 : i32
    %c0_i32_0 = arith.constant 0 : i32
    %c0_i32_1 = arith.constant 0 : i32
    return %arg0, %c0_i32, %c0_i32_0 : i32, i32, i32
  }
  func.func @transform_1(%arg0: i32) -> (i32, i32, i32) {
    %c0_i32 = arith.constant 0 : i32
    %c0_i32_0 = arith.constant 0 : i32
    %c0_i32_1 = arith.constant 0 : i32
    return %arg0, %c0_i32, %c0_i32_0 : i32, i32, i32
  }
  func.func @transform_2(%arg0: i32) -> (i32, i32, i32) {
    %c0_i32 = arith.constant 0 : i32
    %c0_i32_0 = arith.constant 0 : i32
    %c0_i32_1 = arith.constant 0 : i32
    %c0_i32_2 = arith.constant 0 : i32
    return %c0_i32, %c0_i32_0, %c0_i32_1 : i32, i32, i32
  }
  func.func @transform_3(%arg0: i32) -> (i32, i32, i32) {
    %c0_i32 = arith.constant 0 : i32
    %c0_i32_0 = arith.constant 0 : i32
    %c0_i32_1 = arith.constant 0 : i32
    return %arg0, %c0_i32, %c0_i32_0 : i32, i32, i32
  }
  func.func @transform_4(%arg0: i32) -> (i32, i32, i32) {
    %c0_i32 = arith.constant 0 : i32
    %c0_i32_0 = arith.constant 0 : i32
    %c0_i32_1 = arith.constant 0 : i32
    return %arg0, %c0_i32, %c0_i32_0 : i32, i32, i32
  }
}

module attributes {stable_mosaic.version = 11 : i64} {
  func.func @_affine_lrelu_kernel(%arg0: i32, %arg1: memref<2x8x256xbf16, #tpu.memory_space<vmem>>, %arg2: memref<1x256xf32, #tpu.memory_space<vmem>>, %arg3: memref<1x256xf32, #tpu.memory_space<vmem>>, %arg4: memref<2x8x256xbf16, #tpu.memory_space<vmem>>) attributes {dimension_semantics = [#tpu.dimension_semantics<parallel>], iteration_bounds = array<i64: 1>, scalar_prefetch = 0 : i64, scratch_operands = 0 : i64, tpu.core_type = #tpu.core_type<tc>, window_params = [{transform_indices = @transform_0, window_bounds = array<i64: 2, 8, 256>}, {pipeline_mode = #tpu.pipeline_mode<synchronous>, transform_indices = @transform_1, window_bounds = array<i64: 1, 256>}, {pipeline_mode = #tpu.pipeline_mode<synchronous>, transform_indices = @transform_2, window_bounds = array<i64: 1, 256>}, {transform_indices = @transform_3, window_bounds = array<i64: 2, 8, 256>}]} {
    %c0 = arith.constant 0 : index
    %c0_0 = arith.constant 0 : index
    %0 = vector.load %arg2[%c0, %c0_0] : memref<1x256xf32, #tpu.memory_space<vmem>>, vector<1x256xf32>
    %c0_1 = arith.constant 0 : index
    %c0_2 = arith.constant 0 : index
    %1 = vector.load %arg3[%c0_1, %c0_2] : memref<1x256xf32, #tpu.memory_space<vmem>>, vector<1x256xf32>
    %c0_3 = arith.constant 0 : index
    %c0_4 = arith.constant 0 : index
    %c0_5 = arith.constant 0 : index
    %2 = vector.load %arg1[%c0_3, %c0_4, %c0_5] : memref<2x8x256xbf16, #tpu.memory_space<vmem>>, vector<1x8x256xbf16>
    %3 = vector.shape_cast %2 : vector<1x8x256xbf16> to vector<8x256xbf16>
    %4 = arith.extf %3 : vector<8x256xbf16> to vector<8x256xf32>
    %5 = vector.broadcast %0 : vector<1x256xf32> to vector<8x256xf32>
    %6 = arith.mulf %4, %5 : vector<8x256xf32>
    %7 = vector.broadcast %1 : vector<1x256xf32> to vector<8x256xf32>
    %8 = arith.addf %6, %7 : vector<8x256xf32>
    %cst = arith.constant 0.000000e+00 : f32
    %9 = vector.broadcast %cst : f32 to vector<8x256xf32>
    %10 = arith.cmpf oge, %8, %9 : vector<8x256xf32>
    %cst_6 = arith.constant 2.000000e-01 : f32
    %11 = vector.broadcast %cst_6 : f32 to vector<8x256xf32>
    %12 = arith.mulf %11, %8 : vector<8x256xf32>
    %13 = arith.select %10, %8, %12 : vector<8x256xi1>, vector<8x256xf32>
    %14 = arith.truncf %13 : vector<8x256xf32> to vector<8x256xbf16>
    %c0_7 = arith.constant 0 : index
    %c0_8 = arith.constant 0 : index
    %c0_9 = arith.constant 0 : index
    %15 = vector.load %arg4[%c0_7, %c0_8, %c0_9] : memref<2x8x256xbf16, #tpu.memory_space<vmem>>, vector<1x8x256xbf16>
    %16 = vector.shape_cast %15 : vector<1x8x256xbf16> to vector<8x256xbf16>
    %17 = vector.shape_cast %14 : vector<8x256xbf16> to vector<1x8x256xbf16>
    tpu.vector_store %arg4[%c0_7, %c0_8, %c0_9], %17 {strides = array<i32>} : memref<2x8x256xbf16, #tpu.memory_space<vmem>>, vector<1x8x256xbf16>,
    %c1 = arith.constant 1 : index
    %c0_10 = arith.constant 0 : index
    %c0_11 = arith.constant 0 : index
    %18 = vector.load %arg1[%c1, %c0_10, %c0_11] : memref<2x8x256xbf16, #tpu.memory_space<vmem>>, vector<1x8x256xbf16>
    %19 = vector.shape_cast %18 : vector<1x8x256xbf16> to vector<8x256xbf16>
    %20 = arith.extf %19 : vector<8x256xbf16> to vector<8x256xf32>
    %21 = vector.broadcast %0 : vector<1x256xf32> to vector<8x256xf32>
    %22 = arith.mulf %20, %21 : vector<8x256xf32>
    %23 = vector.broadcast %1 : vector<1x256xf32> to vector<8x256xf32>
    %24 = arith.addf %22, %23 : vector<8x256xf32>
    %cst_12 = arith.constant 0.000000e+00 : f32
    %25 = vector.broadcast %cst_12 : f32 to vector<8x256xf32>
    %26 = arith.cmpf oge, %24, %25 : vector<8x256xf32>
    %cst_13 = arith.constant 2.000000e-01 : f32
    %27 = vector.broadcast %cst_13 : f32 to vector<8x256xf32>
    %28 = arith.mulf %27, %24 : vector<8x256xf32>
    %29 = arith.select %26, %24, %28 : vector<8x256xi1>, vector<8x256xf32>
    %30 = arith.truncf %29 : vector<8x256xf32> to vector<8x256xbf16>
    %c1_14 = arith.constant 1 : index
    %c0_15 = arith.constant 0 : index
    %c0_16 = arith.constant 0 : index
    %31 = vector.load %arg4[%c1_14, %c0_15, %c0_16] : memref<2x8x256xbf16, #tpu.memory_space<vmem>>, vector<1x8x256xbf16>
    %32 = vector.shape_cast %31 : vector<1x8x256xbf16> to vector<8x256xbf16>
    %33 = vector.shape_cast %30 : vector<8x256xbf16> to vector<1x8x256xbf16>
    tpu.vector_store %arg4[%c1_14, %c0_15, %c0_16], %33 {strides = array<i32>} : memref<2x8x256xbf16, #tpu.memory_space<vmem>>, vector<1x8x256xbf16>,
    return
  }
  func.func @transform_0(%arg0: i32) -> (i32, i32, i32) {
    %c0_i32 = arith.constant 0 : i32
    %c0_i32_0 = arith.constant 0 : i32
    %c0_i32_1 = arith.constant 0 : i32
    return %arg0, %c0_i32, %c0_i32_0 : i32, i32, i32
  }
  func.func @transform_1(%arg0: i32) -> (i32, i32) {
    %c0_i32 = arith.constant 0 : i32
    %c0_i32_0 = arith.constant 0 : i32
    %c0_i32_1 = arith.constant 0 : i32
    return %c0_i32, %c0_i32_0 : i32, i32
  }
  func.func @transform_2(%arg0: i32) -> (i32, i32) {
    %c0_i32 = arith.constant 0 : i32
    %c0_i32_0 = arith.constant 0 : i32
    %c0_i32_1 = arith.constant 0 : i32
    return %c0_i32, %c0_i32_0 : i32, i32
  }
  func.func @transform_3(%arg0: i32) -> (i32, i32, i32) {
    %c0_i32 = arith.constant 0 : i32
    %c0_i32_0 = arith.constant 0 : i32
    %c0_i32_1 = arith.constant 0 : i32
    return %arg0, %c0_i32, %c0_i32_0 : i32, i32, i32
  }
}

module attributes {stable_mosaic.version = 11 : i64} {
  func.func @_conv_stats_kernel(%arg0: i32, %arg1: memref<2x5x320xbf16, #tpu.memory_space<vmem>>, %arg2: memref<2x5x320xbf16, #tpu.memory_space<vmem>>, %arg3: memref<4x320x256xbf16, #tpu.memory_space<vmem>>, %arg4: memref<2x4x256xbf16, #tpu.memory_space<vmem>>, %arg5: memref<1x2x256xf32, #tpu.memory_space<vmem>>) attributes {dimension_semantics = [#tpu.dimension_semantics<parallel>], iteration_bounds = array<i64: 1>, scalar_prefetch = 0 : i64, scratch_operands = 0 : i64, tpu.core_type = #tpu.core_type<tc>, window_params = [{transform_indices = @transform_0, window_bounds = array<i64: 2, 5, 320>}, {transform_indices = @transform_1, window_bounds = array<i64: 2, 5, 320>}, {pipeline_mode = #tpu.pipeline_mode<synchronous>, transform_indices = @transform_2, window_bounds = array<i64: 4, 320, 256>}, {transform_indices = @transform_3, window_bounds = array<i64: 2, 4, 256>}, {transform_indices = @transform_4, window_bounds = array<i64: 1, 2, 256>}]} {
    %cst = arith.constant 0.000000e+00 : f32
    %0 = vector.broadcast %cst : f32 to vector<1x256xf32>
    %cst_0 = arith.constant 0.000000e+00 : f32
    %1 = vector.broadcast %cst_0 : f32 to vector<1x256xf32>
    %c0 = arith.constant 0 : index
    %c0_1 = arith.constant 0 : index
    %c0_2 = arith.constant 0 : index
    %2 = vector.load %arg1[%c0, %c0_1, %c0_2] : memref<2x5x320xbf16, #tpu.memory_space<vmem>>, vector<1x5x320xbf16>
    %3 = vector.shape_cast %2 : vector<1x5x320xbf16> to vector<5x320xbf16>
    %c0_3 = arith.constant 0 : index
    %c0_4 = arith.constant 0 : index
    %c0_5 = arith.constant 0 : index
    %4 = vector.load %arg2[%c0_3, %c0_4, %c0_5] : memref<2x5x320xbf16, #tpu.memory_space<vmem>>, vector<1x5x320xbf16>
    %5 = vector.shape_cast %4 : vector<1x5x320xbf16> to vector<5x320xbf16>
    %6 = vector.extract_strided_slice %3 {offsets = [0, 0], sizes = [4, 320], strides = [1, 1]} : vector<5x320xbf16> to vector<4x320xbf16>
    %c0_6 = arith.constant 0 : index
    %c0_7 = arith.constant 0 : index
    %c0_8 = arith.constant 0 : index
    %7 = vector.load %arg3[%c0_6, %c0_7, %c0_8] : memref<4x320x256xbf16, #tpu.memory_space<vmem>>, vector<1x320x256xbf16>
    %8 = vector.shape_cast %7 : vector<1x320x256xbf16> to vector<320x256xbf16>
    %cst_9 = arith.constant dense<0.000000e+00> : vector<4x256xf32>
    %9 = tpu.matmul %6, %8, %cst_9 {dimension_numbers = #tpu.dot_dimension_numbers<[1], [0], [0], [1], [0, 0, 1, 1], [], []>} : vector<4x320xbf16>, vector<320x256xbf16>, vector<4x256xf32> -> vector<4x256xf32>
    %10 = vector.extract_strided_slice %5 {offsets = [0, 0], sizes = [4, 320], strides = [1, 1]} : vector<5x320xbf16> to vector<4x320xbf16>
    %c1 = arith.constant 1 : index
    %c0_10 = arith.constant 0 : index
    %c0_11 = arith.constant 0 : index
    %11 = vector.load %arg3[%c1, %c0_10, %c0_11] : memref<4x320x256xbf16, #tpu.memory_space<vmem>>, vector<1x320x256xbf16>
    %12 = vector.shape_cast %11 : vector<1x320x256xbf16> to vector<320x256xbf16>
    %cst_12 = arith.constant dense<0.000000e+00> : vector<4x256xf32>
    %13 = tpu.matmul %10, %12, %cst_12 {dimension_numbers = #tpu.dot_dimension_numbers<[1], [0], [0], [1], [0, 0, 1, 1], [], []>} : vector<4x320xbf16>, vector<320x256xbf16>, vector<4x256xf32> -> vector<4x256xf32>
    %14 = arith.addf %9, %13 : vector<4x256xf32>
    %15 = vector.extract_strided_slice %3 {offsets = [1, 0], sizes = [4, 320], strides = [1, 1]} : vector<5x320xbf16> to vector<4x320xbf16>
    %c2 = arith.constant 2 : index
    %c0_13 = arith.constant 0 : index
    %c0_14 = arith.constant 0 : index
    %16 = vector.load %arg3[%c2, %c0_13, %c0_14] : memref<4x320x256xbf16, #tpu.memory_space<vmem>>, vector<1x320x256xbf16>
    %17 = vector.shape_cast %16 : vector<1x320x256xbf16> to vector<320x256xbf16>
    %cst_15 = arith.constant dense<0.000000e+00> : vector<4x256xf32>
    %18 = tpu.matmul %15, %17, %cst_15 {dimension_numbers = #tpu.dot_dimension_numbers<[1], [0], [0], [1], [0, 0, 1, 1], [], []>} : vector<4x320xbf16>, vector<320x256xbf16>, vector<4x256xf32> -> vector<4x256xf32>
    %19 = arith.addf %14, %18 : vector<4x256xf32>
    %20 = vector.extract_strided_slice %5 {offsets = [1, 0], sizes = [4, 320], strides = [1, 1]} : vector<5x320xbf16> to vector<4x320xbf16>
    %c3 = arith.constant 3 : index
    %c0_16 = arith.constant 0 : index
    %c0_17 = arith.constant 0 : index
    %21 = vector.load %arg3[%c3, %c0_16, %c0_17] : memref<4x320x256xbf16, #tpu.memory_space<vmem>>, vector<1x320x256xbf16>
    %22 = vector.shape_cast %21 : vector<1x320x256xbf16> to vector<320x256xbf16>
    %cst_18 = arith.constant dense<0.000000e+00> : vector<4x256xf32>
    %23 = tpu.matmul %20, %22, %cst_18 {dimension_numbers = #tpu.dot_dimension_numbers<[1], [0], [0], [1], [0, 0, 1, 1], [], []>} : vector<4x320xbf16>, vector<320x256xbf16>, vector<4x256xf32> -> vector<4x256xf32>
    %24 = arith.addf %19, %23 : vector<4x256xf32>
    %25 = arith.truncf %24 : vector<4x256xf32> to vector<4x256xbf16>
    %c0_19 = arith.constant 0 : index
    %c0_20 = arith.constant 0 : index
    %c0_21 = arith.constant 0 : index
    %26 = vector.load %arg4[%c0_19, %c0_20, %c0_21] : memref<2x4x256xbf16, #tpu.memory_space<vmem>>, vector<1x4x256xbf16>
    %27 = vector.shape_cast %26 : vector<1x4x256xbf16> to vector<4x256xbf16>
    %28 = vector.shape_cast %25 : vector<4x256xbf16> to vector<1x4x256xbf16>
    tpu.vector_store %arg4[%c0_19, %c0_20, %c0_21], %28 {strides = array<i32>} : memref<2x4x256xbf16, #tpu.memory_space<vmem>>, vector<1x4x256xbf16>,
    %cst_22 = arith.constant dense<0.000000e+00> : vector<256xf32>
    %29 = vector.multi_reduction <add>, %24, %cst_22 [0] : vector<4x256xf32> to vector<256xf32>
    %30 = vector.shape_cast %29 : vector<256xf32> to vector<1x256xf32>
    %31 = arith.addf %0, %30 : vector<1x256xf32>
    %32 = arith.mulf %24, %24 : vector<4x256xf32>
    %cst_23 = arith.constant dense<0.000000e+00> : vector<256xf32>
    %33 = vector.multi_reduction <add>, %32, %cst_23 [0] : vector<4x256xf32> to vector<256xf32>
    %34 = vector.shape_cast %33 : vector<256xf32> to vector<1x256xf32>
    %35 = arith.addf %1, %34 : vector<1x256xf32>
    %c1_24 = arith.constant 1 : index
    %c0_25 = arith.constant 0 : index
    %c0_26 = arith.constant 0 : index
    %36 = vector.load %arg1[%c1_24, %c0_25, %c0_26] : memref<2x5x320xbf16, #tpu.memory_space<vmem>>, vector<1x5x320xbf16>
    %37 = vector.shape_cast %36 : vector<1x5x320xbf16> to vector<5x320xbf16>
    %c1_27 = arith.constant 1 : index
    %c0_28 = arith.constant 0 : index
    %c0_29 = arith.constant 0 : index
    %38 = vector.load %arg2[%c1_27, %c0_28, %c0_29] : memref<2x5x320xbf16, #tpu.memory_space<vmem>>, vector<1x5x320xbf16>
    %39 = vector.shape_cast %38 : vector<1x5x320xbf16> to vector<5x320xbf16>
    %40 = vector.extract_strided_slice %37 {offsets = [0, 0], sizes = [4, 320], strides = [1, 1]} : vector<5x320xbf16> to vector<4x320xbf16>
    %c0_30 = arith.constant 0 : index
    %c0_31 = arith.constant 0 : index
    %c0_32 = arith.constant 0 : index
    %41 = vector.load %arg3[%c0_30, %c0_31, %c0_32] : memref<4x320x256xbf16, #tpu.memory_space<vmem>>, vector<1x320x256xbf16>
    %42 = vector.shape_cast %41 : vector<1x320x256xbf16> to vector<320x256xbf16>
    %cst_33 = arith.constant dense<0.000000e+00> : vector<4x256xf32>
    %43 = tpu.matmul %40, %42, %cst_33 {dimension_numbers = #tpu.dot_dimension_numbers<[1], [0], [0], [1], [0, 0, 1, 1], [], []>} : vector<4x320xbf16>, vector<320x256xbf16>, vector<4x256xf32> -> vector<4x256xf32>
    %44 = vector.extract_strided_slice %39 {offsets = [0, 0], sizes = [4, 320], strides = [1, 1]} : vector<5x320xbf16> to vector<4x320xbf16>
    %c1_34 = arith.constant 1 : index
    %c0_35 = arith.constant 0 : index
    %c0_36 = arith.constant 0 : index
    %45 = vector.load %arg3[%c1_34, %c0_35, %c0_36] : memref<4x320x256xbf16, #tpu.memory_space<vmem>>, vector<1x320x256xbf16>
    %46 = vector.shape_cast %45 : vector<1x320x256xbf16> to vector<320x256xbf16>
    %cst_37 = arith.constant dense<0.000000e+00> : vector<4x256xf32>
    %47 = tpu.matmul %44, %46, %cst_37 {dimension_numbers = #tpu.dot_dimension_numbers<[1], [0], [0], [1], [0, 0, 1, 1], [], []>} : vector<4x320xbf16>, vector<320x256xbf16>, vector<4x256xf32> -> vector<4x256xf32>
    %48 = arith.addf %43, %47 : vector<4x256xf32>
    %49 = vector.extract_strided_slice %37 {offsets = [1, 0], sizes = [4, 320], strides = [1, 1]} : vector<5x320xbf16> to vector<4x320xbf16>
    %c2_38 = arith.constant 2 : index
    %c0_39 = arith.constant 0 : index
    %c0_40 = arith.constant 0 : index
    %50 = vector.load %arg3[%c2_38, %c0_39, %c0_40] : memref<4x320x256xbf16, #tpu.memory_space<vmem>>, vector<1x320x256xbf16>
    %51 = vector.shape_cast %50 : vector<1x320x256xbf16> to vector<320x256xbf16>
    %cst_41 = arith.constant dense<0.000000e+00> : vector<4x256xf32>
    %52 = tpu.matmul %49, %51, %cst_41 {dimension_numbers = #tpu.dot_dimension_numbers<[1], [0], [0], [1], [0, 0, 1, 1], [], []>} : vector<4x320xbf16>, vector<320x256xbf16>, vector<4x256xf32> -> vector<4x256xf32>
    %53 = arith.addf %48, %52 : vector<4x256xf32>
    %54 = vector.extract_strided_slice %39 {offsets = [1, 0], sizes = [4, 320], strides = [1, 1]} : vector<5x320xbf16> to vector<4x320xbf16>
    %c3_42 = arith.constant 3 : index
    %c0_43 = arith.constant 0 : index
    %c0_44 = arith.constant 0 : index
    %55 = vector.load %arg3[%c3_42, %c0_43, %c0_44] : memref<4x320x256xbf16, #tpu.memory_space<vmem>>, vector<1x320x256xbf16>
    %56 = vector.shape_cast %55 : vector<1x320x256xbf16> to vector<320x256xbf16>
    %cst_45 = arith.constant dense<0.000000e+00> : vector<4x256xf32>
    %57 = tpu.matmul %54, %56, %cst_45 {dimension_numbers = #tpu.dot_dimension_numbers<[1], [0], [0], [1], [0, 0, 1, 1], [], []>} : vector<4x320xbf16>, vector<320x256xbf16>, vector<4x256xf32> -> vector<4x256xf32>
    %58 = arith.addf %53, %57 : vector<4x256xf32>
    %59 = arith.truncf %58 : vector<4x256xf32> to vector<4x256xbf16>
    %c1_46 = arith.constant 1 : index
    %c0_47 = arith.constant 0 : index
    %c0_48 = arith.constant 0 : index
    %60 = vector.load %arg4[%c1_46, %c0_47, %c0_48] : memref<2x4x256xbf16, #tpu.memory_space<vmem>>, vector<1x4x256xbf16>
    %61 = vector.shape_cast %60 : vector<1x4x256xbf16> to vector<4x256xbf16>
    %62 = vector.shape_cast %59 : vector<4x256xbf16> to vector<1x4x256xbf16>
    tpu.vector_store %arg4[%c1_46, %c0_47, %c0_48], %62 {strides = array<i32>} : memref<2x4x256xbf16, #tpu.memory_space<vmem>>, vector<1x4x256xbf16>,
    %cst_49 = arith.constant dense<0.000000e+00> : vector<256xf32>
    %63 = vector.multi_reduction <add>, %58, %cst_49 [0] : vector<4x256xf32> to vector<256xf32>
    %64 = vector.shape_cast %63 : vector<256xf32> to vector<1x256xf32>
    %65 = arith.addf %31, %64 : vector<1x256xf32>
    %66 = arith.mulf %58, %58 : vector<4x256xf32>
    %cst_50 = arith.constant dense<0.000000e+00> : vector<256xf32>
    %67 = vector.multi_reduction <add>, %66, %cst_50 [0] : vector<4x256xf32> to vector<256xf32>
    %68 = vector.shape_cast %67 : vector<256xf32> to vector<1x256xf32>
    %69 = arith.addf %35, %68 : vector<1x256xf32>
    %70 = tpu.concatenate %65, %69 in 0 : vector<1x256xf32>, vector<1x256xf32> -> vector<2x256xf32>
    %71 = vector.shape_cast %70 : vector<2x256xf32> to vector<1x2x256xf32>
    %c0_51 = arith.constant 0 : index
    %c0_52 = arith.constant 0 : index
    %c0_53 = arith.constant 0 : index
    %72 = vector.load %arg5[%c0_51, %c0_52, %c0_53] : memref<1x2x256xf32, #tpu.memory_space<vmem>>, vector<1x2x256xf32>
    tpu.vector_store %arg5[%c0_51, %c0_52, %c0_53], %71 {strides = array<i32>} : memref<1x2x256xf32, #tpu.memory_space<vmem>>, vector<1x2x256xf32>,
    return
  }
  func.func @transform_0(%arg0: i32) -> (i32, i32, i32) {
    %c0_i32 = arith.constant 0 : i32
    %c0_i32_0 = arith.constant 0 : i32
    %c0_i32_1 = arith.constant 0 : i32
    return %arg0, %c0_i32, %c0_i32_0 : i32, i32, i32
  }
  func.func @transform_1(%arg0: i32) -> (i32, i32, i32) {
    %c0_i32 = arith.constant 0 : i32
    %c0_i32_0 = arith.constant 0 : i32
    %c0_i32_1 = arith.constant 0 : i32
    return %arg0, %c0_i32, %c0_i32_0 : i32, i32, i32
  }
  func.func @transform_2(%arg0: i32) -> (i32, i32, i32) {
    %c0_i32 = arith.constant 0 : i32
    %c0_i32_0 = arith.constant 0 : i32
    %c0_i32_1 = arith.constant 0 : i32
    %c0_i32_2 = arith.constant 0 : i32
    return %c0_i32, %c0_i32_0, %c0_i32_1 : i32, i32, i32
  }
  func.func @transform_3(%arg0: i32) -> (i32, i32, i32) {
    %c0_i32 = arith.constant 0 : i32
    %c0_i32_0 = arith.constant 0 : i32
    %c0_i32_1 = arith.constant 0 : i32
    return %arg0, %c0_i32, %c0_i32_0 : i32, i32, i32
  }
  func.func @transform_4(%arg0: i32) -> (i32, i32, i32) {
    %c0_i32 = arith.constant 0 : i32
    %c0_i32_0 = arith.constant 0 : i32
    %c0_i32_1 = arith.constant 0 : i32
    return %arg0, %c0_i32, %c0_i32_0 : i32, i32, i32
  }
}

module attributes {stable_mosaic.version = 11 : i64} {
  func.func @_affine_lrelu_kernel(%arg0: i32, %arg1: memref<2x4x256xbf16, #tpu.memory_space<vmem>>, %arg2: memref<1x256xf32, #tpu.memory_space<vmem>>, %arg3: memref<1x256xf32, #tpu.memory_space<vmem>>, %arg4: memref<2x4x256xbf16, #tpu.memory_space<vmem>>) attributes {dimension_semantics = [#tpu.dimension_semantics<parallel>], iteration_bounds = array<i64: 1>, scalar_prefetch = 0 : i64, scratch_operands = 0 : i64, tpu.core_type = #tpu.core_type<tc>, window_params = [{transform_indices = @transform_0, window_bounds = array<i64: 2, 4, 256>}, {pipeline_mode = #tpu.pipeline_mode<synchronous>, transform_indices = @transform_1, window_bounds = array<i64: 1, 256>}, {pipeline_mode = #tpu.pipeline_mode<synchronous>, transform_indices = @transform_2, window_bounds = array<i64: 1, 256>}, {transform_indices = @transform_3, window_bounds = array<i64: 2, 4, 256>}]} {
    %c0 = arith.constant 0 : index
    %c0_0 = arith.constant 0 : index
    %0 = vector.load %arg2[%c0, %c0_0] : memref<1x256xf32, #tpu.memory_space<vmem>>, vector<1x256xf32>
    %c0_1 = arith.constant 0 : index
    %c0_2 = arith.constant 0 : index
    %1 = vector.load %arg3[%c0_1, %c0_2] : memref<1x256xf32, #tpu.memory_space<vmem>>, vector<1x256xf32>
    %c0_3 = arith.constant 0 : index
    %c0_4 = arith.constant 0 : index
    %c0_5 = arith.constant 0 : index
    %2 = vector.load %arg1[%c0_3, %c0_4, %c0_5] : memref<2x4x256xbf16, #tpu.memory_space<vmem>>, vector<1x4x256xbf16>
    %3 = vector.shape_cast %2 : vector<1x4x256xbf16> to vector<4x256xbf16>
    %4 = arith.extf %3 : vector<4x256xbf16> to vector<4x256xf32>
    %5 = vector.broadcast %0 : vector<1x256xf32> to vector<4x256xf32>
    %6 = arith.mulf %4, %5 : vector<4x256xf32>
    %7 = vector.broadcast %1 : vector<1x256xf32> to vector<4x256xf32>
    %8 = arith.addf %6, %7 : vector<4x256xf32>
    %cst = arith.constant 0.000000e+00 : f32
    %9 = vector.broadcast %cst : f32 to vector<4x256xf32>
    %10 = arith.cmpf oge, %8, %9 : vector<4x256xf32>
    %cst_6 = arith.constant 2.000000e-01 : f32
    %11 = vector.broadcast %cst_6 : f32 to vector<4x256xf32>
    %12 = arith.mulf %11, %8 : vector<4x256xf32>
    %13 = arith.select %10, %8, %12 : vector<4x256xi1>, vector<4x256xf32>
    %14 = arith.truncf %13 : vector<4x256xf32> to vector<4x256xbf16>
    %c0_7 = arith.constant 0 : index
    %c0_8 = arith.constant 0 : index
    %c0_9 = arith.constant 0 : index
    %15 = vector.load %arg4[%c0_7, %c0_8, %c0_9] : memref<2x4x256xbf16, #tpu.memory_space<vmem>>, vector<1x4x256xbf16>
    %16 = vector.shape_cast %15 : vector<1x4x256xbf16> to vector<4x256xbf16>
    %17 = vector.shape_cast %14 : vector<4x256xbf16> to vector<1x4x256xbf16>
    tpu.vector_store %arg4[%c0_7, %c0_8, %c0_9], %17 {strides = array<i32>} : memref<2x4x256xbf16, #tpu.memory_space<vmem>>, vector<1x4x256xbf16>,
    %c1 = arith.constant 1 : index
    %c0_10 = arith.constant 0 : index
    %c0_11 = arith.constant 0 : index
    %18 = vector.load %arg1[%c1, %c0_10, %c0_11] : memref<2x4x256xbf16, #tpu.memory_space<vmem>>, vector<1x4x256xbf16>
    %19 = vector.shape_cast %18 : vector<1x4x256xbf16> to vector<4x256xbf16>
    %20 = arith.extf %19 : vector<4x256xbf16> to vector<4x256xf32>
    %21 = vector.broadcast %0 : vector<1x256xf32> to vector<4x256xf32>
    %22 = arith.mulf %20, %21 : vector<4x256xf32>
    %23 = vector.broadcast %1 : vector<1x256xf32> to vector<4x256xf32>
    %24 = arith.addf %22, %23 : vector<4x256xf32>
    %cst_12 = arith.constant 0.000000e+00 : f32
    %25 = vector.broadcast %cst_12 : f32 to vector<4x256xf32>
    %26 = arith.cmpf oge, %24, %25 : vector<4x256xf32>
    %cst_13 = arith.constant 2.000000e-01 : f32
    %27 = vector.broadcast %cst_13 : f32 to vector<4x256xf32>
    %28 = arith.mulf %27, %24 : vector<4x256xf32>
    %29 = arith.select %26, %24, %28 : vector<4x256xi1>, vector<4x256xf32>
    %30 = arith.truncf %29 : vector<4x256xf32> to vector<4x256xbf16>
    %c1_14 = arith.constant 1 : index
    %c0_15 = arith.constant 0 : index
    %c0_16 = arith.constant 0 : index
    %31 = vector.load %arg4[%c1_14, %c0_15, %c0_16] : memref<2x4x256xbf16, #tpu.memory_space<vmem>>, vector<1x4x256xbf16>
    %32 = vector.shape_cast %31 : vector<1x4x256xbf16> to vector<4x256xbf16>
    %33 = vector.shape_cast %30 : vector<4x256xbf16> to vector<1x4x256xbf16>
    tpu.vector_store %arg4[%c1_14, %c0_15, %c0_16], %33 {strides = array<i32>} : memref<2x4x256xbf16, #tpu.memory_space<vmem>>, vector<1x4x256xbf16>,
    return
  }
  func.func @transform_0(%arg0: i32) -> (i32, i32, i32) {
    %c0_i32 = arith.constant 0 : i32
    %c0_i32_0 = arith.constant 0 : i32
    %c0_i32_1 = arith.constant 0 : i32
    return %arg0, %c0_i32, %c0_i32_0 : i32, i32, i32
  }
  func.func @transform_1(%arg0: i32) -> (i32, i32) {
    %c0_i32 = arith.constant 0 : i32
    %c0_i32_0 = arith.constant 0 : i32
    %c0_i32_1 = arith.constant 0 : i32
    return %c0_i32, %c0_i32_0 : i32, i32
  }
  func.func @transform_2(%arg0: i32) -> (i32, i32) {
    %c0_i32 = arith.constant 0 : i32
    %c0_i32_0 = arith.constant 0 : i32
    %c0_i32_1 = arith.constant 0 : i32
    return %c0_i32, %c0_i32_0 : i32, i32
  }
  func.func @transform_3(%arg0: i32) -> (i32, i32, i32) {
    %c0_i32 = arith.constant 0 : i32
    %c0_i32_0 = arith.constant 0 : i32
    %c0_i32_1 = arith.constant 0 : i32
    return %arg0, %c0_i32, %c0_i32_0 : i32, i32, i32
  }
}

module attributes {stable_mosaic.version = 11 : i64} {
  func.func @_head_sigmoid_kernel(%arg0: i32, %arg1: memref<2x1024xbf16, #tpu.memory_space<vmem>>, %arg2: memref<1x1024xbf16, #tpu.memory_space<vmem>>, %arg3: memref<1x1xf32, #tpu.memory_space<smem>>, %arg4: memref<2x1xf32, #tpu.memory_space<vmem>>) attributes {dimension_semantics = [#tpu.dimension_semantics<parallel>], iteration_bounds = array<i64: 1>, scalar_prefetch = 0 : i64, scratch_operands = 0 : i64, tpu.core_type = #tpu.core_type<tc>, window_params = [{transform_indices = @transform_0, window_bounds = array<i64: 2, 1024>}, {pipeline_mode = #tpu.pipeline_mode<synchronous>, transform_indices = @transform_1, window_bounds = array<i64: 1, 1024>}, {transform_indices = @transform_2, window_bounds = array<i64: 1, 1>}, {transform_indices = @transform_3, window_bounds = array<i64: 2, 1>}]} {
    %c0 = arith.constant 0 : index
    %c0_0 = arith.constant 0 : index
    %0 = vector.load %arg1[%c0, %c0_0] : memref<2x1024xbf16, #tpu.memory_space<vmem>>, vector<2x1024xbf16>
    %1 = arith.extf %0 : vector<2x1024xbf16> to vector<2x1024xf32>
    %c0_1 = arith.constant 0 : index
    %c0_2 = arith.constant 0 : index
    %2 = vector.load %arg2[%c0_1, %c0_2] : memref<1x1024xbf16, #tpu.memory_space<vmem>>, vector<1x1024xbf16>
    %3 = arith.extf %2 : vector<1x1024xbf16> to vector<1x1024xf32>
    %4 = vector.broadcast %3 : vector<1x1024xf32> to vector<2x1024xf32>
    %5 = arith.mulf %1, %4 : vector<2x1024xf32>
    %cst = arith.constant dense<0.000000e+00> : vector<2xf32>
    %6 = vector.multi_reduction <add>, %5, %cst [1] : vector<2x1024xf32> to vector<2xf32>
    %7 = vector.shape_cast %6 : vector<2xf32> to vector<2x1xf32>
    %c0_3 = arith.constant 0 : index
    %c0_4 = arith.constant 0 : index
    %8 = memref.load %arg3[%c0_3, %c0_4] : memref<1x1xf32, #tpu.memory_space<smem>>
    %9 = vector.broadcast %8 : f32 to vector<2x1xf32>
    %10 = arith.addf %7, %9 : vector<2x1xf32>
    %cst_5 = arith.constant 0.000000e+00 : f32
    %11 = vector.broadcast %cst_5 : f32 to vector<2x1xf32>
    %12 = arith.subf %11, %10 : vector<2x1xf32>
    %13 = math.exp %12 : vector<2x1xf32>
    %cst_6 = arith.constant 1.000000e+00 : f32
    %14 = vector.broadcast %cst_6 : f32 to vector<2x1xf32>
    %15 = arith.addf %14, %13 : vector<2x1xf32>
    %cst_7 = arith.constant 1.000000e+00 : f32
    %16 = vector.broadcast %cst_7 : f32 to vector<2x1xf32>
    %17 = arith.divf %16, %15 : vector<2x1xf32>
    %c0_8 = arith.constant 0 : index
    %c0_9 = arith.constant 0 : index
    %18 = vector.load %arg4[%c0_8, %c0_9] : memref<2x1xf32, #tpu.memory_space<vmem>>, vector<2x1xf32>
    tpu.vector_store %arg4[%c0_8, %c0_9], %17 {strides = array<i32>} : memref<2x1xf32, #tpu.memory_space<vmem>>, vector<2x1xf32>,
    return
  }
  func.func @transform_0(%arg0: i32) -> (i32, i32) {
    %c0_i32 = arith.constant 0 : i32
    %c0_i32_0 = arith.constant 0 : i32
    return %arg0, %c0_i32 : i32, i32
  }
  func.func @transform_1(%arg0: i32) -> (i32, i32) {
    %c0_i32 = arith.constant 0 : i32
    %c0_i32_0 = arith.constant 0 : i32
    %c0_i32_1 = arith.constant 0 : i32
    return %c0_i32, %c0_i32_0 : i32, i32
  }
  func.func @transform_2(%arg0: i32) -> (i32, i32) {
    %c0_i32 = arith.constant 0 : i32
    %c0_i32_0 = arith.constant 0 : i32
    %c0_i32_1 = arith.constant 0 : i32
    return %c0_i32, %c0_i32_0 : i32, i32
  }
  func.func @transform_3(%arg0: i32) -> (i32, i32) {
    %c0_i32 = arith.constant 0 : i32
    %c0_i32_0 = arith.constant 0 : i32
    return %arg0, %c0_i32 : i32, i32
  }
}

</mosaic_0001>

<llo_original>
// kernel: tile.38
$region0: #{tile.38}
  #allocation0 [shape = 's32[1]{0}', space=sflag, size = 0x4, scoped, tag = 'scoped memory for tile.38']
  %s0 = inlined_call_operand.vmem [shape: f32[8], index: 0, kind: input, shape index: {}]
  %s1 = inlined_call_operand.vmem [shape: f32[32,8], index: 1, kind: output, shape index: {}]
  // Predicated region
  $region2: #{tile.38} parent=0 // pred_check
    _
  $region3: #{tile.38} parent=0 // pred_check_branch
    %3 = sbr.rel (0) target = $region5
  $region4: #{tile.38} parent=0 // pred_region
    _
  $region5: #{tile.38} parent=0 // pred_fallthru
    _
  %v4 = vld [vmem:[%s0] ss:$0 sm:$0xff]
  %5 = vst [vmem:[%s1] sm:$0xff] %v4
  %s6 = scalar_lea.vmem %s1, 8
  %7 = vst [vmem:[%s6] sm:$0xff] %v4
  %s8 = scalar_lea.vmem %s1, 16
  %9 = vst [vmem:[%s8] sm:$0xff] %v4
  %s10 = scalar_lea.vmem %s1, 24
  %11 = vst [vmem:[%s10] sm:$0xff] %v4

// kernel: tile.39
$region0: #{tile.39}
  %s0 = inlined_call_operand.vmem [shape: f32[32,8], index: 0, kind: input, shape index: {}]
  %s1 = inlined_call_operand.vmem [shape: f32[1,256], index: 1, kind: output, shape index: {}]
  $region1: #{tile.39} parent=0
    #allocation0 [shape = 'u8[8192]{0}', space=vmem, size = 0x2000, scoped, tag = 'scoped mem for output reshape']
    %s2 = smov 3
    %v3 = vld [vmem:[%s0] ss:$16 sm:%s2]
    %vm4 = vcmask 64512
    %5 = vst.msk [vmem:[#allocation0] ss:$8 sm:$0x3] %vm4, %v3
    %s6 = scalar_lea.vmem %s0, 15
    %s7 = smov 3
    %v8 = vld [vmem:[%s6] ss:$16 sm:%s7]
    %9 = vrot.lane.b32.xlu0 %v8, 120
    %v10 = vpop.permute.xlu0 %9
    %vm11 = vcmask 1048512
    %12 = vst.msk [vmem:[#allocation0] ss:$8 sm:$0x3] %vm11, %v10
    %s13 = scalar_lea.vmem %s0, 14
    %s14 = smov 3
    %v15 = vld [vmem:[%s13] ss:$16 sm:%s14]
    %16 = vrot.lane.b32.xlu0 %v15, 112
    %v17 = vpop.permute.xlu0 %16
    %vm18 = vcmask 982912
    %19 = vst.msk [vmem:[#allocation0] ss:$8 sm:$0x3] %vm18, %v17
    %s20 = scalar_lea.vmem %s0, 13
    %s21 = smov 3
    %v22 = vld [vmem:[%s20] ss:$16 sm:%s21]
    %23 = vrot.lane.b32.xlu0 %v22, 104
    %v24 = vpop.permute.xlu0 %23
    %vm25 = vcmask 917312
    %26 = vst.msk [vmem:[#allocation0] ss:$8 sm:$0x3] %vm25, %v24
    %s27 = scalar_lea.vmem %s0, 12
    %s28 = smov 3
    %v29 = vld [vmem:[%s27] ss:$16 sm:%s28]
    %30 = vrot.lane.b32.xlu0 %v29, 96
    %v31 = vpop.permute.xlu0 %30
    %vm32 = vcmask 851712
    %33 = vst.msk [vmem:[#allocation0] ss:$8 sm:$0x3] %vm32, %v31
    %s34 = scalar_lea.vmem %s0, 11
    %s35 = smov 3
    %v36 = vld [vmem:[%s34] ss:$16 sm:%s35]
    %37 = vrot.lane.b32.xlu0 %v36, 88
    %v38 = vpop.permute.xlu0 %37
    %vm39 = vcmask 786112
    %40 = vst.msk [vmem:[#allocation0] ss:$8 sm:$0x3] %vm39, %v38
    %s41 = scalar_lea.vmem %s0, 10
    %s42 = smov 3
    %v43 = vld [vmem:[%s41] ss:$16 sm:%s42]
    %44 = vrot.lane.b32.xlu0 %v43, 80
    %v45 = vpop.permute.xlu0 %44
    %vm46 = vcmask 720512
    %47 = vst.msk [vmem:[#allocation0] ss:$8 sm:$0x3] %vm46, %v45
    %s48 = scalar_lea.vmem %s0, 9
    %s49 = smov 3
    %v50 = vld [vmem:[%s48] ss:$16 sm:%s49]
    %51 = vrot.lane.b32.xlu0 %v50, 72
    %v52 = vpop.permute.xlu0 %51
    %vm53 = vcmask 654912
    %54 = vst.msk [vmem:[#allocation0] ss:$8 sm:$0x3] %vm53, %v52
    %s55 = scalar_lea.vmem %s0, 8
    %s56 = smov 3
    %v57 = vld [vmem:[%s55] ss:$16 sm:%s56]
    %58 = vrot.lane.b32.xlu0 %v57, 64
    %v59 = vpop.permute.xlu0 %58
    %vm60 = vcmask 589312
    %61 = vst.msk [vmem:[#allocation0] ss:$8 sm:$0x3] %vm60, %v59
    %s62 = scalar_lea.vmem %s0, 7
    %s63 = smov 3
    %v64 = vld [vmem:[%s62] ss:$16 sm:%s63]
    %65 = vrot.lane.b32.xlu0 %v64, 56
    %v66 = vpop.permute.xlu0 %65
    %vm67 = vcmask 523712
    %68 = vst.msk [vmem:[#allocation0] ss:$8 sm:$0x3] %vm67, %v66
    %s69 = scalar_lea.vmem %s0, 6
    %s70 = smov 3
    %v71 = vld [vmem:[%s69] ss:$16 sm:%s70]
    %72 = vrot.lane.b32.xlu0 %v71, 48
    %v73 = vpop.permute.xlu0 %72
    %vm74 = vcmask 458112
    %75 = vst.msk [vmem:[#allocation0] ss:$8 sm:$0x3] %vm74, %v73
    %s76 = scalar_lea.vmem %s0, 5
    %s77 = smov 3
    %v78 = vld [vmem:[%s76] ss:$16 sm:%s77]
    %79 = vrot.lane.b32.xlu0 %v78, 40
    %v80 = vpop.permute.xlu0 %79
    %vm81 = vcmask 392512
    %82 = vst.msk [vmem:[#allocation0] ss:$8 sm:$0x3] %vm81, %v80
    %s83 = scalar_lea.vmem %s0, 4
    %s84 = smov 3
    %v85 = vld [vmem:[%s83] ss:$16 sm:%s84]
    %86 = vrot.lane.b32.xlu0 %v85, 32
    %v87 = vpop.permute.xlu0 %86
    %vm88 = vcmask 326912
    %89 = vst.msk [vmem:[#allocation0] ss:$8 sm:$0x3] %vm88, %v87
    %s90 = scalar_lea.vmem %s0, 3
    %s91 = smov 3
    %v92 = vld [vmem:[%s90] ss:$16 sm:%s91]
    %93 = vrot.lane.b32.xlu0 %v92, 24
    %v94 = vpop.permute.xlu0 %93
    %vm95 = vcmask 261312
    %96 = vst.msk [vmem:[#allocation0] ss:$8 sm:$0x3] %vm95, %v94
    %s97 = scalar_lea.vmem %s0, 2
    %s98 = smov 3
    %v99 = vld [vmem:[%s97] ss:$16 sm:%s98]
    %100 = vrot.lane.b32.xlu0 %v99, 16
    %v101 = vpop.permute.xlu0 %100
    %vm102 = vcmask 195712
    %103 = vst.msk [vmem:[#allocation0] ss:$8 sm:$0x3] %vm102, %v101
    %s104 = scalar_lea.vmem %s0, 1
    %s105 = smov 3
    %v106 = vld [vmem:[%s104] ss:$16 sm:%s105]
    %107 = vrot.lane.b32.xlu0 %v106, 8
    %v108 = vpop.permute.xlu0 %107
    %vm109 = vcmask 130112
    %110 = vst.msk [vmem:[#allocation0] ss:$8 sm:$0x3] %vm109, %v108
    %s112 = sshllo.u32 0, 1
    %v114 = vld [vmem:[#allocation0] sm:%s112]
    %s115 = sshllo.u32 0, 1
    %116 = vst [vmem:[%s1] sm:%s115] %v114
    %s117 = scalar_lea.vmem [#allocation0], 8
    %v118 = vld [vmem:[%s117] sm:%s112]
    %s119 = sshllo.u32 0, 1
    %s120 = scalar_lea.vmem %s1, 1
    %121 = vst [vmem:[%s120] sm:%s119] %v118

// kernel: discriminator_forward.8
$region0: #{discriminator_forward.8}
  #allocation0 [shape = 'u32[]', space=smem, size = 0x4, offset = 0x4, fixed_abs, tag = 'smem constant byte address 0x4 - core index']
  #allocation1 [shape = 'u32[144,128]{1,0:T(1,128)}', space=vmem, size = 0x12000, scoped, tag = 'internal scratch']
  %s0 = inlined_call_operand.vmem [shape: bf16[2,33,132], index: 0, kind: input, shape index: {}]
  %s1 = inlined_call_operand.vmem [shape: bf16[2,33,132], index: 1, kind: input, shape index: {}]
  %s2 = inlined_call_operand.vmem [shape: bf16[4,132,256], index: 2, kind: input, shape index: {}]
  %s3 = inlined_call_operand.vmem [shape: f32[1,256], index: 3, kind: input, shape index: {}]
  %s4 = inlined_call_operand.vmem [shape: bf16[2,32,256], index: 4, kind: output, shape index: {}]
  %s5 = sld [smem:[#allocation0]]
  $region26: #{discriminator_forward.8} parent=0
    _
  %s7 = ssub.s32 1, %s5
  %s8 = scalar_select 0, %s7, %s5
  // Predicated region
  $region2: #{discriminator_forward.8} parent=0 // pred_check
    _
  $region3: #{discriminator_forward.8} parent=0 // pred_check_branch
    %10 = sbr.rel (0) target = $region5
  $region4: #{discriminator_forward.8} parent=0 // pred_region
    _
  $region5: #{discriminator_forward.8} parent=0 // pred_fallthru
    _
  // Predicated region
  $region6: #{discriminator_forward.8} parent=0 // pred_check
    _
  $region7: #{discriminator_forward.8} parent=0 // pred_check_branch
    %12 = sbr.rel (0) target = $region9
  $region8: #{discriminator_forward.8} parent=0 // pred_region
    _
  $region9: #{discriminator_forward.8} parent=0 // pred_fallthru
    _
  // Predicated region
  $region10: #{discriminator_forward.8} parent=0 // pred_check
    _
  $region11: #{discriminator_forward.8} parent=0 // pred_check_branch
    %14 = sbr.rel (0) target = $region13
  $region12: #{discriminator_forward.8} parent=0 // pred_region
    _
  $region13: #{discriminator_forward.8} parent=0 // pred_fallthru
    _
  // Predicated region
  $region14: #{discriminator_forward.8} parent=0 // pred_check
    _
  $region15: #{discriminator_forward.8} parent=0 // pred_check_branch
    %16 = sbr.rel (0) target = $region17
  $region16: #{discriminator_forward.8} parent=0 // pred_region
    _
  $region17: #{discriminator_forward.8} parent=0 // pred_fallthru
    _
  %v18 = vld [vmem:[%s3] sm:$0x3]
  %v19 = vld [vmem:[%s0] sm:$0xff]
  %v20 = vld [vmem:[%s0 + $0x8] sm:$0xff]
  %v21 = vld [vmem:[%s0 + $0x10] sm:$0xff]
  %v22 = vld [vmem:[%s0 + $0x18] sm:$0xff]
  %v23 = vld [vmem:[%s0 + $0x20] sm:$0x11]
  %v24 = vld [vmem:[%s1] sm:$0xff]
  %v25 = vld [vmem:[%s1 + $0x8] sm:$0xff]
  %v26 = vld [vmem:[%s1 + $0x10] sm:$0xff]
  %v27 = vld [vmem:[%s1 + $0x18] sm:$0xff]
  %v28 = vld [vmem:[%s1 + $0x20] sm:$0x11]
  %v29 = vld [vmem:[%s2] sm:$0xff]
  %v30 = vld [vmem:[%s2 + $0x8] sm:$0xff]
  %v31 = vld [vmem:[%s2 + $0x10] sm:$0xff]
  %v32 = vld [vmem:[%s2 + $0x18] sm:$0xff]
  %v33 = vld [vmem:[%s2 + $0x20] sm:$0xff]
  %v34 = vld [vmem:[%s2 + $0x28] sm:$0xff]
  %v35 = vld [vmem:[%s2 + $0x30] sm:$0xff]
  %v36 = vld [vmem:[%s2 + $0x38] sm:$0xff]
  %v37 = vld [vmem:[%s2 + $0x40] sm:$0xff]
  %v38 = vld [vmem:[%s2 + $0x48] sm:$0xff]
  %v39 = vld [vmem:[%s2 + $0x50] sm:$0xff]
  %v40 = vld [vmem:[%s2 + $0x58] sm:$0xff]
  %v41 = vld [vmem:[%s2 + $0x60] sm:$0xff]
  %v42 = vld [vmem:[%s2 + $0x68] sm:$0xff]
  %v43 = vld [vmem:[%s2 + $0x70] sm:$0xff]
  %v44 = vld [vmem:[%s2 + $0x78] sm:$0xff]
  %v45 = vld [vmem:[%s2 + $0x80] sm:$0x33]
  %s46 = scalar_lea.vmem %s2, 136
  %v47 = vld [vmem:[%s46] sm:$0xff]
  %v48 = vld [vmem:[%s46 + $0x8] sm:$0xff]
  %v49 = vld [vmem:[%s46 + $0x10] sm:$0xff]
  %v50 = vld [vmem:[%s46 + $0x18] sm:$0xff]
  %v51 = vld [vmem:[%s46 + $0x20] sm:$0xff]
  %v52 = vld [vmem:[%s46 + $0x28] sm:$0xff]
  %v53 = vld [vmem:[%s46 + $0x30] sm:$0xff]
  %v54 = vld [vmem:[%s46 + $0x38] sm:$0xff]
  %v55 = vld [vmem:[%s46 + $0x40] sm:$0xff]
  %v56 = vld [vmem:[%s46 + $0x48] sm:$0xff]
  %v57 = vld [vmem:[%s46 + $0x50] sm:$0xff]
  %v58 = vld [vmem:[%s46 + $0x58] sm:$0xff]
  %v59 = vld [vmem:[%s46 + $0x60] sm:$0xff]
  %v60 = vld [vmem:[%s46 + $0x68] sm:$0xff]
  %v61 = vld [vmem:[%s46 + $0x70] sm:$0xff]
  %v62 = vld [vmem:[%s46 + $0x78] sm:$0xff]
  %v63 = vld [vmem:[%s46 + $0x80] sm:$0x33]
  %v68 = vunpack.c.l.b16 %v24
  %v69 = vunpack.c.h.b16 %v24
  %v70 = vunpack.c.l.b16 %v25
  %v71 = vunpack.c.h.b16 %v25
  %v72 = vunpack.c.l.b16 %v26
  %v73 = vunpack.c.h.b16 %v26
  %v74 = vunpack.c.l.b16 %v27
  %v75 = vunpack.c.h.b16 %v27
  %v76 = vpack.c.b16 %v70, %v68
  %v77 = vpack.c.b16 %v71, %v69
  %v78 = vpack.c.b16 %v74, %v72
  %v79 = vpack.c.b16 %v75, %v73
  %v99 = vunpack.c.l.b16 %v47
  %v100 = vunpack.c.h.b16 %v47
  %v101 = vunpack.c.l.b16 %v48
  %v102 = vunpack.c.h.b16 %v48
  %v103 = vunpack.c.l.b16 %v49
  %v104 = vunpack.c.h.b16 %v49
  %v105 = vunpack.c.l.b16 %v50
  %v106 = vunpack.c.h.b16 %v50
  %v107 = vunpack.c.l.b16 %v51
  %v108 = vunpack.c.h.b16 %v51
  %v109 = vunpack.c.l.b16 %v52
  %v110 = vunpack.c.h.b16 %v52
  %v111 = vunpack.c.l.b16 %v53
  %v112 = vunpack.c.h.b16 %v53
  %v113 = vunpack.c.l.b16 %v54
  %v114 = vunpack.c.h.b16 %v54
  %v115 = vunpack.c.l.b16 %v55
  %v116 = vunpack.c.h.b16 %v55
  %v117 = vunpack.c.l.b16 %v56
  %v118 = vunpack.c.h.b16 %v56
  %v119 = vunpack.c.l.b16 %v57
  %v120 = vunpack.c.h.b16 %v57
  %v121 = vunpack.c.l.b16 %v58
  %v122 = vunpack.c.h.b16 %v58
  %v123 = vunpack.c.l.b16 %v59
  %v124 = vunpack.c.h.b16 %v59
  %v125 = vunpack.c.l.b16 %v60
  %v126 = vunpack.c.h.b16 %v60
  %v127 = vunpack.c.l.b16 %v61
  %v128 = vunpack.c.h.b16 %v61
  %v129 = vunpack.c.l.b16 %v62
  %v130 = vunpack.c.h.b16 %v62
  %v131 = vunpack.c.l.b16 %v63
  %v132 = vunpack.c.h.b16 %v63
  %v133 = vpack.c.b16 %v101, %v99
  %v134 = vpack.c.b16 %v102, %v100
  %v135 = vpack.c.b16 %v105, %v103
  %v136 = vpack.c.b16 %v106, %v104
  %v137 = vpack.c.b16 %v109, %v107
  %v138 = vpack.c.b16 %v110, %v108
  %v139 = vpack.c.b16 %v113, %v111
  %v140 = vpack.c.b16 %v114, %v112
  %v141 = vpack.c.b16 %v117, %v115
  %v142 = vpack.c.b16 %v118, %v116
  %v143 = vpack.c.b16 %v121, %v119
  %v144 = vpack.c.b16 %v122, %v120
  %v145 = vpack.c.b16 %v125, %v123
  %v146 = vpack.c.b16 %v126, %v124
  %v147 = vpack.c.b16 %v129, %v127
  %v148 = vpack.c.b16 %v130, %v128
  %v149 = vpack.c.b16 %v131, %v131
  %v150 = vpack.c.b16 %v132, %v132
  %vm167 = vcmask 31744
  %v169 = vsel %vm167, %v77, 0
  %v172 = vsel %vm167, %v79, 0
  %vm174 = vcmask 1041408
  %v176 = vsel %vm174, %v149, 0
  %v179 = vsel %vm174, %v150, 0
  %181 = vmatprep.subr.bf16.mxu0 %v134
  %182 = vmatpush1.bf16.msra.mxu0 %v133
  %183 = vmatprep.subr.bf16.mxu0 %v136
  %184 = vmatpush1.bf16.msra.mxu0 %v135
  %185 = vmatprep.subr.bf16.mxu0 %v138
  %186 = vmatpush1.bf16.msra.mxu0 %v137
  %187 = vmatprep.subr.bf16.mxu0 %v140
  %188 = vmatpush1.bf16.msra.mxu0 %v139
  %189 = vmatprep.subr.bf16.mxu0 %v142
  %190 = vmatpush1.bf16.msra.mxu0 %v141
  %191 = vmatprep.subr.bf16.mxu0 %v144
  %192 = vmatpush1.bf16.msra.mxu0 %v143
  %193 = vmatprep.subr.bf16.mxu0 %v146
  %194 = vmatpush1.bf16.msra.mxu0 %v145
  %195 = vmatprep.subr.bf16.mxu0 %v148
  %196 = vmatpush1.bf16.msra.mxu0 %v147
  %197 = vmatprep.subr.bf16.mxu0 %v179
  %198 = vmatpush1.bf16.msra.mxu0 %v176
  %199 = vmatprep.subr.bf16.mxu0 0
  %200 = vmatpush1.bf16.msra.mxu0 0
  %201 = vmatprep.subr.bf16.mxu0 0
  %202 = vmatpush1.bf16.msra.mxu0 0
  %203 = vmatprep.subr.bf16.mxu0 0
  %204 = vmatpush1.bf16.msra.mxu0 0
  %205 = vmatprep.subr.bf16.mxu0 0
  %206 = vmatpush1.bf16.msra.mxu0 0
  %207 = vmatprep.subr.bf16.mxu0 0
  %208 = vmatpush1.bf16.msra.mxu0 0
  %209 = vmatprep.subr.bf16.mxu0 0
  %210 = vmatpush1.bf16.msra.mxu0 0
  %211 = vmatprep.subr.bf16.mxu0 0
  %212 = vmatpush1.bf16.msra.mxu0 0
  %213 = vmatprep.mubr.bf16.mxu0 %v169
  %214 = vmatmul.mubr.bf16.gmra.mrb[0].mxu0 %v76
  %v215 = vpop.f32.mrb[0].mxu0
  %v216 = vadd.f32 0.0, %v215
  %v217 = vpop.f32.mrb[0].mxu0
  %v218 = vadd.f32 0.0, %v217
  %v219 = vpop.f32.mrb[0].mxu0
  %v220 = vadd.f32 0.0, %v219
  %v221 = vpop.f32.mrb[0].mxu0
  %v222 = vadd.f32 0.0, %v221
  %223 = vmatprep.mubr.bf16.mxu0 %v172
  %224 = vmatmul.mubr.bf16.gmra.mrb[0].mxu0 %v78
  %v225 = vpop.f32.mrb[0].mxu0
  %v226 = vadd.f32 0.0, %v225
  %v227 = vpop.f32.mrb[0].mxu0
  %v228 = vadd.f32 0.0, %v227
  %v229 = vpop.f32.mrb[0].mxu0
  %v230 = vadd.f32 0.0, %v229
  %v231 = vpop.f32.mrb[0].mxu0
  %v232 = vadd.f32 0.0, %v231
  %233 = vdwg.mxu0
  %v238 = vunpack.c.l.b16 %v19
  %v239 = vunpack.c.h.b16 %v19
  %v240 = vunpack.c.l.b16 %v20
  %v241 = vunpack.c.h.b16 %v20
  %v242 = vunpack.c.l.b16 %v21
  %v243 = vunpack.c.h.b16 %v21
  %v244 = vunpack.c.l.b16 %v22
  %v245 = vunpack.c.h.b16 %v22
  %v246 = vpack.c.b16 %v240, %v238
  %v247 = vpack.c.b16 %v241, %v239
  %v248 = vpack.c.b16 %v244, %v242
  %v249 = vpack.c.b16 %v245, %v243
  %v269 = vunpack.c.l.b16 %v29
  %v270 = vunpack.c.h.b16 %v29
  %v271 = vunpack.c.l.b16 %v30
  %v272 = vunpack.c.h.b16 %v30
  %v273 = vunpack.c.l.b16 %v31
  %v274 = vunpack.c.h.b16 %v31
  %v275 = vunpack.c.l.b16 %v32
  %v276 = vunpack.c.h.b16 %v32
  %v277 = vunpack.c.l.b16 %v33
  %v278 = vunpack.c.h.b16 %v33
  %v279 = vunpack.c.l.b16 %v34
  %v280 = vunpack.c.h.b16 %v34
  %v281 = vunpack.c.l.b16 %v35
  %v282 = vunpack.c.h.b16 %v35
  %v283 = vunpack.c.l.b16 %v36
  %v284 = vunpack.c.h.b16 %v36
  %v285 = vunpack.c.l.b16 %v37
  %v286 = vunpack.c.h.b16 %v37
  %v287 = vunpack.c.l.b16 %v38
  %v288 = vunpack.c.h.b16 %v38
  %v289 = vunpack.c.l.b16 %v39
  %v290 = vunpack.c.h.b16 %v39
  %v291 = vunpack.c.l.b16 %v40
  %v292 = vunpack.c.h.b16 %v40
  %v293 = vunpack.c.l.b16 %v41
  %v294 = vunpack.c.h.b16 %v41
  %v295 = vunpack.c.l.b16 %v42
  %v296 = vunpack.c.h.b16 %v42
  %v297 = vunpack.c.l.b16 %v43
  %v298 = vunpack.c.h.b16 %v43
  %v299 = vunpack.c.l.b16 %v44
  %v300 = vunpack.c.h.b16 %v44
  %v301 = vunpack.c.l.b16 %v45
  %v302 = vunpack.c.h.b16 %v45
  %v303 = vpack.c.b16 %v271, %v269
  %v304 = vpack.c.b16 %v272, %v270
  %v305 = vpack.c.b16 %v275, %v273
  %v306 = vpack.c.b16 %v276, %v274
  %v307 = vpack.c.b16 %v279, %v277
  %v308 = vpack.c.b16 %v280, %v278
  %v309 = vpack.c.b16 %v283, %v281
  %v310 = vpack.c.b16 %v284, %v282
  %v311 = vpack.c.b16 %v287, %v285
  %v312 = vpack.c.b16 %v288, %v286
  %v313 = vpack.c.b16 %v291, %v289
  %v314 = vpack.c.b16 %v292, %v290
  %v315 = vpack.c.b16 %v295, %v293
  %v316 = vpack.c.b16 %v296, %v294
  %v317 = vpack.c.b16 %v299, %v297
  %v318 = vpack.c.b16 %v300, %v298
  %v319 = vpack.c.b16 %v301, %v301
  %v320 = vpack.c.b16 %v302, %v302
  %v338 = vsel %vm167, %v247, 0
  %v341 = vsel %vm167, %v249, 0
  %v344 = vsel %vm174, %v319, 0
  %v347 = vsel %vm174, %v320, 0
  %349 = vmatprep.subr.bf16.mxu0 %v304
  %350 = vmatpush1.bf16.msra.mxu0 %v303
  %351 = vmatprep.subr.bf16.mxu0 %v306
  %352 = vmatpush1.bf16.msra.mxu0 %v305
  %353 = vmatprep.subr.bf16.mxu0 %v308
  %354 = vmatpush1.bf16.msra.mxu0 %v307
  %355 = vmatprep.subr.bf16.mxu0 %v310
  %356 = vmatpush1.bf16.msra.mxu0 %v309
  %357 = vmatprep.subr.bf16.mxu0 %v312
  %358 = vmatpush1.bf16.msra.mxu0 %v311
  %359 = vmatprep.subr.bf16.mxu0 %v314
  %360 = vmatpush1.bf16.msra.mxu0 %v313
  %361 = vmatprep.subr.bf16.mxu0 %v316
  %362 = vmatpush1.bf16.msra.mxu0 %v315
  %363 = vmatprep.subr.bf16.mxu0 %v318
  %364 = vmatpush1.bf16.msra.mxu0 %v317
  %365 = vmatprep.subr.bf16.mxu0 %v347
  %366 = vmatpush1.bf16.msra.mxu0 %v344
  %367 = vmatprep.subr.bf16.mxu0 0
  %368 = vmatpush1.bf16.msra.mxu0 0
  %369 = vmatprep.subr.bf16.mxu0 0
  %370 = vmatpush1.bf16.msra.mxu0 0
  %371 = vmatprep.subr.bf16.mxu0 0
  %372 = vmatpush1.bf16.msra.mxu0 0
  %373 = vmatprep.subr.bf16.mxu0 0
  %374 = vmatpush1.bf16.msra.mxu0 0
  %375 = vmatprep.subr.bf16.mxu0 0
  %376 = vmatpush1.bf16.msra.mxu0 0
  %377 = vmatprep.subr.bf16.mxu0 0
  %378 = vmatpush1.bf16.msra.mxu0 0
  %379 = vmatprep.subr.bf16.mxu0 0
  %380 = vmatpush1.bf16.msra.mxu0 0
  %381 = vmatprep.mubr.bf16.mxu0 %v338
  %382 = vmatmul.mubr.bf16.gmra.mrb[0].mxu0 %v246
  %v383 = vpop.f32.mrb[0].mxu0
  %v384 = vadd.f32 %v216, %v383
  %v385 = vpop.f32.mrb[0].mxu0
  %v386 = vadd.f32 %v218, %v385
  %v387 = vpop.f32.mrb[0].mxu0
  %v388 = vadd.f32 %v220, %v387
  %v389 = vpop.f32.mrb[0].mxu0
  %v390 = vadd.f32 %v222, %v389
  %391 = vmatprep.mubr.bf16.mxu0 %v341
  %392 = vmatmul.mubr.bf16.gmra.mrb[0].mxu0 %v248
  %v393 = vpop.f32.mrb[0].mxu0
  %v394 = vadd.f32 %v226, %v393
  %v395 = vpop.f32.mrb[0].mxu0
  %v396 = vadd.f32 %v228, %v395
  %v397 = vpop.f32.mrb[0].mxu0
  %v398 = vadd.f32 %v230, %v397
  %v399 = vpop.f32.mrb[0].mxu0
  %v400 = vadd.f32 %v232, %v399
  %401 = vdwg.mxu0
  %s402 = scalar_lea.vmem %s2, 272
  %v403 = vld [vmem:[%s402] sm:$0xff]
  %v404 = vld [vmem:[%s402 + $0x8] sm:$0xff]
  %v405 = vld [vmem:[%s402 + $0x10] sm:$0xff]
  %v406 = vld [vmem:[%s402 + $0x18] sm:$0xff]
  %v407 = vld [vmem:[%s402 + $0x20] sm:$0xff]
  %v408 = vld [vmem:[%s402 + $0x28] sm:$0xff]
  %v409 = vld [vmem:[%s402 + $0x30] sm:$0xff]
  %v410 = vld [vmem:[%s402 + $0x38] sm:$0xff]
  %v411 = vld [vmem:[%s402 + $0x40] sm:$0xff]
  %v412 = vld [vmem:[%s402 + $0x48] sm:$0xff]
  %v413 = vld [vmem:[%s402 + $0x50] sm:$0xff]
  %v414 = vld [vmem:[%s402 + $0x58] sm:$0xff]
  %v415 = vld [vmem:[%s402 + $0x60] sm:$0xff]
  %v416 = vld [vmem:[%s402 + $0x68] sm:$0xff]
  %v417 = vld [vmem:[%s402 + $0x70] sm:$0xff]
  %v418 = vld [vmem:[%s402 + $0x78] sm:$0xff]
  %v419 = vld [vmem:[%s402 + $0x80] sm:$0x33]
  %v421 = vunpack.c.l.b16 %v23
  %v422 = vunpack.c.h.b16 %v23
  %v423 = vpack.c.b16 %v421, %v421
  %v424 = vpack.c.b16 %v422, %v422
  %vm425 = vsmask.f32 7424
  %v427 = vshrl.u32 %v246, 16
  %v429 = vshll.u32 %v246, 16
  %v431 = vrot.slane %v429, 1
  %v432 = vor.u32 %v427, %v431
  %v434 = vshll.u32 %v248, 16
  %v436 = vrot.slane %v434, 1
  %v437 = vsel %vm425, %v432, %v436
  %v438 = vshrl.u32 %v247, 16
  %v440 = vshll.u32 %v247, 16
  %v442 = vrot.slane %v440, 1
  %v443 = vor.u32 %v438, %v442
  %v444 = vshll.u32 %v249, 16
  %v446 = vrot.slane %v444, 1
  %v447 = vsel %vm425, %v443, %v446
  %v448 = vshrl.u32 %v248, 16
  %v450 = vor.u32 %v448, %v436
  %v452 = vshll.u32 %v423, 16
  %v454 = vrot.slane %v452, 1
  %v455 = vsel %vm425, %v450, %v454
  %v456 = vshrl.u32 %v249, 16
  %v458 = vor.u32 %v456, %v446
  %v460 = vshll.u32 %v424, 16
  %v462 = vrot.slane %v460, 1
  %v463 = vsel %vm425, %v458, %v462
  %v483 = vunpack.c.l.b16 %v403
  %v484 = vunpack.c.h.b16 %v403
  %v485 = vunpack.c.l.b16 %v404
  %v486 = vunpack.c.h.b16 %v404
  %v487 = vunpack.c.l.b16 %v405
  %v488 = vunpack.c.h.b16 %v405
  %v489 = vunpack.c.l.b16 %v406
  %v490 = vunpack.c.h.b16 %v406
  %v491 = vunpack.c.l.b16 %v407
  %v492 = vunpack.c.h.b16 %v407
  %v493 = vunpack.c.l.b16 %v408
  %v494 = vunpack.c.h.b16 %v408
  %v495 = vunpack.c.l.b16 %v409
  %v496 = vunpack.c.h.b16 %v409
  %v497 = vunpack.c.l.b16 %v410
  %v498 = vunpack.c.h.b16 %v410
  %v499 = vunpack.c.l.b16 %v411
  %v500 = vunpack.c.h.b16 %v411
  %v501 = vunpack.c.l.b16 %v412
  %v502 = vunpack.c.h.b16 %v412
  %v503 = vunpack.c.l.b16 %v413
  %v504 = vunpack.c.h.b16 %v413
  %v505 = vunpack.c.l.b16 %v414
  %v506 = vunpack.c.h.b16 %v414
  %v507 = vunpack.c.l.b16 %v415
  %v508 = vunpack.c.h.b16 %v415
  %v509 = vunpack.c.l.b16 %v416
  %v510 = vunpack.c.h.b16 %v416
  %v511 = vunpack.c.l.b16 %v417
  %v512 = vunpack.c.h.b16 %v417
  %v513 = vunpack.c.l.b16 %v418
  %v514 = vunpack.c.h.b16 %v418
  %v515 = vunpack.c.l.b16 %v419
  %v516 = vunpack.c.h.b16 %v419
  %v517 = vpack.c.b16 %v485, %v483
  %v518 = vpack.c.b16 %v486, %v484
  %v519 = vpack.c.b16 %v489, %v487
  %v520 = vpack.c.b16 %v490, %v488
  %v521 = vpack.c.b16 %v493, %v491
  %v522 = vpack.c.b16 %v494, %v492
  %v523 = vpack.c.b16 %v497, %v495
  %v524 = vpack.c.b16 %v498, %v496
  %v525 = vpack.c.b16 %v501, %v499
  %v526 = vpack.c.b16 %v502, %v500
  %v527 = vpack.c.b16 %v505, %v503
  %v528 = vpack.c.b16 %v506, %v504
  %v529 = vpack.c.b16 %v509, %v507
  %v530 = vpack.c.b16 %v510, %v508
  %v531 = vpack.c.b16 %v513, %v511
  %v532 = vpack.c.b16 %v514, %v512
  %v533 = vpack.c.b16 %v515, %v515
  %v534 = vpack.c.b16 %v516, %v516
  %v552 = vsel %vm167, %v447, 0
  %v555 = vsel %vm167, %v463, 0
  %v558 = vsel %vm174, %v533, 0
  %v561 = vsel %vm174, %v534, 0
  %563 = vmatprep.subr.bf16.mxu0 %v518
  %564 = vmatpush1.bf16.msra.mxu0 %v517
  %565 = vmatprep.subr.bf16.mxu0 %v520
  %566 = vmatpush1.bf16.msra.mxu0 %v519
  %567 = vmatprep.subr.bf16.mxu0 %v522
  %568 = vmatpush1.bf16.msra.mxu0 %v521
  %569 = vmatprep.subr.bf16.mxu0 %v524
  %570 = vmatpush1.bf16.msra.mxu0 %v523
  %571 = vmatprep.subr.bf16.mxu0 %v526
  %572 = vmatpush1.bf16.msra.mxu0 %v525
  %573 = vmatprep.subr.bf16.mxu0 %v528
  %574 = vmatpush1.bf16.msra.mxu0 %v527
  %575 = vmatprep.subr.bf16.mxu0 %v530
  %576 = vmatpush1.bf16.msra.mxu0 %v529
  %577 = vmatprep.subr.bf16.mxu0 %v532
  %578 = vmatpush1.bf16.msra.mxu0 %v531
  %579 = vmatprep.subr.bf16.mxu0 %v561
  %580 = vmatpush1.bf16.msra.mxu0 %v558
  %581 = vmatprep.subr.bf16.mxu0 0
  %582 = vmatpush1.bf16.msra.mxu0 0
  %583 = vmatprep.subr.bf16.mxu0 0
  %584 = vmatpush1.bf16.msra.mxu0 0
  %585 = vmatprep.subr.bf16.mxu0 0
  %586 = vmatpush1.bf16.msra.mxu0 0
  %587 = vmatprep.subr.bf16.mxu0 0
  %588 = vmatpush1.bf16.msra.mxu0 0
  %589 = vmatprep.subr.bf16.mxu0 0
  %590 = vmatpush1.bf16.msra.mxu0 0
  %591 = vmatprep.subr.bf16.mxu0 0
  %592 = vmatpush1.bf16.msra.mxu0 0
  %593 = vmatprep.subr.bf16.mxu0 0
  %594 = vmatpush1.bf16.msra.mxu0 0
  %595 = vmatprep.mubr.bf16.mxu0 %v552
  %596 = vmatmul.mubr.bf16.gmra.mrb[0].mxu0 %v437
  %v597 = vpop.f32.mrb[0].mxu0
  %v598 = vadd.f32 0.0, %v597
  %v599 = vpop.f32.mrb[0].mxu0
  %v600 = vadd.f32 0.0, %v599
  %v601 = vpop.f32.mrb[0].mxu0
  %v602 = vadd.f32 0.0, %v601
  %v603 = vpop.f32.mrb[0].mxu0
  %v604 = vadd.f32 0.0, %v603
  %605 = vmatprep.mubr.bf16.mxu0 %v555
  %606 = vmatmul.mubr.bf16.gmra.mrb[0].mxu0 %v455
  %v607 = vpop.f32.mrb[0].mxu0
  %v608 = vadd.f32 0.0, %v607
  %v609 = vpop.f32.mrb[0].mxu0
  %v610 = vadd.f32 0.0, %v609
  %v611 = vpop.f32.mrb[0].mxu0
  %v612 = vadd.f32 0.0, %v611
  %v613 = vpop.f32.mrb[0].mxu0
  %v614 = vadd.f32 0.0, %v613
  %615 = vdwg.mxu0
  %v616 = vadd.f32 %v384, %v598
  %v617 = vadd.f32 %v386, %v600
  %v618 = vadd.f32 %v388, %v602
  %v619 = vadd.f32 %v390, %v604
  %v620 = vadd.f32 %v394, %v608
  %v621 = vadd.f32 %v396, %v610
  %v622 = vadd.f32 %v398, %v612
  %v623 = vadd.f32 %v400, %v614
  %s624 = scalar_lea.vmem %s2, 408
  %v625 = vld [vmem:[%s624] sm:$0xff]
  %v626 = vld [vmem:[%s624 + $0x8] sm:$0xff]
  %v627 = vld [vmem:[%s624 + $0x10] sm:$0xff]
  %v628 = vld [vmem:[%s624 + $0x18] sm:$0xff]
  %v629 = vld [vmem:[%s624 + $0x20] sm:$0xff]
  %v630 = vld [vmem:[%s624 + $0x28] sm:$0xff]
  %v631 = vld [vmem:[%s624 + $0x30] sm:$0xff]
  %v632 = vld [vmem:[%s624 + $0x38] sm:$0xff]
  %v633 = vld [vmem:[%s624 + $0x40] sm:$0xff]
  %v634 = vld [vmem:[%s624 + $0x48] sm:$0xff]
  %v635 = vld [vmem:[%s624 + $0x50] sm:$0xff]
  %v636 = vld [vmem:[%s624 + $0x58] sm:$0xff]
  %v637 = vld [vmem:[%s624 + $0x60] sm:$0xff]
  %v638 = vld [vmem:[%s624 + $0x68] sm:$0xff]
  %v639 = vld [vmem:[%s624 + $0x70] sm:$0xff]
  %v640 = vld [vmem:[%s624 + $0x78] sm:$0xff]
  %v641 = vld [vmem:[%s624 + $0x80] sm:$0x33]
  %v643 = vunpack.c.l.b16 %v28
  %v644 = vunpack.c.h.b16 %v28
  %v645 = vpack.c.b16 %v643, %v643
  %v646 = vpack.c.b16 %v644, %v644
  %v648 = vshrl.u32 %v76, 16
  %v650 = vshll.u32 %v76, 16
  %v652 = vrot.slane %v650, 1
  %v653 = vor.u32 %v648, %v652
  %v655 = vshll.u32 %v78, 16
  %v657 = vrot.slane %v655, 1
  %v658 = vsel %vm425, %v653, %v657
  %v659 = vshrl.u32 %v77, 16
  %v661 = vshll.u32 %v77, 16
  %v663 = vrot.slane %v661, 1
  %v664 = vor.u32 %v659, %v663
  %v665 = vshll.u32 %v79, 16
  %v667 = vrot.slane %v665, 1
  %v668 = vsel %vm425, %v664, %v667
  %v669 = vshrl.u32 %v78, 16
  %v671 = vor.u32 %v669, %v657
  %v673 = vshll.u32 %v645, 16
  %v675 = vrot.slane %v673, 1
  %v676 = vsel %vm425, %v671, %v675
  %v677 = vshrl.u32 %v79, 16
  %v679 = vor.u32 %v677, %v667
  %v681 = vshll.u32 %v646, 16
  %v683 = vrot.slane %v681, 1
  %v684 = vsel %vm425, %v679, %v683
  %v704 = vunpack.c.l.b16 %v625
  %v705 = vunpack.c.h.b16 %v625
  %v706 = vunpack.c.l.b16 %v626
  %v707 = vunpack.c.h.b16 %v626
  %v708 = vunpack.c.l.b16 %v627
  %v709 = vunpack.c.h.b16 %v627
  %v710 = vunpack.c.l.b16 %v628
  %v711 = vunpack.c.h.b16 %v628
  %v712 = vunpack.c.l.b16 %v629
  %v713 = vunpack.c.h.b16 %v629
  %v714 = vunpack.c.l.b16 %v630
  %v715 = vunpack.c.h.b16 %v630
  %v716 = vunpack.c.l.b16 %v631
  %v717 = vunpack.c.h.b16 %v631
  %v718 = vunpack.c.l.b16 %v632
  %v719 = vunpack.c.h.b16 %v632
  %v720 = vunpack.c.l.b16 %v633
  %v721 = vunpack.c.h.b16 %v633
  %v722 = vunpack.c.l.b16 %v634
  %v723 = vunpack.c.h.b16 %v634
  %v724 = vunpack.c.l.b16 %v635
  %v725 = vunpack.c.h.b16 %v635
  %v726 = vunpack.c.l.b16 %v636
  %v727 = vunpack.c.h.b16 %v636
  %v728 = vunpack.c.l.b16 %v637
  %v729 = vunpack.c.h.b16 %v637
  %v730 = vunpack.c.l.b16 %v638
  %v731 = vunpack.c.h.b16 %v638
  %v732 = vunpack.c.l.b16 %v639
  %v733 = vunpack.c.h.b16 %v639
  %v734 = vunpack.c.l.b16 %v640
  %v735 = vunpack.c.h.b16 %v640
  %v736 = vunpack.c.l.b16 %v641
  %v737 = vunpack.c.h.b16 %v641
  %v738 = vpack.c.b16 %v706, %v704
  %v739 = vpack.c.b16 %v707, %v705
  %v740 = vpack.c.b16 %v710, %v708
  %v741 = vpack.c.b16 %v711, %v709
  %v742 = vpack.c.b16 %v714, %v712
  %v743 = vpack.c.b16 %v715, %v713
  %v744 = vpack.c.b16 %v718, %v716
  %v745 = vpack.c.b16 %v719, %v717
  %v746 = vpack.c.b16 %v722, %v720
  %v747 = vpack.c.b16 %v723, %v721
  %v748 = vpack.c.b16 %v726, %v724
  %v749 = vpack.c.b16 %v727, %v725
  %v750 = vpack.c.b16 %v730, %v728
  %v751 = vpack.c.b16 %v731, %v729
  %v752 = vpack.c.b16 %v734, %v732
  %v753 = vpack.c.b16 %v735, %v733
  %v754 = vpack.c.b16 %v736, %v736
  %v755 = vpack.c.b16 %v737, %v737
  %v773 = vsel %vm167, %v668, 0
  %v776 = vsel %vm167, %v684, 0
  %v779 = vsel %vm174, %v754, 0
  %v782 = vsel %vm174, %v755, 0
  %784 = vmatprep.subr.bf16.mxu0 %v739
  %785 = vmatpush1.bf16.msra.mxu0 %v738
  %786 = vmatprep.subr.bf16.mxu0 %v741
  %787 = vmatpush1.bf16.msra.mxu0 %v740
  %788 = vmatprep.subr.bf16.mxu0 %v743
  %789 = vmatpush1.bf16.msra.mxu0 %v742
  %790 = vmatprep.subr.bf16.mxu0 %v745
  %791 = vmatpush1.bf16.msra.mxu0 %v744
  %792 = vmatprep.subr.bf16.mxu0 %v747
  %793 = vmatpush1.bf16.msra.mxu0 %v746
  %794 = vmatprep.subr.bf16.mxu0 %v749
  %795 = vmatpush1.bf16.msra.mxu0 %v748
  %796 = vmatprep.subr.bf16.mxu0 %v751
  %797 = vmatpush1.bf16.msra.mxu0 %v750
  %798 = vmatprep.subr.bf16.mxu0 %v753
  %799 = vmatpush1.bf16.msra.mxu0 %v752
  %800 = vmatprep.subr.bf16.mxu0 %v782
  %801 = vmatpush1.bf16.msra.mxu0 %v779
  %802 = vmatprep.subr.bf16.mxu0 0
  %803 = vmatpush1.bf16.msra.mxu0 0
  %804 = vmatprep.subr.bf16.mxu0 0
  %805 = vmatpush1.bf16.msra.mxu0 0
  %806 = vmatprep.subr.bf16.mxu0 0
  %807 = vmatpush1.bf16.msra.mxu0 0
  %808 = vmatprep.subr.bf16.mxu0 0
  %809 = vmatpush1.bf16.msra.mxu0 0
  %810 = vmatprep.subr.bf16.mxu0 0
  %811 = vmatpush1.bf16.msra.mxu0 0
  %812 = vmatprep.subr.bf16.mxu0 0
  %813 = vmatpush1.bf16.msra.mxu0 0
  %814 = vmatprep.subr.bf16.mxu0 0
  %815 = vmatpush1.bf16.msra.mxu0 0
  %816 = vmatprep.mubr.bf16.mxu0 %v773
  %817 = vmatmul.mubr.bf16.gmra.mrb[0].mxu0 %v658
  %v818 = vpop.f32.mrb[0].mxu0
  %v819 = vadd.f32 0.0, %v818
  %v820 = vpop.f32.mrb[0].mxu0
  %v821 = vadd.f32 0.0, %v820
  %v822 = vpop.f32.mrb[0].mxu0
  %v823 = vadd.f32 0.0, %v822
  %v824 = vpop.f32.mrb[0].mxu0
  %v825 = vadd.f32 0.0, %v824
  %826 = vmatprep.mubr.bf16.mxu0 %v776
  %827 = vmatmul.mubr.bf16.gmra.mrb[0].mxu0 %v676
  %v828 = vpop.f32.mrb[0].mxu0
  %v829 = vadd.f32 0.0, %v828
  %v830 = vpop.f32.mrb[0].mxu0
  %v831 = vadd.f32 0.0, %v830
  %v832 = vpop.f32.mrb[0].mxu0
  %v833 = vadd.f32 0.0, %v832
  %v834 = vpop.f32.mrb[0].mxu0
  %v835 = vadd.f32 0.0, %v834
  %836 = vdwg.mxu0
  %v837 = vadd.f32 %v616, %v819
  %v838 = vadd.f32 %v617, %v821
  %v839 = vadd.f32 %v618, %v823
  %v840 = vadd.f32 %v619, %v825
  %v841 = vadd.f32 %v620, %v829
  %v842 = vadd.f32 %v621, %v831
  %v843 = vadd.f32 %v622, %v833
  %v844 = vadd.f32 %v623, %v835
  %v846 = vlaneseq
  %v847 = vshrl.u32 %v846, 7
  %v848 = vsub.s32 0, %v847
  %v849 = vrot.slane %v18, %v848
  %v850 = vlaneseq
  %v851 = vshrl.u32 %v850, 7
  %v852 = vsub.s32 1, %v851
  %v853 = vrot.slane %v18, %v852
  %v856 = vadd.f32 %v837, %v849
  %v857 = vadd.f32 %v838, %v853
  %v858 = vadd.f32 %v839, %v849
  %v859 = vadd.f32 %v840, %v853
  %v860 = vadd.f32 %v841, %v849
  %v861 = vadd.f32 %v842, %v853
  %v862 = vadd.f32 %v843, %v849
  %v863 = vadd.f32 %v844, %v853
  %vm864 = vcmp.ge.f32.partialorder %v856, 0.0
  %vm865 = vcmp.ge.f32.partialorder %v857, 0.0
  %vm866 = vcmp.ge.f32.partialorder %v858, 0.0
  %vm867 = vcmp.ge.f32.partialorder %v859, 0.0
  %vm868 = vcmp.ge.f32.partialorder %v860, 0.0
  %vm869 = vcmp.ge.f32.partialorder %v861, 0.0
  %vm870 = vcmp.ge.f32.partialorder %v862, 0.0
  %vm871 = vcmp.ge.f32.partialorder %v863, 0.0
  %v872 = vmul.f32 %v856, 0.2
  %v873 = vmul.f32 %v857, 0.2
  %v874 = vmul.f32 %v858, 0.2
  %v875 = vmul.f32 %v859, 0.2
  %v876 = vmul.f32 %v860, 0.2
  %v877 = vmul.f32 %v861, 0.2
  %v878 = vmul.f32 %v862, 0.2
  %v879 = vmul.f32 %v863, 0.2
  %v880 = vsel %vm864, %v856, %v872
  %v881 = vsel %vm865, %v857, %v873
  %v882 = vsel %vm866, %v858, %v874
  %v883 = vsel %vm867, %v859, %v875
  %v884 = vsel %vm868, %v860, %v876
  %v885 = vsel %vm869, %v861, %v877
  %v886 = vsel %vm870, %v862, %v878
  %v887 = vsel %vm871, %v863, %v879
  %v888 = vpack.c.bf16 %v882, %v880
  %v889 = vpack.c.bf16 %v883, %v881
  %v890 = vpack.c.bf16 %v886, %v884
  %v891 = vpack.c.bf16 %v887, %v885
  %v896 = vunpack.c.l.b16 %v888
  %v897 = vunpack.c.l.b16 %v889
  %v898 = vunpack.c.h.b16 %v888
  %v899 = vunpack.c.h.b16 %v889
  %v900 = vunpack.c.l.b16 %v890
  %v901 = vunpack.c.l.b16 %v891
  %v902 = vunpack.c.h.b16 %v890
  %v903 = vunpack.c.h.b16 %v891
  %v904 = vpack.c.b16 %v897, %v896
  %v905 = vpack.c.b16 %v899, %v898
  %v906 = vpack.c.b16 %v901, %v900
  %v907 = vpack.c.b16 %v903, %v902
  %912 = vst [vmem:[%s4] sm:$0xff] %v904
  %913 = vst [vmem:[%s4 + $0x8] sm:$0xff] %v905
  %914 = vst [vmem:[%s4 + $0x10] sm:$0xff] %v906
  %915 = vst [vmem:[%s4 + $0x18] sm:$0xff] %v907
  %s916 = scalar_lea.vmem %s0, 40
  %v917 = vld [vmem:[%s916] sm:$0xff]
  %v918 = vld [vmem:[%s916 + $0x8] sm:$0xff]
  %v919 = vld [vmem:[%s916 + $0x10] sm:$0xff]
  %v920 = vld [vmem:[%s916 + $0x18] sm:$0xff]
  %v921 = vld [vmem:[%s916 + $0x20] sm:$0x11]
  %s922 = scalar_lea.vmem %s1, 40
  %v923 = vld [vmem:[%s922] sm:$0xff]
  %v924 = vld [vmem:[%s922 + $0x8] sm:$0xff]
  %v925 = vld [vmem:[%s922 + $0x10] sm:$0xff]
  %v926 = vld [vmem:[%s922 + $0x18] sm:$0xff]
  %v927 = vld [vmem:[%s922 + $0x20] sm:$0x11]
  %v928 = vld [vmem:[%s2] sm:$0xff]
  %v929 = vld [vmem:[%s2 + $0x8] sm:$0xff]
  %v930 = vld [vmem:[%s2 + $0x10] sm:$0xff]
  %v931 = vld [vmem:[%s2 + $0x18] sm:$0xff]
  %v932 = vld [vmem:[%s2 + $0x20] sm:$0xff]
  %v933 = vld [vmem:[%s2 + $0x28] sm:$0xff]
  %v934 = vld [vmem:[%s2 + $0x30] sm:$0xff]
  %v935 = vld [vmem:[%s2 + $0x38] sm:$0xff]
  %v936 = vld [vmem:[%s2 + $0x40] sm:$0xff]
  %v937 = vld [vmem:[%s2 + $0x48] sm:$0xff]
  %v938 = vld [vmem:[%s2 + $0x50] sm:$0xff]
  %v939 = vld [vmem:[%s2 + $0x58] sm:$0xff]
  %v940 = vld [vmem:[%s2 + $0x60] sm:$0xff]
  %v941 = vld [vmem:[%s2 + $0x68] sm:$0xff]
  %v942 = vld [vmem:[%s2 + $0x70] sm:$0xff]
  %v943 = vld [vmem:[%s2 + $0x78] sm:$0xff]
  %v944 = vld [vmem:[%s2 + $0x80] sm:$0x33]
  %v945 = vld [vmem:[%s46] sm:$0xff]
  %v946 = vld [vmem:[%s46 + $0x8] sm:$0xff]
  %v947 = vld [vmem:[%s46 + $0x10] sm:$0xff]
  %v948 = vld [vmem:[%s46 + $0x18] sm:$0xff]
  %v949 = vld [vmem:[%s46 + $0x20] sm:$0xff]
  %v950 = vld [vmem:[%s46 + $0x28] sm:$0xff]
  %v951 = vld [vmem:[%s46 + $0x30] sm:$0xff]
  %v952 = vld [vmem:[%s46 + $0x38] sm:$0xff]
  %v953 = vld [vmem:[%s46 + $0x40] sm:$0xff]
  %v954 = vld [vmem:[%s46 + $0x48] sm:$0xff]
  %v955 = vld [vmem:[%s46 + $0x50] sm:$0xff]
  %v956 = vld [vmem:[%s46 + $0x58] sm:$0xff]
  %v957 = vld [vmem:[%s46 + $0x60] sm:$0xff]
  %v958 = vld [vmem:[%s46 + $0x68] sm:$0xff]
  %v959 = vld [vmem:[%s46 + $0x70] sm:$0xff]
  %v960 = vld [vmem:[%s46 + $0x78] sm:$0xff]
  %v961 = vld [vmem:[%s46 + $0x80] sm:$0x33]
  %v966 = vunpack.c.l.b16 %v923
  %v967 = vunpack.c.h.b16 %v923
  %v968 = vunpack.c.l.b16 %v924
  %v969 = vunpack.c.h.b16 %v924
  %v970 = vunpack.c.l.b16 %v925
  %v971 = vunpack.c.h.b16 %v925
  %v972 = vunpack.c.l.b16 %v926
  %v973 = vunpack.c.h.b16 %v926
  %v974 = vpack.c.b16 %v968, %v966
  %v975 = vpack.c.b16 %v969, %v967
  %v976 = vpack.c.b16 %v972, %v970
  %v977 = vpack.c.b16 %v973, %v971
  %v997 = vunpack.c.l.b16 %v945
  %v998 = vunpack.c.h.b16 %v945
  %v999 = vunpack.c.l.b16 %v946
  %v1000 = vunpack.c.h.b16 %v946
  %v1001 = vunpack.c.l.b16 %v947
  %v1002 = vunpack.c.h.b16 %v947
  %v1003 = vunpack.c.l.b16 %v948
  %v1004 = vunpack.c.h.b16 %v948
  %v1005 = vunpack.c.l.b16 %v949
  %v1006 = vunpack.c.h.b16 %v949
  %v1007 = vunpack.c.l.b16 %v950
  %v1008 = vunpack.c.h.b16 %v950
  %v1009 = vunpack.c.l.b16 %v951
  %v1010 = vunpack.c.h.b16 %v951
  %v1011 = vunpack.c.l.b16 %v952
  %v1012 = vunpack.c.h.b16 %v952
  %v1013 = vunpack.c.l.b16 %v953
  %v1014 = vunpack.c.h.b16 %v953
  %v1015 = vunpack.c.l.b16 %v954
  %v1016 = vunpack.c.h.b16 %v954
  %v1017 = vunpack.c.l.b16 %v955
  %v1018 = vunpack.c.h.b16 %v955
  %v1019 = vunpack.c.l.b16 %v956
  %v1020 = vunpack.c.h.b16 %v956
  %v1021 = vunpack.c.l.b16 %v957
  %v1022 = vunpack.c.h.b16 %v957
  %v1023 = vunpack.c.l.b16 %v958
  %v1024 = vunpack.c.h.b16 %v958
  %v1025 = vunpack.c.l.b16 %v959
  %v1026 = vunpack.c.h.b16 %v959
  %v1027 = vunpack.c.l.b16 %v960
  %v1028 = vunpack.c.h.b16 %v960
  %v1029 = vunpack.c.l.b16 %v961
  %v1030 = vunpack.c.h.b16 %v961
  %v1031 = vpack.c.b16 %v999, %v997
  %v1032 = vpack.c.b16 %v1000, %v998
  %v1033 = vpack.c.b16 %v1003, %v1001
  %v1034 = vpack.c.b16 %v1004, %v1002
  %v1035 = vpack.c.b16 %v1007, %v1005
  %v1036 = vpack.c.b16 %v1008, %v1006
  %v1037 = vpack.c.b16 %v1011, %v1009
  %v1038 = vpack.c.b16 %v1012, %v1010
  %v1039 = vpack.c.b16 %v1015, %v1013
  %v1040 = vpack.c.b16 %v1016, %v1014
  %v1041 = vpack.c.b16 %v1019, %v1017
  %v1042 = vpack.c.b16 %v1020, %v1018
  %v1043 = vpack.c.b16 %v1023, %v1021
  %v1044 = vpack.c.b16 %v1024, %v1022
  %v1045 = vpack.c.b16 %v1027, %v1025
  %v1046 = vpack.c.b16 %v1028, %v1026
  %v1047 = vpack.c.b16 %v1029, %v1029
  %v1048 = vpack.c.b16 %v1030, %v1030
  %v1066 = vsel %vm167, %v975, 0
  %v1069 = vsel %vm167, %v977, 0
  %v1072 = vsel %vm174, %v1047, 0
  %v1075 = vsel %vm174, %v1048, 0
  %1077 = vmatprep.subr.bf16.mxu0 %v1032
  %1078 = vmatpush1.bf16.msra.mxu0 %v1031
  %1079 = vmatprep.subr.bf16.mxu0 %v1034
  %1080 = vmatpush1.bf16.msra.mxu0 %v1033
  %1081 = vmatprep.subr.bf16.mxu0 %v1036
  %1082 = vmatpush1.bf16.msra.mxu0 %v1035
  %1083 = vmatprep.subr.bf16.mxu0 %v1038
  %1084 = vmatpush1.bf16.msra.mxu0 %v1037
  %1085 = vmatprep.subr.bf16.mxu0 %v1040
  %1086 = vmatpush1.bf16.msra.mxu0 %v1039
  %1087 = vmatprep.subr.bf16.mxu0 %v1042
  %1088 = vmatpush1.bf16.msra.mxu0 %v1041
  %1089 = vmatprep.subr.bf16.mxu0 %v1044
  %1090 = vmatpush1.bf16.msra.mxu0 %v1043
  %1091 = vmatprep.subr.bf16.mxu0 %v1046
  %1092 = vmatpush1.bf16.msra.mxu0 %v1045
  %1093 = vmatprep.subr.bf16.mxu0 %v1075
  %1094 = vmatpush1.bf16.msra.mxu0 %v1072
  %1095 = vmatprep.subr.bf16.mxu0 0
  %1096 = vmatpush1.bf16.msra.mxu0 0
  %1097 = vmatprep.subr.bf16.mxu0 0
  %1098 = vmatpush1.bf16.msra.mxu0 0
  %1099 = vmatprep.subr.bf16.mxu0 0
  %1100 = vmatpush1.bf16.msra.mxu0 0
  %1101 = vmatprep.subr.bf16.mxu0 0
  %1102 = vmatpush1.bf16.msra.mxu0 0
  %1103 = vmatprep.subr.bf16.mxu0 0
  %1104 = vmatpush1.bf16.msra.mxu0 0
  %1105 = vmatprep.subr.bf16.mxu0 0
  %1106 = vmatpush1.bf16.msra.mxu0 0
  %1107 = vmatprep.subr.bf16.mxu0 0
  %1108 = vmatpush1.bf16.msra.mxu0 0
  %1109 = vmatprep.mubr.bf16.mxu0 %v1066
  %1110 = vmatmul.mubr.bf16.gmra.mrb[0].mxu0 %v974
  %v1111 = vpop.f32.mrb[0].mxu0
  %v1112 = vadd.f32 0.0, %v1111
  %v1113 = vpop.f32.mrb[0].mxu0
  %v1114 = vadd.f32 0.0, %v1113
  %v1115 = vpop.f32.mrb[0].mxu0
  %v1116 = vadd.f32 0.0, %v1115
  %v1117 = vpop.f32.mrb[0].mxu0
  %v1118 = vadd.f32 0.0, %v1117
  %1119 = vmatprep.mubr.bf16.mxu0 %v1069
  %1120 = vmatmul.mubr.bf16.gmra.mrb[0].mxu0 %v976
  %v1121 = vpop.f32.mrb[0].mxu0
  %v1122 = vadd.f32 0.0, %v1121
  %v1123 = vpop.f32.mrb[0].mxu0
  %v1124 = vadd.f32 0.0, %v1123
  %v1125 = vpop.f32.mrb[0].mxu0
  %v1126 = vadd.f32 0.0, %v1125
  %v1127 = vpop.f32.mrb[0].mxu0
  %v1128 = vadd.f32 0.0, %v1127
  %1129 = vdwg.mxu0
  %v1134 = vunpack.c.l.b16 %v917
  %v1135 = vunpack.c.h.b16 %v917
  %v1136 = vunpack.c.l.b16 %v918
  %v1137 = vunpack.c.h.b16 %v918
  %v1138 = vunpack.c.l.b16 %v919
  %v1139 = vunpack.c.h.b16 %v919
  %v1140 = vunpack.c.l.b16 %v920
  %v1141 = vunpack.c.h.b16 %v920
  %v1142 = vpack.c.b16 %v1136, %v1134
  %v1143 = vpack.c.b16 %v1137, %v1135
  %v1144 = vpack.c.b16 %v1140, %v1138
  %v1145 = vpack.c.b16 %v1141, %v1139
  %v1165 = vunpack.c.l.b16 %v928
  %v1166 = vunpack.c.h.b16 %v928
  %v1167 = vunpack.c.l.b16 %v929
  %v1168 = vunpack.c.h.b16 %v929
  %v1169 = vunpack.c.l.b16 %v930
  %v1170 = vunpack.c.h.b16 %v930
  %v1171 = vunpack.c.l.b16 %v931
  %v1172 = vunpack.c.h.b16 %v931
  %v1173 = vunpack.c.l.b16 %v932
  %v1174 = vunpack.c.h.b16 %v932
  %v1175 = vunpack.c.l.b16 %v933
  %v1176 = vunpack.c.h.b16 %v933
  %v1177 = vunpack.c.l.b16 %v934
  %v1178 = vunpack.c.h.b16 %v934
  %v1179 = vunpack.c.l.b16 %v935
  %v1180 = vunpack.c.h.b16 %v935
  %v1181 = vunpack.c.l.b16 %v936
  %v1182 = vunpack.c.h.b16 %v936
  %v1183 = vunpack.c.l.b16 %v937
  %v1184 = vunpack.c.h.b16 %v937
  %v1185 = vunpack.c.l.b16 %v938
  %v1186 = vunpack.c.h.b16 %v938
  %v1187 = vunpack.c.l.b16 %v939
  %v1188 = vunpack.c.h.b16 %v939
  %v1189 = vunpack.c.l.b16 %v940
  %v1190 = vunpack.c.h.b16 %v940
  %v1191 = vunpack.c.l.b16 %v941
  %v1192 = vunpack.c.h.b16 %v941
  %v1193 = vunpack.c.l.b16 %v942
  %v1194 = vunpack.c.h.b16 %v942
  %v1195 = vunpack.c.l.b16 %v943
  %v1196 = vunpack.c.h.b16 %v943
  %v1197 = vunpack.c.l.b16 %v944
  %v1198 = vunpack.c.h.b16 %v944
  %v1199 = vpack.c.b16 %v1167, %v1165
  %v1200 = vpack.c.b16 %v1168, %v1166
  %v1201 = vpack.c.b16 %v1171, %v1169
  %v1202 = vpack.c.b16 %v1172, %v1170
  %v1203 = vpack.c.b16 %v1175, %v1173
  %v1204 = vpack.c.b16 %v1176, %v1174
  %v1205 = vpack.c.b16 %v1179, %v1177
  %v1206 = vpack.c.b16 %v1180, %v1178
  %v1207 = vpack.c.b16 %v1183, %v1181
  %v1208 = vpack.c.b16 %v1184, %v1182
  %v1209 = vpack.c.b16 %v1187, %v1185
  %v1210 = vpack.c.b16 %v1188, %v1186
  %v1211 = vpack.c.b16 %v1191, %v1189
  %v1212 = vpack.c.b16 %v1192, %v1190
  %v1213 = vpack.c.b16 %v1195, %v1193
  %v1214 = vpack.c.b16 %v1196, %v1194
  %v1215 = vpack.c.b16 %v1197, %v1197
  %v1216 = vpack.c.b16 %v1198, %v1198
  %v1234 = vsel %vm167, %v1143, 0
  %v1237 = vsel %vm167, %v1145, 0
  %v1240 = vsel %vm174, %v1215, 0
  %v1243 = vsel %vm174, %v1216, 0
  %1245 = vmatprep.subr.bf16.mxu0 %v1200
  %1246 = vmatpush1.bf16.msra.mxu0 %v1199
  %1247 = vmatprep.subr.bf16.mxu0 %v1202
  %1248 = vmatpush1.bf16.msra.mxu0 %v1201
  %1249 = vmatprep.subr.bf16.mxu0 %v1204
  %1250 = vmatpush1.bf16.msra.mxu0 %v1203
  %1251 = vmatprep.subr.bf16.mxu0 %v1206
  %1252 = vmatpush1.bf16.msra.mxu0 %v1205
  %1253 = vmatprep.subr.bf16.mxu0 %v1208
  %1254 = vmatpush1.bf16.msra.mxu0 %v1207
  %1255 = vmatprep.subr.bf16.mxu0 %v1210
  %1256 = vmatpush1.bf16.msra.mxu0 %v1209
  %1257 = vmatprep.subr.bf16.mxu0 %v1212
  %1258 = vmatpush1.bf16.msra.mxu0 %v1211
  %1259 = vmatprep.subr.bf16.mxu0 %v1214
  %1260 = vmatpush1.bf16.msra.mxu0 %v1213
  %1261 = vmatprep.subr.bf16.mxu0 %v1243
  %1262 = vmatpush1.bf16.msra.mxu0 %v1240
  %1263 = vmatprep.subr.bf16.mxu0 0
  %1264 = vmatpush1.bf16.msra.mxu0 0
  %1265 = vmatprep.subr.bf16.mxu0 0
  %1266 = vmatpush1.bf16.msra.mxu0 0
  %1267 = vmatprep.subr.bf16.mxu0 0
  %1268 = vmatpush1.bf16.msra.mxu0 0
  %1269 = vmatprep.subr.bf16.mxu0 0
  %1270 = vmatpush1.bf16.msra.mxu0 0
  %1271 = vmatprep.subr.bf16.mxu0 0
  %1272 = vmatpush1.bf16.msra.mxu0 0
  %1273 = vmatprep.subr.bf16.mxu0 0
  %1274 = vmatpush1.bf16.msra.mxu0 0
  %1275 = vmatprep.subr.bf16.mxu0 0
  %1276 = vmatpush1.bf16.msra.mxu0 0
  %1277 = vmatprep.mubr.bf16.mxu0 %v1234
  %1278 = vmatmul.mubr.bf16.gmra.mrb[0].mxu0 %v1142
  %v1279 = vpop.f32.mrb[0].mxu0
  %v1280 = vadd.f32 %v1112, %v1279
  %v1281 = vpop.f32.mrb[0].mxu0
  %v1282 = vadd.f32 %v1114, %v1281
  %v1283 = vpop.f32.mrb[0].mxu0
  %v1284 = vadd.f32 %v1116, %v1283
  %v1285 = vpop.f32.mrb[0].mxu0
  %v1286 = vadd.f32 %v1118, %v1285
  %1287 = vmatprep.mubr.bf16.mxu0 %v1237
  %1288 = vmatmul.mubr.bf16.gmra.mrb[0].mxu0 %v1144
  %v1289 = vpop.f32.mrb[0].mxu0
  %v1290 = vadd.f32 %v1122, %v1289
  %v1291 = vpop.f32.mrb[0].mxu0
  %v1292 = vadd.f32 %v1124, %v1291
  %v1293 = vpop.f32.mrb[0].mxu0
  %v1294 = vadd.f32 %v1126, %v1293
  %v1295 = vpop.f32.mrb[0].mxu0
  %v1296 = vadd.f32 %v1128, %v1295
  %1297 = vdwg.mxu0
  %v1298 = vld [vmem:[%s402] sm:$0xff]
  %v1299 = vld [vmem:[%s402 + $0x8] sm:$0xff]
  %v1300 = vld [vmem:[%s402 + $0x10] sm:$0xff]
  %v1301 = vld [vmem:[%s402 + $0x18] sm:$0xff]
  %v1302 = vld [vmem:[%s402 + $0x20] sm:$0xff]
  %v1303 = vld [vmem:[%s402 + $0x28] sm:$0xff]
  %v1304 = vld [vmem:[%s402 + $0x30] sm:$0xff]
  %v1305 = vld [vmem:[%s402 + $0x38] sm:$0xff]
  %v1306 = vld [vmem:[%s402 + $0x40] sm:$0xff]
  %v1307 = vld [vmem:[%s402 + $0x48] sm:$0xff]
  %v1308 = vld [vmem:[%s402 + $0x50] sm:$0xff]
  %v1309 = vld [vmem:[%s402 + $0x58] sm:$0xff]
  %v1310 = vld [vmem:[%s402 + $0x60] sm:$0xff]
  %v1311 = vld [vmem:[%s402 + $0x68] sm:$0xff]
  %v1312 = vld [vmem:[%s402 + $0x70] sm:$0xff]
  %v1313 = vld [vmem:[%s402 + $0x78] sm:$0xff]
  %v1314 = vld [vmem:[%s402 + $0x80] sm:$0x33]
  %v1316 = vunpack.c.l.b16 %v921
  %v1317 = vunpack.c.h.b16 %v921
  %v1318 = vpack.c.b16 %v1316, %v1316
  %v1319 = vpack.c.b16 %v1317, %v1317
  %v1321 = vshrl.u32 %v1142, 16
  %v1323 = vshll.u32 %v1142, 16
  %v1325 = vrot.slane %v1323, 1
  %v1326 = vor.u32 %v1321, %v1325
  %v1328 = vshll.u32 %v1144, 16
  %v1330 = vrot.slane %v1328, 1
  %v1331 = vsel %vm425, %v1326, %v1330
  %v1332 = vshrl.u32 %v1143, 16
  %v1334 = vshll.u32 %v1143, 16
  %v1336 = vrot.slane %v1334, 1
  %v1337 = vor.u32 %v1332, %v1336
  %v1338 = vshll.u32 %v1145, 16
  %v1340 = vrot.slane %v1338, 1
  %v1341 = vsel %vm425, %v1337, %v1340
  %v1342 = vshrl.u32 %v1144, 16
  %v1344 = vor.u32 %v1342, %v1330
  %v1346 = vshll.u32 %v1318, 16
  %v1348 = vrot.slane %v1346, 1
  %v1349 = vsel %vm425, %v1344, %v1348
  %v1350 = vshrl.u32 %v1145, 16
  %v1352 = vor.u32 %v1350, %v1340
  %v1354 = vshll.u32 %v1319, 16
  %v1356 = vrot.slane %v1354, 1
  %v1357 = vsel %vm425, %v1352, %v1356
  %v1377 = vunpack.c.l.b16 %v1298
  %v1378 = vunpack.c.h.b16 %v1298
  %v1379 = vunpack.c.l.b16 %v1299
  %v1380 = vunpack.c.h.b16 %v1299
  %v1381 = vunpack.c.l.b16 %v1300
  %v1382 = vunpack.c.h.b16 %v1300
  %v1383 = vunpack.c.l.b16 %v1301
  %v1384 = vunpack.c.h.b16 %v1301
  %v1385 = vunpack.c.l.b16 %v1302
  %v1386 = vunpack.c.h.b16 %v1302
  %v1387 = vunpack.c.l.b16 %v1303
  %v1388 = vunpack.c.h.b16 %v1303
  %v1389 = vunpack.c.l.b16 %v1304
  %v1390 = vunpack.c.h.b16 %v1304
  %v1391 = vunpack.c.l.b16 %v1305
  %v1392 = vunpack.c.h.b16 %v1305
  %v1393 = vunpack.c.l.b16 %v1306
  %v1394 = vunpack.c.h.b16 %v1306
  %v1395 = vunpack.c.l.b16 %v1307
  %v1396 = vunpack.c.h.b16 %v1307
  %v1397 = vunpack.c.l.b16 %v1308
  %v1398 = vunpack.c.h.b16 %v1308
  %v1399 = vunpack.c.l.b16 %v1309
  %v1400 = vunpack.c.h.b16 %v1309
  %v1401 = vunpack.c.l.b16 %v1310
  %v1402 = vunpack.c.h.b16 %v1310
  %v1403 = vunpack.c.l.b16 %v1311
  %v1404 = vunpack.c.h.b16 %v1311
  %v1405 = vunpack.c.l.b16 %v1312
  %v1406 = vunpack.c.h.b16 %v1312
  %v1407 = vunpack.c.l.b16 %v1313
  %v1408 = vunpack.c.h.b16 %v1313
  %v1409 = vunpack.c.l.b16 %v1314
  %v1410 = vunpack.c.h.b16 %v1314
  %v1411 = vpack.c.b16 %v1379, %v1377
  %v1412 = vpack.c.b16 %v1380, %v1378
  %v1413 = vpack.c.b16 %v1383, %v1381
  %v1414 = vpack.c.b16 %v1384, %v1382
  %v1415 = vpack.c.b16 %v1387, %v1385
  %v1416 = vpack.c.b16 %v1388, %v1386
  %v1417 = vpack.c.b16 %v1391, %v1389
  %v1418 = vpack.c.b16 %v1392, %v1390
  %v1419 = vpack.c.b16 %v1395, %v1393
  %v1420 = vpack.c.b16 %v1396, %v1394
  %v1421 = vpack.c.b16 %v1399, %v1397
  %v1422 = vpack.c.b16 %v1400, %v1398
  %v1423 = vpack.c.b16 %v1403, %v1401
  %v1424 = vpack.c.b16 %v1404, %v1402
  %v1425 = vpack.c.b16 %v1407, %v1405
  %v1426 = vpack.c.b16 %v1408, %v1406
  %v1427 = vpack.c.b16 %v1409, %v1409
  %v1428 = vpack.c.b16 %v1410, %v1410
  %v1446 = vsel %vm167, %v1341, 0
  %v1449 = vsel %vm167, %v1357, 0
  %v1452 = vsel %vm174, %v1427, 0
  %v1455 = vsel %vm174, %v1428, 0
  %1457 = vmatprep.subr.bf16.mxu0 %v1412
  %1458 = vmatpush1.bf16.msra.mxu0 %v1411
  %1459 = vmatprep.subr.bf16.mxu0 %v1414
  %1460 = vmatpush1.bf16.msra.mxu0 %v1413
  %1461 = vmatprep.subr.bf16.mxu0 %v1416
  %1462 = vmatpush1.bf16.msra.mxu0 %v1415
  %1463 = vmatprep.subr.bf16.mxu0 %v1418
  %1464 = vmatpush1.bf16.msra.mxu0 %v1417
  %1465 = vmatprep.subr.bf16.mxu0 %v1420
  %1466 = vmatpush1.bf16.msra.mxu0 %v1419
  %1467 = vmatprep.subr.bf16.mxu0 %v1422
  %1468 = vmatpush1.bf16.msra.mxu0 %v1421
  %1469 = vmatprep.subr.bf16.mxu0 %v1424
  %1470 = vmatpush1.bf16.msra.mxu0 %v1423
  %1471 = vmatprep.subr.bf16.mxu0 %v1426
  %1472 = vmatpush1.bf16.msra.mxu0 %v1425
  %1473 = vmatprep.subr.bf16.mxu0 %v1455
  %1474 = vmatpush1.bf16.msra.mxu0 %v1452
  %1475 = vmatprep.subr.bf16.mxu0 0
  %1476 = vmatpush1.bf16.msra.mxu0 0
  %1477 = vmatprep.subr.bf16.mxu0 0
  %1478 = vmatpush1.bf16.msra.mxu0 0
  %1479 = vmatprep.subr.bf16.mxu0 0
  %1480 = vmatpush1.bf16.msra.mxu0 0
  %1481 = vmatprep.subr.bf16.mxu0 0
  %1482 = vmatpush1.bf16.msra.mxu0 0
  %1483 = vmatprep.subr.bf16.mxu0 0
  %1484 = vmatpush1.bf16.msra.mxu0 0
  %1485 = vmatprep.subr.bf16.mxu0 0
  %1486 = vmatpush1.bf16.msra.mxu0 0
  %1487 = vmatprep.subr.bf16.mxu0 0
  %1488 = vmatpush1.bf16.msra.mxu0 0
  %1489 = vmatprep.mubr.bf16.mxu0 %v1446
  %1490 = vmatmul.mubr.bf16.gmra.mrb[0].mxu0 %v1331
  %v1491 = vpop.f32.mrb[0].mxu0
  %v1492 = vadd.f32 0.0, %v1491
  %v1493 = vpop.f32.mrb[0].mxu0
  %v1494 = vadd.f32 0.0, %v1493
  %v1495 = vpop.f32.mrb[0].mxu0
  %v1496 = vadd.f32 0.0, %v1495
  %v1497 = vpop.f32.mrb[0].mxu0
  %v1498 = vadd.f32 0.0, %v1497
  %1499 = vmatprep.mubr.bf16.mxu0 %v1449
  %1500 = vmatmul.mubr.bf16.gmra.mrb[0].mxu0 %v1349
  %v1501 = vpop.f32.mrb[0].mxu0
  %v1502 = vadd.f32 0.0, %v1501
  %v1503 = vpop.f32.mrb[0].mxu0
  %v1504 = vadd.f32 0.0, %v1503
  %v1505 = vpop.f32.mrb[0].mxu0
  %v1506 = vadd.f32 0.0, %v1505
  %v1507 = vpop.f32.mrb[0].mxu0
  %v1508 = vadd.f32 0.0, %v1507
  %1509 = vdwg.mxu0
  %v1510 = vadd.f32 %v1280, %v1492
  %v1511 = vadd.f32 %v1282, %v1494
  %v1512 = vadd.f32 %v1284, %v1496
  %v1513 = vadd.f32 %v1286, %v1498
  %v1514 = vadd.f32 %v1290, %v1502
  %v1515 = vadd.f32 %v1292, %v1504
  %v1516 = vadd.f32 %v1294, %v1506
  %v1517 = vadd.f32 %v1296, %v1508
  %v1518 = vld [vmem:[%s624] sm:$0xff]
  %v1519 = vld [vmem:[%s624 + $0x8] sm:$0xff]
  %v1520 = vld [vmem:[%s624 + $0x10] sm:$0xff]
  %v1521 = vld [vmem:[%s624 + $0x18] sm:$0xff]
  %v1522 = vld [vmem:[%s624 + $0x20] sm:$0xff]
  %v1523 = vld [vmem:[%s624 + $0x28] sm:$0xff]
  %v1524 = vld [vmem:[%s624 + $0x30] sm:$0xff]
  %v1525 = vld [vmem:[%s624 + $0x38] sm:$0xff]
  %v1526 = vld [vmem:[%s624 + $0x40] sm:$0xff]
  %v1527 = vld [vmem:[%s624 + $0x48] sm:$0xff]
  %v1528 = vld [vmem:[%s624 + $0x50] sm:$0xff]
  %v1529 = vld [vmem:[%s624 + $0x58] sm:$0xff]
  %v1530 = vld [vmem:[%s624 + $0x60] sm:$0xff]
  %v1531 = vld [vmem:[%s624 + $0x68] sm:$0xff]
  %v1532 = vld [vmem:[%s624 + $0x70] sm:$0xff]
  %v1533 = vld [vmem:[%s624 + $0x78] sm:$0xff]
  %v1534 = vld [vmem:[%s624 + $0x80] sm:$0x33]
  %v1536 = vunpack.c.l.b16 %v927
  %v1537 = vunpack.c.h.b16 %v927
  %v1538 = vpack.c.b16 %v1536, %v1536
  %v1539 = vpack.c.b16 %v1537, %v1537
  %v1541 = vshrl.u32 %v974, 16
  %v1543 = vshll.u32 %v974, 16
  %v1545 = vrot.slane %v1543, 1
  %v1546 = vor.u32 %v1541, %v1545
  %v1548 = vshll.u32 %v976, 16
  %v1550 = vrot.slane %v1548, 1
  %v1551 = vsel %vm425, %v1546, %v1550
  %v1552 = vshrl.u32 %v975, 16
  %v1554 = vshll.u32 %v975, 16
  %v1556 = vrot.slane %v1554, 1
  %v1557 = vor.u32 %v1552, %v1556
  %v1558 = vshll.u32 %v977, 16
  %v1560 = vrot.slane %v1558, 1
  %v1561 = vsel %vm425, %v1557, %v1560
  %v1562 = vshrl.u32 %v976, 16
  %v1564 = vor.u32 %v1562, %v1550
  %v1566 = vshll.u32 %v1538, 16
  %v1568 = vrot.slane %v1566, 1
  %v1569 = vsel %vm425, %v1564, %v1568
  %v1570 = vshrl.u32 %v977, 16
  %v1572 = vor.u32 %v1570, %v1560
  %v1574 = vshll.u32 %v1539, 16
  %v1576 = vrot.slane %v1574, 1
  %v1577 = vsel %vm425, %v1572, %v1576
  %v1597 = vunpack.c.l.b16 %v1518
  %v1598 = vunpack.c.h.b16 %v1518
  %v1599 = vunpack.c.l.b16 %v1519
  %v1600 = vunpack.c.h.b16 %v1519
  %v1601 = vunpack.c.l.b16 %v1520
  %v1602 = vunpack.c.h.b16 %v1520
  %v1603 = vunpack.c.l.b16 %v1521
  %v1604 = vunpack.c.h.b16 %v1521
  %v1605 = vunpack.c.l.b16 %v1522
  %v1606 = vunpack.c.h.b16 %v1522
  %v1607 = vunpack.c.l.b16 %v1523
  %v1608 = vunpack.c.h.b16 %v1523
  %v1609 = vunpack.c.l.b16 %v1524
  %v1610 = vunpack.c.h.b16 %v1524
  %v1611 = vunpack.c.l.b16 %v1525
  %v1612 = vunpack.c.h.b16 %v1525
  %v1613 = vunpack.c.l.b16 %v1526
  %v1614 = vunpack.c.h.b16 %v1526
  %v1615 = vunpack.c.l.b16 %v1527
  %v1616 = vunpack.c.h.b16 %v1527
  %v1617 = vunpack.c.l.b16 %v1528
  %v1618 = vunpack.c.h.b16 %v1528
  %v1619 = vunpack.c.l.b16 %v1529
  %v1620 = vunpack.c.h.b16 %v1529
  %v1621 = vunpack.c.l.b16 %v1530
  %v1622 = vunpack.c.h.b16 %v1530
  %v1623 = vunpack.c.l.b16 %v1531
  %v1624 = vunpack.c.h.b16 %v1531
  %v1625 = vunpack.c.l.b16 %v1532
  %v1626 = vunpack.c.h.b16 %v1532
  %v1627 = vunpack.c.l.b16 %v1533
  %v1628 = vunpack.c.h.b16 %v1533
  %v1629 = vunpack.c.l.b16 %v1534
  %v1630 = vunpack.c.h.b16 %v1534
  %v1631 = vpack.c.b16 %v1599, %v1597
  %v1632 = vpack.c.b16 %v1600, %v1598
  %v1633 = vpack.c.b16 %v1603, %v1601
  %v1634 = vpack.c.b16 %v1604, %v1602
  %v1635 = vpack.c.b16 %v1607, %v1605
  %v1636 = vpack.c.b16 %v1608, %v1606
  %v1637 = vpack.c.b16 %v1611, %v1609
  %v1638 = vpack.c.b16 %v1612, %v1610
  %v1639 = vpack.c.b16 %v1615, %v1613
  %v1640 = vpack.c.b16 %v1616, %v1614
  %v1641 = vpack.c.b16 %v1619, %v1617
  %v1642 = vpack.c.b16 %v1620, %v1618
  %v1643 = vpack.c.b16 %v1623, %v1621
  %v1644 = vpack.c.b16 %v1624, %v1622
  %v1645 = vpack.c.b16 %v1627, %v1625
  %v1646 = vpack.c.b16 %v1628, %v1626
  %v1647 = vpack.c.b16 %v1629, %v1629
  %v1648 = vpack.c.b16 %v1630, %v1630
  %v1666 = vsel %vm167, %v1561, 0
  %v1669 = vsel %vm167, %v1577, 0
  %v1672 = vsel %vm174, %v1647, 0
  %v1675 = vsel %vm174, %v1648, 0
  %1677 = vmatprep.subr.bf16.mxu0 %v1632
  %1678 = vmatpush1.bf16.msra.mxu0 %v1631
  %1679 = vmatprep.subr.bf16.mxu0 %v1634
  %1680 = vmatpush1.bf16.msra.mxu0 %v1633
  %1681 = vmatprep.subr.bf16.mxu0 %v1636
  %1682 = vmatpush1.bf16.msra.mxu0 %v1635
  %1683 = vmatprep.subr.bf16.mxu0 %v1638
  %1684 = vmatpush1.bf16.msra.mxu0 %v1637
  %1685 = vmatprep.subr.bf16.mxu0 %v1640
  %1686 = vmatpush1.bf16.msra.mxu0 %v1639
  %1687 = vmatprep.subr.bf16.mxu0 %v1642
  %1688 = vmatpush1.bf16.msra.mxu0 %v1641
  %1689 = vmatprep.subr.bf16.mxu0 %v1644
  %1690 = vmatpush1.bf16.msra.mxu0 %v1643
  %1691 = vmatprep.subr.bf16.mxu0 %v1646
  %1692 = vmatpush1.bf16.msra.mxu0 %v1645
  %1693 = vmatprep.subr.bf16.mxu0 %v1675
  %1694 = vmatpush1.bf16.msra.mxu0 %v1672
  %1695 = vmatprep.subr.bf16.mxu0 0
  %1696 = vmatpush1.bf16.msra.mxu0 0
  %1697 = vmatprep.subr.bf16.mxu0 0
  %1698 = vmatpush1.bf16.msra.mxu0 0
  %1699 = vmatprep.subr.bf16.mxu0 0
  %1700 = vmatpush1.bf16.msra.mxu0 0
  %1701 = vmatprep.subr.bf16.mxu0 0
  %1702 = vmatpush1.bf16.msra.mxu0 0
  %1703 = vmatprep.subr.bf16.mxu0 0
  %1704 = vmatpush1.bf16.msra.mxu0 0
  %1705 = vmatprep.subr.bf16.mxu0 0
  %1706 = vmatpush1.bf16.msra.mxu0 0
  %1707 = vmatprep.subr.bf16.mxu0 0
  %1708 = vmatpush1.bf16.msra.mxu0 0
  %1709 = vmatprep.mubr.bf16.mxu0 %v1666
  %1710 = vmatmul.mubr.bf16.gmra.mrb[0].mxu0 %v1551
  %v1711 = vpop.f32.mrb[0].mxu0
  %v1712 = vadd.f32 0.0, %v1711
  %v1713 = vpop.f32.mrb[0].mxu0
  %v1714 = vadd.f32 0.0, %v1713
  %v1715 = vpop.f32.mrb[0].mxu0
  %v1716 = vadd.f32 0.0, %v1715
  %v1717 = vpop.f32.mrb[0].mxu0
  %v1718 = vadd.f32 0.0, %v1717
  %1719 = vmatprep.mubr.bf16.mxu0 %v1669
  %1720 = vmatmul.mubr.bf16.gmra.mrb[0].mxu0 %v1569
  %v1721 = vpop.f32.mrb[0].mxu0
  %v1722 = vadd.f32 0.0, %v1721
  %v1723 = vpop.f32.mrb[0].mxu0
  %v1724 = vadd.f32 0.0, %v1723
  %v1725 = vpop.f32.mrb[0].mxu0
  %v1726 = vadd.f32 0.0, %v1725
  %v1727 = vpop.f32.mrb[0].mxu0
  %v1728 = vadd.f32 0.0, %v1727
  %1729 = vdwg.mxu0
  %v1730 = vadd.f32 %v1510, %v1712
  %v1731 = vadd.f32 %v1511, %v1714
  %v1732 = vadd.f32 %v1512, %v1716
  %v1733 = vadd.f32 %v1513, %v1718
  %v1734 = vadd.f32 %v1514, %v1722
  %v1735 = vadd.f32 %v1515, %v1724
  %v1736 = vadd.f32 %v1516, %v1726
  %v1737 = vadd.f32 %v1517, %v1728
  %v1738 = vadd.f32 %v1730, %v849
  %v1739 = vadd.f32 %v1731, %v853
  %v1740 = vadd.f32 %v1732, %v849
  %v1741 = vadd.f32 %v1733, %v853
  %v1742 = vadd.f32 %v1734, %v849
  %v1743 = vadd.f32 %v1735, %v853
  %v1744 = vadd.f32 %v1736, %v849
  %v1745 = vadd.f32 %v1737, %v853
  %vm1746 = vcmp.ge.f32.partialorder %v1738, 0.0
  %vm1747 = vcmp.ge.f32.partialorder %v1739, 0.0
  %vm1748 = vcmp.ge.f32.partialorder %v1740, 0.0
  %vm1749 = vcmp.ge.f32.partialorder %v1741, 0.0
  %vm1750 = vcmp.ge.f32.partialorder %v1742, 0.0
  %vm1751 = vcmp.ge.f32.partialorder %v1743, 0.0
  %vm1752 = vcmp.ge.f32.partialorder %v1744, 0.0
  %vm1753 = vcmp.ge.f32.partialorder %v1745, 0.0
  %v1754 = vmul.f32 %v1738, 0.2
  %v1755 = vmul.f32 %v1739, 0.2
  %v1756 = vmul.f32 %v1740, 0.2
  %v1757 = vmul.f32 %v1741, 0.2
  %v1758 = vmul.f32 %v1742, 0.2
  %v1759 = vmul.f32 %v1743, 0.2
  %v1760 = vmul.f32 %v1744, 0.2
  %v1761 = vmul.f32 %v1745, 0.2
  %v1762 = vsel %vm1746, %v1738, %v1754
  %v1763 = vsel %vm1747, %v1739, %v1755
  %v1764 = vsel %vm1748, %v1740, %v1756
  %v1765 = vsel %vm1749, %v1741, %v1757
  %v1766 = vsel %vm1750, %v1742, %v1758
  %v1767 = vsel %vm1751, %v1743, %v1759
  %v1768 = vsel %vm1752, %v1744, %v1760
  %v1769 = vsel %vm1753, %v1745, %v1761
  %v1770 = vpack.c.bf16 %v1764, %v1762
  %v1771 = vpack.c.bf16 %v1765, %v1763
  %v1772 = vpack.c.bf16 %v1768, %v1766
  %v1773 = vpack.c.bf16 %v1769, %v1767
  %v1778 = vunpack.c.l.b16 %v1770
  %v1779 = vunpack.c.l.b16 %v1771
  %v1780 = vunpack.c.h.b16 %v1770
  %v1781 = vunpack.c.h.b16 %v1771
  %v1782 = vunpack.c.l.b16 %v1772
  %v1783 = vunpack.c.l.b16 %v1773
  %v1784 = vunpack.c.h.b16 %v1772
  %v1785 = vunpack.c.h.b16 %v1773
  %v1786 = vpack.c.b16 %v1779, %v1778
  %v1787 = vpack.c.b16 %v1781, %v1780
  %v1788 = vpack.c.b16 %v1783, %v1782
  %v1789 = vpack.c.b16 %v1785, %v1784
  %s1794 = scalar_lea.vmem %s4, 32
  %1795 = vst [vmem:[%s1794] sm:$0xff] %v1786
  %1796 = vst [vmem:[%s1794 + $0x8] sm:$0xff] %v1787
  %1797 = vst [vmem:[%s1794 + $0x10] sm:$0xff] %v1788
  %1798 = vst [vmem:[%s1794 + $0x18] sm:$0xff] %v1789
  // Predicated region
  $region18: #{discriminator_forward.8} parent=0 // pred_check
    _
  $region19: #{discriminator_forward.8} parent=0 // pred_check_branch
    %1800 = sbr.rel (0) target = $region21
  $region20: #{discriminator_forward.8} parent=0 // pred_region
    _
  $region21: #{discriminator_forward.8} parent=0 // pred_fallthru
    _
  // Predicated region
  $region22: #{discriminator_forward.8} parent=0 // pred_check
    _
  $region23: #{discriminator_forward.8} parent=0 // pred_check_branch
    %1802 = sbr.rel (0) target = $region25
  $region24: #{discriminator_forward.8} parent=0 // pred_region
    _
  $region25: #{discriminator_forward.8} parent=0 // pred_fallthru
    _

// kernel: discriminator_forward.9
$region0: #{discriminator_forward.9}
  #allocation0 [shape = 'u32[]', space=smem, size = 0x4, offset = 0x4, fixed_abs, tag = 'smem constant byte address 0x4 - core index']
  #allocation1 [shape = 'u32[144,128]{1,0:T(1,128)}', space=vmem, size = 0x12000, scoped, tag = 'internal scratch']
  %s0 = inlined_call_operand.vmem [shape: bf16[2,17,272], index: 0, kind: input, shape index: {}]
  %s1 = inlined_call_operand.vmem [shape: bf16[2,17,272], index: 1, kind: input, shape index: {}]
  %s2 = inlined_call_operand.vmem [shape: bf16[4,272,256], index: 2, kind: input, shape index: {}]
  %s3 = inlined_call_operand.vmem [shape: bf16[2,16,256], index: 3, kind: output, shape index: {0}]
  %s4 = inlined_call_operand.vmem [shape: f32[1,2,256], index: 4, kind: output, shape index: {1}]
  %5 = xla_tuple %s3, %s4
  %s6 = sld [smem:[#allocation0]]
  $region30: #{discriminator_forward.9} parent=0
    _
  %s8 = ssub.s32 1, %s6
  %s9 = scalar_select 0, %s8, %s6
  // Predicated region
  $region2: #{discriminator_forward.9} parent=0 // pred_check
    _
  $region3: #{discriminator_forward.9} parent=0 // pred_check_branch
    %11 = sbr.rel (0) target = $region5
  $region4: #{discriminator_forward.9} parent=0 // pred_region
    _
  $region5: #{discriminator_forward.9} parent=0 // pred_fallthru
    _
  // Predicated region
  $region6: #{discriminator_forward.9} parent=0 // pred_check
    _
  $region7: #{discriminator_forward.9} parent=0 // pred_check_branch
    %13 = sbr.rel (0) target = $region9
  $region8: #{discriminator_forward.9} parent=0 // pred_region
    _
  $region9: #{discriminator_forward.9} parent=0 // pred_fallthru
    _
  // Predicated region
  $region10: #{discriminator_forward.9} parent=0 // pred_check
    _
  $region11: #{discriminator_forward.9} parent=0 // pred_check_branch
    %15 = sbr.rel (0) target = $region13
  $region12: #{discriminator_forward.9} parent=0 // pred_region
    _
  $region13: #{discriminator_forward.9} parent=0 // pred_fallthru
    _
  %v17 = vld [vmem:[%s0] sm:$0xff]
  %v18 = vld [vmem:[%s0 + $0x8] sm:$0xf]
  %v19 = vld [vmem:[%s0 + $0xc] sm:$0xff]
  %v20 = vld [vmem:[%s0 + $0x14] sm:$0xf]
  %v21 = vld [vmem:[%s0 + $0x18] sm:$0x11]
  %v22 = vld [vmem:[%s0 + $0x20] sm:$0x1]
  %v23 = vld [vmem:[%s1] sm:$0xff]
  %v24 = vld [vmem:[%s1 + $0x8] sm:$0xf]
  %v25 = vld [vmem:[%s1 + $0xc] sm:$0xff]
  %v26 = vld [vmem:[%s1 + $0x14] sm:$0xf]
  %v27 = vld [vmem:[%s1 + $0x18] sm:$0x11]
  %v28 = vld [vmem:[%s1 + $0x20] sm:$0x1]
  %v29 = vld [vmem:[%s2] sm:$0xff]
  %v30 = vld [vmem:[%s2 + $0x8] sm:$0xff]
  %v31 = vld [vmem:[%s2 + $0x10] sm:$0xff]
  %v32 = vld [vmem:[%s2 + $0x18] sm:$0xff]
  %v33 = vld [vmem:[%s2 + $0x20] sm:$0xff]
  %v34 = vld [vmem:[%s2 + $0x28] sm:$0xff]
  %v35 = vld [vmem:[%s2 + $0x30] sm:$0xff]
  %v36 = vld [vmem:[%s2 + $0x38] sm:$0xff]
  %v37 = vld [vmem:[%s2 + $0x40] sm:$0xff]
  %v38 = vld [vmem:[%s2 + $0x48] sm:$0xff]
  %v39 = vld [vmem:[%s2 + $0x50] sm:$0xff]
  %v40 = vld [vmem:[%s2 + $0x58] sm:$0xff]
  %v41 = vld [vmem:[%s2 + $0x60] sm:$0xff]
  %v42 = vld [vmem:[%s2 + $0x68] sm:$0xff]
  %v43 = vld [vmem:[%s2 + $0x70] sm:$0xff]
  %v44 = vld [vmem:[%s2 + $0x78] sm:$0xff]
  %v45 = vld [vmem:[%s2 + $0x80] sm:$0xff]
  %v46 = vld [vmem:[%s2 + $0x88] sm:$0xff]
  %v47 = vld [vmem:[%s2 + $0x90] sm:$0xff]
  %v48 = vld [vmem:[%s2 + $0x98] sm:$0xff]
  %v49 = vld [vmem:[%s2 + $0xa0] sm:$0xff]
  %v50 = vld [vmem:[%s2 + $0xa8] sm:$0xff]
  %v51 = vld [vmem:[%s2 + $0xb0] sm:$0xff]
  %v52 = vld [vmem:[%s2 + $0xb8] sm:$0xff]
  %v53 = vld [vmem:[%s2 + $0xc0] sm:$0xff]
  %v54 = vld [vmem:[%s2 + $0xc8] sm:$0xff]
  %v55 = vld [vmem:[%s2 + $0xd0] sm:$0xff]
  %v56 = vld [vmem:[%s2 + $0xd8] sm:$0xff]
  %v57 = vld [vmem:[%s2 + $0xe0] sm:$0xff]
  %v58 = vld [vmem:[%s2 + $0xe8] sm:$0xff]
  %v59 = vld [vmem:[%s2 + $0xf0] sm:$0xff]
  %v60 = vld [vmem:[%s2 + $0xf8] sm:$0xff]
  %v61 = vld [vmem:[%s2 + $0x100] sm:$0xff]
  %v62 = vld [vmem:[%s2 + $0x108] sm:$0xff]
  %s63 = scalar_lea.vmem %s2, 272
  %v64 = vld [vmem:[%s63] sm:$0xff]
  %v65 = vld [vmem:[%s63 + $0x8] sm:$0xff]
  %v66 = vld [vmem:[%s63 + $0x10] sm:$0xff]
  %v67 = vld [vmem:[%s63 + $0x18] sm:$0xff]
  %v68 = vld [vmem:[%s63 + $0x20] sm:$0xff]
  %v69 = vld [vmem:[%s63 + $0x28] sm:$0xff]
  %v70 = vld [vmem:[%s63 + $0x30] sm:$0xff]
  %v71 = vld [vmem:[%s63 + $0x38] sm:$0xff]
  %v72 = vld [vmem:[%s63 + $0x40] sm:$0xff]
  %v73 = vld [vmem:[%s63 + $0x48] sm:$0xff]
  %v74 = vld [vmem:[%s63 + $0x50] sm:$0xff]
  %v75 = vld [vmem:[%s63 + $0x58] sm:$0xff]
  %v76 = vld [vmem:[%s63 + $0x60] sm:$0xff]
  %v77 = vld [vmem:[%s63 + $0x68] sm:$0xff]
  %v78 = vld [vmem:[%s63 + $0x70] sm:$0xff]
  %v79 = vld [vmem:[%s63 + $0x78] sm:$0xff]
  %v80 = vld [vmem:[%s63 + $0x80] sm:$0xff]
  %v81 = vld [vmem:[%s63 + $0x88] sm:$0xff]
  %v82 = vld [vmem:[%s63 + $0x90] sm:$0xff]
  %v83 = vld [vmem:[%s63 + $0x98] sm:$0xff]
  %v84 = vld [vmem:[%s63 + $0xa0] sm:$0xff]
  %v85 = vld [vmem:[%s63 + $0xa8] sm:$0xff]
  %v86 = vld [vmem:[%s63 + $0xb0] sm:$0xff]
  %v87 = vld [vmem:[%s63 + $0xb8] sm:$0xff]
  %v88 = vld [vmem:[%s63 + $0xc0] sm:$0xff]
  %v89 = vld [vmem:[%s63 + $0xc8] sm:$0xff]
  %v90 = vld [vmem:[%s63 + $0xd0] sm:$0xff]
  %v91 = vld [vmem:[%s63 + $0xd8] sm:$0xff]
  %v92 = vld [vmem:[%s63 + $0xe0] sm:$0xff]
  %v93 = vld [vmem:[%s63 + $0xe8] sm:$0xff]
  %v94 = vld [vmem:[%s63 + $0xf0] sm:$0xff]
  %v95 = vld [vmem:[%s63 + $0xf8] sm:$0xff]
  %v96 = vld [vmem:[%s63 + $0x100] sm:$0xff]
  %v97 = vld [vmem:[%s63 + $0x108] sm:$0xff]
  %v102 = vunpack.c.l.b16 %v23
  %v103 = vunpack.c.h.b16 %v23
  %v104 = vunpack.c.l.b16 %v24
  %v105 = vunpack.c.l.b16 %v25
  %v106 = vunpack.c.h.b16 %v25
  %v107 = vunpack.c.l.b16 %v26
  %v108 = vpack.c.b16 %v105, %v102
  %v109 = vpack.c.b16 %v106, %v103
  %v110 = vpack.c.b16 %v107, %v104
  %v147 = vunpack.c.l.b16 %v64
  %v148 = vunpack.c.h.b16 %v64
  %v149 = vunpack.c.l.b16 %v65
  %v150 = vunpack.c.h.b16 %v65
  %v151 = vunpack.c.l.b16 %v66
  %v152 = vunpack.c.h.b16 %v66
  %v153 = vunpack.c.l.b16 %v67
  %v154 = vunpack.c.h.b16 %v67
  %v155 = vunpack.c.l.b16 %v68
  %v156 = vunpack.c.h.b16 %v68
  %v157 = vunpack.c.l.b16 %v69
  %v158 = vunpack.c.h.b16 %v69
  %v159 = vunpack.c.l.b16 %v70
  %v160 = vunpack.c.h.b16 %v70
  %v161 = vunpack.c.l.b16 %v71
  %v162 = vunpack.c.h.b16 %v71
  %v163 = vunpack.c.l.b16 %v72
  %v164 = vunpack.c.h.b16 %v72
  %v165 = vunpack.c.l.b16 %v73
  %v166 = vunpack.c.h.b16 %v73
  %v167 = vunpack.c.l.b16 %v74
  %v168 = vunpack.c.h.b16 %v74
  %v169 = vunpack.c.l.b16 %v75
  %v170 = vunpack.c.h.b16 %v75
  %v171 = vunpack.c.l.b16 %v76
  %v172 = vunpack.c.h.b16 %v76
  %v173 = vunpack.c.l.b16 %v77
  %v174 = vunpack.c.h.b16 %v77
  %v175 = vunpack.c.l.b16 %v78
  %v176 = vunpack.c.h.b16 %v78
  %v177 = vunpack.c.l.b16 %v79
  %v178 = vunpack.c.h.b16 %v79
  %v179 = vunpack.c.l.b16 %v80
  %v180 = vunpack.c.h.b16 %v80
  %v181 = vunpack.c.l.b16 %v81
  %v182 = vunpack.c.h.b16 %v81
  %v183 = vunpack.c.l.b16 %v82
  %v184 = vunpack.c.h.b16 %v82
  %v185 = vunpack.c.l.b16 %v83
  %v186 = vunpack.c.h.b16 %v83
  %v187 = vunpack.c.l.b16 %v84
  %v188 = vunpack.c.h.b16 %v84
  %v189 = vunpack.c.l.b16 %v85
  %v190 = vunpack.c.h.b16 %v85
  %v191 = vunpack.c.l.b16 %v86
  %v192 = vunpack.c.h.b16 %v86
  %v193 = vunpack.c.l.b16 %v87
  %v194 = vunpack.c.h.b16 %v87
  %v195 = vunpack.c.l.b16 %v88
  %v196 = vunpack.c.h.b16 %v88
  %v197 = vunpack.c.l.b16 %v89
  %v198 = vunpack.c.h.b16 %v89
  %v199 = vunpack.c.l.b16 %v90
  %v200 = vunpack.c.h.b16 %v90
  %v201 = vunpack.c.l.b16 %v91
  %v202 = vunpack.c.h.b16 %v91
  %v203 = vunpack.c.l.b16 %v92
  %v204 = vunpack.c.h.b16 %v92
  %v205 = vunpack.c.l.b16 %v93
  %v206 = vunpack.c.h.b16 %v93
  %v207 = vunpack.c.l.b16 %v94
  %v208 = vunpack.c.h.b16 %v94
  %v209 = vunpack.c.l.b16 %v95
  %v210 = vunpack.c.h.b16 %v95
  %v211 = vunpack.c.l.b16 %v96
  %v212 = vunpack.c.h.b16 %v96
  %v213 = vunpack.c.l.b16 %v97
  %v214 = vunpack.c.h.b16 %v97
  %v215 = vpack.c.b16 %v149, %v147
  %v216 = vpack.c.b16 %v150, %v148
  %v217 = vpack.c.b16 %v153, %v151
  %v218 = vpack.c.b16 %v154, %v152
  %v219 = vpack.c.b16 %v157, %v155
  %v220 = vpack.c.b16 %v158, %v156
  %v221 = vpack.c.b16 %v161, %v159
  %v222 = vpack.c.b16 %v162, %v160
  %v223 = vpack.c.b16 %v165, %v163
  %v224 = vpack.c.b16 %v166, %v164
  %v225 = vpack.c.b16 %v169, %v167
  %v226 = vpack.c.b16 %v170, %v168
  %v227 = vpack.c.b16 %v173, %v171
  %v228 = vpack.c.b16 %v174, %v172
  %v229 = vpack.c.b16 %v177, %v175
  %v230 = vpack.c.b16 %v178, %v176
  %v231 = vpack.c.b16 %v181, %v179
  %v232 = vpack.c.b16 %v182, %v180
  %v233 = vpack.c.b16 %v185, %v183
  %v234 = vpack.c.b16 %v186, %v184
  %v235 = vpack.c.b16 %v189, %v187
  %v236 = vpack.c.b16 %v190, %v188
  %v237 = vpack.c.b16 %v193, %v191
  %v238 = vpack.c.b16 %v194, %v192
  %v239 = vpack.c.b16 %v197, %v195
  %v240 = vpack.c.b16 %v198, %v196
  %v241 = vpack.c.b16 %v201, %v199
  %v242 = vpack.c.b16 %v202, %v200
  %v243 = vpack.c.b16 %v205, %v203
  %v244 = vpack.c.b16 %v206, %v204
  %v245 = vpack.c.b16 %v209, %v207
  %v246 = vpack.c.b16 %v210, %v208
  %v247 = vpack.c.b16 %v213, %v211
  %v248 = vpack.c.b16 %v214, %v212
  %vm283 = vcmask 130048
  %v285 = vsel %vm283, %v110, 0
  %287 = vmatprep.subr.bf16.mxu0 %v216
  %288 = vmatpush1.bf16.msra.mxu0 %v215
  %289 = vmatprep.subr.bf16.mxu0 %v218
  %290 = vmatpush1.bf16.msra.mxu0 %v217
  %291 = vmatprep.subr.bf16.mxu0 %v220
  %292 = vmatpush1.bf16.msra.mxu0 %v219
  %293 = vmatprep.subr.bf16.mxu0 %v222
  %294 = vmatpush1.bf16.msra.mxu0 %v221
  %295 = vmatprep.subr.bf16.mxu0 %v224
  %296 = vmatpush1.bf16.msra.mxu0 %v223
  %297 = vmatprep.subr.bf16.mxu0 %v226
  %298 = vmatpush1.bf16.msra.mxu0 %v225
  %299 = vmatprep.subr.bf16.mxu0 %v228
  %300 = vmatpush1.bf16.msra.mxu0 %v227
  %301 = vmatprep.subr.bf16.mxu0 %v230
  %302 = vmatpush1.bf16.msra.mxu0 %v229
  %303 = vmatprep.subr.bf16.mxu0 %v232
  %304 = vmatpush1.bf16.msra.mxu0 %v231
  %305 = vmatprep.subr.bf16.mxu0 %v234
  %306 = vmatpush1.bf16.msra.mxu0 %v233
  %307 = vmatprep.subr.bf16.mxu0 %v236
  %308 = vmatpush1.bf16.msra.mxu0 %v235
  %309 = vmatprep.subr.bf16.mxu0 %v238
  %310 = vmatpush1.bf16.msra.mxu0 %v237
  %311 = vmatprep.subr.bf16.mxu0 %v240
  %312 = vmatpush1.bf16.msra.mxu0 %v239
  %313 = vmatprep.subr.bf16.mxu0 %v242
  %314 = vmatpush1.bf16.msra.mxu0 %v241
  %315 = vmatprep.subr.bf16.mxu0 %v244
  %316 = vmatpush1.bf16.msra.mxu0 %v243
  %317 = vmatprep.subr.bf16.mxu0 %v246
  %318 = vmatpush1.bf16.msra.mxu0 %v245
  %319 = vmatprep.mubr.bf16.mxu0 %v109
  %320 = vmatmul.mubr.bf16.gmra.mrb[0].mxu0 %v108
  %v321 = vpop.f32.mrb[0].mxu0
  %v322 = vadd.f32 0.0, %v321
  %v323 = vpop.f32.mrb[0].mxu0
  %v324 = vadd.f32 0.0, %v323
  %v325 = vpop.f32.mrb[0].mxu0
  %v326 = vadd.f32 0.0, %v325
  %v327 = vpop.f32.mrb[0].mxu0
  %v328 = vadd.f32 0.0, %v327
  %329 = vdwg.mxu0
  %330 = vmatprep.subr.bf16.mxu0 %v248
  %331 = vmatpush1.bf16.msra.mxu0 %v247
  %332 = vmatprep.subr.bf16.mxu0 0
  %333 = vmatpush1.bf16.msra.mxu0 0
  %334 = vmatprep.subr.bf16.mxu0 0
  %335 = vmatpush1.bf16.msra.mxu0 0
  %336 = vmatprep.subr.bf16.mxu0 0
  %337 = vmatpush1.bf16.msra.mxu0 0
  %338 = vmatprep.subr.bf16.mxu0 0
  %339 = vmatpush1.bf16.msra.mxu0 0
  %340 = vmatprep.subr.bf16.mxu0 0
  %341 = vmatpush1.bf16.msra.mxu0 0
  %342 = vmatprep.subr.bf16.mxu0 0
  %343 = vmatpush1.bf16.msra.mxu0 0
  %344 = vmatprep.subr.bf16.mxu0 0
  %345 = vmatpush1.bf16.msra.mxu0 0
  %346 = vmatprep.subr.bf16.mxu0 0
  %347 = vmatpush1.bf16.msra.mxu0 0
  %348 = vmatprep.subr.bf16.mxu0 0
  %349 = vmatpush1.bf16.msra.mxu0 0
  %350 = vmatprep.subr.bf16.mxu0 0
  %351 = vmatpush1.bf16.msra.mxu0 0
  %352 = vmatprep.subr.bf16.mxu0 0
  %353 = vmatpush1.bf16.msra.mxu0 0
  %354 = vmatprep.subr.bf16.mxu0 0
  %355 = vmatpush1.bf16.msra.mxu0 0
  %356 = vmatprep.subr.bf16.mxu0 0
  %357 = vmatpush1.bf16.msra.mxu0 0
  %358 = vmatprep.subr.bf16.mxu0 0
  %359 = vmatpush1.bf16.msra.mxu0 0
  %360 = vmatprep.subr.bf16.mxu0 0
  %361 = vmatpush1.bf16.msra.mxu0 0
  %362 = vmatprep.mubr.bf16.mxu0 0
  %363 = vmatmul.mubr.bf16.gmra.mrb[0].mxu0 %v285
  %v364 = vpop.f32.mrb[0].mxu0
  %v365 = vadd.f32 %v322, %v364
  %v366 = vpop.f32.mrb[0].mxu0
  %v367 = vadd.f32 %v324, %v366
  %v368 = vpop.f32.mrb[0].mxu0
  %v369 = vadd.f32 %v326, %v368
  %v370 = vpop.f32.mrb[0].mxu0
  %v371 = vadd.f32 %v328, %v370
  %372 = vdwg.mxu0
  %v377 = vunpack.c.l.b16 %v17
  %v378 = vunpack.c.h.b16 %v17
  %v379 = vunpack.c.l.b16 %v18
  %v380 = vunpack.c.l.b16 %v19
  %v381 = vunpack.c.h.b16 %v19
  %v382 = vunpack.c.l.b16 %v20
  %v383 = vpack.c.b16 %v380, %v377
  %v384 = vpack.c.b16 %v381, %v378
  %v385 = vpack.c.b16 %v382, %v379
  %v422 = vunpack.c.l.b16 %v29
  %v423 = vunpack.c.h.b16 %v29
  %v424 = vunpack.c.l.b16 %v30
  %v425 = vunpack.c.h.b16 %v30
  %v426 = vunpack.c.l.b16 %v31
  %v427 = vunpack.c.h.b16 %v31
  %v428 = vunpack.c.l.b16 %v32
  %v429 = vunpack.c.h.b16 %v32
  %v430 = vunpack.c.l.b16 %v33
  %v431 = vunpack.c.h.b16 %v33
  %v432 = vunpack.c.l.b16 %v34
  %v433 = vunpack.c.h.b16 %v34
  %v434 = vunpack.c.l.b16 %v35
  %v435 = vunpack.c.h.b16 %v35
  %v436 = vunpack.c.l.b16 %v36
  %v437 = vunpack.c.h.b16 %v36
  %v438 = vunpack.c.l.b16 %v37
  %v439 = vunpack.c.h.b16 %v37
  %v440 = vunpack.c.l.b16 %v38
  %v441 = vunpack.c.h.b16 %v38
  %v442 = vunpack.c.l.b16 %v39
  %v443 = vunpack.c.h.b16 %v39
  %v444 = vunpack.c.l.b16 %v40
  %v445 = vunpack.c.h.b16 %v40
  %v446 = vunpack.c.l.b16 %v41
  %v447 = vunpack.c.h.b16 %v41
  %v448 = vunpack.c.l.b16 %v42
  %v449 = vunpack.c.h.b16 %v42
  %v450 = vunpack.c.l.b16 %v43
  %v451 = vunpack.c.h.b16 %v43
  %v452 = vunpack.c.l.b16 %v44
  %v453 = vunpack.c.h.b16 %v44
  %v454 = vunpack.c.l.b16 %v45
  %v455 = vunpack.c.h.b16 %v45
  %v456 = vunpack.c.l.b16 %v46
  %v457 = vunpack.c.h.b16 %v46
  %v458 = vunpack.c.l.b16 %v47
  %v459 = vunpack.c.h.b16 %v47
  %v460 = vunpack.c.l.b16 %v48
  %v461 = vunpack.c.h.b16 %v48
  %v462 = vunpack.c.l.b16 %v49
  %v463 = vunpack.c.h.b16 %v49
  %v464 = vunpack.c.l.b16 %v50
  %v465 = vunpack.c.h.b16 %v50
  %v466 = vunpack.c.l.b16 %v51
  %v467 = vunpack.c.h.b16 %v51
  %v468 = vunpack.c.l.b16 %v52
  %v469 = vunpack.c.h.b16 %v52
  %v470 = vunpack.c.l.b16 %v53
  %v471 = vunpack.c.h.b16 %v53
  %v472 = vunpack.c.l.b16 %v54
  %v473 = vunpack.c.h.b16 %v54
  %v474 = vunpack.c.l.b16 %v55
  %v475 = vunpack.c.h.b16 %v55
  %v476 = vunpack.c.l.b16 %v56
  %v477 = vunpack.c.h.b16 %v56
  %v478 = vunpack.c.l.b16 %v57
  %v479 = vunpack.c.h.b16 %v57
  %v480 = vunpack.c.l.b16 %v58
  %v481 = vunpack.c.h.b16 %v58
  %v482 = vunpack.c.l.b16 %v59
  %v483 = vunpack.c.h.b16 %v59
  %v484 = vunpack.c.l.b16 %v60
  %v485 = vunpack.c.h.b16 %v60
  %v486 = vunpack.c.l.b16 %v61
  %v487 = vunpack.c.h.b16 %v61
  %v488 = vunpack.c.l.b16 %v62
  %v489 = vunpack.c.h.b16 %v62
  %v490 = vpack.c.b16 %v424, %v422
  %v491 = vpack.c.b16 %v425, %v423
  %v492 = vpack.c.b16 %v428, %v426
  %v493 = vpack.c.b16 %v429, %v427
  %v494 = vpack.c.b16 %v432, %v430
  %v495 = vpack.c.b16 %v433, %v431
  %v496 = vpack.c.b16 %v436, %v434
  %v497 = vpack.c.b16 %v437, %v435
  %v498 = vpack.c.b16 %v440, %v438
  %v499 = vpack.c.b16 %v441, %v439
  %v500 = vpack.c.b16 %v444, %v442
  %v501 = vpack.c.b16 %v445, %v443
  %v502 = vpack.c.b16 %v448, %v446
  %v503 = vpack.c.b16 %v449, %v447
  %v504 = vpack.c.b16 %v452, %v450
  %v505 = vpack.c.b16 %v453, %v451
  %v506 = vpack.c.b16 %v456, %v454
  %v507 = vpack.c.b16 %v457, %v455
  %v508 = vpack.c.b16 %v460, %v458
  %v509 = vpack.c.b16 %v461, %v459
  %v510 = vpack.c.b16 %v464, %v462
  %v511 = vpack.c.b16 %v465, %v463
  %v512 = vpack.c.b16 %v468, %v466
  %v513 = vpack.c.b16 %v469, %v467
  %v514 = vpack.c.b16 %v472, %v470
  %v515 = vpack.c.b16 %v473, %v471
  %v516 = vpack.c.b16 %v476, %v474
  %v517 = vpack.c.b16 %v477, %v475
  %v518 = vpack.c.b16 %v480, %v478
  %v519 = vpack.c.b16 %v481, %v479
  %v520 = vpack.c.b16 %v484, %v482
  %v521 = vpack.c.b16 %v485, %v483
  %v522 = vpack.c.b16 %v488, %v486
  %v523 = vpack.c.b16 %v489, %v487
  %v559 = vsel %vm283, %v385, 0
  %561 = vmatprep.subr.bf16.mxu0 %v491
  %562 = vmatpush1.bf16.msra.mxu0 %v490
  %563 = vmatprep.subr.bf16.mxu0 %v493
  %564 = vmatpush1.bf16.msra.mxu0 %v492
  %565 = vmatprep.subr.bf16.mxu0 %v495
  %566 = vmatpush1.bf16.msra.mxu0 %v494
  %567 = vmatprep.subr.bf16.mxu0 %v497
  %568 = vmatpush1.bf16.msra.mxu0 %v496
  %569 = vmatprep.subr.bf16.mxu0 %v499
  %570 = vmatpush1.bf16.msra.mxu0 %v498
  %571 = vmatprep.subr.bf16.mxu0 %v501
  %572 = vmatpush1.bf16.msra.mxu0 %v500
  %573 = vmatprep.subr.bf16.mxu0 %v503
  %574 = vmatpush1.bf16.msra.mxu0 %v502
  %575 = vmatprep.subr.bf16.mxu0 %v505
  %576 = vmatpush1.bf16.msra.mxu0 %v504
  %577 = vmatprep.subr.bf16.mxu0 %v507
  %578 = vmatpush1.bf16.msra.mxu0 %v506
  %579 = vmatprep.subr.bf16.mxu0 %v509
  %580 = vmatpush1.bf16.msra.mxu0 %v508
  %581 = vmatprep.subr.bf16.mxu0 %v511
  %582 = vmatpush1.bf16.msra.mxu0 %v510
  %583 = vmatprep.subr.bf16.mxu0 %v513
  %584 = vmatpush1.bf16.msra.mxu0 %v512
  %585 = vmatprep.subr.bf16.mxu0 %v515
  %586 = vmatpush1.bf16.msra.mxu0 %v514
  %587 = vmatprep.subr.bf16.mxu0 %v517
  %588 = vmatpush1.bf16.msra.mxu0 %v516
  %589 = vmatprep.subr.bf16.mxu0 %v519
  %590 = vmatpush1.bf16.msra.mxu0 %v518
  %591 = vmatprep.subr.bf16.mxu0 %v521
  %592 = vmatpush1.bf16.msra.mxu0 %v520
  %593 = vmatprep.mubr.bf16.mxu0 %v384
  %594 = vmatmul.mubr.bf16.gmra.mrb[0].mxu0 %v383
  %v595 = vpop.f32.mrb[0].mxu0
  %v596 = vadd.f32 %v365, %v595
  %v597 = vpop.f32.mrb[0].mxu0
  %v598 = vadd.f32 %v367, %v597
  %v599 = vpop.f32.mrb[0].mxu0
  %v600 = vadd.f32 %v369, %v599
  %v601 = vpop.f32.mrb[0].mxu0
  %v602 = vadd.f32 %v371, %v601
  %603 = vdwg.mxu0
  %604 = vmatprep.subr.bf16.mxu0 %v523
  %605 = vmatpush1.bf16.msra.mxu0 %v522
  %606 = vmatprep.subr.bf16.mxu0 0
  %607 = vmatpush1.bf16.msra.mxu0 0
  %608 = vmatprep.subr.bf16.mxu0 0
  %609 = vmatpush1.bf16.msra.mxu0 0
  %610 = vmatprep.subr.bf16.mxu0 0
  %611 = vmatpush1.bf16.msra.mxu0 0
  %612 = vmatprep.subr.bf16.mxu0 0
  %613 = vmatpush1.bf16.msra.mxu0 0
  %614 = vmatprep.subr.bf16.mxu0 0
  %615 = vmatpush1.bf16.msra.mxu0 0
  %616 = vmatprep.subr.bf16.mxu0 0
  %617 = vmatpush1.bf16.msra.mxu0 0
  %618 = vmatprep.subr.bf16.mxu0 0
  %619 = vmatpush1.bf16.msra.mxu0 0
  %620 = vmatprep.subr.bf16.mxu0 0
  %621 = vmatpush1.bf16.msra.mxu0 0
  %622 = vmatprep.subr.bf16.mxu0 0
  %623 = vmatpush1.bf16.msra.mxu0 0
  %624 = vmatprep.subr.bf16.mxu0 0
  %625 = vmatpush1.bf16.msra.mxu0 0
  %626 = vmatprep.subr.bf16.mxu0 0
  %627 = vmatpush1.bf16.msra.mxu0 0
  %628 = vmatprep.subr.bf16.mxu0 0
  %629 = vmatpush1.bf16.msra.mxu0 0
  %630 = vmatprep.subr.bf16.mxu0 0
  %631 = vmatpush1.bf16.msra.mxu0 0
  %632 = vmatprep.subr.bf16.mxu0 0
  %633 = vmatpush1.bf16.msra.mxu0 0
  %634 = vmatprep.subr.bf16.mxu0 0
  %635 = vmatpush1.bf16.msra.mxu0 0
  %636 = vmatprep.mubr.bf16.mxu0 0
  %637 = vmatmul.mubr.bf16.gmra.mrb[0].mxu0 %v559
  %v638 = vpop.f32.mrb[0].mxu0
  %v639 = vadd.f32 %v596, %v638
  %v640 = vpop.f32.mrb[0].mxu0
  %v641 = vadd.f32 %v598, %v640
  %v642 = vpop.f32.mrb[0].mxu0
  %v643 = vadd.f32 %v600, %v642
  %v644 = vpop.f32.mrb[0].mxu0
  %v645 = vadd.f32 %v602, %v644
  %646 = vdwg.mxu0
  %s647 = scalar_lea.vmem %s2, 544
  %v648 = vld [vmem:[%s647] sm:$0xff]
  %v649 = vld [vmem:[%s647 + $0x8] sm:$0xff]
  %v650 = vld [vmem:[%s647 + $0x10] sm:$0xff]
  %v651 = vld [vmem:[%s647 + $0x18] sm:$0xff]
  %v652 = vld [vmem:[%s647 + $0x20] sm:$0xff]
  %v653 = vld [vmem:[%s647 + $0x28] sm:$0xff]
  %v654 = vld [vmem:[%s647 + $0x30] sm:$0xff]
  %v655 = vld [vmem:[%s647 + $0x38] sm:$0xff]
  %v656 = vld [vmem:[%s647 + $0x40] sm:$0xff]
  %v657 = vld [vmem:[%s647 + $0x48] sm:$0xff]
  %v658 = vld [vmem:[%s647 + $0x50] sm:$0xff]
  %v659 = vld [vmem:[%s647 + $0x58] sm:$0xff]
  %v660 = vld [vmem:[%s647 + $0x60] sm:$0xff]
  %v661 = vld [vmem:[%s647 + $0x68] sm:$0xff]
  %v662 = vld [vmem:[%s647 + $0x70] sm:$0xff]
  %v663 = vld [vmem:[%s647 + $0x78] sm:$0xff]
  %v664 = vld [vmem:[%s647 + $0x80] sm:$0xff]
  %v665 = vld [vmem:[%s647 + $0x88] sm:$0xff]
  %v666 = vld [vmem:[%s647 + $0x90] sm:$0xff]
  %v667 = vld [vmem:[%s647 + $0x98] sm:$0xff]
  %v668 = vld [vmem:[%s647 + $0xa0] sm:$0xff]
  %v669 = vld [vmem:[%s647 + $0xa8] sm:$0xff]
  %v670 = vld [vmem:[%s647 + $0xb0] sm:$0xff]
  %v671 = vld [vmem:[%s647 + $0xb8] sm:$0xff]
  %v672 = vld [vmem:[%s647 + $0xc0] sm:$0xff]
  %v673 = vld [vmem:[%s647 + $0xc8] sm:$0xff]
  %v674 = vld [vmem:[%s647 + $0xd0] sm:$0xff]
  %v675 = vld [vmem:[%s647 + $0xd8] sm:$0xff]
  %v676 = vld [vmem:[%s647 + $0xe0] sm:$0xff]
  %v677 = vld [vmem:[%s647 + $0xe8] sm:$0xff]
  %v678 = vld [vmem:[%s647 + $0xf0] sm:$0xff]
  %v679 = vld [vmem:[%s647 + $0xf8] sm:$0xff]
  %v680 = vld [vmem:[%s647 + $0x100] sm:$0xff]
  %v681 = vld [vmem:[%s647 + $0x108] sm:$0xff]
  %v684 = vunpack.c.l.b16 %v21
  %v685 = vunpack.c.h.b16 %v21
  %v686 = vunpack.c.l.b16 %v22
  %v687 = vpack.c.b16 %v684, %v684
  %v688 = vpack.c.b16 %v685, %v685
  %v689 = vpack.c.b16 %v686, %v686
  %vm690 = vsmask.f32 7424
  %v692 = vshrl.u32 %v383, 16
  %v694 = vshll.u32 %v383, 16
  %v696 = vrot.slane %v694, 1
  %v697 = vor.u32 %v692, %v696
  %v699 = vshll.u32 %v687, 16
  %v701 = vrot.slane %v699, 1
  %v702 = vsel %vm690, %v697, %v701
  %v704 = vshrl.u32 %v384, 16
  %v706 = vshll.u32 %v384, 16
  %v708 = vrot.slane %v706, 1
  %v709 = vor.u32 %v704, %v708
  %v711 = vshll.u32 %v688, 16
  %v713 = vrot.slane %v711, 1
  %v714 = vsel %vm690, %v709, %v713
  %v715 = vshrl.u32 %v385, 16
  %v717 = vshll.u32 %v385, 16
  %v719 = vrot.slane %v717, 1
  %v720 = vor.u32 %v715, %v719
  %v722 = vshll.u32 %v689, 16
  %v724 = vrot.slane %v722, 1
  %v725 = vsel %vm690, %v720, %v724
  %v762 = vunpack.c.l.b16 %v648
  %v763 = vunpack.c.h.b16 %v648
  %v764 = vunpack.c.l.b16 %v649
  %v765 = vunpack.c.h.b16 %v649
  %v766 = vunpack.c.l.b16 %v650
  %v767 = vunpack.c.h.b16 %v650
  %v768 = vunpack.c.l.b16 %v651
  %v769 = vunpack.c.h.b16 %v651
  %v770 = vunpack.c.l.b16 %v652
  %v771 = vunpack.c.h.b16 %v652
  %v772 = vunpack.c.l.b16 %v653
  %v773 = vunpack.c.h.b16 %v653
  %v774 = vunpack.c.l.b16 %v654
  %v775 = vunpack.c.h.b16 %v654
  %v776 = vunpack.c.l.b16 %v655
  %v777 = vunpack.c.h.b16 %v655
  %v778 = vunpack.c.l.b16 %v656
  %v779 = vunpack.c.h.b16 %v656
  %v780 = vunpack.c.l.b16 %v657
  %v781 = vunpack.c.h.b16 %v657
  %v782 = vunpack.c.l.b16 %v658
  %v783 = vunpack.c.h.b16 %v658
  %v784 = vunpack.c.l.b16 %v659
  %v785 = vunpack.c.h.b16 %v659
  %v786 = vunpack.c.l.b16 %v660
  %v787 = vunpack.c.h.b16 %v660
  %v788 = vunpack.c.l.b16 %v661
  %v789 = vunpack.c.h.b16 %v661
  %v790 = vunpack.c.l.b16 %v662
  %v791 = vunpack.c.h.b16 %v662
  %v792 = vunpack.c.l.b16 %v663
  %v793 = vunpack.c.h.b16 %v663
  %v794 = vunpack.c.l.b16 %v664
  %v795 = vunpack.c.h.b16 %v664
  %v796 = vunpack.c.l.b16 %v665
  %v797 = vunpack.c.h.b16 %v665
  %v798 = vunpack.c.l.b16 %v666
  %v799 = vunpack.c.h.b16 %v666
  %v800 = vunpack.c.l.b16 %v667
  %v801 = vunpack.c.h.b16 %v667
  %v802 = vunpack.c.l.b16 %v668
  %v803 = vunpack.c.h.b16 %v668
  %v804 = vunpack.c.l.b16 %v669
  %v805 = vunpack.c.h.b16 %v669
  %v806 = vunpack.c.l.b16 %v670
  %v807 = vunpack.c.h.b16 %v670
  %v808 = vunpack.c.l.b16 %v671
  %v809 = vunpack.c.h.b16 %v671
  %v810 = vunpack.c.l.b16 %v672
  %v811 = vunpack.c.h.b16 %v672
  %v812 = vunpack.c.l.b16 %v673
  %v813 = vunpack.c.h.b16 %v673
  %v814 = vunpack.c.l.b16 %v674
  %v815 = vunpack.c.h.b16 %v674
  %v816 = vunpack.c.l.b16 %v675
  %v817 = vunpack.c.h.b16 %v675
  %v818 = vunpack.c.l.b16 %v676
  %v819 = vunpack.c.h.b16 %v676
  %v820 = vunpack.c.l.b16 %v677
  %v821 = vunpack.c.h.b16 %v677
  %v822 = vunpack.c.l.b16 %v678
  %v823 = vunpack.c.h.b16 %v678
  %v824 = vunpack.c.l.b16 %v679
  %v825 = vunpack.c.h.b16 %v679
  %v826 = vunpack.c.l.b16 %v680
  %v827 = vunpack.c.h.b16 %v680
  %v828 = vunpack.c.l.b16 %v681
  %v829 = vunpack.c.h.b16 %v681
  %v830 = vpack.c.b16 %v764, %v762
  %v831 = vpack.c.b16 %v765, %v763
  %v832 = vpack.c.b16 %v768, %v766
  %v833 = vpack.c.b16 %v769, %v767
  %v834 = vpack.c.b16 %v772, %v770
  %v835 = vpack.c.b16 %v773, %v771
  %v836 = vpack.c.b16 %v776, %v774
  %v837 = vpack.c.b16 %v777, %v775
  %v838 = vpack.c.b16 %v780, %v778
  %v839 = vpack.c.b16 %v781, %v779
  %v840 = vpack.c.b16 %v784, %v782
  %v841 = vpack.c.b16 %v785, %v783
  %v842 = vpack.c.b16 %v788, %v786
  %v843 = vpack.c.b16 %v789, %v787
  %v844 = vpack.c.b16 %v792, %v790
  %v845 = vpack.c.b16 %v793, %v791
  %v846 = vpack.c.b16 %v796, %v794
  %v847 = vpack.c.b16 %v797, %v795
  %v848 = vpack.c.b16 %v800, %v798
  %v849 = vpack.c.b16 %v801, %v799
  %v850 = vpack.c.b16 %v804, %v802
  %v851 = vpack.c.b16 %v805, %v803
  %v852 = vpack.c.b16 %v808, %v806
  %v853 = vpack.c.b16 %v809, %v807
  %v854 = vpack.c.b16 %v812, %v810
  %v855 = vpack.c.b16 %v813, %v811
  %v856 = vpack.c.b16 %v816, %v814
  %v857 = vpack.c.b16 %v817, %v815
  %v858 = vpack.c.b16 %v820, %v818
  %v859 = vpack.c.b16 %v821, %v819
  %v860 = vpack.c.b16 %v824, %v822
  %v861 = vpack.c.b16 %v825, %v823
  %v862 = vpack.c.b16 %v828, %v826
  %v863 = vpack.c.b16 %v829, %v827
  %v899 = vsel %vm283, %v725, 0
  %901 = vmatprep.subr.bf16.mxu0 %v831
  %902 = vmatpush1.bf16.msra.mxu0 %v830
  %903 = vmatprep.subr.bf16.mxu0 %v833
  %904 = vmatpush1.bf16.msra.mxu0 %v832
  %905 = vmatprep.subr.bf16.mxu0 %v835
  %906 = vmatpush1.bf16.msra.mxu0 %v834
  %907 = vmatprep.subr.bf16.mxu0 %v837
  %908 = vmatpush1.bf16.msra.mxu0 %v836
  %909 = vmatprep.subr.bf16.mxu0 %v839
  %910 = vmatpush1.bf16.msra.mxu0 %v838
  %911 = vmatprep.subr.bf16.mxu0 %v841
  %912 = vmatpush1.bf16.msra.mxu0 %v840
  %913 = vmatprep.subr.bf16.mxu0 %v843
  %914 = vmatpush1.bf16.msra.mxu0 %v842
  %915 = vmatprep.subr.bf16.mxu0 %v845
  %916 = vmatpush1.bf16.msra.mxu0 %v844
  %917 = vmatprep.subr.bf16.mxu0 %v847
  %918 = vmatpush1.bf16.msra.mxu0 %v846
  %919 = vmatprep.subr.bf16.mxu0 %v849
  %920 = vmatpush1.bf16.msra.mxu0 %v848
  %921 = vmatprep.subr.bf16.mxu0 %v851
  %922 = vmatpush1.bf16.msra.mxu0 %v850
  %923 = vmatprep.subr.bf16.mxu0 %v853
  %924 = vmatpush1.bf16.msra.mxu0 %v852
  %925 = vmatprep.subr.bf16.mxu0 %v855
  %926 = vmatpush1.bf16.msra.mxu0 %v854
  %927 = vmatprep.subr.bf16.mxu0 %v857
  %928 = vmatpush1.bf16.msra.mxu0 %v856
  %929 = vmatprep.subr.bf16.mxu0 %v859
  %930 = vmatpush1.bf16.msra.mxu0 %v858
  %931 = vmatprep.subr.bf16.mxu0 %v861
  %932 = vmatpush1.bf16.msra.mxu0 %v860
  %933 = vmatprep.mubr.bf16.mxu0 %v714
  %934 = vmatmul.mubr.bf16.gmra.mrb[0].mxu0 %v702
  %v935 = vpop.f32.mrb[0].mxu0
  %v936 = vadd.f32 0.0, %v935
  %v937 = vpop.f32.mrb[0].mxu0
  %v938 = vadd.f32 0.0, %v937
  %v939 = vpop.f32.mrb[0].mxu0
  %v940 = vadd.f32 0.0, %v939
  %v941 = vpop.f32.mrb[0].mxu0
  %v942 = vadd.f32 0.0, %v941
  %943 = vdwg.mxu0
  %944 = vmatprep.subr.bf16.mxu0 %v863
  %945 = vmatpush1.bf16.msra.mxu0 %v862
  %946 = vmatprep.subr.bf16.mxu0 0
  %947 = vmatpush1.bf16.msra.mxu0 0
  %948 = vmatprep.subr.bf16.mxu0 0
  %949 = vmatpush1.bf16.msra.mxu0 0
  %950 = vmatprep.subr.bf16.mxu0 0
  %951 = vmatpush1.bf16.msra.mxu0 0
  %952 = vmatprep.subr.bf16.mxu0 0
  %953 = vmatpush1.bf16.msra.mxu0 0
  %954 = vmatprep.subr.bf16.mxu0 0
  %955 = vmatpush1.bf16.msra.mxu0 0
  %956 = vmatprep.subr.bf16.mxu0 0
  %957 = vmatpush1.bf16.msra.mxu0 0
  %958 = vmatprep.subr.bf16.mxu0 0
  %959 = vmatpush1.bf16.msra.mxu0 0
  %960 = vmatprep.subr.bf16.mxu0 0
  %961 = vmatpush1.bf16.msra.mxu0 0
  %962 = vmatprep.subr.bf16.mxu0 0
  %963 = vmatpush1.bf16.msra.mxu0 0
  %964 = vmatprep.subr.bf16.mxu0 0
  %965 = vmatpush1.bf16.msra.mxu0 0
  %966 = vmatprep.subr.bf16.mxu0 0
  %967 = vmatpush1.bf16.msra.mxu0 0
  %968 = vmatprep.subr.bf16.mxu0 0
  %969 = vmatpush1.bf16.msra.mxu0 0
  %970 = vmatprep.subr.bf16.mxu0 0
  %971 = vmatpush1.bf16.msra.mxu0 0
  %972 = vmatprep.subr.bf16.mxu0 0
  %973 = vmatpush1.bf16.msra.mxu0 0
  %974 = vmatprep.subr.bf16.mxu0 0
  %975 = vmatpush1.bf16.msra.mxu0 0
  %976 = vmatprep.mubr.bf16.mxu0 0
  %977 = vmatmul.mubr.bf16.gmra.mrb[0].mxu0 %v899
  %v978 = vpop.f32.mrb[0].mxu0
  %v979 = vadd.f32 %v936, %v978
  %v980 = vpop.f32.mrb[0].mxu0
  %v981 = vadd.f32 %v938, %v980
  %v982 = vpop.f32.mrb[0].mxu0
  %v983 = vadd.f32 %v940, %v982
  %v984 = vpop.f32.mrb[0].mxu0
  %v985 = vadd.f32 %v942, %v984
  %986 = vdwg.mxu0
  %v987 = vadd.f32 %v639, %v979
  %v988 = vadd.f32 %v641, %v981
  %v989 = vadd.f32 %v643, %v983
  %v990 = vadd.f32 %v645, %v985
  %s991 = scalar_lea.vmem %s2, 816
  %v992 = vld [vmem:[%s991] sm:$0xff]
  %v993 = vld [vmem:[%s991 + $0x8] sm:$0xff]
  %v994 = vld [vmem:[%s991 + $0x10] sm:$0xff]
  %v995 = vld [vmem:[%s991 + $0x18] sm:$0xff]
  %v996 = vld [vmem:[%s991 + $0x20] sm:$0xff]
  %v997 = vld [vmem:[%s991 + $0x28] sm:$0xff]
  %v998 = vld [vmem:[%s991 + $0x30] sm:$0xff]
  %v999 = vld [vmem:[%s991 + $0x38] sm:$0xff]
  %v1000 = vld [vmem:[%s991 + $0x40] sm:$0xff]
  %v1001 = vld [vmem:[%s991 + $0x48] sm:$0xff]
  %v1002 = vld [vmem:[%s991 + $0x50] sm:$0xff]
  %v1003 = vld [vmem:[%s991 + $0x58] sm:$0xff]
  %v1004 = vld [vmem:[%s991 + $0x60] sm:$0xff]
  %v1005 = vld [vmem:[%s991 + $0x68] sm:$0xff]
  %v1006 = vld [vmem:[%s991 + $0x70] sm:$0xff]
  %v1007 = vld [vmem:[%s991 + $0x78] sm:$0xff]
  %v1008 = vld [vmem:[%s991 + $0x80] sm:$0xff]
  %v1009 = vld [vmem:[%s991 + $0x88] sm:$0xff]
  %v1010 = vld [vmem:[%s991 + $0x90] sm:$0xff]
  %v1011 = vld [vmem:[%s991 + $0x98] sm:$0xff]
  %v1012 = vld [vmem:[%s991 + $0xa0] sm:$0xff]
  %v1013 = vld [vmem:[%s991 + $0xa8] sm:$0xff]
  %v1014 = vld [vmem:[%s991 + $0xb0] sm:$0xff]
  %v1015 = vld [vmem:[%s991 + $0xb8] sm:$0xff]
  %v1016 = vld [vmem:[%s991 + $0xc0] sm:$0xff]
  %v1017 = vld [vmem:[%s991 + $0xc8] sm:$0xff]
  %v1018 = vld [vmem:[%s991 + $0xd0] sm:$0xff]
  %v1019 = vld [vmem:[%s991 + $0xd8] sm:$0xff]
  %v1020 = vld [vmem:[%s991 + $0xe0] sm:$0xff]
  %v1021 = vld [vmem:[%s991 + $0xe8] sm:$0xff]
  %v1022 = vld [vmem:[%s991 + $0xf0] sm:$0xff]
  %v1023 = vld [vmem:[%s991 + $0xf8] sm:$0xff]
  %v1024 = vld [vmem:[%s991 + $0x100] sm:$0xff]
  %v1025 = vld [vmem:[%s991 + $0x108] sm:$0xff]
  %v1028 = vunpack.c.l.b16 %v27
  %v1029 = vunpack.c.h.b16 %v27
  %v1030 = vunpack.c.l.b16 %v28
  %v1031 = vpack.c.b16 %v1028, %v1028
  %v1032 = vpack.c.b16 %v1029, %v1029
  %v1033 = vpack.c.b16 %v1030, %v1030
  %v1035 = vshrl.u32 %v108, 16
  %v1037 = vshll.u32 %v108, 16
  %v1039 = vrot.slane %v1037, 1
  %v1040 = vor.u32 %v1035, %v1039
  %v1042 = vshll.u32 %v1031, 16
  %v1044 = vrot.slane %v1042, 1
  %v1045 = vsel %vm690, %v1040, %v1044
  %v1047 = vshrl.u32 %v109, 16
  %v1049 = vshll.u32 %v109, 16
  %v1051 = vrot.slane %v1049, 1
  %v1052 = vor.u32 %v1047, %v1051
  %v1054 = vshll.u32 %v1032, 16
  %v1056 = vrot.slane %v1054, 1
  %v1057 = vsel %vm690, %v1052, %v1056
  %v1058 = vshrl.u32 %v110, 16
  %v1060 = vshll.u32 %v110, 16
  %v1062 = vrot.slane %v1060, 1
  %v1063 = vor.u32 %v1058, %v1062
  %v1065 = vshll.u32 %v1033, 16
  %v1067 = vrot.slane %v1065, 1
  %v1068 = vsel %vm690, %v1063, %v1067
  %v1105 = vunpack.c.l.b16 %v992
  %v1106 = vunpack.c.h.b16 %v992
  %v1107 = vunpack.c.l.b16 %v993
  %v1108 = vunpack.c.h.b16 %v993
  %v1109 = vunpack.c.l.b16 %v994
  %v1110 = vunpack.c.h.b16 %v994
  %v1111 = vunpack.c.l.b16 %v995
  %v1112 = vunpack.c.h.b16 %v995
  %v1113 = vunpack.c.l.b16 %v996
  %v1114 = vunpack.c.h.b16 %v996
  %v1115 = vunpack.c.l.b16 %v997
  %v1116 = vunpack.c.h.b16 %v997
  %v1117 = vunpack.c.l.b16 %v998
  %v1118 = vunpack.c.h.b16 %v998
  %v1119 = vunpack.c.l.b16 %v999
  %v1120 = vunpack.c.h.b16 %v999
  %v1121 = vunpack.c.l.b16 %v1000
  %v1122 = vunpack.c.h.b16 %v1000
  %v1123 = vunpack.c.l.b16 %v1001
  %v1124 = vunpack.c.h.b16 %v1001
  %v1125 = vunpack.c.l.b16 %v1002
  %v1126 = vunpack.c.h.b16 %v1002
  %v1127 = vunpack.c.l.b16 %v1003
  %v1128 = vunpack.c.h.b16 %v1003
  %v1129 = vunpack.c.l.b16 %v1004
  %v1130 = vunpack.c.h.b16 %v1004
  %v1131 = vunpack.c.l.b16 %v1005
  %v1132 = vunpack.c.h.b16 %v1005
  %v1133 = vunpack.c.l.b16 %v1006
  %v1134 = vunpack.c.h.b16 %v1006
  %v1135 = vunpack.c.l.b16 %v1007
  %v1136 = vunpack.c.h.b16 %v1007
  %v1137 = vunpack.c.l.b16 %v1008
  %v1138 = vunpack.c.h.b16 %v1008
  %v1139 = vunpack.c.l.b16 %v1009
  %v1140 = vunpack.c.h.b16 %v1009
  %v1141 = vunpack.c.l.b16 %v1010
  %v1142 = vunpack.c.h.b16 %v1010
  %v1143 = vunpack.c.l.b16 %v1011
  %v1144 = vunpack.c.h.b16 %v1011
  %v1145 = vunpack.c.l.b16 %v1012
  %v1146 = vunpack.c.h.b16 %v1012
  %v1147 = vunpack.c.l.b16 %v1013
  %v1148 = vunpack.c.h.b16 %v1013
  %v1149 = vunpack.c.l.b16 %v1014
  %v1150 = vunpack.c.h.b16 %v1014
  %v1151 = vunpack.c.l.b16 %v1015
  %v1152 = vunpack.c.h.b16 %v1015
  %v1153 = vunpack.c.l.b16 %v1016
  %v1154 = vunpack.c.h.b16 %v1016
  %v1155 = vunpack.c.l.b16 %v1017
  %v1156 = vunpack.c.h.b16 %v1017
  %v1157 = vunpack.c.l.b16 %v1018
  %v1158 = vunpack.c.h.b16 %v1018
  %v1159 = vunpack.c.l.b16 %v1019
  %v1160 = vunpack.c.h.b16 %v1019
  %v1161 = vunpack.c.l.b16 %v1020
  %v1162 = vunpack.c.h.b16 %v1020
  %v1163 = vunpack.c.l.b16 %v1021
  %v1164 = vunpack.c.h.b16 %v1021
  %v1165 = vunpack.c.l.b16 %v1022
  %v1166 = vunpack.c.h.b16 %v1022
  %v1167 = vunpack.c.l.b16 %v1023
  %v1168 = vunpack.c.h.b16 %v1023
  %v1169 = vunpack.c.l.b16 %v1024
  %v1170 = vunpack.c.h.b16 %v1024
  %v1171 = vunpack.c.l.b16 %v1025
  %v1172 = vunpack.c.h.b16 %v1025
  %v1173 = vpack.c.b16 %v1107, %v1105
  %v1174 = vpack.c.b16 %v1108, %v1106
  %v1175 = vpack.c.b16 %v1111, %v1109
  %v1176 = vpack.c.b16 %v1112, %v1110
  %v1177 = vpack.c.b16 %v1115, %v1113
  %v1178 = vpack.c.b16 %v1116, %v1114
  %v1179 = vpack.c.b16 %v1119, %v1117
  %v1180 = vpack.c.b16 %v1120, %v1118
  %v1181 = vpack.c.b16 %v1123, %v1121
  %v1182 = vpack.c.b16 %v1124, %v1122
  %v1183 = vpack.c.b16 %v1127, %v1125
  %v1184 = vpack.c.b16 %v1128, %v1126
  %v1185 = vpack.c.b16 %v1131, %v1129
  %v1186 = vpack.c.b16 %v1132, %v1130
  %v1187 = vpack.c.b16 %v1135, %v1133
  %v1188 = vpack.c.b16 %v1136, %v1134
  %v1189 = vpack.c.b16 %v1139, %v1137
  %v1190 = vpack.c.b16 %v1140, %v1138
  %v1191 = vpack.c.b16 %v1143, %v1141
  %v1192 = vpack.c.b16 %v1144, %v1142
  %v1193 = vpack.c.b16 %v1147, %v1145
  %v1194 = vpack.c.b16 %v1148, %v1146
  %v1195 = vpack.c.b16 %v1151, %v1149
  %v1196 = vpack.c.b16 %v1152, %v1150
  %v1197 = vpack.c.b16 %v1155, %v1153
  %v1198 = vpack.c.b16 %v1156, %v1154
  %v1199 = vpack.c.b16 %v1159, %v1157
  %v1200 = vpack.c.b16 %v1160, %v1158
  %v1201 = vpack.c.b16 %v1163, %v1161
  %v1202 = vpack.c.b16 %v1164, %v1162
  %v1203 = vpack.c.b16 %v1167, %v1165
  %v1204 = vpack.c.b16 %v1168, %v1166
  %v1205 = vpack.c.b16 %v1171, %v1169
  %v1206 = vpack.c.b16 %v1172, %v1170
  %v1242 = vsel %vm283, %v1068, 0
  %1244 = vmatprep.subr.bf16.mxu0 %v1174
  %1245 = vmatpush1.bf16.msra.mxu0 %v1173
  %1246 = vmatprep.subr.bf16.mxu0 %v1176
  %1247 = vmatpush1.bf16.msra.mxu0 %v1175
  %1248 = vmatprep.subr.bf16.mxu0 %v1178
  %1249 = vmatpush1.bf16.msra.mxu0 %v1177
  %1250 = vmatprep.subr.bf16.mxu0 %v1180
  %1251 = vmatpush1.bf16.msra.mxu0 %v1179
  %1252 = vmatprep.subr.bf16.mxu0 %v1182
  %1253 = vmatpush1.bf16.msra.mxu0 %v1181
  %1254 = vmatprep.subr.bf16.mxu0 %v1184
  %1255 = vmatpush1.bf16.msra.mxu0 %v1183
  %1256 = vmatprep.subr.bf16.mxu0 %v1186
  %1257 = vmatpush1.bf16.msra.mxu0 %v1185
  %1258 = vmatprep.subr.bf16.mxu0 %v1188
  %1259 = vmatpush1.bf16.msra.mxu0 %v1187
  %1260 = vmatprep.subr.bf16.mxu0 %v1190
  %1261 = vmatpush1.bf16.msra.mxu0 %v1189
  %1262 = vmatprep.subr.bf16.mxu0 %v1192
  %1263 = vmatpush1.bf16.msra.mxu0 %v1191
  %1264 = vmatprep.subr.bf16.mxu0 %v1194
  %1265 = vmatpush1.bf16.msra.mxu0 %v1193
  %1266 = vmatprep.subr.bf16.mxu0 %v1196
  %1267 = vmatpush1.bf16.msra.mxu0 %v1195
  %1268 = vmatprep.subr.bf16.mxu0 %v1198
  %1269 = vmatpush1.bf16.msra.mxu0 %v1197
  %1270 = vmatprep.subr.bf16.mxu0 %v1200
  %1271 = vmatpush1.bf16.msra.mxu0 %v1199
  %1272 = vmatprep.subr.bf16.mxu0 %v1202
  %1273 = vmatpush1.bf16.msra.mxu0 %v1201
  %1274 = vmatprep.subr.bf16.mxu0 %v1204
  %1275 = vmatpush1.bf16.msra.mxu0 %v1203
  %1276 = vmatprep.mubr.bf16.mxu0 %v1057
  %1277 = vmatmul.mubr.bf16.gmra.mrb[0].mxu0 %v1045
  %v1278 = vpop.f32.mrb[0].mxu0
  %v1279 = vadd.f32 0.0, %v1278
  %v1280 = vpop.f32.mrb[0].mxu0
  %v1281 = vadd.f32 0.0, %v1280
  %v1282 = vpop.f32.mrb[0].mxu0
  %v1283 = vadd.f32 0.0, %v1282
  %v1284 = vpop.f32.mrb[0].mxu0
  %v1285 = vadd.f32 0.0, %v1284
  %1286 = vdwg.mxu0
  %1287 = vmatprep.subr.bf16.mxu0 %v1206
  %1288 = vmatpush1.bf16.msra.mxu0 %v1205
  %1289 = vmatprep.subr.bf16.mxu0 0
  %1290 = vmatpush1.bf16.msra.mxu0 0
  %1291 = vmatprep.subr.bf16.mxu0 0
  %1292 = vmatpush1.bf16.msra.mxu0 0
  %1293 = vmatprep.subr.bf16.mxu0 0
  %1294 = vmatpush1.bf16.msra.mxu0 0
  %1295 = vmatprep.subr.bf16.mxu0 0
  %1296 = vmatpush1.bf16.msra.mxu0 0
  %1297 = vmatprep.subr.bf16.mxu0 0
  %1298 = vmatpush1.bf16.msra.mxu0 0
  %1299 = vmatprep.subr.bf16.mxu0 0
  %1300 = vmatpush1.bf16.msra.mxu0 0
  %1301 = vmatprep.subr.bf16.mxu0 0
  %1302 = vmatpush1.bf16.msra.mxu0 0
  %1303 = vmatprep.subr.bf16.mxu0 0
  %1304 = vmatpush1.bf16.msra.mxu0 0
  %1305 = vmatprep.subr.bf16.mxu0 0
  %1306 = vmatpush1.bf16.msra.mxu0 0
  %1307 = vmatprep.subr.bf16.mxu0 0
  %1308 = vmatpush1.bf16.msra.mxu0 0
  %1309 = vmatprep.subr.bf16.mxu0 0
  %1310 = vmatpush1.bf16.msra.mxu0 0
  %1311 = vmatprep.subr.bf16.mxu0 0
  %1312 = vmatpush1.bf16.msra.mxu0 0
  %1313 = vmatprep.subr.bf16.mxu0 0
  %1314 = vmatpush1.bf16.msra.mxu0 0
  %1315 = vmatprep.subr.bf16.mxu0 0
  %1316 = vmatpush1.bf16.msra.mxu0 0
  %1317 = vmatprep.subr.bf16.mxu0 0
  %1318 = vmatpush1.bf16.msra.mxu0 0
  %1319 = vmatprep.mubr.bf16.mxu0 0
  %1320 = vmatmul.mubr.bf16.gmra.mrb[0].mxu0 %v1242
  %v1321 = vpop.f32.mrb[0].mxu0
  %v1322 = vadd.f32 %v1279, %v1321
  %v1323 = vpop.f32.mrb[0].mxu0
  %v1324 = vadd.f32 %v1281, %v1323
  %v1325 = vpop.f32.mrb[0].mxu0
  %v1326 = vadd.f32 %v1283, %v1325
  %v1327 = vpop.f32.mrb[0].mxu0
  %v1328 = vadd.f32 %v1285, %v1327
  %1329 = vdwg.mxu0
  %v1330 = vadd.f32 %v987, %v1322
  %v1331 = vadd.f32 %v988, %v1324
  %v1332 = vadd.f32 %v989, %v1326
  %v1333 = vadd.f32 %v990, %v1328
  %v1334 = vpack.c.bf16 %v1332, %v1330
  %v1335 = vpack.c.bf16 %v1333, %v1331
  %v1338 = vunpack.c.l.b16 %v1334
  %v1339 = vunpack.c.l.b16 %v1335
  %v1340 = vunpack.c.h.b16 %v1334
  %v1341 = vunpack.c.h.b16 %v1335
  %v1342 = vpack.c.b16 %v1339, %v1338
  %v1343 = vpack.c.b16 %v1341, %v1340
  %1346 = vst [vmem:[%s3] sm:$0xff] %v1342
  %1347 = vst [vmem:[%s3 + $0x8] sm:$0xff] %v1343
  %v1348 = vadd.f32 %v1330, %v1332
  %v1349 = vrot.slane %v1348, 4
  %v1350 = vadd.f32 %v1348, %v1349
  %v1351 = vrot.slane %v1350, 2
  %v1352 = vadd.f32 %v1350, %v1351
  %v1353 = vrot.slane %v1352, 1
  %v1354 = vadd.f32 %v1352, %v1353
  %v1355 = vadd.f32 %v1331, %v1333
  %v1356 = vrot.slane %v1355, 4
  %v1357 = vadd.f32 %v1355, %v1356
  %v1358 = vrot.slane %v1357, 2
  %v1359 = vadd.f32 %v1357, %v1358
  %v1360 = vrot.slane %v1359, 1
  %v1361 = vadd.f32 %v1359, %v1360
  %v1362 = vadd.f32 %v1354, 0.0
  %v1363 = vadd.f32 %v1361, 0.0
  %v1364 = vmul.f32 %v1330, %v1330
  %v1365 = vmul.f32 %v1331, %v1331
  %v1366 = vmul.f32 %v1332, %v1332
  %v1367 = vmul.f32 %v1333, %v1333
  %v1368 = vadd.f32 %v1364, %v1366
  %v1369 = vrot.slane %v1368, 4
  %v1370 = vadd.f32 %v1368, %v1369
  %v1371 = vrot.slane %v1370, 2
  %v1372 = vadd.f32 %v1370, %v1371
  %v1373 = vrot.slane %v1372, 1
  %v1374 = vadd.f32 %v1372, %v1373
  %v1375 = vadd.f32 %v1365, %v1367
  %v1376 = vrot.slane %v1375, 4
  %v1377 = vadd.f32 %v1375, %v1376
  %v1378 = vrot.slane %v1377, 2
  %v1379 = vadd.f32 %v1377, %v1378
  %v1380 = vrot.slane %v1379, 1
  %v1381 = vadd.f32 %v1379, %v1380
  %v1382 = vadd.f32 %v1374, 0.0
  %v1383 = vadd.f32 %v1381, 0.0
  %s1384 = scalar_lea.vmem %s0, 36
  %v1385 = vld [vmem:[%s1384] sm:$0xff]
  %v1386 = vld [vmem:[%s1384 + $0x8] sm:$0xf]
  %v1387 = vld [vmem:[%s1384 + $0xc] sm:$0xff]
  %v1388 = vld [vmem:[%s1384 + $0x14] sm:$0xf]
  %v1389 = vld [vmem:[%s1384 + $0x18] sm:$0x11]
  %v1390 = vld [vmem:[%s1384 + $0x20] sm:$0x1]
  %s1391 = scalar_lea.vmem %s1, 36
  %v1392 = vld [vmem:[%s1391] sm:$0xff]
  %v1393 = vld [vmem:[%s1391 + $0x8] sm:$0xf]
  %v1394 = vld [vmem:[%s1391 + $0xc] sm:$0xff]
  %v1395 = vld [vmem:[%s1391 + $0x14] sm:$0xf]
  %v1396 = vld [vmem:[%s1391 + $0x18] sm:$0x11]
  %v1397 = vld [vmem:[%s1391 + $0x20] sm:$0x1]
  %v1398 = vld [vmem:[%s2] sm:$0xff]
  %v1399 = vld [vmem:[%s2 + $0x8] sm:$0xff]
  %v1400 = vld [vmem:[%s2 + $0x10] sm:$0xff]
  %v1401 = vld [vmem:[%s2 + $0x18] sm:$0xff]
  %v1402 = vld [vmem:[%s2 + $0x20] sm:$0xff]
  %v1403 = vld [vmem:[%s2 + $0x28] sm:$0xff]
  %v1404 = vld [vmem:[%s2 + $0x30] sm:$0xff]
  %v1405 = vld [vmem:[%s2 + $0x38] sm:$0xff]
  %v1406 = vld [vmem:[%s2 + $0x40] sm:$0xff]
  %v1407 = vld [vmem:[%s2 + $0x48] sm:$0xff]
  %v1408 = vld [vmem:[%s2 + $0x50] sm:$0xff]
  %v1409 = vld [vmem:[%s2 + $0x58] sm:$0xff]
  %v1410 = vld [vmem:[%s2 + $0x60] sm:$0xff]
  %v1411 = vld [vmem:[%s2 + $0x68] sm:$0xff]
  %v1412 = vld [vmem:[%s2 + $0x70] sm:$0xff]
  %v1413 = vld [vmem:[%s2 + $0x78] sm:$0xff]
  %v1414 = vld [vmem:[%s2 + $0x80] sm:$0xff]
  %v1415 = vld [vmem:[%s2 + $0x88] sm:$0xff]
  %v1416 = vld [vmem:[%s2 + $0x90] sm:$0xff]
  %v1417 = vld [vmem:[%s2 + $0x98] sm:$0xff]
  %v1418 = vld [vmem:[%s2 + $0xa0] sm:$0xff]
  %v1419 = vld [vmem:[%s2 + $0xa8] sm:$0xff]
  %v1420 = vld [vmem:[%s2 + $0xb0] sm:$0xff]
  %v1421 = vld [vmem:[%s2 + $0xb8] sm:$0xff]
  %v1422 = vld [vmem:[%s2 + $0xc0] sm:$0xff]
  %v1423 = vld [vmem:[%s2 + $0xc8] sm:$0xff]
  %v1424 = vld [vmem:[%s2 + $0xd0] sm:$0xff]
  %v1425 = vld [vmem:[%s2 + $0xd8] sm:$0xff]
  %v1426 = vld [vmem:[%s2 + $0xe0] sm:$0xff]
  %v1427 = vld [vmem:[%s2 + $0xe8] sm:$0xff]
  %v1428 = vld [vmem:[%s2 + $0xf0] sm:$0xff]
  %v1429 = vld [vmem:[%s2 + $0xf8] sm:$0xff]
  %v1430 = vld [vmem:[%s2 + $0x100] sm:$0xff]
  %v1431 = vld [vmem:[%s2 + $0x108] sm:$0xff]
  %v1432 = vld [vmem:[%s63] sm:$0xff]
  %v1433 = vld [vmem:[%s63 + $0x8] sm:$0xff]
  %v1434 = vld [vmem:[%s63 + $0x10] sm:$0xff]
  %v1435 = vld [vmem:[%s63 + $0x18] sm:$0xff]
  %v1436 = vld [vmem:[%s63 + $0x20] sm:$0xff]
  %v1437 = vld [vmem:[%s63 + $0x28] sm:$0xff]
  %v1438 = vld [vmem:[%s63 + $0x30] sm:$0xff]
  %v1439 = vld [vmem:[%s63 + $0x38] sm:$0xff]
  %v1440 = vld [vmem:[%s63 + $0x40] sm:$0xff]
  %v1441 = vld [vmem:[%s63 + $0x48] sm:$0xff]
  %v1442 = vld [vmem:[%s63 + $0x50] sm:$0xff]
  %v1443 = vld [vmem:[%s63 + $0x58] sm:$0xff]
  %v1444 = vld [vmem:[%s63 + $0x60] sm:$0xff]
  %v1445 = vld [vmem:[%s63 + $0x68] sm:$0xff]
  %v1446 = vld [vmem:[%s63 + $0x70] sm:$0xff]
  %v1447 = vld [vmem:[%s63 + $0x78] sm:$0xff]
  %v1448 = vld [vmem:[%s63 + $0x80] sm:$0xff]
  %v1449 = vld [vmem:[%s63 + $0x88] sm:$0xff]
  %v1450 = vld [vmem:[%s63 + $0x90] sm:$0xff]
  %v1451 = vld [vmem:[%s63 + $0x98] sm:$0xff]
  %v1452 = vld [vmem:[%s63 + $0xa0] sm:$0xff]
  %v1453 = vld [vmem:[%s63 + $0xa8] sm:$0xff]
  %v1454 = vld [vmem:[%s63 + $0xb0] sm:$0xff]
  %v1455 = vld [vmem:[%s63 + $0xb8] sm:$0xff]
  %v1456 = vld [vmem:[%s63 + $0xc0] sm:$0xff]
  %v1457 = vld [vmem:[%s63 + $0xc8] sm:$0xff]
  %v1458 = vld [vmem:[%s63 + $0xd0] sm:$0xff]
  %v1459 = vld [vmem:[%s63 + $0xd8] sm:$0xff]
  %v1460 = vld [vmem:[%s63 + $0xe0] sm:$0xff]
  %v1461 = vld [vmem:[%s63 + $0xe8] sm:$0xff]
  %v1462 = vld [vmem:[%s63 + $0xf0] sm:$0xff]
  %v1463 = vld [vmem:[%s63 + $0xf8] sm:$0xff]
  %v1464 = vld [vmem:[%s63 + $0x100] sm:$0xff]
  %v1465 = vld [vmem:[%s63 + $0x108] sm:$0xff]
  %v1470 = vunpack.c.l.b16 %v1392
  %v1471 = vunpack.c.h.b16 %v1392
  %v1472 = vunpack.c.l.b16 %v1393
  %v1473 = vunpack.c.l.b16 %v1394
  %v1474 = vunpack.c.h.b16 %v1394
  %v1475 = vunpack.c.l.b16 %v1395
  %v1476 = vpack.c.b16 %v1473, %v1470
  %v1477 = vpack.c.b16 %v1474, %v1471
  %v1478 = vpack.c.b16 %v1475, %v1472
  %v1515 = vunpack.c.l.b16 %v1432
  %v1516 = vunpack.c.h.b16 %v1432
  %v1517 = vunpack.c.l.b16 %v1433
  %v1518 = vunpack.c.h.b16 %v1433
  %v1519 = vunpack.c.l.b16 %v1434
  %v1520 = vunpack.c.h.b16 %v1434
  %v1521 = vunpack.c.l.b16 %v1435
  %v1522 = vunpack.c.h.b16 %v1435
  %v1523 = vunpack.c.l.b16 %v1436
  %v1524 = vunpack.c.h.b16 %v1436
  %v1525 = vunpack.c.l.b16 %v1437
  %v1526 = vunpack.c.h.b16 %v1437
  %v1527 = vunpack.c.l.b16 %v1438
  %v1528 = vunpack.c.h.b16 %v1438
  %v1529 = vunpack.c.l.b16 %v1439
  %v1530 = vunpack.c.h.b16 %v1439
  %v1531 = vunpack.c.l.b16 %v1440
  %v1532 = vunpack.c.h.b16 %v1440
  %v1533 = vunpack.c.l.b16 %v1441
  %v1534 = vunpack.c.h.b16 %v1441
  %v1535 = vunpack.c.l.b16 %v1442
  %v1536 = vunpack.c.h.b16 %v1442
  %v1537 = vunpack.c.l.b16 %v1443
  %v1538 = vunpack.c.h.b16 %v1443
  %v1539 = vunpack.c.l.b16 %v1444
  %v1540 = vunpack.c.h.b16 %v1444
  %v1541 = vunpack.c.l.b16 %v1445
  %v1542 = vunpack.c.h.b16 %v1445
  %v1543 = vunpack.c.l.b16 %v1446
  %v1544 = vunpack.c.h.b16 %v1446
  %v1545 = vunpack.c.l.b16 %v1447
  %v1546 = vunpack.c.h.b16 %v1447
  %v1547 = vunpack.c.l.b16 %v1448
  %v1548 = vunpack.c.h.b16 %v1448
  %v1549 = vunpack.c.l.b16 %v1449
  %v1550 = vunpack.c.h.b16 %v1449
  %v1551 = vunpack.c.l.b16 %v1450
  %v1552 = vunpack.c.h.b16 %v1450
  %v1553 = vunpack.c.l.b16 %v1451
  %v1554 = vunpack.c.h.b16 %v1451
  %v1555 = vunpack.c.l.b16 %v1452
  %v1556 = vunpack.c.h.b16 %v1452
  %v1557 = vunpack.c.l.b16 %v1453
  %v1558 = vunpack.c.h.b16 %v1453
  %v1559 = vunpack.c.l.b16 %v1454
  %v1560 = vunpack.c.h.b16 %v1454
  %v1561 = vunpack.c.l.b16 %v1455
  %v1562 = vunpack.c.h.b16 %v1455
  %v1563 = vunpack.c.l.b16 %v1456
  %v1564 = vunpack.c.h.b16 %v1456
  %v1565 = vunpack.c.l.b16 %v1457
  %v1566 = vunpack.c.h.b16 %v1457
  %v1567 = vunpack.c.l.b16 %v1458
  %v1568 = vunpack.c.h.b16 %v1458
  %v1569 = vunpack.c.l.b16 %v1459
  %v1570 = vunpack.c.h.b16 %v1459
  %v1571 = vunpack.c.l.b16 %v1460
  %v1572 = vunpack.c.h.b16 %v1460
  %v1573 = vunpack.c.l.b16 %v1461
  %v1574 = vunpack.c.h.b16 %v1461
  %v1575 = vunpack.c.l.b16 %v1462
  %v1576 = vunpack.c.h.b16 %v1462
  %v1577 = vunpack.c.l.b16 %v1463
  %v1578 = vunpack.c.h.b16 %v1463
  %v1579 = vunpack.c.l.b16 %v1464
  %v1580 = vunpack.c.h.b16 %v1464
  %v1581 = vunpack.c.l.b16 %v1465
  %v1582 = vunpack.c.h.b16 %v1465
  %v1583 = vpack.c.b16 %v1517, %v1515
  %v1584 = vpack.c.b16 %v1518, %v1516
  %v1585 = vpack.c.b16 %v1521, %v1519
  %v1586 = vpack.c.b16 %v1522, %v1520
  %v1587 = vpack.c.b16 %v1525, %v1523
  %v1588 = vpack.c.b16 %v1526, %v1524
  %v1589 = vpack.c.b16 %v1529, %v1527
  %v1590 = vpack.c.b16 %v1530, %v1528
  %v1591 = vpack.c.b16 %v1533, %v1531
  %v1592 = vpack.c.b16 %v1534, %v1532
  %v1593 = vpack.c.b16 %v1537, %v1535
  %v1594 = vpack.c.b16 %v1538, %v1536
  %v1595 = vpack.c.b16 %v1541, %v1539
  %v1596 = vpack.c.b16 %v1542, %v1540
  %v1597 = vpack.c.b16 %v1545, %v1543
  %v1598 = vpack.c.b16 %v1546, %v1544
  %v1599 = vpack.c.b16 %v1549, %v1547
  %v1600 = vpack.c.b16 %v1550, %v1548
  %v1601 = vpack.c.b16 %v1553, %v1551
  %v1602 = vpack.c.b16 %v1554, %v1552
  %v1603 = vpack.c.b16 %v1557, %v1555
  %v1604 = vpack.c.b16 %v1558, %v1556
  %v1605 = vpack.c.b16 %v1561, %v1559
  %v1606 = vpack.c.b16 %v1562, %v1560
  %v1607 = vpack.c.b16 %v1565, %v1563
  %v1608 = vpack.c.b16 %v1566, %v1564
  %v1609 = vpack.c.b16 %v1569, %v1567
  %v1610 = vpack.c.b16 %v1570, %v1568
  %v1611 = vpack.c.b16 %v1573, %v1571
  %v1612 = vpack.c.b16 %v1574, %v1572
  %v1613 = vpack.c.b16 %v1577, %v1575
  %v1614 = vpack.c.b16 %v1578, %v1576
  %v1615 = vpack.c.b16 %v1581, %v1579
  %v1616 = vpack.c.b16 %v1582, %v1580
  %v1652 = vsel %vm283, %v1478, 0
  %1654 = vmatprep.subr.bf16.mxu0 %v1584
  %1655 = vmatpush1.bf16.msra.mxu0 %v1583
  %1656 = vmatprep.subr.bf16.mxu0 %v1586
  %1657 = vmatpush1.bf16.msra.mxu0 %v1585
  %1658 = vmatprep.subr.bf16.mxu0 %v1588
  %1659 = vmatpush1.bf16.msra.mxu0 %v1587
  %1660 = vmatprep.subr.bf16.mxu0 %v1590
  %1661 = vmatpush1.bf16.msra.mxu0 %v1589
  %1662 = vmatprep.subr.bf16.mxu0 %v1592
  %1663 = vmatpush1.bf16.msra.mxu0 %v1591
  %1664 = vmatprep.subr.bf16.mxu0 %v1594
  %1665 = vmatpush1.bf16.msra.mxu0 %v1593
  %1666 = vmatprep.subr.bf16.mxu0 %v1596
  %1667 = vmatpush1.bf16.msra.mxu0 %v1595
  %1668 = vmatprep.subr.bf16.mxu0 %v1598
  %1669 = vmatpush1.bf16.msra.mxu0 %v1597
  %1670 = vmatprep.subr.bf16.mxu0 %v1600
  %1671 = vmatpush1.bf16.msra.mxu0 %v1599
  %1672 = vmatprep.subr.bf16.mxu0 %v1602
  %1673 = vmatpush1.bf16.msra.mxu0 %v1601
  %1674 = vmatprep.subr.bf16.mxu0 %v1604
  %1675 = vmatpush1.bf16.msra.mxu0 %v1603
  %1676 = vmatprep.subr.bf16.mxu0 %v1606
  %1677 = vmatpush1.bf16.msra.mxu0 %v1605
  %1678 = vmatprep.subr.bf16.mxu0 %v1608
  %1679 = vmatpush1.bf16.msra.mxu0 %v1607
  %1680 = vmatprep.subr.bf16.mxu0 %v1610
  %1681 = vmatpush1.bf16.msra.mxu0 %v1609
  %1682 = vmatprep.subr.bf16.mxu0 %v1612
  %1683 = vmatpush1.bf16.msra.mxu0 %v1611
  %1684 = vmatprep.subr.bf16.mxu0 %v1614
  %1685 = vmatpush1.bf16.msra.mxu0 %v1613
  %1686 = vmatprep.mubr.bf16.mxu0 %v1477
  %1687 = vmatmul.mubr.bf16.gmra.mrb[0].mxu0 %v1476
  %v1688 = vpop.f32.mrb[0].mxu0
  %v1689 = vadd.f32 0.0, %v1688
  %v1690 = vpop.f32.mrb[0].mxu0
  %v1691 = vadd.f32 0.0, %v1690
  %v1692 = vpop.f32.mrb[0].mxu0
  %v1693 = vadd.f32 0.0, %v1692
  %v1694 = vpop.f32.mrb[0].mxu0
  %v1695 = vadd.f32 0.0, %v1694
  %1696 = vdwg.mxu0
  %1697 = vmatprep.subr.bf16.mxu0 %v1616
  %1698 = vmatpush1.bf16.msra.mxu0 %v1615
  %1699 = vmatprep.subr.bf16.mxu0 0
  %1700 = vmatpush1.bf16.msra.mxu0 0
  %1701 = vmatprep.subr.bf16.mxu0 0
  %1702 = vmatpush1.bf16.msra.mxu0 0
  %1703 = vmatprep.subr.bf16.mxu0 0
  %1704 = vmatpush1.bf16.msra.mxu0 0
  %1705 = vmatprep.subr.bf16.mxu0 0
  %1706 = vmatpush1.bf16.msra.mxu0 0
  %1707 = vmatprep.subr.bf16.mxu0 0
  %1708 = vmatpush1.bf16.msra.mxu0 0
  %1709 = vmatprep.subr.bf16.mxu0 0
  %1710 = vmatpush1.bf16.msra.mxu0 0
  %1711 = vmatprep.subr.bf16.mxu0 0
  %1712 = vmatpush1.bf16.msra.mxu0 0
  %1713 = vmatprep.subr.bf16.mxu0 0
  %1714 = vmatpush1.bf16.msra.mxu0 0
  %1715 = vmatprep.subr.bf16.mxu0 0
  %1716 = vmatpush1.bf16.msra.mxu0 0
  %1717 = vmatprep.subr.bf16.mxu0 0
  %1718 = vmatpush1.bf16.msra.mxu0 0
  %1719 = vmatprep.subr.bf16.mxu0 0
  %1720 = vmatpush1.bf16.msra.mxu0 0
  %1721 = vmatprep.subr.bf16.mxu0 0
  %1722 = vmatpush1.bf16.msra.mxu0 0
  %1723 = vmatprep.subr.bf16.mxu0 0
  %1724 = vmatpush1.bf16.msra.mxu0 0
  %1725 = vmatprep.subr.bf16.mxu0 0
  %1726 = vmatpush1.bf16.msra.mxu0 0
  %1727 = vmatprep.subr.bf16.mxu0 0
  %1728 = vmatpush1.bf16.msra.mxu0 0
  %1729 = vmatprep.mubr.bf16.mxu0 0
  %1730 = vmatmul.mubr.bf16.gmra.mrb[0].mxu0 %v1652
  %v1731 = vpop.f32.mrb[0].mxu0
  %v1732 = vadd.f32 %v1689, %v1731
  %v1733 = vpop.f32.mrb[0].mxu0
  %v1734 = vadd.f32 %v1691, %v1733
  %v1735 = vpop.f32.mrb[0].mxu0
  %v1736 = vadd.f32 %v1693, %v1735
  %v1737 = vpop.f32.mrb[0].mxu0
  %v1738 = vadd.f32 %v1695, %v1737
  %1739 = vdwg.mxu0
  %v1744 = vunpack.c.l.b16 %v1385
  %v1745 = vunpack.c.h.b16 %v1385
  %v1746 = vunpack.c.l.b16 %v1386
  %v1747 = vunpack.c.l.b16 %v1387
  %v1748 = vunpack.c.h.b16 %v1387
  %v1749 = vunpack.c.l.b16 %v1388
  %v1750 = vpack.c.b16 %v1747, %v1744
  %v1751 = vpack.c.b16 %v1748, %v1745
  %v1752 = vpack.c.b16 %v1749, %v1746
  %v1789 = vunpack.c.l.b16 %v1398
  %v1790 = vunpack.c.h.b16 %v1398
  %v1791 = vunpack.c.l.b16 %v1399
  %v1792 = vunpack.c.h.b16 %v1399
  %v1793 = vunpack.c.l.b16 %v1400
  %v1794 = vunpack.c.h.b16 %v1400
  %v1795 = vunpack.c.l.b16 %v1401
  %v1796 = vunpack.c.h.b16 %v1401
  %v1797 = vunpack.c.l.b16 %v1402
  %v1798 = vunpack.c.h.b16 %v1402
  %v1799 = vunpack.c.l.b16 %v1403
  %v1800 = vunpack.c.h.b16 %v1403
  %v1801 = vunpack.c.l.b16 %v1404
  %v1802 = vunpack.c.h.b16 %v1404
  %v1803 = vunpack.c.l.b16 %v1405
  %v1804 = vunpack.c.h.b16 %v1405
  %v1805 = vunpack.c.l.b16 %v1406
  %v1806 = vunpack.c.h.b16 %v1406
  %v1807 = vunpack.c.l.b16 %v1407
  %v1808 = vunpack.c.h.b16 %v1407
  %v1809 = vunpack.c.l.b16 %v1408
  %v1810 = vunpack.c.h.b16 %v1408
  %v1811 = vunpack.c.l.b16 %v1409
  %v1812 = vunpack.c.h.b16 %v1409
  %v1813 = vunpack.c.l.b16 %v1410
  %v1814 = vunpack.c.h.b16 %v1410
  %v1815 = vunpack.c.l.b16 %v1411
  %v1816 = vunpack.c.h.b16 %v1411
  %v1817 = vunpack.c.l.b16 %v1412
  %v1818 = vunpack.c.h.b16 %v1412
  %v1819 = vunpack.c.l.b16 %v1413
  %v1820 = vunpack.c.h.b16 %v1413
  %v1821 = vunpack.c.l.b16 %v1414
  %v1822 = vunpack.c.h.b16 %v1414
  %v1823 = vunpack.c.l.b16 %v1415
  %v1824 = vunpack.c.h.b16 %v1415
  %v1825 = vunpack.c.l.b16 %v1416
  %v1826 = vunpack.c.h.b16 %v1416
  %v1827 = vunpack.c.l.b16 %v1417
  %v1828 = vunpack.c.h.b16 %v1417
  %v1829 = vunpack.c.l.b16 %v1418
  %v1830 = vunpack.c.h.b16 %v1418
  %v1831 = vunpack.c.l.b16 %v1419
  %v1832 = vunpack.c.h.b16 %v1419
  %v1833 = vunpack.c.l.b16 %v1420
  %v1834 = vunpack.c.h.b16 %v1420
  %v1835 = vunpack.c.l.b16 %v1421
  %v1836 = vunpack.c.h.b16 %v1421
  %v1837 = vunpack.c.l.b16 %v1422
  %v1838 = vunpack.c.h.b16 %v1422
  %v1839 = vunpack.c.l.b16 %v1423
  %v1840 = vunpack.c.h.b16 %v1423
  %v1841 = vunpack.c.l.b16 %v1424
  %v1842 = vunpack.c.h.b16 %v1424
  %v1843 = vunpack.c.l.b16 %v1425
  %v1844 = vunpack.c.h.b16 %v1425
  %v1845 = vunpack.c.l.b16 %v1426
  %v1846 = vunpack.c.h.b16 %v1426
  %v1847 = vunpack.c.l.b16 %v1427
  %v1848 = vunpack.c.h.b16 %v1427
  %v1849 = vunpack.c.l.b16 %v1428
  %v1850 = vunpack.c.h.b16 %v1428
  %v1851 = vunpack.c.l.b16 %v1429
  %v1852 = vunpack.c.h.b16 %v1429
  %v1853 = vunpack.c.l.b16 %v1430
  %v1854 = vunpack.c.h.b16 %v1430
  %v1855 = vunpack.c.l.b16 %v1431
  %v1856 = vunpack.c.h.b16 %v1431
  %v1857 = vpack.c.b16 %v1791, %v1789
  %v1858 = vpack.c.b16 %v1792, %v1790
  %v1859 = vpack.c.b16 %v1795, %v1793
  %v1860 = vpack.c.b16 %v1796, %v1794
  %v1861 = vpack.c.b16 %v1799, %v1797
  %v1862 = vpack.c.b16 %v1800, %v1798
  %v1863 = vpack.c.b16 %v1803, %v1801
  %v1864 = vpack.c.b16 %v1804, %v1802
  %v1865 = vpack.c.b16 %v1807, %v1805
  %v1866 = vpack.c.b16 %v1808, %v1806
  %v1867 = vpack.c.b16 %v1811, %v1809
  %v1868 = vpack.c.b16 %v1812, %v1810
  %v1869 = vpack.c.b16 %v1815, %v1813
  %v1870 = vpack.c.b16 %v1816, %v1814
  %v1871 = vpack.c.b16 %v1819, %v1817
  %v1872 = vpack.c.b16 %v1820, %v1818
  %v1873 = vpack.c.b16 %v1823, %v1821
  %v1874 = vpack.c.b16 %v1824, %v1822
  %v1875 = vpack.c.b16 %v1827, %v1825
  %v1876 = vpack.c.b16 %v1828, %v1826
  %v1877 = vpack.c.b16 %v1831, %v1829
  %v1878 = vpack.c.b16 %v1832, %v1830
  %v1879 = vpack.c.b16 %v1835, %v1833
  %v1880 = vpack.c.b16 %v1836, %v1834
  %v1881 = vpack.c.b16 %v1839, %v1837
  %v1882 = vpack.c.b16 %v1840, %v1838
  %v1883 = vpack.c.b16 %v1843, %v1841
  %v1884 = vpack.c.b16 %v1844, %v1842
  %v1885 = vpack.c.b16 %v1847, %v1845
  %v1886 = vpack.c.b16 %v1848, %v1846
  %v1887 = vpack.c.b16 %v1851, %v1849
  %v1888 = vpack.c.b16 %v1852, %v1850
  %v1889 = vpack.c.b16 %v1855, %v1853
  %v1890 = vpack.c.b16 %v1856, %v1854
  %v1926 = vsel %vm283, %v1752, 0
  %1928 = vmatprep.subr.bf16.mxu0 %v1858
  %1929 = vmatpush1.bf16.msra.mxu0 %v1857
  %1930 = vmatprep.subr.bf16.mxu0 %v1860
  %1931 = vmatpush1.bf16.msra.mxu0 %v1859
  %1932 = vmatprep.subr.bf16.mxu0 %v1862
  %1933 = vmatpush1.bf16.msra.mxu0 %v1861
  %1934 = vmatprep.subr.bf16.mxu0 %v1864
  %1935 = vmatpush1.bf16.msra.mxu0 %v1863
  %1936 = vmatprep.subr.bf16.mxu0 %v1866
  %1937 = vmatpush1.bf16.msra.mxu0 %v1865
  %1938 = vmatprep.subr.bf16.mxu0 %v1868
  %1939 = vmatpush1.bf16.msra.mxu0 %v1867
  %1940 = vmatprep.subr.bf16.mxu0 %v1870
  %1941 = vmatpush1.bf16.msra.mxu0 %v1869
  %1942 = vmatprep.subr.bf16.mxu0 %v1872
  %1943 = vmatpush1.bf16.msra.mxu0 %v1871
  %1944 = vmatprep.subr.bf16.mxu0 %v1874
  %1945 = vmatpush1.bf16.msra.mxu0 %v1873
  %1946 = vmatprep.subr.bf16.mxu0 %v1876
  %1947 = vmatpush1.bf16.msra.mxu0 %v1875
  %1948 = vmatprep.subr.bf16.mxu0 %v1878
  %1949 = vmatpush1.bf16.msra.mxu0 %v1877
  %1950 = vmatprep.subr.bf16.mxu0 %v1880
  %1951 = vmatpush1.bf16.msra.mxu0 %v1879
  %1952 = vmatprep.subr.bf16.mxu0 %v1882
  %1953 = vmatpush1.bf16.msra.mxu0 %v1881
  %1954 = vmatprep.subr.bf16.mxu0 %v1884
  %1955 = vmatpush1.bf16.msra.mxu0 %v1883
  %1956 = vmatprep.subr.bf16.mxu0 %v1886
  %1957 = vmatpush1.bf16.msra.mxu0 %v1885
  %1958 = vmatprep.subr.bf16.mxu0 %v1888
  %1959 = vmatpush1.bf16.msra.mxu0 %v1887
  %1960 = vmatprep.mubr.bf16.mxu0 %v1751
  %1961 = vmatmul.mubr.bf16.gmra.mrb[0].mxu0 %v1750
  %v1962 = vpop.f32.mrb[0].mxu0
  %v1963 = vadd.f32 %v1732, %v1962
  %v1964 = vpop.f32.mrb[0].mxu0
  %v1965 = vadd.f32 %v1734, %v1964
  %v1966 = vpop.f32.mrb[0].mxu0
  %v1967 = vadd.f32 %v1736, %v1966
  %v1968 = vpop.f32.mrb[0].mxu0
  %v1969 = vadd.f32 %v1738, %v1968
  %1970 = vdwg.mxu0
  %1971 = vmatprep.subr.bf16.mxu0 %v1890
  %1972 = vmatpush1.bf16.msra.mxu0 %v1889
  %1973 = vmatprep.subr.bf16.mxu0 0
  %1974 = vmatpush1.bf16.msra.mxu0 0
  %1975 = vmatprep.subr.bf16.mxu0 0
  %1976 = vmatpush1.bf16.msra.mxu0 0
  %1977 = vmatprep.subr.bf16.mxu0 0
  %1978 = vmatpush1.bf16.msra.mxu0 0
  %1979 = vmatprep.subr.bf16.mxu0 0
  %1980 = vmatpush1.bf16.msra.mxu0 0
  %1981 = vmatprep.subr.bf16.mxu0 0
  %1982 = vmatpush1.bf16.msra.mxu0 0
  %1983 = vmatprep.subr.bf16.mxu0 0
  %1984 = vmatpush1.bf16.msra.mxu0 0
  %1985 = vmatprep.subr.bf16.mxu0 0
  %1986 = vmatpush1.bf16.msra.mxu0 0
  %1987 = vmatprep.subr.bf16.mxu0 0
  %1988 = vmatpush1.bf16.msra.mxu0 0
  %1989 = vmatprep.subr.bf16.mxu0 0
  %1990 = vmatpush1.bf16.msra.mxu0 0
  %1991 = vmatprep.subr.bf16.mxu0 0
  %1992 = vmatpush1.bf16.msra.mxu0 0
  %1993 = vmatprep.subr.bf16.mxu0 0
  %1994 = vmatpush1.bf16.msra.mxu0 0
  %1995 = vmatprep.subr.bf16.mxu0 0
  %1996 = vmatpush1.bf16.msra.mxu0 0
  %1997 = vmatprep.subr.bf16.mxu0 0
  %1998 = vmatpush1.bf16.msra.mxu0 0
  %1999 = vmatprep.subr.bf16.mxu0 0
  %2000 = vmatpush1.bf16.msra.mxu0 0
  %2001 = vmatprep.subr.bf16.mxu0 0
  %2002 = vmatpush1.bf16.msra.mxu0 0
  %2003 = vmatprep.mubr.bf16.mxu0 0
  %2004 = vmatmul.mubr.bf16.gmra.mrb[0].mxu0 %v1926
  %v2005 = vpop.f32.mrb[0].mxu0
  %v2006 = vadd.f32 %v1963, %v2005
  %v2007 = vpop.f32.mrb[0].mxu0
  %v2008 = vadd.f32 %v1965, %v2007
  %v2009 = vpop.f32.mrb[0].mxu0
  %v2010 = vadd.f32 %v1967, %v2009
  %v2011 = vpop.f32.mrb[0].mxu0
  %v2012 = vadd.f32 %v1969, %v2011
  %2013 = vdwg.mxu0
  %v2014 = vld [vmem:[%s647] sm:$0xff]
  %v2015 = vld [vmem:[%s647 + $0x8] sm:$0xff]
  %v2016 = vld [vmem:[%s647 + $0x10] sm:$0xff]
  %v2017 = vld [vmem:[%s647 + $0x18] sm:$0xff]
  %v2018 = vld [vmem:[%s647 + $0x20] sm:$0xff]
  %v2019 = vld [vmem:[%s647 + $0x28] sm:$0xff]
  %v2020 = vld [vmem:[%s647 + $0x30] sm:$0xff]
  %v2021 = vld [vmem:[%s647 + $0x38] sm:$0xff]
  %v2022 = vld [vmem:[%s647 + $0x40] sm:$0xff]
  %v2023 = vld [vmem:[%s647 + $0x48] sm:$0xff]
  %v2024 = vld [vmem:[%s647 + $0x50] sm:$0xff]
  %v2025 = vld [vmem:[%s647 + $0x58] sm:$0xff]
  %v2026 = vld [vmem:[%s647 + $0x60] sm:$0xff]
  %v2027 = vld [vmem:[%s647 + $0x68] sm:$0xff]
  %v2028 = vld [vmem:[%s647 + $0x70] sm:$0xff]
  %v2029 = vld [vmem:[%s647 + $0x78] sm:$0xff]
  %v2030 = vld [vmem:[%s647 + $0x80] sm:$0xff]
  %v2031 = vld [vmem:[%s647 + $0x88] sm:$0xff]
  %v2032 = vld [vmem:[%s647 + $0x90] sm:$0xff]
  %v2033 = vld [vmem:[%s647 + $0x98] sm:$0xff]
  %v2034 = vld [vmem:[%s647 + $0xa0] sm:$0xff]
  %v2035 = vld [vmem:[%s647 + $0xa8] sm:$0xff]
  %v2036 = vld [vmem:[%s647 + $0xb0] sm:$0xff]
  %v2037 = vld [vmem:[%s647 + $0xb8] sm:$0xff]
  %v2038 = vld [vmem:[%s647 + $0xc0] sm:$0xff]
  %v2039 = vld [vmem:[%s647 + $0xc8] sm:$0xff]
  %v2040 = vld [vmem:[%s647 + $0xd0] sm:$0xff]
  %v2041 = vld [vmem:[%s647 + $0xd8] sm:$0xff]
  %v2042 = vld [vmem:[%s647 + $0xe0] sm:$0xff]
  %v2043 = vld [vmem:[%s647 + $0xe8] sm:$0xff]
  %v2044 = vld [vmem:[%s647 + $0xf0] sm:$0xff]
  %v2045 = vld [vmem:[%s647 + $0xf8] sm:$0xff]
  %v2046 = vld [vmem:[%s647 + $0x100] sm:$0xff]
  %v2047 = vld [vmem:[%s647 + $0x108] sm:$0xff]
  %v2050 = vunpack.c.l.b16 %v1389
  %v2051 = vunpack.c.h.b16 %v1389
  %v2052 = vunpack.c.l.b16 %v1390
  %v2053 = vpack.c.b16 %v2050, %v2050
  %v2054 = vpack.c.b16 %v2051, %v2051
  %v2055 = vpack.c.b16 %v2052, %v2052
  %v2057 = vshrl.u32 %v1750, 16
  %v2059 = vshll.u32 %v1750, 16
  %v2061 = vrot.slane %v2059, 1
  %v2062 = vor.u32 %v2057, %v2061
  %v2064 = vshll.u32 %v2053, 16
  %v2066 = vrot.slane %v2064, 1
  %v2067 = vsel %vm690, %v2062, %v2066
  %v2069 = vshrl.u32 %v1751, 16
  %v2071 = vshll.u32 %v1751, 16
  %v2073 = vrot.slane %v2071, 1
  %v2074 = vor.u32 %v2069, %v2073
  %v2076 = vshll.u32 %v2054, 16
  %v2078 = vrot.slane %v2076, 1
  %v2079 = vsel %vm690, %v2074, %v2078
  %v2080 = vshrl.u32 %v1752, 16
  %v2082 = vshll.u32 %v1752, 16
  %v2084 = vrot.slane %v2082, 1
  %v2085 = vor.u32 %v2080, %v2084
  %v2087 = vshll.u32 %v2055, 16
  %v2089 = vrot.slane %v2087, 1
  %v2090 = vsel %vm690, %v2085, %v2089
  %v2127 = vunpack.c.l.b16 %v2014
  %v2128 = vunpack.c.h.b16 %v2014
  %v2129 = vunpack.c.l.b16 %v2015
  %v2130 = vunpack.c.h.b16 %v2015
  %v2131 = vunpack.c.l.b16 %v2016
  %v2132 = vunpack.c.h.b16 %v2016
  %v2133 = vunpack.c.l.b16 %v2017
  %v2134 = vunpack.c.h.b16 %v2017
  %v2135 = vunpack.c.l.b16 %v2018
  %v2136 = vunpack.c.h.b16 %v2018
  %v2137 = vunpack.c.l.b16 %v2019
  %v2138 = vunpack.c.h.b16 %v2019
  %v2139 = vunpack.c.l.b16 %v2020
  %v2140 = vunpack.c.h.b16 %v2020
  %v2141 = vunpack.c.l.b16 %v2021
  %v2142 = vunpack.c.h.b16 %v2021
  %v2143 = vunpack.c.l.b16 %v2022
  %v2144 = vunpack.c.h.b16 %v2022
  %v2145 = vunpack.c.l.b16 %v2023
  %v2146 = vunpack.c.h.b16 %v2023
  %v2147 = vunpack.c.l.b16 %v2024
  %v2148 = vunpack.c.h.b16 %v2024
  %v2149 = vunpack.c.l.b16 %v2025
  %v2150 = vunpack.c.h.b16 %v2025
  %v2151 = vunpack.c.l.b16 %v2026
  %v2152 = vunpack.c.h.b16 %v2026
  %v2153 = vunpack.c.l.b16 %v2027
  %v2154 = vunpack.c.h.b16 %v2027
  %v2155 = vunpack.c.l.b16 %v2028
  %v2156 = vunpack.c.h.b16 %v2028
  %v2157 = vunpack.c.l.b16 %v2029
  %v2158 = vunpack.c.h.b16 %v2029
  %v2159 = vunpack.c.l.b16 %v2030
  %v2160 = vunpack.c.h.b16 %v2030
  %v2161 = vunpack.c.l.b16 %v2031
  %v2162 = vunpack.c.h.b16 %v2031
  %v2163 = vunpack.c.l.b16 %v2032
  %v2164 = vunpack.c.h.b16 %v2032
  %v2165 = vunpack.c.l.b16 %v2033
  %v2166 = vunpack.c.h.b16 %v2033
  %v2167 = vunpack.c.l.b16 %v2034
  %v2168 = vunpack.c.h.b16 %v2034
  %v2169 = vunpack.c.l.b16 %v2035
  %v2170 = vunpack.c.h.b16 %v2035
  %v2171 = vunpack.c.l.b16 %v2036
  %v2172 = vunpack.c.h.b16 %v2036
  %v2173 = vunpack.c.l.b16 %v2037
  %v2174 = vunpack.c.h.b16 %v2037
  %v2175 = vunpack.c.l.b16 %v2038
  %v2176 = vunpack.c.h.b16 %v2038
  %v2177 = vunpack.c.l.b16 %v2039
  %v2178 = vunpack.c.h.b16 %v2039
  %v2179 = vunpack.c.l.b16 %v2040
  %v2180 = vunpack.c.h.b16 %v2040
  %v2181 = vunpack.c.l.b16 %v2041
  %v2182 = vunpack.c.h.b16 %v2041
  %v2183 = vunpack.c.l.b16 %v2042
  %v2184 = vunpack.c.h.b16 %v2042
  %v2185 = vunpack.c.l.b16 %v2043
  %v2186 = vunpack.c.h.b16 %v2043
  %v2187 = vunpack.c.l.b16 %v2044
  %v2188 = vunpack.c.h.b16 %v2044
  %v2189 = vunpack.c.l.b16 %v2045
  %v2190 = vunpack.c.h.b16 %v2045
  %v2191 = vunpack.c.l.b16 %v2046
  %v2192 = vunpack.c.h.b16 %v2046
  %v2193 = vunpack.c.l.b16 %v2047
  %v2194 = vunpack.c.h.b16 %v2047
  %v2195 = vpack.c.b16 %v2129, %v2127
  %v2196 = vpack.c.b16 %v2130, %v2128
  %v2197 = vpack.c.b16 %v2133, %v2131
  %v2198 = vpack.c.b16 %v2134, %v2132
  %v2199 = vpack.c.b16 %v2137, %v2135
  %v2200 = vpack.c.b16 %v2138, %v2136
  %v2201 = vpack.c.b16 %v2141, %v2139
  %v2202 = vpack.c.b16 %v2142, %v2140
  %v2203 = vpack.c.b16 %v2145, %v2143
  %v2204 = vpack.c.b16 %v2146, %v2144
  %v2205 = vpack.c.b16 %v2149, %v2147
  %v2206 = vpack.c.b16 %v2150, %v2148
  %v2207 = vpack.c.b16 %v2153, %v2151
  %v2208 = vpack.c.b16 %v2154, %v2152
  %v2209 = vpack.c.b16 %v2157, %v2155
  %v2210 = vpack.c.b16 %v2158, %v2156
  %v2211 = vpack.c.b16 %v2161, %v2159
  %v2212 = vpack.c.b16 %v2162, %v2160
  %v2213 = vpack.c.b16 %v2165, %v2163
  %v2214 = vpack.c.b16 %v2166, %v2164
  %v2215 = vpack.c.b16 %v2169, %v2167
  %v2216 = vpack.c.b16 %v2170, %v2168
  %v2217 = vpack.c.b16 %v2173, %v2171
  %v2218 = vpack.c.b16 %v2174, %v2172
  %v2219 = vpack.c.b16 %v2177, %v2175
  %v2220 = vpack.c.b16 %v2178, %v2176
  %v2221 = vpack.c.b16 %v2181, %v2179
  %v2222 = vpack.c.b16 %v2182, %v2180
  %v2223 = vpack.c.b16 %v2185, %v2183
  %v2224 = vpack.c.b16 %v2186, %v2184
  %v2225 = vpack.c.b16 %v2189, %v2187
  %v2226 = vpack.c.b16 %v2190, %v2188
  %v2227 = vpack.c.b16 %v2193, %v2191
  %v2228 = vpack.c.b16 %v2194, %v2192
  %v2264 = vsel %vm283, %v2090, 0
  %2266 = vmatprep.subr.bf16.mxu0 %v2196
  %2267 = vmatpush1.bf16.msra.mxu0 %v2195
  %2268 = vmatprep.subr.bf16.mxu0 %v2198
  %2269 = vmatpush1.bf16.msra.mxu0 %v2197
  %2270 = vmatprep.subr.bf16.mxu0 %v2200
  %2271 = vmatpush1.bf16.msra.mxu0 %v2199
  %2272 = vmatprep.subr.bf16.mxu0 %v2202
  %2273 = vmatpush1.bf16.msra.mxu0 %v2201
  %2274 = vmatprep.subr.bf16.mxu0 %v2204
  %2275 = vmatpush1.bf16.msra.mxu0 %v2203
  %2276 = vmatprep.subr.bf16.mxu0 %v2206
  %2277 = vmatpush1.bf16.msra.mxu0 %v2205
  %2278 = vmatprep.subr.bf16.mxu0 %v2208
  %2279 = vmatpush1.bf16.msra.mxu0 %v2207
  %2280 = vmatprep.subr.bf16.mxu0 %v2210
  %2281 = vmatpush1.bf16.msra.mxu0 %v2209
  %2282 = vmatprep.subr.bf16.mxu0 %v2212
  %2283 = vmatpush1.bf16.msra.mxu0 %v2211
  %2284 = vmatprep.subr.bf16.mxu0 %v2214
  %2285 = vmatpush1.bf16.msra.mxu0 %v2213
  %2286 = vmatprep.subr.bf16.mxu0 %v2216
  %2287 = vmatpush1.bf16.msra.mxu0 %v2215
  %2288 = vmatprep.subr.bf16.mxu0 %v2218
  %2289 = vmatpush1.bf16.msra.mxu0 %v2217
  %2290 = vmatprep.subr.bf16.mxu0 %v2220
  %2291 = vmatpush1.bf16.msra.mxu0 %v2219
  %2292 = vmatprep.subr.bf16.mxu0 %v2222
  %2293 = vmatpush1.bf16.msra.mxu0 %v2221
  %2294 = vmatprep.subr.bf16.mxu0 %v2224
  %2295 = vmatpush1.bf16.msra.mxu0 %v2223
  %2296 = vmatprep.subr.bf16.mxu0 %v2226
  %2297 = vmatpush1.bf16.msra.mxu0 %v2225
  %2298 = vmatprep.mubr.bf16.mxu0 %v2079
  %2299 = vmatmul.mubr.bf16.gmra.mrb[0].mxu0 %v2067
  %v2300 = vpop.f32.mrb[0].mxu0
  %v2301 = vadd.f32 0.0, %v2300
  %v2302 = vpop.f32.mrb[0].mxu0
  %v2303 = vadd.f32 0.0, %v2302
  %v2304 = vpop.f32.mrb[0].mxu0
  %v2305 = vadd.f32 0.0, %v2304
  %v2306 = vpop.f32.mrb[0].mxu0
  %v2307 = vadd.f32 0.0, %v2306
  %2308 = vdwg.mxu0
  %2309 = vmatprep.subr.bf16.mxu0 %v2228
  %2310 = vmatpush1.bf16.msra.mxu0 %v2227
  %2311 = vmatprep.subr.bf16.mxu0 0
  %2312 = vmatpush1.bf16.msra.mxu0 0
  %2313 = vmatprep.subr.bf16.mxu0 0
  %2314 = vmatpush1.bf16.msra.mxu0 0
  %2315 = vmatprep.subr.bf16.mxu0 0
  %2316 = vmatpush1.bf16.msra.mxu0 0
  %2317 = vmatprep.subr.bf16.mxu0 0
  %2318 = vmatpush1.bf16.msra.mxu0 0
  %2319 = vmatprep.subr.bf16.mxu0 0
  %2320 = vmatpush1.bf16.msra.mxu0 0
  %2321 = vmatprep.subr.bf16.mxu0 0
  %2322 = vmatpush1.bf16.msra.mxu0 0
  %2323 = vmatprep.subr.bf16.mxu0 0
  %2324 = vmatpush1.bf16.msra.mxu0 0
  %2325 = vmatprep.subr.bf16.mxu0 0
  %2326 = vmatpush1.bf16.msra.mxu0 0
  %2327 = vmatprep.subr.bf16.mxu0 0
  %2328 = vmatpush1.bf16.msra.mxu0 0
  %2329 = vmatprep.subr.bf16.mxu0 0
  %2330 = vmatpush1.bf16.msra.mxu0 0
  %2331 = vmatprep.subr.bf16.mxu0 0
  %2332 = vmatpush1.bf16.msra.mxu0 0
  %2333 = vmatprep.subr.bf16.mxu0 0
  %2334 = vmatpush1.bf16.msra.mxu0 0
  %2335 = vmatprep.subr.bf16.mxu0 0
  %2336 = vmatpush1.bf16.msra.mxu0 0
  %2337 = vmatprep.subr.bf16.mxu0 0
  %2338 = vmatpush1.bf16.msra.mxu0 0
  %2339 = vmatprep.subr.bf16.mxu0 0
  %2340 = vmatpush1.bf16.msra.mxu0 0
  %2341 = vmatprep.mubr.bf16.mxu0 0
  %2342 = vmatmul.mubr.bf16.gmra.mrb[0].mxu0 %v2264
  %v2343 = vpop.f32.mrb[0].mxu0
  %v2344 = vadd.f32 %v2301, %v2343
  %v2345 = vpop.f32.mrb[0].mxu0
  %v2346 = vadd.f32 %v2303, %v2345
  %v2347 = vpop.f32.mrb[0].mxu0
  %v2348 = vadd.f32 %v2305, %v2347
  %v2349 = vpop.f32.mrb[0].mxu0
  %v2350 = vadd.f32 %v2307, %v2349
  %2351 = vdwg.mxu0
  %v2352 = vadd.f32 %v2006, %v2344
  %v2353 = vadd.f32 %v2008, %v2346
  %v2354 = vadd.f32 %v2010, %v2348
  %v2355 = vadd.f32 %v2012, %v2350
  %v2356 = vld [vmem:[%s991] sm:$0xff]
  %v2357 = vld [vmem:[%s991 + $0x8] sm:$0xff]
  %v2358 = vld [vmem:[%s991 + $0x10] sm:$0xff]
  %v2359 = vld [vmem:[%s991 + $0x18] sm:$0xff]
  %v2360 = vld [vmem:[%s991 + $0x20] sm:$0xff]
  %v2361 = vld [vmem:[%s991 + $0x28] sm:$0xff]
  %v2362 = vld [vmem:[%s991 + $0x30] sm:$0xff]
  %v2363 = vld [vmem:[%s991 + $0x38] sm:$0xff]
  %v2364 = vld [vmem:[%s991 + $0x40] sm:$0xff]
  %v2365 = vld [vmem:[%s991 + $0x48] sm:$0xff]
  %v2366 = vld [vmem:[%s991 + $0x50] sm:$0xff]
  %v2367 = vld [vmem:[%s991 + $0x58] sm:$0xff]
  %v2368 = vld [vmem:[%s991 + $0x60] sm:$0xff]
  %v2369 = vld [vmem:[%s991 + $0x68] sm:$0xff]
  %v2370 = vld [vmem:[%s991 + $0x70] sm:$0xff]
  %v2371 = vld [vmem:[%s991 + $0x78] sm:$0xff]
  %v2372 = vld [vmem:[%s991 + $0x80] sm:$0xff]
  %v2373 = vld [vmem:[%s991 + $0x88] sm:$0xff]
  %v2374 = vld [vmem:[%s991 + $0x90] sm:$0xff]
  %v2375 = vld [vmem:[%s991 + $0x98] sm:$0xff]
  %v2376 = vld [vmem:[%s991 + $0xa0] sm:$0xff]
  %v2377 = vld [vmem:[%s991 + $0xa8] sm:$0xff]
  %v2378 = vld [vmem:[%s991 + $0xb0] sm:$0xff]
  %v2379 = vld [vmem:[%s991 + $0xb8] sm:$0xff]
  %v2380 = vld [vmem:[%s991 + $0xc0] sm:$0xff]
  %v2381 = vld [vmem:[%s991 + $0xc8] sm:$0xff]
  %v2382 = vld [vmem:[%s991 + $0xd0] sm:$0xff]
  %v2383 = vld [vmem:[%s991 + $0xd8] sm:$0xff]
  %v2384 = vld [vmem:[%s991 + $0xe0] sm:$0xff]
  %v2385 = vld [vmem:[%s991 + $0xe8] sm:$0xff]
  %v2386 = vld [vmem:[%s991 + $0xf0] sm:$0xff]
  %v2387 = vld [vmem:[%s991 + $0xf8] sm:$0xff]
  %v2388 = vld [vmem:[%s991 + $0x100] sm:$0xff]
  %v2389 = vld [vmem:[%s991 + $0x108] sm:$0xff]
  %v2392 = vunpack.c.l.b16 %v1396
  %v2393 = vunpack.c.h.b16 %v1396
  %v2394 = vunpack.c.l.b16 %v1397
  %v2395 = vpack.c.b16 %v2392, %v2392
  %v2396 = vpack.c.b16 %v2393, %v2393
  %v2397 = vpack.c.b16 %v2394, %v2394
  %v2399 = vshrl.u32 %v1476, 16
  %v2401 = vshll.u32 %v1476, 16
  %v2403 = vrot.slane %v2401, 1
  %v2404 = vor.u32 %v2399, %v2403
  %v2406 = vshll.u32 %v2395, 16
  %v2408 = vrot.slane %v2406, 1
  %v2409 = vsel %vm690, %v2404, %v2408
  %v2411 = vshrl.u32 %v1477, 16
  %v2413 = vshll.u32 %v1477, 16
  %v2415 = vrot.slane %v2413, 1
  %v2416 = vor.u32 %v2411, %v2415
  %v2418 = vshll.u32 %v2396, 16
  %v2420 = vrot.slane %v2418, 1
  %v2421 = vsel %vm690, %v2416, %v2420
  %v2422 = vshrl.u32 %v1478, 16
  %v2424 = vshll.u32 %v1478, 16
  %v2426 = vrot.slane %v2424, 1
  %v2427 = vor.u32 %v2422, %v2426
  %v2429 = vshll.u32 %v2397, 16
  %v2431 = vrot.slane %v2429, 1
  %v2432 = vsel %vm690, %v2427, %v2431
  %v2469 = vunpack.c.l.b16 %v2356
  %v2470 = vunpack.c.h.b16 %v2356
  %v2471 = vunpack.c.l.b16 %v2357
  %v2472 = vunpack.c.h.b16 %v2357
  %v2473 = vunpack.c.l.b16 %v2358
  %v2474 = vunpack.c.h.b16 %v2358
  %v2475 = vunpack.c.l.b16 %v2359
  %v2476 = vunpack.c.h.b16 %v2359
  %v2477 = vunpack.c.l.b16 %v2360
  %v2478 = vunpack.c.h.b16 %v2360
  %v2479 = vunpack.c.l.b16 %v2361
  %v2480 = vunpack.c.h.b16 %v2361
  %v2481 = vunpack.c.l.b16 %v2362
  %v2482 = vunpack.c.h.b16 %v2362
  %v2483 = vunpack.c.l.b16 %v2363
  %v2484 = vunpack.c.h.b16 %v2363
  %v2485 = vunpack.c.l.b16 %v2364
  %v2486 = vunpack.c.h.b16 %v2364
  %v2487 = vunpack.c.l.b16 %v2365
  %v2488 = vunpack.c.h.b16 %v2365
  %v2489 = vunpack.c.l.b16 %v2366
  %v2490 = vunpack.c.h.b16 %v2366
  %v2491 = vunpack.c.l.b16 %v2367
  %v2492 = vunpack.c.h.b16 %v2367
  %v2493 = vunpack.c.l.b16 %v2368
  %v2494 = vunpack.c.h.b16 %v2368
  %v2495 = vunpack.c.l.b16 %v2369
  %v2496 = vunpack.c.h.b16 %v2369
  %v2497 = vunpack.c.l.b16 %v2370
  %v2498 = vunpack.c.h.b16 %v2370
  %v2499 = vunpack.c.l.b16 %v2371
  %v2500 = vunpack.c.h.b16 %v2371
  %v2501 = vunpack.c.l.b16 %v2372
  %v2502 = vunpack.c.h.b16 %v2372
  %v2503 = vunpack.c.l.b16 %v2373
  %v2504 = vunpack.c.h.b16 %v2373
  %v2505 = vunpack.c.l.b16 %v2374
  %v2506 = vunpack.c.h.b16 %v2374
  %v2507 = vunpack.c.l.b16 %v2375
  %v2508 = vunpack.c.h.b16 %v2375
  %v2509 = vunpack.c.l.b16 %v2376
  %v2510 = vunpack.c.h.b16 %v2376
  %v2511 = vunpack.c.l.b16 %v2377
  %v2512 = vunpack.c.h.b16 %v2377
  %v2513 = vunpack.c.l.b16 %v2378
  %v2514 = vunpack.c.h.b16 %v2378
  %v2515 = vunpack.c.l.b16 %v2379
  %v2516 = vunpack.c.h.b16 %v2379
  %v2517 = vunpack.c.l.b16 %v2380
  %v2518 = vunpack.c.h.b16 %v2380
  %v2519 = vunpack.c.l.b16 %v2381
  %v2520 = vunpack.c.h.b16 %v2381
  %v2521 = vunpack.c.l.b16 %v2382
  %v2522 = vunpack.c.h.b16 %v2382
  %v2523 = vunpack.c.l.b16 %v2383
  %v2524 = vunpack.c.h.b16 %v2383
  %v2525 = vunpack.c.l.b16 %v2384
  %v2526 = vunpack.c.h.b16 %v2384
  %v2527 = vunpack.c.l.b16 %v2385
  %v2528 = vunpack.c.h.b16 %v2385
  %v2529 = vunpack.c.l.b16 %v2386
  %v2530 = vunpack.c.h.b16 %v2386
  %v2531 = vunpack.c.l.b16 %v2387
  %v2532 = vunpack.c.h.b16 %v2387
  %v2533 = vunpack.c.l.b16 %v2388
  %v2534 = vunpack.c.h.b16 %v2388
  %v2535 = vunpack.c.l.b16 %v2389
  %v2536 = vunpack.c.h.b16 %v2389
  %v2537 = vpack.c.b16 %v2471, %v2469
  %v2538 = vpack.c.b16 %v2472, %v2470
  %v2539 = vpack.c.b16 %v2475, %v2473
  %v2540 = vpack.c.b16 %v2476, %v2474
  %v2541 = vpack.c.b16 %v2479, %v2477
  %v2542 = vpack.c.b16 %v2480, %v2478
  %v2543 = vpack.c.b16 %v2483, %v2481
  %v2544 = vpack.c.b16 %v2484, %v2482
  %v2545 = vpack.c.b16 %v2487, %v2485
  %v2546 = vpack.c.b16 %v2488, %v2486
  %v2547 = vpack.c.b16 %v2491, %v2489
  %v2548 = vpack.c.b16 %v2492, %v2490
  %v2549 = vpack.c.b16 %v2495, %v2493
  %v2550 = vpack.c.b16 %v2496, %v2494
  %v2551 = vpack.c.b16 %v2499, %v2497
  %v2552 = vpack.c.b16 %v2500, %v2498
  %v2553 = vpack.c.b16 %v2503, %v2501
  %v2554 = vpack.c.b16 %v2504, %v2502
  %v2555 = vpack.c.b16 %v2507, %v2505
  %v2556 = vpack.c.b16 %v2508, %v2506
  %v2557 = vpack.c.b16 %v2511, %v2509
  %v2558 = vpack.c.b16 %v2512, %v2510
  %v2559 = vpack.c.b16 %v2515, %v2513
  %v2560 = vpack.c.b16 %v2516, %v2514
  %v2561 = vpack.c.b16 %v2519, %v2517
  %v2562 = vpack.c.b16 %v2520, %v2518
  %v2563 = vpack.c.b16 %v2523, %v2521
  %v2564 = vpack.c.b16 %v2524, %v2522
  %v2565 = vpack.c.b16 %v2527, %v2525
  %v2566 = vpack.c.b16 %v2528, %v2526
  %v2567 = vpack.c.b16 %v2531, %v2529
  %v2568 = vpack.c.b16 %v2532, %v2530
  %v2569 = vpack.c.b16 %v2535, %v2533
  %v2570 = vpack.c.b16 %v2536, %v2534
  %v2606 = vsel %vm283, %v2432, 0
  %2608 = vmatprep.subr.bf16.mxu0 %v2538
  %2609 = vmatpush1.bf16.msra.mxu0 %v2537
  %2610 = vmatprep.subr.bf16.mxu0 %v2540
  %2611 = vmatpush1.bf16.msra.mxu0 %v2539
  %2612 = vmatprep.subr.bf16.mxu0 %v2542
  %2613 = vmatpush1.bf16.msra.mxu0 %v2541
  %2614 = vmatprep.subr.bf16.mxu0 %v2544
  %2615 = vmatpush1.bf16.msra.mxu0 %v2543
  %2616 = vmatprep.subr.bf16.mxu0 %v2546
  %2617 = vmatpush1.bf16.msra.mxu0 %v2545
  %2618 = vmatprep.subr.bf16.mxu0 %v2548
  %2619 = vmatpush1.bf16.msra.mxu0 %v2547
  %2620 = vmatprep.subr.bf16.mxu0 %v2550
  %2621 = vmatpush1.bf16.msra.mxu0 %v2549
  %2622 = vmatprep.subr.bf16.mxu0 %v2552
  %2623 = vmatpush1.bf16.msra.mxu0 %v2551
  %2624 = vmatprep.subr.bf16.mxu0 %v2554
  %2625 = vmatpush1.bf16.msra.mxu0 %v2553
  %2626 = vmatprep.subr.bf16.mxu0 %v2556
  %2627 = vmatpush1.bf16.msra.mxu0 %v2555
  %2628 = vmatprep.subr.bf16.mxu0 %v2558
  %2629 = vmatpush1.bf16.msra.mxu0 %v2557
  %2630 = vmatprep.subr.bf16.mxu0 %v2560
  %2631 = vmatpush1.bf16.msra.mxu0 %v2559
  %2632 = vmatprep.subr.bf16.mxu0 %v2562
  %2633 = vmatpush1.bf16.msra.mxu0 %v2561
  %2634 = vmatprep.subr.bf16.mxu0 %v2564
  %2635 = vmatpush1.bf16.msra.mxu0 %v2563
  %2636 = vmatprep.subr.bf16.mxu0 %v2566
  %2637 = vmatpush1.bf16.msra.mxu0 %v2565
  %2638 = vmatprep.subr.bf16.mxu0 %v2568
  %2639 = vmatpush1.bf16.msra.mxu0 %v2567
  %2640 = vmatprep.mubr.bf16.mxu0 %v2421
  %2641 = vmatmul.mubr.bf16.gmra.mrb[0].mxu0 %v2409
  %v2642 = vpop.f32.mrb[0].mxu0
  %v2643 = vadd.f32 0.0, %v2642
  %v2644 = vpop.f32.mrb[0].mxu0
  %v2645 = vadd.f32 0.0, %v2644
  %v2646 = vpop.f32.mrb[0].mxu0
  %v2647 = vadd.f32 0.0, %v2646
  %v2648 = vpop.f32.mrb[0].mxu0
  %v2649 = vadd.f32 0.0, %v2648
  %2650 = vdwg.mxu0
  %2651 = vmatprep.subr.bf16.mxu0 %v2570
  %2652 = vmatpush1.bf16.msra.mxu0 %v2569
  %2653 = vmatprep.subr.bf16.mxu0 0
  %2654 = vmatpush1.bf16.msra.mxu0 0
  %2655 = vmatprep.subr.bf16.mxu0 0
  %2656 = vmatpush1.bf16.msra.mxu0 0
  %2657 = vmatprep.subr.bf16.mxu0 0
  %2658 = vmatpush1.bf16.msra.mxu0 0
  %2659 = vmatprep.subr.bf16.mxu0 0
  %2660 = vmatpush1.bf16.msra.mxu0 0
  %2661 = vmatprep.subr.bf16.mxu0 0
  %2662 = vmatpush1.bf16.msra.mxu0 0
  %2663 = vmatprep.subr.bf16.mxu0 0
  %2664 = vmatpush1.bf16.msra.mxu0 0
  %2665 = vmatprep.subr.bf16.mxu0 0
  %2666 = vmatpush1.bf16.msra.mxu0 0
  %2667 = vmatprep.subr.bf16.mxu0 0
  %2668 = vmatpush1.bf16.msra.mxu0 0
  %2669 = vmatprep.subr.bf16.mxu0 0
  %2670 = vmatpush1.bf16.msra.mxu0 0
  %2671 = vmatprep.subr.bf16.mxu0 0
  %2672 = vmatpush1.bf16.msra.mxu0 0
  %2673 = vmatprep.subr.bf16.mxu0 0
  %2674 = vmatpush1.bf16.msra.mxu0 0
  %2675 = vmatprep.subr.bf16.mxu0 0
  %2676 = vmatpush1.bf16.msra.mxu0 0
  %2677 = vmatprep.subr.bf16.mxu0 0
  %2678 = vmatpush1.bf16.msra.mxu0 0
  %2679 = vmatprep.subr.bf16.mxu0 0
  %2680 = vmatpush1.bf16.msra.mxu0 0
  %2681 = vmatprep.subr.bf16.mxu0 0
  %2682 = vmatpush1.bf16.msra.mxu0 0
  %2683 = vmatprep.mubr.bf16.mxu0 0
  %2684 = vmatmul.mubr.bf16.gmra.mrb[0].mxu0 %v2606
  %v2685 = vpop.f32.mrb[0].mxu0
  %v2686 = vadd.f32 %v2643, %v2685
  %v2687 = vpop.f32.mrb[0].mxu0
  %v2688 = vadd.f32 %v2645, %v2687
  %v2689 = vpop.f32.mrb[0].mxu0
  %v2690 = vadd.f32 %v2647, %v2689
  %v2691 = vpop.f32.mrb[0].mxu0
  %v2692 = vadd.f32 %v2649, %v2691
  %2693 = vdwg.mxu0
  %v2694 = vadd.f32 %v2352, %v2686
  %v2695 = vadd.f32 %v2353, %v2688
  %v2696 = vadd.f32 %v2354, %v2690
  %v2697 = vadd.f32 %v2355, %v2692
  %v2698 = vpack.c.bf16 %v2696, %v2694
  %v2699 = vpack.c.bf16 %v2697, %v2695
  %v2702 = vunpack.c.l.b16 %v2698
  %v2703 = vunpack.c.l.b16 %v2699
  %v2704 = vunpack.c.h.b16 %v2698
  %v2705 = vunpack.c.h.b16 %v2699
  %v2706 = vpack.c.b16 %v2703, %v2702
  %v2707 = vpack.c.b16 %v2705, %v2704
  %s2710 = scalar_lea.vmem %s3, 16
  %2711 = vst [vmem:[%s2710] sm:$0xff] %v2706
  %2712 = vst [vmem:[%s2710 + $0x8] sm:$0xff] %v2707
  %v2713 = vadd.f32 %v2694, %v2696
  %v2714 = vrot.slane %v2713, 4
  %v2715 = vadd.f32 %v2713, %v2714
  %v2716 = vrot.slane %v2715, 2
  %v2717 = vadd.f32 %v2715, %v2716
  %v2718 = vrot.slane %v2717, 1
  %v2719 = vadd.f32 %v2717, %v2718
  %v2720 = vadd.f32 %v2695, %v2697
  %v2721 = vrot.slane %v2720, 4
  %v2722 = vadd.f32 %v2720, %v2721
  %v2723 = vrot.slane %v2722, 2
  %v2724 = vadd.f32 %v2722, %v2723
  %v2725 = vrot.slane %v2724, 1
  %v2726 = vadd.f32 %v2724, %v2725
  %v2727 = vadd.f32 %v1362, %v2719
  %v2728 = vadd.f32 %v1363, %v2726
  %v2729 = vmul.f32 %v2694, %v2694
  %v2730 = vmul.f32 %v2695, %v2695
  %v2731 = vmul.f32 %v2696, %v2696
  %v2732 = vmul.f32 %v2697, %v2697
  %v2733 = vadd.f32 %v2729, %v2731
  %v2734 = vrot.slane %v2733, 4
  %v2735 = vadd.f32 %v2733, %v2734
  %v2736 = vrot.slane %v2735, 2
  %v2737 = vadd.f32 %v2735, %v2736
  %v2738 = vrot.slane %v2737, 1
  %v2739 = vadd.f32 %v2737, %v2738
  %v2740 = vadd.f32 %v2730, %v2732
  %v2741 = vrot.slane %v2740, 4
  %v2742 = vadd.f32 %v2740, %v2741
  %v2743 = vrot.slane %v2742, 2
  %v2744 = vadd.f32 %v2742, %v2743
  %v2745 = vrot.slane %v2744, 1
  %v2746 = vadd.f32 %v2744, %v2745
  %v2747 = vadd.f32 %v1382, %v2739
  %v2748 = vadd.f32 %v1383, %v2746
  %vm2749 = vcmask 1040384
  %v2750 = vsel %vm2749, %v2727, %v2747
  %v2751 = vsel %vm2749, %v2728, %v2748
  %v2754 = vcombine.low %v2750, %v2751
  %v2756 = vunpack.c.l.s4 1983009808
  %v2757 = vunpack.c.0.s8 %v2756
  %v2758 = vlaneseq
  %v2759 = vshrl.u32 %v2758, 7
  %v2760 = vsub.s32 %v2757, %v2759
  %v2761 = vrot.slane %v2754, %v2760
  %2763 = vst [vmem:[%s4] sm:$0xf] %v2761
  // Predicated region
  $region14: #{discriminator_forward.9} parent=0 // pred_check
    _
  $region15: #{discriminator_forward.9} parent=0 // pred_check_branch
    %2765 = sbr.rel (0) target = $region17
  $region16: #{discriminator_forward.9} parent=0 // pred_region
    _
  $region17: #{discriminator_forward.9} parent=0 // pred_fallthru
    _
  // Predicated region
  $region18: #{discriminator_forward.9} parent=0 // pred_check
    _
  $region19: #{discriminator_forward.9} parent=0 // pred_check_branch
    %2767 = sbr.rel (0) target = $region21
  $region20: #{discriminator_forward.9} parent=0 // pred_region
    _
  $region21: #{discriminator_forward.9} parent=0 // pred_fallthru
    _
  // Predicated region
  $region22: #{discriminator_forward.9} parent=0 // pred_check
    _
  $region23: #{discriminator_forward.9} parent=0 // pred_check_branch
    %2769 = sbr.rel (0) target = $region25
  $region24: #{discriminator_forward.9} parent=0 // pred_region
    _
  $region25: #{discriminator_forward.9} parent=0 // pred_fallthru
    _
  // Predicated region
  $region26: #{discriminator_forward.9} parent=0 // pred_check
    _
  $region27: #{discriminator_forward.9} parent=0 // pred_check_branch
    %2771 = sbr.rel (0) target = $region29
  $region28: #{discriminator_forward.9} parent=0 // pred_region
    _
  $region29: #{discriminator_forward.9} parent=0 // pred_fallthru
    _

// kernel: tile.43
$region0: #{tile.43}
  #allocation0 [shape = 's32[1]{0}', space=sflag, size = 0x4, scoped, tag = 'scoped memory for tile.43']
  %s0 = inlined_call_operand.vmem [shape: f32[16], index: 0, kind: input, shape index: {}]
  %s1 = inlined_call_operand.vmem [shape: f32[16,16], index: 1, kind: output, shape index: {}]
  // Predicated region
  $region2: #{tile.43} parent=0 // pred_check
    _
  $region3: #{tile.43} parent=0 // pred_check_branch
    %3 = sbr.rel (0) target = $region5
  $region4: #{tile.43} parent=0 // pred_region
    _
  $region5: #{tile.43} parent=0 // pred_fallthru
    _
  %v4 = vld [vmem:[%s0] ss:$0 sm:$0xff]
  %5 = vst [vmem:[%s1] sm:$0xff] %v4
  %s6 = scalar_lea.vmem %s1, 8
  %7 = vst [vmem:[%s6] sm:$0xff] %v4

// kernel: tile.44
$region0: #{tile.44}
  %s0 = inlined_call_operand.vmem [shape: f32[16,16], index: 0, kind: input, shape index: {}]
  %s1 = inlined_call_operand.vmem [shape: f32[1,256], index: 1, kind: output, shape index: {}]
  $region1: #{tile.44} parent=0
    #allocation0 [shape = 'u8[8192]{0}', space=vmem, size = 0x2000, scoped, tag = 'scoped mem for output reshape']
    %s2 = smov 3
    %v3 = vld [vmem:[%s0] ss:$8 sm:%s2]
    %vm4 = vcmask 130048
    %5 = vst.msk [vmem:[#allocation0] ss:$8 sm:$0x3] %vm4, %v3
    %s6 = scalar_lea.vmem %s0, 7
    %s7 = smov 3
    %v8 = vld [vmem:[%s6] ss:$8 sm:%s7]
    %9 = vrot.lane.b32.xlu0 %v8, 112
    %v10 = vpop.permute.xlu0 %9
    %vm11 = vcmask 1048448
    %12 = vst.msk [vmem:[#allocation0] ss:$8 sm:$0x3] %vm11, %v10
    %s13 = scalar_lea.vmem %s0, 6
    %s14 = smov 3
    %v15 = vld [vmem:[%s13] ss:$8 sm:%s14]
    %16 = vrot.lane.b32.xlu0 %v15, 96
    %v17 = vpop.permute.xlu0 %16
    %vm18 = vcmask 917248
    %19 = vst.msk [vmem:[#allocation0] ss:$8 sm:$0x3] %vm18, %v17
    %s20 = scalar_lea.vmem %s0, 5
    %s21 = smov 3
    %v22 = vld [vmem:[%s20] ss:$8 sm:%s21]
    %23 = vrot.lane.b32.xlu0 %v22, 80
    %v24 = vpop.permute.xlu0 %23
    %vm25 = vcmask 786048
    %26 = vst.msk [vmem:[#allocation0] ss:$8 sm:$0x3] %vm25, %v24
    %s27 = scalar_lea.vmem %s0, 4
    %s28 = smov 3
    %v29 = vld [vmem:[%s27] ss:$8 sm:%s28]
    %30 = vrot.lane.b32.xlu0 %v29, 64
    %v31 = vpop.permute.xlu0 %30
    %vm32 = vcmask 654848
    %33 = vst.msk [vmem:[#allocation0] ss:$8 sm:$0x3] %vm32, %v31
    %s34 = scalar_lea.vmem %s0, 3
    %s35 = smov 3
    %v36 = vld [vmem:[%s34] ss:$8 sm:%s35]
    %37 = vrot.lane.b32.xlu0 %v36, 48
    %v38 = vpop.permute.xlu0 %37
    %vm39 = vcmask 523648
    %40 = vst.msk [vmem:[#allocation0] ss:$8 sm:$0x3] %vm39, %v38
    %s41 = scalar_lea.vmem %s0, 2
    %s42 = smov 3
    %v43 = vld [vmem:[%s41] ss:$8 sm:%s42]
    %44 = vrot.lane.b32.xlu0 %v43, 32
    %v45 = vpop.permute.xlu0 %44
    %vm46 = vcmask 392448
    %47 = vst.msk [vmem:[#allocation0] ss:$8 sm:$0x3] %vm46, %v45
    %s48 = scalar_lea.vmem %s0, 1
    %s49 = smov 3
    %v50 = vld [vmem:[%s48] ss:$8 sm:%s49]
    %51 = vrot.lane.b32.xlu0 %v50, 16
    %v52 = vpop.permute.xlu0 %51
    %vm53 = vcmask 261248
    %54 = vst.msk [vmem:[#allocation0] ss:$8 sm:$0x3] %vm53, %v52
    %s56 = sshllo.u32 0, 1
    %v58 = vld [vmem:[#allocation0] sm:%s56]
    %s59 = sshllo.u32 0, 1
    %60 = vst [vmem:[%s1] sm:%s59] %v58
    %s61 = scalar_lea.vmem [#allocation0], 8
    %v62 = vld [vmem:[%s61] sm:%s56]
    %s63 = sshllo.u32 0, 1
    %s64 = scalar_lea.vmem %s1, 1
    %65 = vst [vmem:[%s64] sm:%s63] %v62

// kernel: discriminator_forward.10
$region0: #{discriminator_forward.10}
  #allocation0 [shape = 'u32[]', space=smem, size = 0x4, offset = 0x4, fixed_abs, tag = 'smem constant byte address 0x4 - core index']
  #allocation1 [shape = 'u32[144,128]{1,0:T(1,128)}', space=vmem, size = 0x12000, scoped, tag = 'internal scratch']
  %s0 = inlined_call_operand.vmem [shape: bf16[2,16,256], index: 0, kind: input, shape index: {}]
  %s1 = inlined_call_operand.vmem [shape: f32[1,256], index: 1, kind: input, shape index: {}]
  %s2 = inlined_call_operand.vmem [shape: f32[1,256], index: 2, kind: input, shape index: {}]
  %s3 = inlined_call_operand.vmem [shape: bf16[2,16,256], index: 3, kind: output, shape index: {}]
  %s4 = sld [smem:[#allocation0]]
  $region22: #{discriminator_forward.10} parent=0
    _
  %s6 = ssub.s32 1, %s4
  %s7 = scalar_select 0, %s6, %s4
  // Predicated region
  $region2: #{discriminator_forward.10} parent=0 // pred_check
    _
  $region3: #{discriminator_forward.10} parent=0 // pred_check_branch
    %9 = sbr.rel (0) target = $region5
  $region4: #{discriminator_forward.10} parent=0 // pred_region
    _
  $region5: #{discriminator_forward.10} parent=0 // pred_fallthru
    _
  // Predicated region
  $region6: #{discriminator_forward.10} parent=0 // pred_check
    _
  $region7: #{discriminator_forward.10} parent=0 // pred_check_branch
    %11 = sbr.rel (0) target = $region9
  $region8: #{discriminator_forward.10} parent=0 // pred_region
    _
  $region9: #{discriminator_forward.10} parent=0 // pred_fallthru
    _
  // Predicated region
  $region10: #{discriminator_forward.10} parent=0 // pred_check
    _
  $region11: #{discriminator_forward.10} parent=0 // pred_check_branch
    %13 = sbr.rel (0) target = $region13
  $region12: #{discriminator_forward.10} parent=0 // pred_region
    _
  $region13: #{discriminator_forward.10} parent=0 // pred_fallthru
    _
  %v14 = vld [vmem:[%s1] sm:$0x3]
  %v15 = vld [vmem:[%s2] sm:$0x3]
  %v16 = vld [vmem:[%s0] sm:$0xff]
  %v17 = vld [vmem:[%s0 + $0x8] sm:$0xff]
  %v18 = vunpack.c.l.bf16 %v16
  %v19 = vunpack.c.h.bf16 %v16
  %v20 = vunpack.c.l.bf16 %v17
  %v21 = vunpack.c.h.bf16 %v17
  %v23 = vlaneseq
  %v24 = vshrl.u32 %v23, 7
  %v25 = vsub.s32 0, %v24
  %v26 = vrot.slane %v14, %v25
  %v27 = vlaneseq
  %v28 = vshrl.u32 %v27, 7
  %v29 = vsub.s32 1, %v28
  %v30 = vrot.slane %v14, %v29
  %v33 = vmul.f32 %v18, %v26
  %v34 = vmul.f32 %v19, %v30
  %v35 = vmul.f32 %v20, %v26
  %v36 = vmul.f32 %v21, %v30
  %v38 = vlaneseq
  %v39 = vshrl.u32 %v38, 7
  %v40 = vsub.s32 0, %v39
  %v41 = vrot.slane %v15, %v40
  %v42 = vlaneseq
  %v43 = vshrl.u32 %v42, 7
  %v44 = vsub.s32 1, %v43
  %v45 = vrot.slane %v15, %v44
  %v48 = vadd.f32 %v33, %v41
  %v49 = vadd.f32 %v34, %v45
  %v50 = vadd.f32 %v35, %v41
  %v51 = vadd.f32 %v36, %v45
  %vm52 = vcmp.ge.f32.partialorder %v48, 0.0
  %vm53 = vcmp.ge.f32.partialorder %v49, 0.0
  %vm54 = vcmp.ge.f32.partialorder %v50, 0.0
  %vm55 = vcmp.ge.f32.partialorder %v51, 0.0
  %v56 = vmul.f32 %v48, 0.2
  %v57 = vmul.f32 %v49, 0.2
  %v58 = vmul.f32 %v50, 0.2
  %v59 = vmul.f32 %v51, 0.2
  %v60 = vsel %vm52, %v48, %v56
  %v61 = vsel %vm53, %v49, %v57
  %v62 = vsel %vm54, %v50, %v58
  %v63 = vsel %vm55, %v51, %v59
  %v64 = vpack.c.bf16 %v62, %v60
  %v65 = vpack.c.bf16 %v63, %v61
  %v68 = vunpack.c.l.b16 %v64
  %v69 = vunpack.c.l.b16 %v65
  %v70 = vunpack.c.h.b16 %v64
  %v71 = vunpack.c.h.b16 %v65
  %v72 = vpack.c.b16 %v69, %v68
  %v73 = vpack.c.b16 %v71, %v70
  %76 = vst [vmem:[%s3] sm:$0xff] %v72
  %77 = vst [vmem:[%s3 + $0x8] sm:$0xff] %v73
  %s78 = scalar_lea.vmem %s0, 16
  %v79 = vld [vmem:[%s78] sm:$0xff]
  %v80 = vld [vmem:[%s78 + $0x8] sm:$0xff]
  %v81 = vunpack.c.l.bf16 %v79
  %v82 = vunpack.c.h.bf16 %v79
  %v83 = vunpack.c.l.bf16 %v80
  %v84 = vunpack.c.h.bf16 %v80
  %v85 = vmul.f32 %v81, %v26
  %v86 = vmul.f32 %v82, %v30
  %v87 = vmul.f32 %v83, %v26
  %v88 = vmul.f32 %v84, %v30
  %v89 = vadd.f32 %v85, %v41
  %v90 = vadd.f32 %v86, %v45
  %v91 = vadd.f32 %v87, %v41
  %v92 = vadd.f32 %v88, %v45
  %vm93 = vcmp.ge.f32.partialorder %v89, 0.0
  %vm94 = vcmp.ge.f32.partialorder %v90, 0.0
  %vm95 = vcmp.ge.f32.partialorder %v91, 0.0
  %vm96 = vcmp.ge.f32.partialorder %v92, 0.0
  %v97 = vmul.f32 %v89, 0.2
  %v98 = vmul.f32 %v90, 0.2
  %v99 = vmul.f32 %v91, 0.2
  %v100 = vmul.f32 %v92, 0.2
  %v101 = vsel %vm93, %v89, %v97
  %v102 = vsel %vm94, %v90, %v98
  %v103 = vsel %vm95, %v91, %v99
  %v104 = vsel %vm96, %v92, %v100
  %v105 = vpack.c.bf16 %v103, %v101
  %v106 = vpack.c.bf16 %v104, %v102
  %v109 = vunpack.c.l.b16 %v105
  %v110 = vunpack.c.l.b16 %v106
  %v111 = vunpack.c.h.b16 %v105
  %v112 = vunpack.c.h.b16 %v106
  %v113 = vpack.c.b16 %v110, %v109
  %v114 = vpack.c.b16 %v112, %v111
  %s117 = scalar_lea.vmem %s3, 16
  %118 = vst [vmem:[%s117] sm:$0xff] %v113
  %119 = vst [vmem:[%s117 + $0x8] sm:$0xff] %v114
  // Predicated region
  $region14: #{discriminator_forward.10} parent=0 // pred_check
    _
  $region15: #{discriminator_forward.10} parent=0 // pred_check_branch
    %121 = sbr.rel (0) target = $region17
  $region16: #{discriminator_forward.10} parent=0 // pred_region
    _
  $region17: #{discriminator_forward.10} parent=0 // pred_fallthru
    _
  // Predicated region
  $region18: #{discriminator_forward.10} parent=0 // pred_check
    _
  $region19: #{discriminator_forward.10} parent=0 // pred_check_branch
    %123 = sbr.rel (0) target = $region21
  $region20: #{discriminator_forward.10} parent=0 // pred_region
    _
  $region21: #{discriminator_forward.10} parent=0 // pred_fallthru
    _

// kernel: discriminator_forward.11
$region0: #{discriminator_forward.11}
  #allocation0 [shape = 'u32[]', space=smem, size = 0x4, offset = 0x4, fixed_abs, tag = 'smem constant byte address 0x4 - core index']
  #allocation1 [shape = 'u32[144,128]{1,0:T(1,128)}', space=vmem, size = 0x12000, scoped, tag = 'internal scratch']
  %s0 = inlined_call_operand.vmem [shape: bf16[2,9,288], index: 0, kind: input, shape index: {}]
  %s1 = inlined_call_operand.vmem [shape: bf16[2,9,288], index: 1, kind: input, shape index: {}]
  %s2 = inlined_call_operand.vmem [shape: bf16[4,288,256], index: 2, kind: input, shape index: {}]
  %s3 = inlined_call_operand.vmem [shape: bf16[2,8,256], index: 3, kind: output, shape index: {0}]
  %s4 = inlined_call_operand.vmem [shape: f32[1,2,256], index: 4, kind: output, shape index: {1}]
  %5 = xla_tuple %s3, %s4
  %s6 = sld [smem:[#allocation0]]
  $region30: #{discriminator_forward.11} parent=0
    _
  %s8 = ssub.s32 1, %s6
  %s9 = scalar_select 0, %s8, %s6
  // Predicated region
  $region2: #{discriminator_forward.11} parent=0 // pred_check
    _
  $region3: #{discriminator_forward.11} parent=0 // pred_check_branch
    %11 = sbr.rel (0) target = $region5
  $region4: #{discriminator_forward.11} parent=0 // pred_region
    _
  $region5: #{discriminator_forward.11} parent=0 // pred_fallthru
    _
  // Predicated region
  $region6: #{discriminator_forward.11} parent=0 // pred_check
    _
  $region7: #{discriminator_forward.11} parent=0 // pred_check_branch
    %13 = sbr.rel (0) target = $region9
  $region8: #{discriminator_forward.11} parent=0 // pred_region
    _
  $region9: #{discriminator_forward.11} parent=0 // pred_fallthru
    _
  // Predicated region
  $region10: #{discriminator_forward.11} parent=0 // pred_check
    _
  $region11: #{discriminator_forward.11} parent=0 // pred_check_branch
    %15 = sbr.rel (0) target = $region13
  $region12: #{discriminator_forward.11} parent=0 // pred_region
    _
  $region13: #{discriminator_forward.11} parent=0 // pred_fallthru
    _
  %v17 = vld [vmem:[%s0] sm:$0xff]
  %v18 = vld [vmem:[%s0 + $0x8] sm:$0xf]
  %v19 = vld [vmem:[%s0 + $0xc] sm:$0x11]
  %v20 = vld [vmem:[%s0 + $0x14] sm:$0x1]
  %v21 = vld [vmem:[%s1] sm:$0xff]
  %v22 = vld [vmem:[%s1 + $0x8] sm:$0xf]
  %v23 = vld [vmem:[%s1 + $0xc] sm:$0x11]
  %v24 = vld [vmem:[%s1 + $0x14] sm:$0x1]
  %v25 = vld [vmem:[%s2] sm:$0xff]
  %v26 = vld [vmem:[%s2 + $0x8] sm:$0xff]
  %v27 = vld [vmem:[%s2 + $0x10] sm:$0xff]
  %v28 = vld [vmem:[%s2 + $0x18] sm:$0xff]
  %v29 = vld [vmem:[%s2 + $0x20] sm:$0xff]
  %v30 = vld [vmem:[%s2 + $0x28] sm:$0xff]
  %v31 = vld [vmem:[%s2 + $0x30] sm:$0xff]
  %v32 = vld [vmem:[%s2 + $0x38] sm:$0xff]
  %v33 = vld [vmem:[%s2 + $0x40] sm:$0xff]
  %v34 = vld [vmem:[%s2 + $0x48] sm:$0xff]
  %v35 = vld [vmem:[%s2 + $0x50] sm:$0xff]
  %v36 = vld [vmem:[%s2 + $0x58] sm:$0xff]
  %v37 = vld [vmem:[%s2 + $0x60] sm:$0xff]
  %v38 = vld [vmem:[%s2 + $0x68] sm:$0xff]
  %v39 = vld [vmem:[%s2 + $0x70] sm:$0xff]
  %v40 = vld [vmem:[%s2 + $0x78] sm:$0xff]
  %v41 = vld [vmem:[%s2 + $0x80] sm:$0xff]
  %v42 = vld [vmem:[%s2 + $0x88] sm:$0xff]
  %v43 = vld [vmem:[%s2 + $0x90] sm:$0xff]
  %v44 = vld [vmem:[%s2 + $0x98] sm:$0xff]
  %v45 = vld [vmem:[%s2 + $0xa0] sm:$0xff]
  %v46 = vld [vmem:[%s2 + $0xa8] sm:$0xff]
  %v47 = vld [vmem:[%s2 + $0xb0] sm:$0xff]
  %v48 = vld [vmem:[%s2 + $0xb8] sm:$0xff]
  %v49 = vld [vmem:[%s2 + $0xc0] sm:$0xff]
  %v50 = vld [vmem:[%s2 + $0xc8] sm:$0xff]
  %v51 = vld [vmem:[%s2 + $0xd0] sm:$0xff]
  %v52 = vld [vmem:[%s2 + $0xd8] sm:$0xff]
  %v53 = vld [vmem:[%s2 + $0xe0] sm:$0xff]
  %v54 = vld [vmem:[%s2 + $0xe8] sm:$0xff]
  %v55 = vld [vmem:[%s2 + $0xf0] sm:$0xff]
  %v56 = vld [vmem:[%s2 + $0xf8] sm:$0xff]
  %v57 = vld [vmem:[%s2 + $0x100] sm:$0xff]
  %v58 = vld [vmem:[%s2 + $0x108] sm:$0xff]
  %v59 = vld [vmem:[%s2 + $0x110] sm:$0xff]
  %v60 = vld [vmem:[%s2 + $0x118] sm:$0xff]
  %s61 = scalar_lea.vmem %s2, 288
  %v62 = vld [vmem:[%s61] sm:$0xff]
  %v63 = vld [vmem:[%s61 + $0x8] sm:$0xff]
  %v64 = vld [vmem:[%s61 + $0x10] sm:$0xff]
  %v65 = vld [vmem:[%s61 + $0x18] sm:$0xff]
  %v66 = vld [vmem:[%s61 + $0x20] sm:$0xff]
  %v67 = vld [vmem:[%s61 + $0x28] sm:$0xff]
  %v68 = vld [vmem:[%s61 + $0x30] sm:$0xff]
  %v69 = vld [vmem:[%s61 + $0x38] sm:$0xff]
  %v70 = vld [vmem:[%s61 + $0x40] sm:$0xff]
  %v71 = vld [vmem:[%s61 + $0x48] sm:$0xff]
  %v72 = vld [vmem:[%s61 + $0x50] sm:$0xff]
  %v73 = vld [vmem:[%s61 + $0x58] sm:$0xff]
  %v74 = vld [vmem:[%s61 + $0x60] sm:$0xff]
  %v75 = vld [vmem:[%s61 + $0x68] sm:$0xff]
  %v76 = vld [vmem:[%s61 + $0x70] sm:$0xff]
  %v77 = vld [vmem:[%s61 + $0x78] sm:$0xff]
  %v78 = vld [vmem:[%s61 + $0x80] sm:$0xff]
  %v79 = vld [vmem:[%s61 + $0x88] sm:$0xff]
  %v80 = vld [vmem:[%s61 + $0x90] sm:$0xff]
  %v81 = vld [vmem:[%s61 + $0x98] sm:$0xff]
  %v82 = vld [vmem:[%s61 + $0xa0] sm:$0xff]
  %v83 = vld [vmem:[%s61 + $0xa8] sm:$0xff]
  %v84 = vld [vmem:[%s61 + $0xb0] sm:$0xff]
  %v85 = vld [vmem:[%s61 + $0xb8] sm:$0xff]
  %v86 = vld [vmem:[%s61 + $0xc0] sm:$0xff]
  %v87 = vld [vmem:[%s61 + $0xc8] sm:$0xff]
  %v88 = vld [vmem:[%s61 + $0xd0] sm:$0xff]
  %v89 = vld [vmem:[%s61 + $0xd8] sm:$0xff]
  %v90 = vld [vmem:[%s61 + $0xe0] sm:$0xff]
  %v91 = vld [vmem:[%s61 + $0xe8] sm:$0xff]
  %v92 = vld [vmem:[%s61 + $0xf0] sm:$0xff]
  %v93 = vld [vmem:[%s61 + $0xf8] sm:$0xff]
  %v94 = vld [vmem:[%s61 + $0x100] sm:$0xff]
  %v95 = vld [vmem:[%s61 + $0x108] sm:$0xff]
  %v96 = vld [vmem:[%s61 + $0x110] sm:$0xff]
  %v97 = vld [vmem:[%s61 + $0x118] sm:$0xff]
  %v100 = vunpack.c.l.b16 %v21
  %v101 = vunpack.c.h.b16 %v21
  %v102 = vunpack.c.l.b16 %v22
  %v103 = vpack.c.b16 %v100, %v100
  %v104 = vpack.c.b16 %v101, %v101
  %v105 = vpack.c.b16 %v102, %v102
  %v144 = vunpack.c.l.b16 %v62
  %v145 = vunpack.c.h.b16 %v62
  %v146 = vunpack.c.l.b16 %v63
  %v147 = vunpack.c.h.b16 %v63
  %v148 = vunpack.c.l.b16 %v64
  %v149 = vunpack.c.h.b16 %v64
  %v150 = vunpack.c.l.b16 %v65
  %v151 = vunpack.c.h.b16 %v65
  %v152 = vunpack.c.l.b16 %v66
  %v153 = vunpack.c.h.b16 %v66
  %v154 = vunpack.c.l.b16 %v67
  %v155 = vunpack.c.h.b16 %v67
  %v156 = vunpack.c.l.b16 %v68
  %v157 = vunpack.c.h.b16 %v68
  %v158 = vunpack.c.l.b16 %v69
  %v159 = vunpack.c.h.b16 %v69
  %v160 = vunpack.c.l.b16 %v70
  %v161 = vunpack.c.h.b16 %v70
  %v162 = vunpack.c.l.b16 %v71
  %v163 = vunpack.c.h.b16 %v71
  %v164 = vunpack.c.l.b16 %v72
  %v165 = vunpack.c.h.b16 %v72
  %v166 = vunpack.c.l.b16 %v73
  %v167 = vunpack.c.h.b16 %v73
  %v168 = vunpack.c.l.b16 %v74
  %v169 = vunpack.c.h.b16 %v74
  %v170 = vunpack.c.l.b16 %v75
  %v171 = vunpack.c.h.b16 %v75
  %v172 = vunpack.c.l.b16 %v76
  %v173 = vunpack.c.h.b16 %v76
  %v174 = vunpack.c.l.b16 %v77
  %v175 = vunpack.c.h.b16 %v77
  %v176 = vunpack.c.l.b16 %v78
  %v177 = vunpack.c.h.b16 %v78
  %v178 = vunpack.c.l.b16 %v79
  %v179 = vunpack.c.h.b16 %v79
  %v180 = vunpack.c.l.b16 %v80
  %v181 = vunpack.c.h.b16 %v80
  %v182 = vunpack.c.l.b16 %v81
  %v183 = vunpack.c.h.b16 %v81
  %v184 = vunpack.c.l.b16 %v82
  %v185 = vunpack.c.h.b16 %v82
  %v186 = vunpack.c.l.b16 %v83
  %v187 = vunpack.c.h.b16 %v83
  %v188 = vunpack.c.l.b16 %v84
  %v189 = vunpack.c.h.b16 %v84
  %v190 = vunpack.c.l.b16 %v85
  %v191 = vunpack.c.h.b16 %v85
  %v192 = vunpack.c.l.b16 %v86
  %v193 = vunpack.c.h.b16 %v86
  %v194 = vunpack.c.l.b16 %v87
  %v195 = vunpack.c.h.b16 %v87
  %v196 = vunpack.c.l.b16 %v88
  %v197 = vunpack.c.h.b16 %v88
  %v198 = vunpack.c.l.b16 %v89
  %v199 = vunpack.c.h.b16 %v89
  %v200 = vunpack.c.l.b16 %v90
  %v201 = vunpack.c.h.b16 %v90
  %v202 = vunpack.c.l.b16 %v91
  %v203 = vunpack.c.h.b16 %v91
  %v204 = vunpack.c.l.b16 %v92
  %v205 = vunpack.c.h.b16 %v92
  %v206 = vunpack.c.l.b16 %v93
  %v207 = vunpack.c.h.b16 %v93
  %v208 = vunpack.c.l.b16 %v94
  %v209 = vunpack.c.h.b16 %v94
  %v210 = vunpack.c.l.b16 %v95
  %v211 = vunpack.c.h.b16 %v95
  %v212 = vunpack.c.l.b16 %v96
  %v213 = vunpack.c.h.b16 %v96
  %v214 = vunpack.c.l.b16 %v97
  %v215 = vunpack.c.h.b16 %v97
  %v216 = vpack.c.b16 %v146, %v144
  %v217 = vpack.c.b16 %v147, %v145
  %v218 = vpack.c.b16 %v150, %v148
  %v219 = vpack.c.b16 %v151, %v149
  %v220 = vpack.c.b16 %v154, %v152
  %v221 = vpack.c.b16 %v155, %v153
  %v222 = vpack.c.b16 %v158, %v156
  %v223 = vpack.c.b16 %v159, %v157
  %v224 = vpack.c.b16 %v162, %v160
  %v225 = vpack.c.b16 %v163, %v161
  %v226 = vpack.c.b16 %v166, %v164
  %v227 = vpack.c.b16 %v167, %v165
  %v228 = vpack.c.b16 %v170, %v168
  %v229 = vpack.c.b16 %v171, %v169
  %v230 = vpack.c.b16 %v174, %v172
  %v231 = vpack.c.b16 %v175, %v173
  %v232 = vpack.c.b16 %v178, %v176
  %v233 = vpack.c.b16 %v179, %v177
  %v234 = vpack.c.b16 %v182, %v180
  %v235 = vpack.c.b16 %v183, %v181
  %v236 = vpack.c.b16 %v186, %v184
  %v237 = vpack.c.b16 %v187, %v185
  %v238 = vpack.c.b16 %v190, %v188
  %v239 = vpack.c.b16 %v191, %v189
  %v240 = vpack.c.b16 %v194, %v192
  %v241 = vpack.c.b16 %v195, %v193
  %v242 = vpack.c.b16 %v198, %v196
  %v243 = vpack.c.b16 %v199, %v197
  %v244 = vpack.c.b16 %v202, %v200
  %v245 = vpack.c.b16 %v203, %v201
  %v246 = vpack.c.b16 %v206, %v204
  %v247 = vpack.c.b16 %v207, %v205
  %v248 = vpack.c.b16 %v210, %v208
  %v249 = vpack.c.b16 %v211, %v209
  %v250 = vpack.c.b16 %v214, %v212
  %v251 = vpack.c.b16 %v215, %v213
  %vm288 = vcmask 261120
  %v290 = vsel %vm288, %v105, 0
  %292 = vmatprep.subr.bf16.mxu0 %v217
  %293 = vmatpush1.bf16.msra.mxu0 %v216
  %294 = vmatprep.subr.bf16.mxu0 %v219
  %295 = vmatpush1.bf16.msra.mxu0 %v218
  %296 = vmatprep.subr.bf16.mxu0 %v221
  %297 = vmatpush1.bf16.msra.mxu0 %v220
  %298 = vmatprep.subr.bf16.mxu0 %v223
  %299 = vmatpush1.bf16.msra.mxu0 %v222
  %300 = vmatprep.subr.bf16.mxu0 %v225
  %301 = vmatpush1.bf16.msra.mxu0 %v224
  %302 = vmatprep.subr.bf16.mxu0 %v227
  %303 = vmatpush1.bf16.msra.mxu0 %v226
  %304 = vmatprep.subr.bf16.mxu0 %v229
  %305 = vmatpush1.bf16.msra.mxu0 %v228
  %306 = vmatprep.subr.bf16.mxu0 %v231
  %307 = vmatpush1.bf16.msra.mxu0 %v230
  %308 = vmatprep.subr.bf16.mxu0 %v233
  %309 = vmatpush1.bf16.msra.mxu0 %v232
  %310 = vmatprep.subr.bf16.mxu0 %v235
  %311 = vmatpush1.bf16.msra.mxu0 %v234
  %312 = vmatprep.subr.bf16.mxu0 %v237
  %313 = vmatpush1.bf16.msra.mxu0 %v236
  %314 = vmatprep.subr.bf16.mxu0 %v239
  %315 = vmatpush1.bf16.msra.mxu0 %v238
  %316 = vmatprep.subr.bf16.mxu0 %v241
  %317 = vmatpush1.bf16.msra.mxu0 %v240
  %318 = vmatprep.subr.bf16.mxu0 %v243
  %319 = vmatpush1.bf16.msra.mxu0 %v242
  %320 = vmatprep.subr.bf16.mxu0 %v245
  %321 = vmatpush1.bf16.msra.mxu0 %v244
  %322 = vmatprep.subr.bf16.mxu0 %v247
  %323 = vmatpush1.bf16.msra.mxu0 %v246
  %324 = vmatprep.mubr.bf16.mxu0 %v104
  %325 = vmatmul.mubr.bf16.gmra.mrb[0].mxu0 %v103
  %v326 = vpop.f32.mrb[0].mxu0
  %v327 = vadd.f32 0.0, %v326
  %v328 = vpop.f32.mrb[0].mxu0
  %v329 = vadd.f32 0.0, %v328
  %v330 = vpop.f32.mrb[0].mxu0
  %v331 = vpop.f32.mrb[0].mxu0
  %332 = vdwg.mxu0
  %333 = vmatprep.subr.bf16.mxu0 %v249
  %334 = vmatpush1.bf16.msra.mxu0 %v248
  %335 = vmatprep.subr.bf16.mxu0 %v251
  %336 = vmatpush1.bf16.msra.mxu0 %v250
  %337 = vmatprep.subr.bf16.mxu0 0
  %338 = vmatpush1.bf16.msra.mxu0 0
  %339 = vmatprep.subr.bf16.mxu0 0
  %340 = vmatpush1.bf16.msra.mxu0 0
  %341 = vmatprep.subr.bf16.mxu0 0
  %342 = vmatpush1.bf16.msra.mxu0 0
  %343 = vmatprep.subr.bf16.mxu0 0
  %344 = vmatpush1.bf16.msra.mxu0 0
  %345 = vmatprep.subr.bf16.mxu0 0
  %346 = vmatpush1.bf16.msra.mxu0 0
  %347 = vmatprep.subr.bf16.mxu0 0
  %348 = vmatpush1.bf16.msra.mxu0 0
  %349 = vmatprep.subr.bf16.mxu0 0
  %350 = vmatpush1.bf16.msra.mxu0 0
  %351 = vmatprep.subr.bf16.mxu0 0
  %352 = vmatpush1.bf16.msra.mxu0 0
  %353 = vmatprep.subr.bf16.mxu0 0
  %354 = vmatpush1.bf16.msra.mxu0 0
  %355 = vmatprep.subr.bf16.mxu0 0
  %356 = vmatpush1.bf16.msra.mxu0 0
  %357 = vmatprep.subr.bf16.mxu0 0
  %358 = vmatpush1.bf16.msra.mxu0 0
  %359 = vmatprep.subr.bf16.mxu0 0
  %360 = vmatpush1.bf16.msra.mxu0 0
  %361 = vmatprep.subr.bf16.mxu0 0
  %362 = vmatpush1.bf16.msra.mxu0 0
  %363 = vmatprep.subr.bf16.mxu0 0
  %364 = vmatpush1.bf16.msra.mxu0 0
  %365 = vmatprep.mubr.bf16.mxu0 0
  %366 = vmatmul.mubr.bf16.gmra.mrb[0].mxu0 %v290
  %v367 = vpop.f32.mrb[0].mxu0
  %v368 = vadd.f32 %v327, %v367
  %v369 = vpop.f32.mrb[0].mxu0
  %v370 = vadd.f32 %v329, %v369
  %v371 = vpop.f32.mrb[0].mxu0
  %v372 = vpop.f32.mrb[0].mxu0
  %373 = vdwg.mxu0
  %v376 = vunpack.c.l.b16 %v17
  %v377 = vunpack.c.h.b16 %v17
  %v378 = vunpack.c.l.b16 %v18
  %v379 = vpack.c.b16 %v376, %v376
  %v380 = vpack.c.b16 %v377, %v377
  %v381 = vpack.c.b16 %v378, %v378
  %v420 = vunpack.c.l.b16 %v25
  %v421 = vunpack.c.h.b16 %v25
  %v422 = vunpack.c.l.b16 %v26
  %v423 = vunpack.c.h.b16 %v26
  %v424 = vunpack.c.l.b16 %v27
  %v425 = vunpack.c.h.b16 %v27
  %v426 = vunpack.c.l.b16 %v28
  %v427 = vunpack.c.h.b16 %v28
  %v428 = vunpack.c.l.b16 %v29
  %v429 = vunpack.c.h.b16 %v29
  %v430 = vunpack.c.l.b16 %v30
  %v431 = vunpack.c.h.b16 %v30
  %v432 = vunpack.c.l.b16 %v31
  %v433 = vunpack.c.h.b16 %v31
  %v434 = vunpack.c.l.b16 %v32
  %v435 = vunpack.c.h.b16 %v32
  %v436 = vunpack.c.l.b16 %v33
  %v437 = vunpack.c.h.b16 %v33
  %v438 = vunpack.c.l.b16 %v34
  %v439 = vunpack.c.h.b16 %v34
  %v440 = vunpack.c.l.b16 %v35
  %v441 = vunpack.c.h.b16 %v35
  %v442 = vunpack.c.l.b16 %v36
  %v443 = vunpack.c.h.b16 %v36
  %v444 = vunpack.c.l.b16 %v37
  %v445 = vunpack.c.h.b16 %v37
  %v446 = vunpack.c.l.b16 %v38
  %v447 = vunpack.c.h.b16 %v38
  %v448 = vunpack.c.l.b16 %v39
  %v449 = vunpack.c.h.b16 %v39
  %v450 = vunpack.c.l.b16 %v40
  %v451 = vunpack.c.h.b16 %v40
  %v452 = vunpack.c.l.b16 %v41
  %v453 = vunpack.c.h.b16 %v41
  %v454 = vunpack.c.l.b16 %v42
  %v455 = vunpack.c.h.b16 %v42
  %v456 = vunpack.c.l.b16 %v43
  %v457 = vunpack.c.h.b16 %v43
  %v458 = vunpack.c.l.b16 %v44
  %v459 = vunpack.c.h.b16 %v44
  %v460 = vunpack.c.l.b16 %v45
  %v461 = vunpack.c.h.b16 %v45
  %v462 = vunpack.c.l.b16 %v46
  %v463 = vunpack.c.h.b16 %v46
  %v464 = vunpack.c.l.b16 %v47
  %v465 = vunpack.c.h.b16 %v47
  %v466 = vunpack.c.l.b16 %v48
  %v467 = vunpack.c.h.b16 %v48
  %v468 = vunpack.c.l.b16 %v49
  %v469 = vunpack.c.h.b16 %v49
  %v470 = vunpack.c.l.b16 %v50
  %v471 = vunpack.c.h.b16 %v50
  %v472 = vunpack.c.l.b16 %v51
  %v473 = vunpack.c.h.b16 %v51
  %v474 = vunpack.c.l.b16 %v52
  %v475 = vunpack.c.h.b16 %v52
  %v476 = vunpack.c.l.b16 %v53
  %v477 = vunpack.c.h.b16 %v53
  %v478 = vunpack.c.l.b16 %v54
  %v479 = vunpack.c.h.b16 %v54
  %v480 = vunpack.c.l.b16 %v55
  %v481 = vunpack.c.h.b16 %v55
  %v482 = vunpack.c.l.b16 %v56
  %v483 = vunpack.c.h.b16 %v56
  %v484 = vunpack.c.l.b16 %v57
  %v485 = vunpack.c.h.b16 %v57
  %v486 = vunpack.c.l.b16 %v58
  %v487 = vunpack.c.h.b16 %v58
  %v488 = vunpack.c.l.b16 %v59
  %v489 = vunpack.c.h.b16 %v59
  %v490 = vunpack.c.l.b16 %v60
  %v491 = vunpack.c.h.b16 %v60
  %v492 = vpack.c.b16 %v422, %v420
  %v493 = vpack.c.b16 %v423, %v421
  %v494 = vpack.c.b16 %v426, %v424
  %v495 = vpack.c.b16 %v427, %v425
  %v496 = vpack.c.b16 %v430, %v428
  %v497 = vpack.c.b16 %v431, %v429
  %v498 = vpack.c.b16 %v434, %v432
  %v499 = vpack.c.b16 %v435, %v433
  %v500 = vpack.c.b16 %v438, %v436
  %v501 = vpack.c.b16 %v439, %v437
  %v502 = vpack.c.b16 %v442, %v440
  %v503 = vpack.c.b16 %v443, %v441
  %v504 = vpack.c.b16 %v446, %v444
  %v505 = vpack.c.b16 %v447, %v445
  %v506 = vpack.c.b16 %v450, %v448
  %v507 = vpack.c.b16 %v451, %v449
  %v508 = vpack.c.b16 %v454, %v452
  %v509 = vpack.c.b16 %v455, %v453
  %v510 = vpack.c.b16 %v458, %v456
  %v511 = vpack.c.b16 %v459, %v457
  %v512 = vpack.c.b16 %v462, %v460
  %v513 = vpack.c.b16 %v463, %v461
  %v514 = vpack.c.b16 %v466, %v464
  %v515 = vpack.c.b16 %v467, %v465
  %v516 = vpack.c.b16 %v470, %v468
  %v517 = vpack.c.b16 %v471, %v469
  %v518 = vpack.c.b16 %v474, %v472
  %v519 = vpack.c.b16 %v475, %v473
  %v520 = vpack.c.b16 %v478, %v476
  %v521 = vpack.c.b16 %v479, %v477
  %v522 = vpack.c.b16 %v482, %v480
  %v523 = vpack.c.b16 %v483, %v481
  %v524 = vpack.c.b16 %v486, %v484
  %v525 = vpack.c.b16 %v487, %v485
  %v526 = vpack.c.b16 %v490, %v488
  %v527 = vpack.c.b16 %v491, %v489
  %v565 = vsel %vm288, %v381, 0
  %567 = vmatprep.subr.bf16.mxu0 %v493
  %568 = vmatpush1.bf16.msra.mxu0 %v492
  %569 = vmatprep.subr.bf16.mxu0 %v495
  %570 = vmatpush1.bf16.msra.mxu0 %v494
  %571 = vmatprep.subr.bf16.mxu0 %v497
  %572 = vmatpush1.bf16.msra.mxu0 %v496
  %573 = vmatprep.subr.bf16.mxu0 %v499
  %574 = vmatpush1.bf16.msra.mxu0 %v498
  %575 = vmatprep.subr.bf16.mxu0 %v501
  %576 = vmatpush1.bf16.msra.mxu0 %v500
  %577 = vmatprep.subr.bf16.mxu0 %v503
  %578 = vmatpush1.bf16.msra.mxu0 %v502
  %579 = vmatprep.subr.bf16.mxu0 %v505
  %580 = vmatpush1.bf16.msra.mxu0 %v504
  %581 = vmatprep.subr.bf16.mxu0 %v507
  %582 = vmatpush1.bf16.msra.mxu0 %v506
  %583 = vmatprep.subr.bf16.mxu0 %v509
  %584 = vmatpush1.bf16.msra.mxu0 %v508
  %585 = vmatprep.subr.bf16.mxu0 %v511
  %586 = vmatpush1.bf16.msra.mxu0 %v510
  %587 = vmatprep.subr.bf16.mxu0 %v513
  %588 = vmatpush1.bf16.msra.mxu0 %v512
  %589 = vmatprep.subr.bf16.mxu0 %v515
  %590 = vmatpush1.bf16.msra.mxu0 %v514
  %591 = vmatprep.subr.bf16.mxu0 %v517
  %592 = vmatpush1.bf16.msra.mxu0 %v516
  %593 = vmatprep.subr.bf16.mxu0 %v519
  %594 = vmatpush1.bf16.msra.mxu0 %v518
  %595 = vmatprep.subr.bf16.mxu0 %v521
  %596 = vmatpush1.bf16.msra.mxu0 %v520
  %597 = vmatprep.subr.bf16.mxu0 %v523
  %598 = vmatpush1.bf16.msra.mxu0 %v522
  %599 = vmatprep.mubr.bf16.mxu0 %v380
  %600 = vmatmul.mubr.bf16.gmra.mrb[0].mxu0 %v379
  %v601 = vpop.f32.mrb[0].mxu0
  %v602 = vadd.f32 %v368, %v601
  %v603 = vpop.f32.mrb[0].mxu0
  %v604 = vadd.f32 %v370, %v603
  %v605 = vpop.f32.mrb[0].mxu0
  %v606 = vpop.f32.mrb[0].mxu0
  %607 = vdwg.mxu0
  %608 = vmatprep.subr.bf16.mxu0 %v525
  %609 = vmatpush1.bf16.msra.mxu0 %v524
  %610 = vmatprep.subr.bf16.mxu0 %v527
  %611 = vmatpush1.bf16.msra.mxu0 %v526
  %612 = vmatprep.subr.bf16.mxu0 0
  %613 = vmatpush1.bf16.msra.mxu0 0
  %614 = vmatprep.subr.bf16.mxu0 0
  %615 = vmatpush1.bf16.msra.mxu0 0
  %616 = vmatprep.subr.bf16.mxu0 0
  %617 = vmatpush1.bf16.msra.mxu0 0
  %618 = vmatprep.subr.bf16.mxu0 0
  %619 = vmatpush1.bf16.msra.mxu0 0
  %620 = vmatprep.subr.bf16.mxu0 0
  %621 = vmatpush1.bf16.msra.mxu0 0
  %622 = vmatprep.subr.bf16.mxu0 0
  %623 = vmatpush1.bf16.msra.mxu0 0
  %624 = vmatprep.subr.bf16.mxu0 0
  %625 = vmatpush1.bf16.msra.mxu0 0
  %626 = vmatprep.subr.bf16.mxu0 0
  %627 = vmatpush1.bf16.msra.mxu0 0
  %628 = vmatprep.subr.bf16.mxu0 0
  %629 = vmatpush1.bf16.msra.mxu0 0
  %630 = vmatprep.subr.bf16.mxu0 0
  %631 = vmatpush1.bf16.msra.mxu0 0
  %632 = vmatprep.subr.bf16.mxu0 0
  %633 = vmatpush1.bf16.msra.mxu0 0
  %634 = vmatprep.subr.bf16.mxu0 0
  %635 = vmatpush1.bf16.msra.mxu0 0
  %636 = vmatprep.subr.bf16.mxu0 0
  %637 = vmatpush1.bf16.msra.mxu0 0
  %638 = vmatprep.subr.bf16.mxu0 0
  %639 = vmatpush1.bf16.msra.mxu0 0
  %640 = vmatprep.mubr.bf16.mxu0 0
  %641 = vmatmul.mubr.bf16.gmra.mrb[0].mxu0 %v565
  %v642 = vpop.f32.mrb[0].mxu0
  %v643 = vadd.f32 %v602, %v642
  %v644 = vpop.f32.mrb[0].mxu0
  %v645 = vadd.f32 %v604, %v644
  %v646 = vpop.f32.mrb[0].mxu0
  %v647 = vpop.f32.mrb[0].mxu0
  %648 = vdwg.mxu0
  %s649 = scalar_lea.vmem %s2, 576
  %v650 = vld [vmem:[%s649] sm:$0xff]
  %v651 = vld [vmem:[%s649 + $0x8] sm:$0xff]
  %v652 = vld [vmem:[%s649 + $0x10] sm:$0xff]
  %v653 = vld [vmem:[%s649 + $0x18] sm:$0xff]
  %v654 = vld [vmem:[%s649 + $0x20] sm:$0xff]
  %v655 = vld [vmem:[%s649 + $0x28] sm:$0xff]
  %v656 = vld [vmem:[%s649 + $0x30] sm:$0xff]
  %v657 = vld [vmem:[%s649 + $0x38] sm:$0xff]
  %v658 = vld [vmem:[%s649 + $0x40] sm:$0xff]
  %v659 = vld [vmem:[%s649 + $0x48] sm:$0xff]
  %v660 = vld [vmem:[%s649 + $0x50] sm:$0xff]
  %v661 = vld [vmem:[%s649 + $0x58] sm:$0xff]
  %v662 = vld [vmem:[%s649 + $0x60] sm:$0xff]
  %v663 = vld [vmem:[%s649 + $0x68] sm:$0xff]
  %v664 = vld [vmem:[%s649 + $0x70] sm:$0xff]
  %v665 = vld [vmem:[%s649 + $0x78] sm:$0xff]
  %v666 = vld [vmem:[%s649 + $0x80] sm:$0xff]
  %v667 = vld [vmem:[%s649 + $0x88] sm:$0xff]
  %v668 = vld [vmem:[%s649 + $0x90] sm:$0xff]
  %v669 = vld [vmem:[%s649 + $0x98] sm:$0xff]
  %v670 = vld [vmem:[%s649 + $0xa0] sm:$0xff]
  %v671 = vld [vmem:[%s649 + $0xa8] sm:$0xff]
  %v672 = vld [vmem:[%s649 + $0xb0] sm:$0xff]
  %v673 = vld [vmem:[%s649 + $0xb8] sm:$0xff]
  %v674 = vld [vmem:[%s649 + $0xc0] sm:$0xff]
  %v675 = vld [vmem:[%s649 + $0xc8] sm:$0xff]
  %v676 = vld [vmem:[%s649 + $0xd0] sm:$0xff]
  %v677 = vld [vmem:[%s649 + $0xd8] sm:$0xff]
  %v678 = vld [vmem:[%s649 + $0xe0] sm:$0xff]
  %v679 = vld [vmem:[%s649 + $0xe8] sm:$0xff]
  %v680 = vld [vmem:[%s649 + $0xf0] sm:$0xff]
  %v681 = vld [vmem:[%s649 + $0xf8] sm:$0xff]
  %v682 = vld [vmem:[%s649 + $0x100] sm:$0xff]
  %v683 = vld [vmem:[%s649 + $0x108] sm:$0xff]
  %v684 = vld [vmem:[%s649 + $0x110] sm:$0xff]
  %v685 = vld [vmem:[%s649 + $0x118] sm:$0xff]
  %v688 = vunpack.c.l.b16 %v19
  %v689 = vunpack.c.h.b16 %v19
  %v690 = vunpack.c.l.b16 %v20
  %v691 = vpack.c.b16 %v688, %v376
  %v692 = vpack.c.b16 %v689, %v377
  %v693 = vpack.c.b16 %v690, %v378
  %v695 = vshrl.u32 %v691, 16
  %v697 = vshll.u32 %v691, 16
  %v699 = vrot.slane %v697, 1
  %v700 = vor.u32 %v695, %v699
  %v702 = vshrl.u32 %v692, 16
  %v704 = vshll.u32 %v692, 16
  %v706 = vrot.slane %v704, 1
  %v707 = vor.u32 %v702, %v706
  %v709 = vshrl.u32 %v693, 16
  %v711 = vshll.u32 %v693, 16
  %v713 = vrot.slane %v711, 1
  %v714 = vor.u32 %v709, %v713
  %v753 = vunpack.c.l.b16 %v650
  %v754 = vunpack.c.h.b16 %v650
  %v755 = vunpack.c.l.b16 %v651
  %v756 = vunpack.c.h.b16 %v651
  %v757 = vunpack.c.l.b16 %v652
  %v758 = vunpack.c.h.b16 %v652
  %v759 = vunpack.c.l.b16 %v653
  %v760 = vunpack.c.h.b16 %v653
  %v761 = vunpack.c.l.b16 %v654
  %v762 = vunpack.c.h.b16 %v654
  %v763 = vunpack.c.l.b16 %v655
  %v764 = vunpack.c.h.b16 %v655
  %v765 = vunpack.c.l.b16 %v656
  %v766 = vunpack.c.h.b16 %v656
  %v767 = vunpack.c.l.b16 %v657
  %v768 = vunpack.c.h.b16 %v657
  %v769 = vunpack.c.l.b16 %v658
  %v770 = vunpack.c.h.b16 %v658
  %v771 = vunpack.c.l.b16 %v659
  %v772 = vunpack.c.h.b16 %v659
  %v773 = vunpack.c.l.b16 %v660
  %v774 = vunpack.c.h.b16 %v660
  %v775 = vunpack.c.l.b16 %v661
  %v776 = vunpack.c.h.b16 %v661
  %v777 = vunpack.c.l.b16 %v662
  %v778 = vunpack.c.h.b16 %v662
  %v779 = vunpack.c.l.b16 %v663
  %v780 = vunpack.c.h.b16 %v663
  %v781 = vunpack.c.l.b16 %v664
  %v782 = vunpack.c.h.b16 %v664
  %v783 = vunpack.c.l.b16 %v665
  %v784 = vunpack.c.h.b16 %v665
  %v785 = vunpack.c.l.b16 %v666
  %v786 = vunpack.c.h.b16 %v666
  %v787 = vunpack.c.l.b16 %v667
  %v788 = vunpack.c.h.b16 %v667
  %v789 = vunpack.c.l.b16 %v668
  %v790 = vunpack.c.h.b16 %v668
  %v791 = vunpack.c.l.b16 %v669
  %v792 = vunpack.c.h.b16 %v669
  %v793 = vunpack.c.l.b16 %v670
  %v794 = vunpack.c.h.b16 %v670
  %v795 = vunpack.c.l.b16 %v671
  %v796 = vunpack.c.h.b16 %v671
  %v797 = vunpack.c.l.b16 %v672
  %v798 = vunpack.c.h.b16 %v672
  %v799 = vunpack.c.l.b16 %v673
  %v800 = vunpack.c.h.b16 %v673
  %v801 = vunpack.c.l.b16 %v674
  %v802 = vunpack.c.h.b16 %v674
  %v803 = vunpack.c.l.b16 %v675
  %v804 = vunpack.c.h.b16 %v675
  %v805 = vunpack.c.l.b16 %v676
  %v806 = vunpack.c.h.b16 %v676
  %v807 = vunpack.c.l.b16 %v677
  %v808 = vunpack.c.h.b16 %v677
  %v809 = vunpack.c.l.b16 %v678
  %v810 = vunpack.c.h.b16 %v678
  %v811 = vunpack.c.l.b16 %v679
  %v812 = vunpack.c.h.b16 %v679
  %v813 = vunpack.c.l.b16 %v680
  %v814 = vunpack.c.h.b16 %v680
  %v815 = vunpack.c.l.b16 %v681
  %v816 = vunpack.c.h.b16 %v681
  %v817 = vunpack.c.l.b16 %v682
  %v818 = vunpack.c.h.b16 %v682
  %v819 = vunpack.c.l.b16 %v683
  %v820 = vunpack.c.h.b16 %v683
  %v821 = vunpack.c.l.b16 %v684
  %v822 = vunpack.c.h.b16 %v684
  %v823 = vunpack.c.l.b16 %v685
  %v824 = vunpack.c.h.b16 %v685
  %v825 = vpack.c.b16 %v755, %v753
  %v826 = vpack.c.b16 %v756, %v754
  %v827 = vpack.c.b16 %v759, %v757
  %v828 = vpack.c.b16 %v760, %v758
  %v829 = vpack.c.b16 %v763, %v761
  %v830 = vpack.c.b16 %v764, %v762
  %v831 = vpack.c.b16 %v767, %v765
  %v832 = vpack.c.b16 %v768, %v766
  %v833 = vpack.c.b16 %v771, %v769
  %v834 = vpack.c.b16 %v772, %v770
  %v835 = vpack.c.b16 %v775, %v773
  %v836 = vpack.c.b16 %v776, %v774
  %v837 = vpack.c.b16 %v779, %v777
  %v838 = vpack.c.b16 %v780, %v778
  %v839 = vpack.c.b16 %v783, %v781
  %v840 = vpack.c.b16 %v784, %v782
  %v841 = vpack.c.b16 %v787, %v785
  %v842 = vpack.c.b16 %v788, %v786
  %v843 = vpack.c.b16 %v791, %v789
  %v844 = vpack.c.b16 %v792, %v790
  %v845 = vpack.c.b16 %v795, %v793
  %v846 = vpack.c.b16 %v796, %v794
  %v847 = vpack.c.b16 %v799, %v797
  %v848 = vpack.c.b16 %v800, %v798
  %v849 = vpack.c.b16 %v803, %v801
  %v850 = vpack.c.b16 %v804, %v802
  %v851 = vpack.c.b16 %v807, %v805
  %v852 = vpack.c.b16 %v808, %v806
  %v853 = vpack.c.b16 %v811, %v809
  %v854 = vpack.c.b16 %v812, %v810
  %v855 = vpack.c.b16 %v815, %v813
  %v856 = vpack.c.b16 %v816, %v814
  %v857 = vpack.c.b16 %v819, %v817
  %v858 = vpack.c.b16 %v820, %v818
  %v859 = vpack.c.b16 %v823, %v821
  %v860 = vpack.c.b16 %v824, %v822
  %v898 = vsel %vm288, %v714, 0
  %900 = vmatprep.subr.bf16.mxu0 %v826
  %901 = vmatpush1.bf16.msra.mxu0 %v825
  %902 = vmatprep.subr.bf16.mxu0 %v828
  %903 = vmatpush1.bf16.msra.mxu0 %v827
  %904 = vmatprep.subr.bf16.mxu0 %v830
  %905 = vmatpush1.bf16.msra.mxu0 %v829
  %906 = vmatprep.subr.bf16.mxu0 %v832
  %907 = vmatpush1.bf16.msra.mxu0 %v831
  %908 = vmatprep.subr.bf16.mxu0 %v834
  %909 = vmatpush1.bf16.msra.mxu0 %v833
  %910 = vmatprep.subr.bf16.mxu0 %v836
  %911 = vmatpush1.bf16.msra.mxu0 %v835
  %912 = vmatprep.subr.bf16.mxu0 %v838
  %913 = vmatpush1.bf16.msra.mxu0 %v837
  %914 = vmatprep.subr.bf16.mxu0 %v840
  %915 = vmatpush1.bf16.msra.mxu0 %v839
  %916 = vmatprep.subr.bf16.mxu0 %v842
  %917 = vmatpush1.bf16.msra.mxu0 %v841
  %918 = vmatprep.subr.bf16.mxu0 %v844
  %919 = vmatpush1.bf16.msra.mxu0 %v843
  %920 = vmatprep.subr.bf16.mxu0 %v846
  %921 = vmatpush1.bf16.msra.mxu0 %v845
  %922 = vmatprep.subr.bf16.mxu0 %v848
  %923 = vmatpush1.bf16.msra.mxu0 %v847
  %924 = vmatprep.subr.bf16.mxu0 %v850
  %925 = vmatpush1.bf16.msra.mxu0 %v849
  %926 = vmatprep.subr.bf16.mxu0 %v852
  %927 = vmatpush1.bf16.msra.mxu0 %v851
  %928 = vmatprep.subr.bf16.mxu0 %v854
  %929 = vmatpush1.bf16.msra.mxu0 %v853
  %930 = vmatprep.subr.bf16.mxu0 %v856
  %931 = vmatpush1.bf16.msra.mxu0 %v855
  %932 = vmatprep.mubr.bf16.mxu0 %v707
  %933 = vmatmul.mubr.bf16.gmra.mrb[0].mxu0 %v700
  %v934 = vpop.f32.mrb[0].mxu0
  %v935 = vadd.f32 0.0, %v934
  %v936 = vpop.f32.mrb[0].mxu0
  %v937 = vadd.f32 0.0, %v936
  %v938 = vpop.f32.mrb[0].mxu0
  %v939 = vpop.f32.mrb[0].mxu0
  %940 = vdwg.mxu0
  %941 = vmatprep.subr.bf16.mxu0 %v858
  %942 = vmatpush1.bf16.msra.mxu0 %v857
  %943 = vmatprep.subr.bf16.mxu0 %v860
  %944 = vmatpush1.bf16.msra.mxu0 %v859
  %945 = vmatprep.subr.bf16.mxu0 0
  %946 = vmatpush1.bf16.msra.mxu0 0
  %947 = vmatprep.subr.bf16.mxu0 0
  %948 = vmatpush1.bf16.msra.mxu0 0
  %949 = vmatprep.subr.bf16.mxu0 0
  %950 = vmatpush1.bf16.msra.mxu0 0
  %951 = vmatprep.subr.bf16.mxu0 0
  %952 = vmatpush1.bf16.msra.mxu0 0
  %953 = vmatprep.subr.bf16.mxu0 0
  %954 = vmatpush1.bf16.msra.mxu0 0
  %955 = vmatprep.subr.bf16.mxu0 0
  %956 = vmatpush1.bf16.msra.mxu0 0
  %957 = vmatprep.subr.bf16.mxu0 0
  %958 = vmatpush1.bf16.msra.mxu0 0
  %959 = vmatprep.subr.bf16.mxu0 0
  %960 = vmatpush1.bf16.msra.mxu0 0
  %961 = vmatprep.subr.bf16.mxu0 0
  %962 = vmatpush1.bf16.msra.mxu0 0
  %963 = vmatprep.subr.bf16.mxu0 0
  %964 = vmatpush1.bf16.msra.mxu0 0
  %965 = vmatprep.subr.bf16.mxu0 0
  %966 = vmatpush1.bf16.msra.mxu0 0
  %967 = vmatprep.subr.bf16.mxu0 0
  %968 = vmatpush1.bf16.msra.mxu0 0
  %969 = vmatprep.subr.bf16.mxu0 0
  %970 = vmatpush1.bf16.msra.mxu0 0
  %971 = vmatprep.subr.bf16.mxu0 0
  %972 = vmatpush1.bf16.msra.mxu0 0
  %973 = vmatprep.mubr.bf16.mxu0 0
  %974 = vmatmul.mubr.bf16.gmra.mrb[0].mxu0 %v898
  %v975 = vpop.f32.mrb[0].mxu0
  %v976 = vadd.f32 %v935, %v975
  %v977 = vpop.f32.mrb[0].mxu0
  %v978 = vadd.f32 %v937, %v977
  %v979 = vpop.f32.mrb[0].mxu0
  %v980 = vpop.f32.mrb[0].mxu0
  %981 = vdwg.mxu0
  %v982 = vadd.f32 %v643, %v976
  %v983 = vadd.f32 %v645, %v978
  %s984 = scalar_lea.vmem %s2, 864
  %v985 = vld [vmem:[%s984] sm:$0xff]
  %v986 = vld [vmem:[%s984 + $0x8] sm:$0xff]
  %v987 = vld [vmem:[%s984 + $0x10] sm:$0xff]
  %v988 = vld [vmem:[%s984 + $0x18] sm:$0xff]
  %v989 = vld [vmem:[%s984 + $0x20] sm:$0xff]
  %v990 = vld [vmem:[%s984 + $0x28] sm:$0xff]
  %v991 = vld [vmem:[%s984 + $0x30] sm:$0xff]
  %v992 = vld [vmem:[%s984 + $0x38] sm:$0xff]
  %v993 = vld [vmem:[%s984 + $0x40] sm:$0xff]
  %v994 = vld [vmem:[%s984 + $0x48] sm:$0xff]
  %v995 = vld [vmem:[%s984 + $0x50] sm:$0xff]
  %v996 = vld [vmem:[%s984 + $0x58] sm:$0xff]
  %v997 = vld [vmem:[%s984 + $0x60] sm:$0xff]
  %v998 = vld [vmem:[%s984 + $0x68] sm:$0xff]
  %v999 = vld [vmem:[%s984 + $0x70] sm:$0xff]
  %v1000 = vld [vmem:[%s984 + $0x78] sm:$0xff]
  %v1001 = vld [vmem:[%s984 + $0x80] sm:$0xff]
  %v1002 = vld [vmem:[%s984 + $0x88] sm:$0xff]
  %v1003 = vld [vmem:[%s984 + $0x90] sm:$0xff]
  %v1004 = vld [vmem:[%s984 + $0x98] sm:$0xff]
  %v1005 = vld [vmem:[%s984 + $0xa0] sm:$0xff]
  %v1006 = vld [vmem:[%s984 + $0xa8] sm:$0xff]
  %v1007 = vld [vmem:[%s984 + $0xb0] sm:$0xff]
  %v1008 = vld [vmem:[%s984 + $0xb8] sm:$0xff]
  %v1009 = vld [vmem:[%s984 + $0xc0] sm:$0xff]
  %v1010 = vld [vmem:[%s984 + $0xc8] sm:$0xff]
  %v1011 = vld [vmem:[%s984 + $0xd0] sm:$0xff]
  %v1012 = vld [vmem:[%s984 + $0xd8] sm:$0xff]
  %v1013 = vld [vmem:[%s984 + $0xe0] sm:$0xff]
  %v1014 = vld [vmem:[%s984 + $0xe8] sm:$0xff]
  %v1015 = vld [vmem:[%s984 + $0xf0] sm:$0xff]
  %v1016 = vld [vmem:[%s984 + $0xf8] sm:$0xff]
  %v1017 = vld [vmem:[%s984 + $0x100] sm:$0xff]
  %v1018 = vld [vmem:[%s984 + $0x108] sm:$0xff]
  %v1019 = vld [vmem:[%s984 + $0x110] sm:$0xff]
  %v1020 = vld [vmem:[%s984 + $0x118] sm:$0xff]
  %v1023 = vunpack.c.l.b16 %v23
  %v1024 = vunpack.c.h.b16 %v23
  %v1025 = vunpack.c.l.b16 %v24
  %v1026 = vpack.c.b16 %v1023, %v100
  %v1027 = vpack.c.b16 %v1024, %v101
  %v1028 = vpack.c.b16 %v1025, %v102
  %v1030 = vshrl.u32 %v1026, 16
  %v1032 = vshll.u32 %v1026, 16
  %v1034 = vrot.slane %v1032, 1
  %v1035 = vor.u32 %v1030, %v1034
  %v1037 = vshrl.u32 %v1027, 16
  %v1039 = vshll.u32 %v1027, 16
  %v1041 = vrot.slane %v1039, 1
  %v1042 = vor.u32 %v1037, %v1041
  %v1044 = vshrl.u32 %v1028, 16
  %v1046 = vshll.u32 %v1028, 16
  %v1048 = vrot.slane %v1046, 1
  %v1049 = vor.u32 %v1044, %v1048
  %v1088 = vunpack.c.l.b16 %v985
  %v1089 = vunpack.c.h.b16 %v985
  %v1090 = vunpack.c.l.b16 %v986
  %v1091 = vunpack.c.h.b16 %v986
  %v1092 = vunpack.c.l.b16 %v987
  %v1093 = vunpack.c.h.b16 %v987
  %v1094 = vunpack.c.l.b16 %v988
  %v1095 = vunpack.c.h.b16 %v988
  %v1096 = vunpack.c.l.b16 %v989
  %v1097 = vunpack.c.h.b16 %v989
  %v1098 = vunpack.c.l.b16 %v990
  %v1099 = vunpack.c.h.b16 %v990
  %v1100 = vunpack.c.l.b16 %v991
  %v1101 = vunpack.c.h.b16 %v991
  %v1102 = vunpack.c.l.b16 %v992
  %v1103 = vunpack.c.h.b16 %v992
  %v1104 = vunpack.c.l.b16 %v993
  %v1105 = vunpack.c.h.b16 %v993
  %v1106 = vunpack.c.l.b16 %v994
  %v1107 = vunpack.c.h.b16 %v994
  %v1108 = vunpack.c.l.b16 %v995
  %v1109 = vunpack.c.h.b16 %v995
  %v1110 = vunpack.c.l.b16 %v996
  %v1111 = vunpack.c.h.b16 %v996
  %v1112 = vunpack.c.l.b16 %v997
  %v1113 = vunpack.c.h.b16 %v997
  %v1114 = vunpack.c.l.b16 %v998
  %v1115 = vunpack.c.h.b16 %v998
  %v1116 = vunpack.c.l.b16 %v999
  %v1117 = vunpack.c.h.b16 %v999
  %v1118 = vunpack.c.l.b16 %v1000
  %v1119 = vunpack.c.h.b16 %v1000
  %v1120 = vunpack.c.l.b16 %v1001
  %v1121 = vunpack.c.h.b16 %v1001
  %v1122 = vunpack.c.l.b16 %v1002
  %v1123 = vunpack.c.h.b16 %v1002
  %v1124 = vunpack.c.l.b16 %v1003
  %v1125 = vunpack.c.h.b16 %v1003
  %v1126 = vunpack.c.l.b16 %v1004
  %v1127 = vunpack.c.h.b16 %v1004
  %v1128 = vunpack.c.l.b16 %v1005
  %v1129 = vunpack.c.h.b16 %v1005
  %v1130 = vunpack.c.l.b16 %v1006
  %v1131 = vunpack.c.h.b16 %v1006
  %v1132 = vunpack.c.l.b16 %v1007
  %v1133 = vunpack.c.h.b16 %v1007
  %v1134 = vunpack.c.l.b16 %v1008
  %v1135 = vunpack.c.h.b16 %v1008
  %v1136 = vunpack.c.l.b16 %v1009
  %v1137 = vunpack.c.h.b16 %v1009
  %v1138 = vunpack.c.l.b16 %v1010
  %v1139 = vunpack.c.h.b16 %v1010
  %v1140 = vunpack.c.l.b16 %v1011
  %v1141 = vunpack.c.h.b16 %v1011
  %v1142 = vunpack.c.l.b16 %v1012
  %v1143 = vunpack.c.h.b16 %v1012
  %v1144 = vunpack.c.l.b16 %v1013
  %v1145 = vunpack.c.h.b16 %v1013
  %v1146 = vunpack.c.l.b16 %v1014
  %v1147 = vunpack.c.h.b16 %v1014
  %v1148 = vunpack.c.l.b16 %v1015
  %v1149 = vunpack.c.h.b16 %v1015
  %v1150 = vunpack.c.l.b16 %v1016
  %v1151 = vunpack.c.h.b16 %v1016
  %v1152 = vunpack.c.l.b16 %v1017
  %v1153 = vunpack.c.h.b16 %v1017
  %v1154 = vunpack.c.l.b16 %v1018
  %v1155 = vunpack.c.h.b16 %v1018
  %v1156 = vunpack.c.l.b16 %v1019
  %v1157 = vunpack.c.h.b16 %v1019
  %v1158 = vunpack.c.l.b16 %v1020
  %v1159 = vunpack.c.h.b16 %v1020
  %v1160 = vpack.c.b16 %v1090, %v1088
  %v1161 = vpack.c.b16 %v1091, %v1089
  %v1162 = vpack.c.b16 %v1094, %v1092
  %v1163 = vpack.c.b16 %v1095, %v1093
  %v1164 = vpack.c.b16 %v1098, %v1096
  %v1165 = vpack.c.b16 %v1099, %v1097
  %v1166 = vpack.c.b16 %v1102, %v1100
  %v1167 = vpack.c.b16 %v1103, %v1101
  %v1168 = vpack.c.b16 %v1106, %v1104
  %v1169 = vpack.c.b16 %v1107, %v1105
  %v1170 = vpack.c.b16 %v1110, %v1108
  %v1171 = vpack.c.b16 %v1111, %v1109
  %v1172 = vpack.c.b16 %v1114, %v1112
  %v1173 = vpack.c.b16 %v1115, %v1113
  %v1174 = vpack.c.b16 %v1118, %v1116
  %v1175 = vpack.c.b16 %v1119, %v1117
  %v1176 = vpack.c.b16 %v1122, %v1120
  %v1177 = vpack.c.b16 %v1123, %v1121
  %v1178 = vpack.c.b16 %v1126, %v1124
  %v1179 = vpack.c.b16 %v1127, %v1125
  %v1180 = vpack.c.b16 %v1130, %v1128
  %v1181 = vpack.c.b16 %v1131, %v1129
  %v1182 = vpack.c.b16 %v1134, %v1132
  %v1183 = vpack.c.b16 %v1135, %v1133
  %v1184 = vpack.c.b16 %v1138, %v1136
  %v1185 = vpack.c.b16 %v1139, %v1137
  %v1186 = vpack.c.b16 %v1142, %v1140
  %v1187 = vpack.c.b16 %v1143, %v1141
  %v1188 = vpack.c.b16 %v1146, %v1144
  %v1189 = vpack.c.b16 %v1147, %v1145
  %v1190 = vpack.c.b16 %v1150, %v1148
  %v1191 = vpack.c.b16 %v1151, %v1149
  %v1192 = vpack.c.b16 %v1154, %v1152
  %v1193 = vpack.c.b16 %v1155, %v1153
  %v1194 = vpack.c.b16 %v1158, %v1156
  %v1195 = vpack.c.b16 %v1159, %v1157
  %v1233 = vsel %vm288, %v1049, 0
  %1235 = vmatprep.subr.bf16.mxu0 %v1161
  %1236 = vmatpush1.bf16.msra.mxu0 %v1160
  %1237 = vmatprep.subr.bf16.mxu0 %v1163
  %1238 = vmatpush1.bf16.msra.mxu0 %v1162
  %1239 = vmatprep.subr.bf16.mxu0 %v1165
  %1240 = vmatpush1.bf16.msra.mxu0 %v1164
  %1241 = vmatprep.subr.bf16.mxu0 %v1167
  %1242 = vmatpush1.bf16.msra.mxu0 %v1166
  %1243 = vmatprep.subr.bf16.mxu0 %v1169
  %1244 = vmatpush1.bf16.msra.mxu0 %v1168
  %1245 = vmatprep.subr.bf16.mxu0 %v1171
  %1246 = vmatpush1.bf16.msra.mxu0 %v1170
  %1247 = vmatprep.subr.bf16.mxu0 %v1173
  %1248 = vmatpush1.bf16.msra.mxu0 %v1172
  %1249 = vmatprep.subr.bf16.mxu0 %v1175
  %1250 = vmatpush1.bf16.msra.mxu0 %v1174
  %1251 = vmatprep.subr.bf16.mxu0 %v1177
  %1252 = vmatpush1.bf16.msra.mxu0 %v1176
  %1253 = vmatprep.subr.bf16.mxu0 %v1179
  %1254 = vmatpush1.bf16.msra.mxu0 %v1178
  %1255 = vmatprep.subr.bf16.mxu0 %v1181
  %1256 = vmatpush1.bf16.msra.mxu0 %v1180
  %1257 = vmatprep.subr.bf16.mxu0 %v1183
  %1258 = vmatpush1.bf16.msra.mxu0 %v1182
  %1259 = vmatprep.subr.bf16.mxu0 %v1185
  %1260 = vmatpush1.bf16.msra.mxu0 %v1184
  %1261 = vmatprep.subr.bf16.mxu0 %v1187
  %1262 = vmatpush1.bf16.msra.mxu0 %v1186
  %1263 = vmatprep.subr.bf16.mxu0 %v1189
  %1264 = vmatpush1.bf16.msra.mxu0 %v1188
  %1265 = vmatprep.subr.bf16.mxu0 %v1191
  %1266 = vmatpush1.bf16.msra.mxu0 %v1190
  %1267 = vmatprep.mubr.bf16.mxu0 %v1042
  %1268 = vmatmul.mubr.bf16.gmra.mrb[0].mxu0 %v1035
  %v1269 = vpop.f32.mrb[0].mxu0
  %v1270 = vadd.f32 0.0, %v1269
  %v1271 = vpop.f32.mrb[0].mxu0
  %v1272 = vadd.f32 0.0, %v1271
  %v1273 = vpop.f32.mrb[0].mxu0
  %v1274 = vpop.f32.mrb[0].mxu0
  %1275 = vdwg.mxu0
  %1276 = vmatprep.subr.bf16.mxu0 %v1193
  %1277 = vmatpush1.bf16.msra.mxu0 %v1192
  %1278 = vmatprep.subr.bf16.mxu0 %v1195
  %1279 = vmatpush1.bf16.msra.mxu0 %v1194
  %1280 = vmatprep.subr.bf16.mxu0 0
  %1281 = vmatpush1.bf16.msra.mxu0 0
  %1282 = vmatprep.subr.bf16.mxu0 0
  %1283 = vmatpush1.bf16.msra.mxu0 0
  %1284 = vmatprep.subr.bf16.mxu0 0
  %1285 = vmatpush1.bf16.msra.mxu0 0
  %1286 = vmatprep.subr.bf16.mxu0 0
  %1287 = vmatpush1.bf16.msra.mxu0 0
  %1288 = vmatprep.subr.bf16.mxu0 0
  %1289 = vmatpush1.bf16.msra.mxu0 0
  %1290 = vmatprep.subr.bf16.mxu0 0
  %1291 = vmatpush1.bf16.msra.mxu0 0
  %1292 = vmatprep.subr.bf16.mxu0 0
  %1293 = vmatpush1.bf16.msra.mxu0 0
  %1294 = vmatprep.subr.bf16.mxu0 0
  %1295 = vmatpush1.bf16.msra.mxu0 0
  %1296 = vmatprep.subr.bf16.mxu0 0
  %1297 = vmatpush1.bf16.msra.mxu0 0
  %1298 = vmatprep.subr.bf16.mxu0 0
  %1299 = vmatpush1.bf16.msra.mxu0 0
  %1300 = vmatprep.subr.bf16.mxu0 0
  %1301 = vmatpush1.bf16.msra.mxu0 0
  %1302 = vmatprep.subr.bf16.mxu0 0
  %1303 = vmatpush1.bf16.msra.mxu0 0
  %1304 = vmatprep.subr.bf16.mxu0 0
  %1305 = vmatpush1.bf16.msra.mxu0 0
  %1306 = vmatprep.subr.bf16.mxu0 0
  %1307 = vmatpush1.bf16.msra.mxu0 0
  %1308 = vmatprep.mubr.bf16.mxu0 0
  %1309 = vmatmul.mubr.bf16.gmra.mrb[0].mxu0 %v1233
  %v1310 = vpop.f32.mrb[0].mxu0
  %v1311 = vadd.f32 %v1270, %v1310
  %v1312 = vpop.f32.mrb[0].mxu0
  %v1313 = vadd.f32 %v1272, %v1312
  %v1314 = vpop.f32.mrb[0].mxu0
  %v1315 = vpop.f32.mrb[0].mxu0
  %1316 = vdwg.mxu0
  %v1317 = vadd.f32 %v982, %v1311
  %v1318 = vadd.f32 %v983, %v1313
  %v1319 = vpack.c.bf16 %v1317, %v1317
  %v1320 = vpack.c.bf16 %v1318, %v1318
  %v1323 = vunpack.c.l.b16 %v1319
  %v1324 = vunpack.c.l.b16 %v1320
  %v1325 = vpack.c.b16 %v1324, %v1323
  %1327 = vst [vmem:[%s3] sm:$0xff] %v1325
  %v1328 = vrot.slane %v1317, 4
  %v1329 = vadd.f32 %v1317, %v1328
  %v1330 = vrot.slane %v1329, 2
  %v1331 = vadd.f32 %v1329, %v1330
  %v1332 = vrot.slane %v1331, 1
  %v1333 = vadd.f32 %v1331, %v1332
  %v1334 = vrot.slane %v1318, 4
  %v1335 = vadd.f32 %v1318, %v1334
  %v1336 = vrot.slane %v1335, 2
  %v1337 = vadd.f32 %v1335, %v1336
  %v1338 = vrot.slane %v1337, 1
  %v1339 = vadd.f32 %v1337, %v1338
  %v1340 = vadd.f32 %v1333, 0.0
  %v1341 = vadd.f32 %v1339, 0.0
  %v1342 = vmul.f32 %v1317, %v1317
  %v1343 = vmul.f32 %v1318, %v1318
  %v1344 = vrot.slane %v1342, 4
  %v1345 = vadd.f32 %v1342, %v1344
  %v1346 = vrot.slane %v1345, 2
  %v1347 = vadd.f32 %v1345, %v1346
  %v1348 = vrot.slane %v1347, 1
  %v1349 = vadd.f32 %v1347, %v1348
  %v1350 = vrot.slane %v1343, 4
  %v1351 = vadd.f32 %v1343, %v1350
  %v1352 = vrot.slane %v1351, 2
  %v1353 = vadd.f32 %v1351, %v1352
  %v1354 = vrot.slane %v1353, 1
  %v1355 = vadd.f32 %v1353, %v1354
  %v1356 = vadd.f32 %v1349, 0.0
  %v1357 = vadd.f32 %v1355, 0.0
  %s1358 = scalar_lea.vmem %s0, 24
  %v1359 = vld [vmem:[%s1358] sm:$0xff]
  %v1360 = vld [vmem:[%s1358 + $0x8] sm:$0xf]
  %v1361 = vld [vmem:[%s1358 + $0xc] sm:$0x11]
  %v1362 = vld [vmem:[%s1358 + $0x14] sm:$0x1]
  %s1363 = scalar_lea.vmem %s1, 24
  %v1364 = vld [vmem:[%s1363] sm:$0xff]
  %v1365 = vld [vmem:[%s1363 + $0x8] sm:$0xf]
  %v1366 = vld [vmem:[%s1363 + $0xc] sm:$0x11]
  %v1367 = vld [vmem:[%s1363 + $0x14] sm:$0x1]
  %v1368 = vld [vmem:[%s2] sm:$0xff]
  %v1369 = vld [vmem:[%s2 + $0x8] sm:$0xff]
  %v1370 = vld [vmem:[%s2 + $0x10] sm:$0xff]
  %v1371 = vld [vmem:[%s2 + $0x18] sm:$0xff]
  %v1372 = vld [vmem:[%s2 + $0x20] sm:$0xff]
  %v1373 = vld [vmem:[%s2 + $0x28] sm:$0xff]
  %v1374 = vld [vmem:[%s2 + $0x30] sm:$0xff]
  %v1375 = vld [vmem:[%s2 + $0x38] sm:$0xff]
  %v1376 = vld [vmem:[%s2 + $0x40] sm:$0xff]
  %v1377 = vld [vmem:[%s2 + $0x48] sm:$0xff]
  %v1378 = vld [vmem:[%s2 + $0x50] sm:$0xff]
  %v1379 = vld [vmem:[%s2 + $0x58] sm:$0xff]
  %v1380 = vld [vmem:[%s2 + $0x60] sm:$0xff]
  %v1381 = vld [vmem:[%s2 + $0x68] sm:$0xff]
  %v1382 = vld [vmem:[%s2 + $0x70] sm:$0xff]
  %v1383 = vld [vmem:[%s2 + $0x78] sm:$0xff]
  %v1384 = vld [vmem:[%s2 + $0x80] sm:$0xff]
  %v1385 = vld [vmem:[%s2 + $0x88] sm:$0xff]
  %v1386 = vld [vmem:[%s2 + $0x90] sm:$0xff]
  %v1387 = vld [vmem:[%s2 + $0x98] sm:$0xff]
  %v1388 = vld [vmem:[%s2 + $0xa0] sm:$0xff]
  %v1389 = vld [vmem:[%s2 + $0xa8] sm:$0xff]
  %v1390 = vld [vmem:[%s2 + $0xb0] sm:$0xff]
  %v1391 = vld [vmem:[%s2 + $0xb8] sm:$0xff]
  %v1392 = vld [vmem:[%s2 + $0xc0] sm:$0xff]
  %v1393 = vld [vmem:[%s2 + $0xc8] sm:$0xff]
  %v1394 = vld [vmem:[%s2 + $0xd0] sm:$0xff]
  %v1395 = vld [vmem:[%s2 + $0xd8] sm:$0xff]
  %v1396 = vld [vmem:[%s2 + $0xe0] sm:$0xff]
  %v1397 = vld [vmem:[%s2 + $0xe8] sm:$0xff]
  %v1398 = vld [vmem:[%s2 + $0xf0] sm:$0xff]
  %v1399 = vld [vmem:[%s2 + $0xf8] sm:$0xff]
  %v1400 = vld [vmem:[%s2 + $0x100] sm:$0xff]
  %v1401 = vld [vmem:[%s2 + $0x108] sm:$0xff]
  %v1402 = vld [vmem:[%s2 + $0x110] sm:$0xff]
  %v1403 = vld [vmem:[%s2 + $0x118] sm:$0xff]
  %v1404 = vld [vmem:[%s61] sm:$0xff]
  %v1405 = vld [vmem:[%s61 + $0x8] sm:$0xff]
  %v1406 = vld [vmem:[%s61 + $0x10] sm:$0xff]
  %v1407 = vld [vmem:[%s61 + $0x18] sm:$0xff]
  %v1408 = vld [vmem:[%s61 + $0x20] sm:$0xff]
  %v1409 = vld [vmem:[%s61 + $0x28] sm:$0xff]
  %v1410 = vld [vmem:[%s61 + $0x30] sm:$0xff]
  %v1411 = vld [vmem:[%s61 + $0x38] sm:$0xff]
  %v1412 = vld [vmem:[%s61 + $0x40] sm:$0xff]
  %v1413 = vld [vmem:[%s61 + $0x48] sm:$0xff]
  %v1414 = vld [vmem:[%s61 + $0x50] sm:$0xff]
  %v1415 = vld [vmem:[%s61 + $0x58] sm:$0xff]
  %v1416 = vld [vmem:[%s61 + $0x60] sm:$0xff]
  %v1417 = vld [vmem:[%s61 + $0x68] sm:$0xff]
  %v1418 = vld [vmem:[%s61 + $0x70] sm:$0xff]
  %v1419 = vld [vmem:[%s61 + $0x78] sm:$0xff]
  %v1420 = vld [vmem:[%s61 + $0x80] sm:$0xff]
  %v1421 = vld [vmem:[%s61 + $0x88] sm:$0xff]
  %v1422 = vld [vmem:[%s61 + $0x90] sm:$0xff]
  %v1423 = vld [vmem:[%s61 + $0x98] sm:$0xff]
  %v1424 = vld [vmem:[%s61 + $0xa0] sm:$0xff]
  %v1425 = vld [vmem:[%s61 + $0xa8] sm:$0xff]
  %v1426 = vld [vmem:[%s61 + $0xb0] sm:$0xff]
  %v1427 = vld [vmem:[%s61 + $0xb8] sm:$0xff]
  %v1428 = vld [vmem:[%s61 + $0xc0] sm:$0xff]
  %v1429 = vld [vmem:[%s61 + $0xc8] sm:$0xff]
  %v1430 = vld [vmem:[%s61 + $0xd0] sm:$0xff]
  %v1431 = vld [vmem:[%s61 + $0xd8] sm:$0xff]
  %v1432 = vld [vmem:[%s61 + $0xe0] sm:$0xff]
  %v1433 = vld [vmem:[%s61 + $0xe8] sm:$0xff]
  %v1434 = vld [vmem:[%s61 + $0xf0] sm:$0xff]
  %v1435 = vld [vmem:[%s61 + $0xf8] sm:$0xff]
  %v1436 = vld [vmem:[%s61 + $0x100] sm:$0xff]
  %v1437 = vld [vmem:[%s61 + $0x108] sm:$0xff]
  %v1438 = vld [vmem:[%s61 + $0x110] sm:$0xff]
  %v1439 = vld [vmem:[%s61 + $0x118] sm:$0xff]
  %v1442 = vunpack.c.l.b16 %v1364
  %v1443 = vunpack.c.h.b16 %v1364
  %v1444 = vunpack.c.l.b16 %v1365
  %v1445 = vpack.c.b16 %v1442, %v1442
  %v1446 = vpack.c.b16 %v1443, %v1443
  %v1447 = vpack.c.b16 %v1444, %v1444
  %v1486 = vunpack.c.l.b16 %v1404
  %v1487 = vunpack.c.h.b16 %v1404
  %v1488 = vunpack.c.l.b16 %v1405
  %v1489 = vunpack.c.h.b16 %v1405
  %v1490 = vunpack.c.l.b16 %v1406
  %v1491 = vunpack.c.h.b16 %v1406
  %v1492 = vunpack.c.l.b16 %v1407
  %v1493 = vunpack.c.h.b16 %v1407
  %v1494 = vunpack.c.l.b16 %v1408
  %v1495 = vunpack.c.h.b16 %v1408
  %v1496 = vunpack.c.l.b16 %v1409
  %v1497 = vunpack.c.h.b16 %v1409
  %v1498 = vunpack.c.l.b16 %v1410
  %v1499 = vunpack.c.h.b16 %v1410
  %v1500 = vunpack.c.l.b16 %v1411
  %v1501 = vunpack.c.h.b16 %v1411
  %v1502 = vunpack.c.l.b16 %v1412
  %v1503 = vunpack.c.h.b16 %v1412
  %v1504 = vunpack.c.l.b16 %v1413
  %v1505 = vunpack.c.h.b16 %v1413
  %v1506 = vunpack.c.l.b16 %v1414
  %v1507 = vunpack.c.h.b16 %v1414
  %v1508 = vunpack.c.l.b16 %v1415
  %v1509 = vunpack.c.h.b16 %v1415
  %v1510 = vunpack.c.l.b16 %v1416
  %v1511 = vunpack.c.h.b16 %v1416
  %v1512 = vunpack.c.l.b16 %v1417
  %v1513 = vunpack.c.h.b16 %v1417
  %v1514 = vunpack.c.l.b16 %v1418
  %v1515 = vunpack.c.h.b16 %v1418
  %v1516 = vunpack.c.l.b16 %v1419
  %v1517 = vunpack.c.h.b16 %v1419
  %v1518 = vunpack.c.l.b16 %v1420
  %v1519 = vunpack.c.h.b16 %v1420
  %v1520 = vunpack.c.l.b16 %v1421
  %v1521 = vunpack.c.h.b16 %v1421
  %v1522 = vunpack.c.l.b16 %v1422
  %v1523 = vunpack.c.h.b16 %v1422
  %v1524 = vunpack.c.l.b16 %v1423
  %v1525 = vunpack.c.h.b16 %v1423
  %v1526 = vunpack.c.l.b16 %v1424
  %v1527 = vunpack.c.h.b16 %v1424
  %v1528 = vunpack.c.l.b16 %v1425
  %v1529 = vunpack.c.h.b16 %v1425
  %v1530 = vunpack.c.l.b16 %v1426
  %v1531 = vunpack.c.h.b16 %v1426
  %v1532 = vunpack.c.l.b16 %v1427
  %v1533 = vunpack.c.h.b16 %v1427
  %v1534 = vunpack.c.l.b16 %v1428
  %v1535 = vunpack.c.h.b16 %v1428
  %v1536 = vunpack.c.l.b16 %v1429
  %v1537 = vunpack.c.h.b16 %v1429
  %v1538 = vunpack.c.l.b16 %v1430
  %v1539 = vunpack.c.h.b16 %v1430
  %v1540 = vunpack.c.l.b16 %v1431
  %v1541 = vunpack.c.h.b16 %v1431
  %v1542 = vunpack.c.l.b16 %v1432
  %v1543 = vunpack.c.h.b16 %v1432
  %v1544 = vunpack.c.l.b16 %v1433
  %v1545 = vunpack.c.h.b16 %v1433
  %v1546 = vunpack.c.l.b16 %v1434
  %v1547 = vunpack.c.h.b16 %v1434
  %v1548 = vunpack.c.l.b16 %v1435
  %v1549 = vunpack.c.h.b16 %v1435
  %v1550 = vunpack.c.l.b16 %v1436
  %v1551 = vunpack.c.h.b16 %v1436
  %v1552 = vunpack.c.l.b16 %v1437
  %v1553 = vunpack.c.h.b16 %v1437
  %v1554 = vunpack.c.l.b16 %v1438
  %v1555 = vunpack.c.h.b16 %v1438
  %v1556 = vunpack.c.l.b16 %v1439
  %v1557 = vunpack.c.h.b16 %v1439
  %v1558 = vpack.c.b16 %v1488, %v1486
  %v1559 = vpack.c.b16 %v1489, %v1487
  %v1560 = vpack.c.b16 %v1492, %v1490
  %v1561 = vpack.c.b16 %v1493, %v1491
  %v1562 = vpack.c.b16 %v1496, %v1494
  %v1563 = vpack.c.b16 %v1497, %v1495
  %v1564 = vpack.c.b16 %v1500, %v1498
  %v1565 = vpack.c.b16 %v1501, %v1499
  %v1566 = vpack.c.b16 %v1504, %v1502
  %v1567 = vpack.c.b16 %v1505, %v1503
  %v1568 = vpack.c.b16 %v1508, %v1506
  %v1569 = vpack.c.b16 %v1509, %v1507
  %v1570 = vpack.c.b16 %v1512, %v1510
  %v1571 = vpack.c.b16 %v1513, %v1511
  %v1572 = vpack.c.b16 %v1516, %v1514
  %v1573 = vpack.c.b16 %v1517, %v1515
  %v1574 = vpack.c.b16 %v1520, %v1518
  %v1575 = vpack.c.b16 %v1521, %v1519
  %v1576 = vpack.c.b16 %v1524, %v1522
  %v1577 = vpack.c.b16 %v1525, %v1523
  %v1578 = vpack.c.b16 %v1528, %v1526
  %v1579 = vpack.c.b16 %v1529, %v1527
  %v1580 = vpack.c.b16 %v1532, %v1530
  %v1581 = vpack.c.b16 %v1533, %v1531
  %v1582 = vpack.c.b16 %v1536, %v1534
  %v1583 = vpack.c.b16 %v1537, %v1535
  %v1584 = vpack.c.b16 %v1540, %v1538
  %v1585 = vpack.c.b16 %v1541, %v1539
  %v1586 = vpack.c.b16 %v1544, %v1542
  %v1587 = vpack.c.b16 %v1545, %v1543
  %v1588 = vpack.c.b16 %v1548, %v1546
  %v1589 = vpack.c.b16 %v1549, %v1547
  %v1590 = vpack.c.b16 %v1552, %v1550
  %v1591 = vpack.c.b16 %v1553, %v1551
  %v1592 = vpack.c.b16 %v1556, %v1554
  %v1593 = vpack.c.b16 %v1557, %v1555
  %v1631 = vsel %vm288, %v1447, 0
  %1633 = vmatprep.subr.bf16.mxu0 %v1559
  %1634 = vmatpush1.bf16.msra.mxu0 %v1558
  %1635 = vmatprep.subr.bf16.mxu0 %v1561
  %1636 = vmatpush1.bf16.msra.mxu0 %v1560
  %1637 = vmatprep.subr.bf16.mxu0 %v1563
  %1638 = vmatpush1.bf16.msra.mxu0 %v1562
  %1639 = vmatprep.subr.bf16.mxu0 %v1565
  %1640 = vmatpush1.bf16.msra.mxu0 %v1564
  %1641 = vmatprep.subr.bf16.mxu0 %v1567
  %1642 = vmatpush1.bf16.msra.mxu0 %v1566
  %1643 = vmatprep.subr.bf16.mxu0 %v1569
  %1644 = vmatpush1.bf16.msra.mxu0 %v1568
  %1645 = vmatprep.subr.bf16.mxu0 %v1571
  %1646 = vmatpush1.bf16.msra.mxu0 %v1570
  %1647 = vmatprep.subr.bf16.mxu0 %v1573
  %1648 = vmatpush1.bf16.msra.mxu0 %v1572
  %1649 = vmatprep.subr.bf16.mxu0 %v1575
  %1650 = vmatpush1.bf16.msra.mxu0 %v1574
  %1651 = vmatprep.subr.bf16.mxu0 %v1577
  %1652 = vmatpush1.bf16.msra.mxu0 %v1576
  %1653 = vmatprep.subr.bf16.mxu0 %v1579
  %1654 = vmatpush1.bf16.msra.mxu0 %v1578
  %1655 = vmatprep.subr.bf16.mxu0 %v1581
  %1656 = vmatpush1.bf16.msra.mxu0 %v1580
  %1657 = vmatprep.subr.bf16.mxu0 %v1583
  %1658 = vmatpush1.bf16.msra.mxu0 %v1582
  %1659 = vmatprep.subr.bf16.mxu0 %v1585
  %1660 = vmatpush1.bf16.msra.mxu0 %v1584
  %1661 = vmatprep.subr.bf16.mxu0 %v1587
  %1662 = vmatpush1.bf16.msra.mxu0 %v1586
  %1663 = vmatprep.subr.bf16.mxu0 %v1589
  %1664 = vmatpush1.bf16.msra.mxu0 %v1588
  %1665 = vmatprep.mubr.bf16.mxu0 %v1446
  %1666 = vmatmul.mubr.bf16.gmra.mrb[0].mxu0 %v1445
  %v1667 = vpop.f32.mrb[0].mxu0
  %v1668 = vadd.f32 0.0, %v1667
  %v1669 = vpop.f32.mrb[0].mxu0
  %v1670 = vadd.f32 0.0, %v1669
  %v1671 = vpop.f32.mrb[0].mxu0
  %v1672 = vpop.f32.mrb[0].mxu0
  %1673 = vdwg.mxu0
  %1674 = vmatprep.subr.bf16.mxu0 %v1591
  %1675 = vmatpush1.bf16.msra.mxu0 %v1590
  %1676 = vmatprep.subr.bf16.mxu0 %v1593
  %1677 = vmatpush1.bf16.msra.mxu0 %v1592
  %1678 = vmatprep.subr.bf16.mxu0 0
  %1679 = vmatpush1.bf16.msra.mxu0 0
  %1680 = vmatprep.subr.bf16.mxu0 0
  %1681 = vmatpush1.bf16.msra.mxu0 0
  %1682 = vmatprep.subr.bf16.mxu0 0
  %1683 = vmatpush1.bf16.msra.mxu0 0
  %1684 = vmatprep.subr.bf16.mxu0 0
  %1685 = vmatpush1.bf16.msra.mxu0 0
  %1686 = vmatprep.subr.bf16.mxu0 0
  %1687 = vmatpush1.bf16.msra.mxu0 0
  %1688 = vmatprep.subr.bf16.mxu0 0
  %1689 = vmatpush1.bf16.msra.mxu0 0
  %1690 = vmatprep.subr.bf16.mxu0 0
  %1691 = vmatpush1.bf16.msra.mxu0 0
  %1692 = vmatprep.subr.bf16.mxu0 0
  %1693 = vmatpush1.bf16.msra.mxu0 0
  %1694 = vmatprep.subr.bf16.mxu0 0
  %1695 = vmatpush1.bf16.msra.mxu0 0
  %1696 = vmatprep.subr.bf16.mxu0 0
  %1697 = vmatpush1.bf16.msra.mxu0 0
  %1698 = vmatprep.subr.bf16.mxu0 0
  %1699 = vmatpush1.bf16.msra.mxu0 0
  %1700 = vmatprep.subr.bf16.mxu0 0
  %1701 = vmatpush1.bf16.msra.mxu0 0
  %1702 = vmatprep.subr.bf16.mxu0 0
  %1703 = vmatpush1.bf16.msra.mxu0 0
  %1704 = vmatprep.subr.bf16.mxu0 0
  %1705 = vmatpush1.bf16.msra.mxu0 0
  %1706 = vmatprep.mubr.bf16.mxu0 0
  %1707 = vmatmul.mubr.bf16.gmra.mrb[0].mxu0 %v1631
  %v1708 = vpop.f32.mrb[0].mxu0
  %v1709 = vadd.f32 %v1668, %v1708
  %v1710 = vpop.f32.mrb[0].mxu0
  %v1711 = vadd.f32 %v1670, %v1710
  %v1712 = vpop.f32.mrb[0].mxu0
  %v1713 = vpop.f32.mrb[0].mxu0
  %1714 = vdwg.mxu0
  %v1717 = vunpack.c.l.b16 %v1359
  %v1718 = vunpack.c.h.b16 %v1359
  %v1719 = vunpack.c.l.b16 %v1360
  %v1720 = vpack.c.b16 %v1717, %v1717
  %v1721 = vpack.c.b16 %v1718, %v1718
  %v1722 = vpack.c.b16 %v1719, %v1719
  %v1761 = vunpack.c.l.b16 %v1368
  %v1762 = vunpack.c.h.b16 %v1368
  %v1763 = vunpack.c.l.b16 %v1369
  %v1764 = vunpack.c.h.b16 %v1369
  %v1765 = vunpack.c.l.b16 %v1370
  %v1766 = vunpack.c.h.b16 %v1370
  %v1767 = vunpack.c.l.b16 %v1371
  %v1768 = vunpack.c.h.b16 %v1371
  %v1769 = vunpack.c.l.b16 %v1372
  %v1770 = vunpack.c.h.b16 %v1372
  %v1771 = vunpack.c.l.b16 %v1373
  %v1772 = vunpack.c.h.b16 %v1373
  %v1773 = vunpack.c.l.b16 %v1374
  %v1774 = vunpack.c.h.b16 %v1374
  %v1775 = vunpack.c.l.b16 %v1375
  %v1776 = vunpack.c.h.b16 %v1375
  %v1777 = vunpack.c.l.b16 %v1376
  %v1778 = vunpack.c.h.b16 %v1376
  %v1779 = vunpack.c.l.b16 %v1377
  %v1780 = vunpack.c.h.b16 %v1377
  %v1781 = vunpack.c.l.b16 %v1378
  %v1782 = vunpack.c.h.b16 %v1378
  %v1783 = vunpack.c.l.b16 %v1379
  %v1784 = vunpack.c.h.b16 %v1379
  %v1785 = vunpack.c.l.b16 %v1380
  %v1786 = vunpack.c.h.b16 %v1380
  %v1787 = vunpack.c.l.b16 %v1381
  %v1788 = vunpack.c.h.b16 %v1381
  %v1789 = vunpack.c.l.b16 %v1382
  %v1790 = vunpack.c.h.b16 %v1382
  %v1791 = vunpack.c.l.b16 %v1383
  %v1792 = vunpack.c.h.b16 %v1383
  %v1793 = vunpack.c.l.b16 %v1384
  %v1794 = vunpack.c.h.b16 %v1384
  %v1795 = vunpack.c.l.b16 %v1385
  %v1796 = vunpack.c.h.b16 %v1385
  %v1797 = vunpack.c.l.b16 %v1386
  %v1798 = vunpack.c.h.b16 %v1386
  %v1799 = vunpack.c.l.b16 %v1387
  %v1800 = vunpack.c.h.b16 %v1387
  %v1801 = vunpack.c.l.b16 %v1388
  %v1802 = vunpack.c.h.b16 %v1388
  %v1803 = vunpack.c.l.b16 %v1389
  %v1804 = vunpack.c.h.b16 %v1389
  %v1805 = vunpack.c.l.b16 %v1390
  %v1806 = vunpack.c.h.b16 %v1390
  %v1807 = vunpack.c.l.b16 %v1391
  %v1808 = vunpack.c.h.b16 %v1391
  %v1809 = vunpack.c.l.b16 %v1392
  %v1810 = vunpack.c.h.b16 %v1392
  %v1811 = vunpack.c.l.b16 %v1393
  %v1812 = vunpack.c.h.b16 %v1393
  %v1813 = vunpack.c.l.b16 %v1394
  %v1814 = vunpack.c.h.b16 %v1394
  %v1815 = vunpack.c.l.b16 %v1395
  %v1816 = vunpack.c.h.b16 %v1395
  %v1817 = vunpack.c.l.b16 %v1396
  %v1818 = vunpack.c.h.b16 %v1396
  %v1819 = vunpack.c.l.b16 %v1397
  %v1820 = vunpack.c.h.b16 %v1397
  %v1821 = vunpack.c.l.b16 %v1398
  %v1822 = vunpack.c.h.b16 %v1398
  %v1823 = vunpack.c.l.b16 %v1399
  %v1824 = vunpack.c.h.b16 %v1399
  %v1825 = vunpack.c.l.b16 %v1400
  %v1826 = vunpack.c.h.b16 %v1400
  %v1827 = vunpack.c.l.b16 %v1401
  %v1828 = vunpack.c.h.b16 %v1401
  %v1829 = vunpack.c.l.b16 %v1402
  %v1830 = vunpack.c.h.b16 %v1402
  %v1831 = vunpack.c.l.b16 %v1403
  %v1832 = vunpack.c.h.b16 %v1403
  %v1833 = vpack.c.b16 %v1763, %v1761
  %v1834 = vpack.c.b16 %v1764, %v1762
  %v1835 = vpack.c.b16 %v1767, %v1765
  %v1836 = vpack.c.b16 %v1768, %v1766
  %v1837 = vpack.c.b16 %v1771, %v1769
  %v1838 = vpack.c.b16 %v1772, %v1770
  %v1839 = vpack.c.b16 %v1775, %v1773
  %v1840 = vpack.c.b16 %v1776, %v1774
  %v1841 = vpack.c.b16 %v1779, %v1777
  %v1842 = vpack.c.b16 %v1780, %v1778
  %v1843 = vpack.c.b16 %v1783, %v1781
  %v1844 = vpack.c.b16 %v1784, %v1782
  %v1845 = vpack.c.b16 %v1787, %v1785
  %v1846 = vpack.c.b16 %v1788, %v1786
  %v1847 = vpack.c.b16 %v1791, %v1789
  %v1848 = vpack.c.b16 %v1792, %v1790
  %v1849 = vpack.c.b16 %v1795, %v1793
  %v1850 = vpack.c.b16 %v1796, %v1794
  %v1851 = vpack.c.b16 %v1799, %v1797
  %v1852 = vpack.c.b16 %v1800, %v1798
  %v1853 = vpack.c.b16 %v1803, %v1801
  %v1854 = vpack.c.b16 %v1804, %v1802
  %v1855 = vpack.c.b16 %v1807, %v1805
  %v1856 = vpack.c.b16 %v1808, %v1806
  %v1857 = vpack.c.b16 %v1811, %v1809
  %v1858 = vpack.c.b16 %v1812, %v1810
  %v1859 = vpack.c.b16 %v1815, %v1813
  %v1860 = vpack.c.b16 %v1816, %v1814
  %v1861 = vpack.c.b16 %v1819, %v1817
  %v1862 = vpack.c.b16 %v1820, %v1818
  %v1863 = vpack.c.b16 %v1823, %v1821
  %v1864 = vpack.c.b16 %v1824, %v1822
  %v1865 = vpack.c.b16 %v1827, %v1825
  %v1866 = vpack.c.b16 %v1828, %v1826
  %v1867 = vpack.c.b16 %v1831, %v1829
  %v1868 = vpack.c.b16 %v1832, %v1830
  %v1906 = vsel %vm288, %v1722, 0
  %1908 = vmatprep.subr.bf16.mxu0 %v1834
  %1909 = vmatpush1.bf16.msra.mxu0 %v1833
  %1910 = vmatprep.subr.bf16.mxu0 %v1836
  %1911 = vmatpush1.bf16.msra.mxu0 %v1835
  %1912 = vmatprep.subr.bf16.mxu0 %v1838
  %1913 = vmatpush1.bf16.msra.mxu0 %v1837
  %1914 = vmatprep.subr.bf16.mxu0 %v1840
  %1915 = vmatpush1.bf16.msra.mxu0 %v1839
  %1916 = vmatprep.subr.bf16.mxu0 %v1842
  %1917 = vmatpush1.bf16.msra.mxu0 %v1841
  %1918 = vmatprep.subr.bf16.mxu0 %v1844
  %1919 = vmatpush1.bf16.msra.mxu0 %v1843
  %1920 = vmatprep.subr.bf16.mxu0 %v1846
  %1921 = vmatpush1.bf16.msra.mxu0 %v1845
  %1922 = vmatprep.subr.bf16.mxu0 %v1848
  %1923 = vmatpush1.bf16.msra.mxu0 %v1847
  %1924 = vmatprep.subr.bf16.mxu0 %v1850
  %1925 = vmatpush1.bf16.msra.mxu0 %v1849
  %1926 = vmatprep.subr.bf16.mxu0 %v1852
  %1927 = vmatpush1.bf16.msra.mxu0 %v1851
  %1928 = vmatprep.subr.bf16.mxu0 %v1854
  %1929 = vmatpush1.bf16.msra.mxu0 %v1853
  %1930 = vmatprep.subr.bf16.mxu0 %v1856
  %1931 = vmatpush1.bf16.msra.mxu0 %v1855
  %1932 = vmatprep.subr.bf16.mxu0 %v1858
  %1933 = vmatpush1.bf16.msra.mxu0 %v1857
  %1934 = vmatprep.subr.bf16.mxu0 %v1860
  %1935 = vmatpush1.bf16.msra.mxu0 %v1859
  %1936 = vmatprep.subr.bf16.mxu0 %v1862
  %1937 = vmatpush1.bf16.msra.mxu0 %v1861
  %1938 = vmatprep.subr.bf16.mxu0 %v1864
  %1939 = vmatpush1.bf16.msra.mxu0 %v1863
  %1940 = vmatprep.mubr.bf16.mxu0 %v1721
  %1941 = vmatmul.mubr.bf16.gmra.mrb[0].mxu0 %v1720
  %v1942 = vpop.f32.mrb[0].mxu0
  %v1943 = vadd.f32 %v1709, %v1942
  %v1944 = vpop.f32.mrb[0].mxu0
  %v1945 = vadd.f32 %v1711, %v1944
  %v1946 = vpop.f32.mrb[0].mxu0
  %v1947 = vpop.f32.mrb[0].mxu0
  %1948 = vdwg.mxu0
  %1949 = vmatprep.subr.bf16.mxu0 %v1866
  %1950 = vmatpush1.bf16.msra.mxu0 %v1865
  %1951 = vmatprep.subr.bf16.mxu0 %v1868
  %1952 = vmatpush1.bf16.msra.mxu0 %v1867
  %1953 = vmatprep.subr.bf16.mxu0 0
  %1954 = vmatpush1.bf16.msra.mxu0 0
  %1955 = vmatprep.subr.bf16.mxu0 0
  %1956 = vmatpush1.bf16.msra.mxu0 0
  %1957 = vmatprep.subr.bf16.mxu0 0
  %1958 = vmatpush1.bf16.msra.mxu0 0
  %1959 = vmatprep.subr.bf16.mxu0 0
  %1960 = vmatpush1.bf16.msra.mxu0 0
  %1961 = vmatprep.subr.bf16.mxu0 0
  %1962 = vmatpush1.bf16.msra.mxu0 0
  %1963 = vmatprep.subr.bf16.mxu0 0
  %1964 = vmatpush1.bf16.msra.mxu0 0
  %1965 = vmatprep.subr.bf16.mxu0 0
  %1966 = vmatpush1.bf16.msra.mxu0 0
  %1967 = vmatprep.subr.bf16.mxu0 0
  %1968 = vmatpush1.bf16.msra.mxu0 0
  %1969 = vmatprep.subr.bf16.mxu0 0
  %1970 = vmatpush1.bf16.msra.mxu0 0
  %1971 = vmatprep.subr.bf16.mxu0 0
  %1972 = vmatpush1.bf16.msra.mxu0 0
  %1973 = vmatprep.subr.bf16.mxu0 0
  %1974 = vmatpush1.bf16.msra.mxu0 0
  %1975 = vmatprep.subr.bf16.mxu0 0
  %1976 = vmatpush1.bf16.msra.mxu0 0
  %1977 = vmatprep.subr.bf16.mxu0 0
  %1978 = vmatpush1.bf16.msra.mxu0 0
  %1979 = vmatprep.subr.bf16.mxu0 0
  %1980 = vmatpush1.bf16.msra.mxu0 0
  %1981 = vmatprep.mubr.bf16.mxu0 0
  %1982 = vmatmul.mubr.bf16.gmra.mrb[0].mxu0 %v1906
  %v1983 = vpop.f32.mrb[0].mxu0
  %v1984 = vadd.f32 %v1943, %v1983
  %v1985 = vpop.f32.mrb[0].mxu0
  %v1986 = vadd.f32 %v1945, %v1985
  %v1987 = vpop.f32.mrb[0].mxu0
  %v1988 = vpop.f32.mrb[0].mxu0
  %1989 = vdwg.mxu0
  %v1990 = vld [vmem:[%s649] sm:$0xff]
  %v1991 = vld [vmem:[%s649 + $0x8] sm:$0xff]
  %v1992 = vld [vmem:[%s649 + $0x10] sm:$0xff]
  %v1993 = vld [vmem:[%s649 + $0x18] sm:$0xff]
  %v1994 = vld [vmem:[%s649 + $0x20] sm:$0xff]
  %v1995 = vld [vmem:[%s649 + $0x28] sm:$0xff]
  %v1996 = vld [vmem:[%s649 + $0x30] sm:$0xff]
  %v1997 = vld [vmem:[%s649 + $0x38] sm:$0xff]
  %v1998 = vld [vmem:[%s649 + $0x40] sm:$0xff]
  %v1999 = vld [vmem:[%s649 + $0x48] sm:$0xff]
  %v2000 = vld [vmem:[%s649 + $0x50] sm:$0xff]
  %v2001 = vld [vmem:[%s649 + $0x58] sm:$0xff]
  %v2002 = vld [vmem:[%s649 + $0x60] sm:$0xff]
  %v2003 = vld [vmem:[%s649 + $0x68] sm:$0xff]
  %v2004 = vld [vmem:[%s649 + $0x70] sm:$0xff]
  %v2005 = vld [vmem:[%s649 + $0x78] sm:$0xff]
  %v2006 = vld [vmem:[%s649 + $0x80] sm:$0xff]
  %v2007 = vld [vmem:[%s649 + $0x88] sm:$0xff]
  %v2008 = vld [vmem:[%s649 + $0x90] sm:$0xff]
  %v2009 = vld [vmem:[%s649 + $0x98] sm:$0xff]
  %v2010 = vld [vmem:[%s649 + $0xa0] sm:$0xff]
  %v2011 = vld [vmem:[%s649 + $0xa8] sm:$0xff]
  %v2012 = vld [vmem:[%s649 + $0xb0] sm:$0xff]
  %v2013 = vld [vmem:[%s649 + $0xb8] sm:$0xff]
  %v2014 = vld [vmem:[%s649 + $0xc0] sm:$0xff]
  %v2015 = vld [vmem:[%s649 + $0xc8] sm:$0xff]
  %v2016 = vld [vmem:[%s649 + $0xd0] sm:$0xff]
  %v2017 = vld [vmem:[%s649 + $0xd8] sm:$0xff]
  %v2018 = vld [vmem:[%s649 + $0xe0] sm:$0xff]
  %v2019 = vld [vmem:[%s649 + $0xe8] sm:$0xff]
  %v2020 = vld [vmem:[%s649 + $0xf0] sm:$0xff]
  %v2021 = vld [vmem:[%s649 + $0xf8] sm:$0xff]
  %v2022 = vld [vmem:[%s649 + $0x100] sm:$0xff]
  %v2023 = vld [vmem:[%s649 + $0x108] sm:$0xff]
  %v2024 = vld [vmem:[%s649 + $0x110] sm:$0xff]
  %v2025 = vld [vmem:[%s649 + $0x118] sm:$0xff]
  %v2028 = vunpack.c.l.b16 %v1361
  %v2029 = vunpack.c.h.b16 %v1361
  %v2030 = vunpack.c.l.b16 %v1362
  %v2031 = vpack.c.b16 %v2028, %v1717
  %v2032 = vpack.c.b16 %v2029, %v1718
  %v2033 = vpack.c.b16 %v2030, %v1719
  %v2035 = vshrl.u32 %v2031, 16
  %v2037 = vshll.u32 %v2031, 16
  %v2039 = vrot.slane %v2037, 1
  %v2040 = vor.u32 %v2035, %v2039
  %v2042 = vshrl.u32 %v2032, 16
  %v2044 = vshll.u32 %v2032, 16
  %v2046 = vrot.slane %v2044, 1
  %v2047 = vor.u32 %v2042, %v2046
  %v2049 = vshrl.u32 %v2033, 16
  %v2051 = vshll.u32 %v2033, 16
  %v2053 = vrot.slane %v2051, 1
  %v2054 = vor.u32 %v2049, %v2053
  %v2093 = vunpack.c.l.b16 %v1990
  %v2094 = vunpack.c.h.b16 %v1990
  %v2095 = vunpack.c.l.b16 %v1991
  %v2096 = vunpack.c.h.b16 %v1991
  %v2097 = vunpack.c.l.b16 %v1992
  %v2098 = vunpack.c.h.b16 %v1992
  %v2099 = vunpack.c.l.b16 %v1993
  %v2100 = vunpack.c.h.b16 %v1993
  %v2101 = vunpack.c.l.b16 %v1994
  %v2102 = vunpack.c.h.b16 %v1994
  %v2103 = vunpack.c.l.b16 %v1995
  %v2104 = vunpack.c.h.b16 %v1995
  %v2105 = vunpack.c.l.b16 %v1996
  %v2106 = vunpack.c.h.b16 %v1996
  %v2107 = vunpack.c.l.b16 %v1997
  %v2108 = vunpack.c.h.b16 %v1997
  %v2109 = vunpack.c.l.b16 %v1998
  %v2110 = vunpack.c.h.b16 %v1998
  %v2111 = vunpack.c.l.b16 %v1999
  %v2112 = vunpack.c.h.b16 %v1999
  %v2113 = vunpack.c.l.b16 %v2000
  %v2114 = vunpack.c.h.b16 %v2000
  %v2115 = vunpack.c.l.b16 %v2001
  %v2116 = vunpack.c.h.b16 %v2001
  %v2117 = vunpack.c.l.b16 %v2002
  %v2118 = vunpack.c.h.b16 %v2002
  %v2119 = vunpack.c.l.b16 %v2003
  %v2120 = vunpack.c.h.b16 %v2003
  %v2121 = vunpack.c.l.b16 %v2004
  %v2122 = vunpack.c.h.b16 %v2004
  %v2123 = vunpack.c.l.b16 %v2005
  %v2124 = vunpack.c.h.b16 %v2005
  %v2125 = vunpack.c.l.b16 %v2006
  %v2126 = vunpack.c.h.b16 %v2006
  %v2127 = vunpack.c.l.b16 %v2007
  %v2128 = vunpack.c.h.b16 %v2007
  %v2129 = vunpack.c.l.b16 %v2008
  %v2130 = vunpack.c.h.b16 %v2008
  %v2131 = vunpack.c.l.b16 %v2009
  %v2132 = vunpack.c.h.b16 %v2009
  %v2133 = vunpack.c.l.b16 %v2010
  %v2134 = vunpack.c.h.b16 %v2010
  %v2135 = vunpack.c.l.b16 %v2011
  %v2136 = vunpack.c.h.b16 %v2011
  %v2137 = vunpack.c.l.b16 %v2012
  %v2138 = vunpack.c.h.b16 %v2012
  %v2139 = vunpack.c.l.b16 %v2013
  %v2140 = vunpack.c.h.b16 %v2013
  %v2141 = vunpack.c.l.b16 %v2014
  %v2142 = vunpack.c.h.b16 %v2014
  %v2143 = vunpack.c.l.b16 %v2015
  %v2144 = vunpack.c.h.b16 %v2015
  %v2145 = vunpack.c.l.b16 %v2016
  %v2146 = vunpack.c.h.b16 %v2016
  %v2147 = vunpack.c.l.b16 %v2017
  %v2148 = vunpack.c.h.b16 %v2017
  %v2149 = vunpack.c.l.b16 %v2018
  %v2150 = vunpack.c.h.b16 %v2018
  %v2151 = vunpack.c.l.b16 %v2019
  %v2152 = vunpack.c.h.b16 %v2019
  %v2153 = vunpack.c.l.b16 %v2020
  %v2154 = vunpack.c.h.b16 %v2020
  %v2155 = vunpack.c.l.b16 %v2021
  %v2156 = vunpack.c.h.b16 %v2021
  %v2157 = vunpack.c.l.b16 %v2022
  %v2158 = vunpack.c.h.b16 %v2022
  %v2159 = vunpack.c.l.b16 %v2023
  %v2160 = vunpack.c.h.b16 %v2023
  %v2161 = vunpack.c.l.b16 %v2024
  %v2162 = vunpack.c.h.b16 %v2024
  %v2163 = vunpack.c.l.b16 %v2025
  %v2164 = vunpack.c.h.b16 %v2025
  %v2165 = vpack.c.b16 %v2095, %v2093
  %v2166 = vpack.c.b16 %v2096, %v2094
  %v2167 = vpack.c.b16 %v2099, %v2097
  %v2168 = vpack.c.b16 %v2100, %v2098
  %v2169 = vpack.c.b16 %v2103, %v2101
  %v2170 = vpack.c.b16 %v2104, %v2102
  %v2171 = vpack.c.b16 %v2107, %v2105
  %v2172 = vpack.c.b16 %v2108, %v2106
  %v2173 = vpack.c.b16 %v2111, %v2109
  %v2174 = vpack.c.b16 %v2112, %v2110
  %v2175 = vpack.c.b16 %v2115, %v2113
  %v2176 = vpack.c.b16 %v2116, %v2114
  %v2177 = vpack.c.b16 %v2119, %v2117
  %v2178 = vpack.c.b16 %v2120, %v2118
  %v2179 = vpack.c.b16 %v2123, %v2121
  %v2180 = vpack.c.b16 %v2124, %v2122
  %v2181 = vpack.c.b16 %v2127, %v2125
  %v2182 = vpack.c.b16 %v2128, %v2126
  %v2183 = vpack.c.b16 %v2131, %v2129
  %v2184 = vpack.c.b16 %v2132, %v2130
  %v2185 = vpack.c.b16 %v2135, %v2133
  %v2186 = vpack.c.b16 %v2136, %v2134
  %v2187 = vpack.c.b16 %v2139, %v2137
  %v2188 = vpack.c.b16 %v2140, %v2138
  %v2189 = vpack.c.b16 %v2143, %v2141
  %v2190 = vpack.c.b16 %v2144, %v2142
  %v2191 = vpack.c.b16 %v2147, %v2145
  %v2192 = vpack.c.b16 %v2148, %v2146
  %v2193 = vpack.c.b16 %v2151, %v2149
  %v2194 = vpack.c.b16 %v2152, %v2150
  %v2195 = vpack.c.b16 %v2155, %v2153
  %v2196 = vpack.c.b16 %v2156, %v2154
  %v2197 = vpack.c.b16 %v2159, %v2157
  %v2198 = vpack.c.b16 %v2160, %v2158
  %v2199 = vpack.c.b16 %v2163, %v2161
  %v2200 = vpack.c.b16 %v2164, %v2162
  %v2238 = vsel %vm288, %v2054, 0
  %2240 = vmatprep.subr.bf16.mxu0 %v2166
  %2241 = vmatpush1.bf16.msra.mxu0 %v2165
  %2242 = vmatprep.subr.bf16.mxu0 %v2168
  %2243 = vmatpush1.bf16.msra.mxu0 %v2167
  %2244 = vmatprep.subr.bf16.mxu0 %v2170
  %2245 = vmatpush1.bf16.msra.mxu0 %v2169
  %2246 = vmatprep.subr.bf16.mxu0 %v2172
  %2247 = vmatpush1.bf16.msra.mxu0 %v2171
  %2248 = vmatprep.subr.bf16.mxu0 %v2174
  %2249 = vmatpush1.bf16.msra.mxu0 %v2173
  %2250 = vmatprep.subr.bf16.mxu0 %v2176
  %2251 = vmatpush1.bf16.msra.mxu0 %v2175
  %2252 = vmatprep.subr.bf16.mxu0 %v2178
  %2253 = vmatpush1.bf16.msra.mxu0 %v2177
  %2254 = vmatprep.subr.bf16.mxu0 %v2180
  %2255 = vmatpush1.bf16.msra.mxu0 %v2179
  %2256 = vmatprep.subr.bf16.mxu0 %v2182
  %2257 = vmatpush1.bf16.msra.mxu0 %v2181
  %2258 = vmatprep.subr.bf16.mxu0 %v2184
  %2259 = vmatpush1.bf16.msra.mxu0 %v2183
  %2260 = vmatprep.subr.bf16.mxu0 %v2186
  %2261 = vmatpush1.bf16.msra.mxu0 %v2185
  %2262 = vmatprep.subr.bf16.mxu0 %v2188
  %2263 = vmatpush1.bf16.msra.mxu0 %v2187
  %2264 = vmatprep.subr.bf16.mxu0 %v2190
  %2265 = vmatpush1.bf16.msra.mxu0 %v2189
  %2266 = vmatprep.subr.bf16.mxu0 %v2192
  %2267 = vmatpush1.bf16.msra.mxu0 %v2191
  %2268 = vmatprep.subr.bf16.mxu0 %v2194
  %2269 = vmatpush1.bf16.msra.mxu0 %v2193
  %2270 = vmatprep.subr.bf16.mxu0 %v2196
  %2271 = vmatpush1.bf16.msra.mxu0 %v2195
  %2272 = vmatprep.mubr.bf16.mxu0 %v2047
  %2273 = vmatmul.mubr.bf16.gmra.mrb[0].mxu0 %v2040
  %v2274 = vpop.f32.mrb[0].mxu0
  %v2275 = vadd.f32 0.0, %v2274
  %v2276 = vpop.f32.mrb[0].mxu0
  %v2277 = vadd.f32 0.0, %v2276
  %v2278 = vpop.f32.mrb[0].mxu0
  %v2279 = vpop.f32.mrb[0].mxu0
  %2280 = vdwg.mxu0
  %2281 = vmatprep.subr.bf16.mxu0 %v2198
  %2282 = vmatpush1.bf16.msra.mxu0 %v2197
  %2283 = vmatprep.subr.bf16.mxu0 %v2200
  %2284 = vmatpush1.bf16.msra.mxu0 %v2199
  %2285 = vmatprep.subr.bf16.mxu0 0
  %2286 = vmatpush1.bf16.msra.mxu0 0
  %2287 = vmatprep.subr.bf16.mxu0 0
  %2288 = vmatpush1.bf16.msra.mxu0 0
  %2289 = vmatprep.subr.bf16.mxu0 0
  %2290 = vmatpush1.bf16.msra.mxu0 0
  %2291 = vmatprep.subr.bf16.mxu0 0
  %2292 = vmatpush1.bf16.msra.mxu0 0
  %2293 = vmatprep.subr.bf16.mxu0 0
  %2294 = vmatpush1.bf16.msra.mxu0 0
  %2295 = vmatprep.subr.bf16.mxu0 0
  %2296 = vmatpush1.bf16.msra.mxu0 0
  %2297 = vmatprep.subr.bf16.mxu0 0
  %2298 = vmatpush1.bf16.msra.mxu0 0
  %2299 = vmatprep.subr.bf16.mxu0 0
  %2300 = vmatpush1.bf16.msra.mxu0 0
  %2301 = vmatprep.subr.bf16.mxu0 0
  %2302 = vmatpush1.bf16.msra.mxu0 0
  %2303 = vmatprep.subr.bf16.mxu0 0
  %2304 = vmatpush1.bf16.msra.mxu0 0
  %2305 = vmatprep.subr.bf16.mxu0 0
  %2306 = vmatpush1.bf16.msra.mxu0 0
  %2307 = vmatprep.subr.bf16.mxu0 0
  %2308 = vmatpush1.bf16.msra.mxu0 0
  %2309 = vmatprep.subr.bf16.mxu0 0
  %2310 = vmatpush1.bf16.msra.mxu0 0
  %2311 = vmatprep.subr.bf16.mxu0 0
  %2312 = vmatpush1.bf16.msra.mxu0 0
  %2313 = vmatprep.mubr.bf16.mxu0 0
  %2314 = vmatmul.mubr.bf16.gmra.mrb[0].mxu0 %v2238
  %v2315 = vpop.f32.mrb[0].mxu0
  %v2316 = vadd.f32 %v2275, %v2315
  %v2317 = vpop.f32.mrb[0].mxu0
  %v2318 = vadd.f32 %v2277, %v2317
  %v2319 = vpop.f32.mrb[0].mxu0
  %v2320 = vpop.f32.mrb[0].mxu0
  %2321 = vdwg.mxu0
  %v2322 = vadd.f32 %v1984, %v2316
  %v2323 = vadd.f32 %v1986, %v2318
  %v2324 = vld [vmem:[%s984] sm:$0xff]
  %v2325 = vld [vmem:[%s984 + $0x8] sm:$0xff]
  %v2326 = vld [vmem:[%s984 + $0x10] sm:$0xff]
  %v2327 = vld [vmem:[%s984 + $0x18] sm:$0xff]
  %v2328 = vld [vmem:[%s984 + $0x20] sm:$0xff]
  %v2329 = vld [vmem:[%s984 + $0x28] sm:$0xff]
  %v2330 = vld [vmem:[%s984 + $0x30] sm:$0xff]
  %v2331 = vld [vmem:[%s984 + $0x38] sm:$0xff]
  %v2332 = vld [vmem:[%s984 + $0x40] sm:$0xff]
  %v2333 = vld [vmem:[%s984 + $0x48] sm:$0xff]
  %v2334 = vld [vmem:[%s984 + $0x50] sm:$0xff]
  %v2335 = vld [vmem:[%s984 + $0x58] sm:$0xff]
  %v2336 = vld [vmem:[%s984 + $0x60] sm:$0xff]
  %v2337 = vld [vmem:[%s984 + $0x68] sm:$0xff]
  %v2338 = vld [vmem:[%s984 + $0x70] sm:$0xff]
  %v2339 = vld [vmem:[%s984 + $0x78] sm:$0xff]
  %v2340 = vld [vmem:[%s984 + $0x80] sm:$0xff]
  %v2341 = vld [vmem:[%s984 + $0x88] sm:$0xff]
  %v2342 = vld [vmem:[%s984 + $0x90] sm:$0xff]
  %v2343 = vld [vmem:[%s984 + $0x98] sm:$0xff]
  %v2344 = vld [vmem:[%s984 + $0xa0] sm:$0xff]
  %v2345 = vld [vmem:[%s984 + $0xa8] sm:$0xff]
  %v2346 = vld [vmem:[%s984 + $0xb0] sm:$0xff]
  %v2347 = vld [vmem:[%s984 + $0xb8] sm:$0xff]
  %v2348 = vld [vmem:[%s984 + $0xc0] sm:$0xff]
  %v2349 = vld [vmem:[%s984 + $0xc8] sm:$0xff]
  %v2350 = vld [vmem:[%s984 + $0xd0] sm:$0xff]
  %v2351 = vld [vmem:[%s984 + $0xd8] sm:$0xff]
  %v2352 = vld [vmem:[%s984 + $0xe0] sm:$0xff]
  %v2353 = vld [vmem:[%s984 + $0xe8] sm:$0xff]
  %v2354 = vld [vmem:[%s984 + $0xf0] sm:$0xff]
  %v2355 = vld [vmem:[%s984 + $0xf8] sm:$0xff]
  %v2356 = vld [vmem:[%s984 + $0x100] sm:$0xff]
  %v2357 = vld [vmem:[%s984 + $0x108] sm:$0xff]
  %v2358 = vld [vmem:[%s984 + $0x110] sm:$0xff]
  %v2359 = vld [vmem:[%s984 + $0x118] sm:$0xff]
  %v2362 = vunpack.c.l.b16 %v1366
  %v2363 = vunpack.c.h.b16 %v1366
  %v2364 = vunpack.c.l.b16 %v1367
  %v2365 = vpack.c.b16 %v2362, %v1442
  %v2366 = vpack.c.b16 %v2363, %v1443
  %v2367 = vpack.c.b16 %v2364, %v1444
  %v2369 = vshrl.u32 %v2365, 16
  %v2371 = vshll.u32 %v2365, 16
  %v2373 = vrot.slane %v2371, 1
  %v2374 = vor.u32 %v2369, %v2373
  %v2376 = vshrl.u32 %v2366, 16
  %v2378 = vshll.u32 %v2366, 16
  %v2380 = vrot.slane %v2378, 1
  %v2381 = vor.u32 %v2376, %v2380
  %v2383 = vshrl.u32 %v2367, 16
  %v2385 = vshll.u32 %v2367, 16
  %v2387 = vrot.slane %v2385, 1
  %v2388 = vor.u32 %v2383, %v2387
  %v2427 = vunpack.c.l.b16 %v2324
  %v2428 = vunpack.c.h.b16 %v2324
  %v2429 = vunpack.c.l.b16 %v2325
  %v2430 = vunpack.c.h.b16 %v2325
  %v2431 = vunpack.c.l.b16 %v2326
  %v2432 = vunpack.c.h.b16 %v2326
  %v2433 = vunpack.c.l.b16 %v2327
  %v2434 = vunpack.c.h.b16 %v2327
  %v2435 = vunpack.c.l.b16 %v2328
  %v2436 = vunpack.c.h.b16 %v2328
  %v2437 = vunpack.c.l.b16 %v2329
  %v2438 = vunpack.c.h.b16 %v2329
  %v2439 = vunpack.c.l.b16 %v2330
  %v2440 = vunpack.c.h.b16 %v2330
  %v2441 = vunpack.c.l.b16 %v2331
  %v2442 = vunpack.c.h.b16 %v2331
  %v2443 = vunpack.c.l.b16 %v2332
  %v2444 = vunpack.c.h.b16 %v2332
  %v2445 = vunpack.c.l.b16 %v2333
  %v2446 = vunpack.c.h.b16 %v2333
  %v2447 = vunpack.c.l.b16 %v2334
  %v2448 = vunpack.c.h.b16 %v2334
  %v2449 = vunpack.c.l.b16 %v2335
  %v2450 = vunpack.c.h.b16 %v2335
  %v2451 = vunpack.c.l.b16 %v2336
  %v2452 = vunpack.c.h.b16 %v2336
  %v2453 = vunpack.c.l.b16 %v2337
  %v2454 = vunpack.c.h.b16 %v2337
  %v2455 = vunpack.c.l.b16 %v2338
  %v2456 = vunpack.c.h.b16 %v2338
  %v2457 = vunpack.c.l.b16 %v2339
  %v2458 = vunpack.c.h.b16 %v2339
  %v2459 = vunpack.c.l.b16 %v2340
  %v2460 = vunpack.c.h.b16 %v2340
  %v2461 = vunpack.c.l.b16 %v2341
  %v2462 = vunpack.c.h.b16 %v2341
  %v2463 = vunpack.c.l.b16 %v2342
  %v2464 = vunpack.c.h.b16 %v2342
  %v2465 = vunpack.c.l.b16 %v2343
  %v2466 = vunpack.c.h.b16 %v2343
  %v2467 = vunpack.c.l.b16 %v2344
  %v2468 = vunpack.c.h.b16 %v2344
  %v2469 = vunpack.c.l.b16 %v2345
  %v2470 = vunpack.c.h.b16 %v2345
  %v2471 = vunpack.c.l.b16 %v2346
  %v2472 = vunpack.c.h.b16 %v2346
  %v2473 = vunpack.c.l.b16 %v2347
  %v2474 = vunpack.c.h.b16 %v2347
  %v2475 = vunpack.c.l.b16 %v2348
  %v2476 = vunpack.c.h.b16 %v2348
  %v2477 = vunpack.c.l.b16 %v2349
  %v2478 = vunpack.c.h.b16 %v2349
  %v2479 = vunpack.c.l.b16 %v2350
  %v2480 = vunpack.c.h.b16 %v2350
  %v2481 = vunpack.c.l.b16 %v2351
  %v2482 = vunpack.c.h.b16 %v2351
  %v2483 = vunpack.c.l.b16 %v2352
  %v2484 = vunpack.c.h.b16 %v2352
  %v2485 = vunpack.c.l.b16 %v2353
  %v2486 = vunpack.c.h.b16 %v2353
  %v2487 = vunpack.c.l.b16 %v2354
  %v2488 = vunpack.c.h.b16 %v2354
  %v2489 = vunpack.c.l.b16 %v2355
  %v2490 = vunpack.c.h.b16 %v2355
  %v2491 = vunpack.c.l.b16 %v2356
  %v2492 = vunpack.c.h.b16 %v2356
  %v2493 = vunpack.c.l.b16 %v2357
  %v2494 = vunpack.c.h.b16 %v2357
  %v2495 = vunpack.c.l.b16 %v2358
  %v2496 = vunpack.c.h.b16 %v2358
  %v2497 = vunpack.c.l.b16 %v2359
  %v2498 = vunpack.c.h.b16 %v2359
  %v2499 = vpack.c.b16 %v2429, %v2427
  %v2500 = vpack.c.b16 %v2430, %v2428
  %v2501 = vpack.c.b16 %v2433, %v2431
  %v2502 = vpack.c.b16 %v2434, %v2432
  %v2503 = vpack.c.b16 %v2437, %v2435
  %v2504 = vpack.c.b16 %v2438, %v2436
  %v2505 = vpack.c.b16 %v2441, %v2439
  %v2506 = vpack.c.b16 %v2442, %v2440
  %v2507 = vpack.c.b16 %v2445, %v2443
  %v2508 = vpack.c.b16 %v2446, %v2444
  %v2509 = vpack.c.b16 %v2449, %v2447
  %v2510 = vpack.c.b16 %v2450, %v2448
  %v2511 = vpack.c.b16 %v2453, %v2451
  %v2512 = vpack.c.b16 %v2454, %v2452
  %v2513 = vpack.c.b16 %v2457, %v2455
  %v2514 = vpack.c.b16 %v2458, %v2456
  %v2515 = vpack.c.b16 %v2461, %v2459
  %v2516 = vpack.c.b16 %v2462, %v2460
  %v2517 = vpack.c.b16 %v2465, %v2463
  %v2518 = vpack.c.b16 %v2466, %v2464
  %v2519 = vpack.c.b16 %v2469, %v2467
  %v2520 = vpack.c.b16 %v2470, %v2468
  %v2521 = vpack.c.b16 %v2473, %v2471
  %v2522 = vpack.c.b16 %v2474, %v2472
  %v2523 = vpack.c.b16 %v2477, %v2475
  %v2524 = vpack.c.b16 %v2478, %v2476
  %v2525 = vpack.c.b16 %v2481, %v2479
  %v2526 = vpack.c.b16 %v2482, %v2480
  %v2527 = vpack.c.b16 %v2485, %v2483
  %v2528 = vpack.c.b16 %v2486, %v2484
  %v2529 = vpack.c.b16 %v2489, %v2487
  %v2530 = vpack.c.b16 %v2490, %v2488
  %v2531 = vpack.c.b16 %v2493, %v2491
  %v2532 = vpack.c.b16 %v2494, %v2492
  %v2533 = vpack.c.b16 %v2497, %v2495
  %v2534 = vpack.c.b16 %v2498, %v2496
  %v2572 = vsel %vm288, %v2388, 0
  %2574 = vmatprep.subr.bf16.mxu0 %v2500
  %2575 = vmatpush1.bf16.msra.mxu0 %v2499
  %2576 = vmatprep.subr.bf16.mxu0 %v2502
  %2577 = vmatpush1.bf16.msra.mxu0 %v2501
  %2578 = vmatprep.subr.bf16.mxu0 %v2504
  %2579 = vmatpush1.bf16.msra.mxu0 %v2503
  %2580 = vmatprep.subr.bf16.mxu0 %v2506
  %2581 = vmatpush1.bf16.msra.mxu0 %v2505
  %2582 = vmatprep.subr.bf16.mxu0 %v2508
  %2583 = vmatpush1.bf16.msra.mxu0 %v2507
  %2584 = vmatprep.subr.bf16.mxu0 %v2510
  %2585 = vmatpush1.bf16.msra.mxu0 %v2509
  %2586 = vmatprep.subr.bf16.mxu0 %v2512
  %2587 = vmatpush1.bf16.msra.mxu0 %v2511
  %2588 = vmatprep.subr.bf16.mxu0 %v2514
  %2589 = vmatpush1.bf16.msra.mxu0 %v2513
  %2590 = vmatprep.subr.bf16.mxu0 %v2516
  %2591 = vmatpush1.bf16.msra.mxu0 %v2515
  %2592 = vmatprep.subr.bf16.mxu0 %v2518
  %2593 = vmatpush1.bf16.msra.mxu0 %v2517
  %2594 = vmatprep.subr.bf16.mxu0 %v2520
  %2595 = vmatpush1.bf16.msra.mxu0 %v2519
  %2596 = vmatprep.subr.bf16.mxu0 %v2522
  %2597 = vmatpush1.bf16.msra.mxu0 %v2521
  %2598 = vmatprep.subr.bf16.mxu0 %v2524
  %2599 = vmatpush1.bf16.msra.mxu0 %v2523
  %2600 = vmatprep.subr.bf16.mxu0 %v2526
  %2601 = vmatpush1.bf16.msra.mxu0 %v2525
  %2602 = vmatprep.subr.bf16.mxu0 %v2528
  %2603 = vmatpush1.bf16.msra.mxu0 %v2527
  %2604 = vmatprep.subr.bf16.mxu0 %v2530
  %2605 = vmatpush1.bf16.msra.mxu0 %v2529
  %2606 = vmatprep.mubr.bf16.mxu0 %v2381
  %2607 = vmatmul.mubr.bf16.gmra.mrb[0].mxu0 %v2374
  %v2608 = vpop.f32.mrb[0].mxu0
  %v2609 = vadd.f32 0.0, %v2608
  %v2610 = vpop.f32.mrb[0].mxu0
  %v2611 = vadd.f32 0.0, %v2610
  %v2612 = vpop.f32.mrb[0].mxu0
  %v2613 = vpop.f32.mrb[0].mxu0
  %2614 = vdwg.mxu0
  %2615 = vmatprep.subr.bf16.mxu0 %v2532
  %2616 = vmatpush1.bf16.msra.mxu0 %v2531
  %2617 = vmatprep.subr.bf16.mxu0 %v2534
  %2618 = vmatpush1.bf16.msra.mxu0 %v2533
  %2619 = vmatprep.subr.bf16.mxu0 0
  %2620 = vmatpush1.bf16.msra.mxu0 0
  %2621 = vmatprep.subr.bf16.mxu0 0
  %2622 = vmatpush1.bf16.msra.mxu0 0
  %2623 = vmatprep.subr.bf16.mxu0 0
  %2624 = vmatpush1.bf16.msra.mxu0 0
  %2625 = vmatprep.subr.bf16.mxu0 0
  %2626 = vmatpush1.bf16.msra.mxu0 0
  %2627 = vmatprep.subr.bf16.mxu0 0
  %2628 = vmatpush1.bf16.msra.mxu0 0
  %2629 = vmatprep.subr.bf16.mxu0 0
  %2630 = vmatpush1.bf16.msra.mxu0 0
  %2631 = vmatprep.subr.bf16.mxu0 0
  %2632 = vmatpush1.bf16.msra.mxu0 0
  %2633 = vmatprep.subr.bf16.mxu0 0
  %2634 = vmatpush1.bf16.msra.mxu0 0
  %2635 = vmatprep.subr.bf16.mxu0 0
  %2636 = vmatpush1.bf16.msra.mxu0 0
  %2637 = vmatprep.subr.bf16.mxu0 0
  %2638 = vmatpush1.bf16.msra.mxu0 0
  %2639 = vmatprep.subr.bf16.mxu0 0
  %2640 = vmatpush1.bf16.msra.mxu0 0
  %2641 = vmatprep.subr.bf16.mxu0 0
  %2642 = vmatpush1.bf16.msra.mxu0 0
  %2643 = vmatprep.subr.bf16.mxu0 0
  %2644 = vmatpush1.bf16.msra.mxu0 0
  %2645 = vmatprep.subr.bf16.mxu0 0
  %2646 = vmatpush1.bf16.msra.mxu0 0
  %2647 = vmatprep.mubr.bf16.mxu0 0
  %2648 = vmatmul.mubr.bf16.gmra.mrb[0].mxu0 %v2572
  %v2649 = vpop.f32.mrb[0].mxu0
  %v2650 = vadd.f32 %v2609, %v2649
  %v2651 = vpop.f32.mrb[0].mxu0
  %v2652 = vadd.f32 %v2611, %v2651
  %v2653 = vpop.f32.mrb[0].mxu0
  %v2654 = vpop.f32.mrb[0].mxu0
  %2655 = vdwg.mxu0
  %v2656 = vadd.f32 %v2322, %v2650
  %v2657 = vadd.f32 %v2323, %v2652
  %v2658 = vpack.c.bf16 %v2656, %v2656
  %v2659 = vpack.c.bf16 %v2657, %v2657
  %v2662 = vunpack.c.l.b16 %v2658
  %v2663 = vunpack.c.l.b16 %v2659
  %v2664 = vpack.c.b16 %v2663, %v2662
  %s2666 = scalar_lea.vmem %s3, 8
  %2667 = vst [vmem:[%s2666] sm:$0xff] %v2664
  %v2668 = vrot.slane %v2656, 4
  %v2669 = vadd.f32 %v2656, %v2668
  %v2670 = vrot.slane %v2669, 2
  %v2671 = vadd.f32 %v2669, %v2670
  %v2672 = vrot.slane %v2671, 1
  %v2673 = vadd.f32 %v2671, %v2672
  %v2674 = vrot.slane %v2657, 4
  %v2675 = vadd.f32 %v2657, %v2674
  %v2676 = vrot.slane %v2675, 2
  %v2677 = vadd.f32 %v2675, %v2676
  %v2678 = vrot.slane %v2677, 1
  %v2679 = vadd.f32 %v2677, %v2678
  %v2680 = vadd.f32 %v1340, %v2673
  %v2681 = vadd.f32 %v1341, %v2679
  %v2682 = vmul.f32 %v2656, %v2656
  %v2683 = vmul.f32 %v2657, %v2657
  %v2684 = vrot.slane %v2682, 4
  %v2685 = vadd.f32 %v2682, %v2684
  %v2686 = vrot.slane %v2685, 2
  %v2687 = vadd.f32 %v2685, %v2686
  %v2688 = vrot.slane %v2687, 1
  %v2689 = vadd.f32 %v2687, %v2688
  %v2690 = vrot.slane %v2683, 4
  %v2691 = vadd.f32 %v2683, %v2690
  %v2692 = vrot.slane %v2691, 2
  %v2693 = vadd.f32 %v2691, %v2692
  %v2694 = vrot.slane %v2693, 1
  %v2695 = vadd.f32 %v2693, %v2694
  %v2696 = vadd.f32 %v1356, %v2689
  %v2697 = vadd.f32 %v1357, %v2695
  %vm2698 = vcmask 1040384
  %v2699 = vsel %vm2698, %v2680, %v2696
  %v2700 = vsel %vm2698, %v2681, %v2697
  %v2703 = vcombine.low %v2699, %v2700
  %v2705 = vunpack.c.l.s4 1983009808
  %v2706 = vunpack.c.0.s8 %v2705
  %v2707 = vlaneseq
  %v2708 = vshrl.u32 %v2707, 7
  %v2709 = vsub.s32 %v2706, %v2708
  %v2710 = vrot.slane %v2703, %v2709
  %2712 = vst [vmem:[%s4] sm:$0xf] %v2710
  // Predicated region
  $region14: #{discriminator_forward.11} parent=0 // pred_check
    _
  $region15: #{discriminator_forward.11} parent=0 // pred_check_branch
    %2714 = sbr.rel (0) target = $region17
  $region16: #{discriminator_forward.11} parent=0 // pred_region
    _
  $region17: #{discriminator_forward.11} parent=0 // pred_fallthru
    _
  // Predicated region
  $region18: #{discriminator_forward.11} parent=0 // pred_check
    _
  $region19: #{discriminator_forward.11} parent=0 // pred_check_branch
    %2716 = sbr.rel (0) target = $region21
  $region20: #{discriminator_forward.11} parent=0 // pred_region
    _
  $region21: #{discriminator_forward.11} parent=0 // pred_fallthru
    _
  // Predicated region
  $region22: #{discriminator_forward.11} parent=0 // pred_check
    _
  $region23: #{discriminator_forward.11} parent=0 // pred_check_branch
    %2718 = sbr.rel (0) target = $region25
  $region24: #{discriminator_forward.11} parent=0 // pred_region
    _
  $region25: #{discriminator_forward.11} parent=0 // pred_fallthru
    _
  // Predicated region
  $region26: #{discriminator_forward.11} parent=0 // pred_check
    _
  $region27: #{discriminator_forward.11} parent=0 // pred_check_branch
    %2720 = sbr.rel (0) target = $region29
  $region28: #{discriminator_forward.11} parent=0 // pred_region
    _
  $region29: #{discriminator_forward.11} parent=0 // pred_fallthru
    _

// kernel: tile.53
$region0: #{tile.53}
  #allocation0 [shape = 's32[1]{0}', space=sflag, size = 0x4, scoped, tag = 'scoped memory for tile.53']
  %s0 = inlined_call_operand.vmem [shape: f32[32], index: 0, kind: input, shape index: {}]
  %s1 = inlined_call_operand.vmem [shape: f32[8,32], index: 1, kind: output, shape index: {}]
  // Predicated region
  $region2: #{tile.53} parent=0 // pred_check
    _
  $region3: #{tile.53} parent=0 // pred_check_branch
    %3 = sbr.rel (0) target = $region5
  $region4: #{tile.53} parent=0 // pred_region
    _
  $region5: #{tile.53} parent=0 // pred_fallthru
    _
  %v4 = vld [vmem:[%s0] ss:$0 sm:$0xff]
  %5 = vst [vmem:[%s1] sm:$0xff] %v4

// kernel: tile.54
$region0: #{tile.54}
  %s0 = inlined_call_operand.vmem [shape: f32[8,32], index: 0, kind: input, shape index: {}]
  %s1 = inlined_call_operand.vmem [shape: f32[1,256], index: 1, kind: output, shape index: {}]
  $region1: #{tile.54} parent=0
    #allocation0 [shape = 'u8[8192]{0}', space=vmem, size = 0x2000, scoped, tag = 'scoped mem for output reshape']
    %s2 = smov 3
    %v3 = vld [vmem:[%s0] ss:$4 sm:%s2]
    %vm4 = vcmask 261120
    %5 = vst.msk [vmem:[#allocation0] ss:$8 sm:$0x3] %vm4, %v3
    %s6 = scalar_lea.vmem %s0, 3
    %s7 = smov 3
    %v8 = vld [vmem:[%s6] ss:$4 sm:%s7]
    %9 = vrot.lane.b32.xlu0 %v8, 96
    %v10 = vpop.permute.xlu0 %9
    %vm11 = vcmask 1048320
    %12 = vst.msk [vmem:[#allocation0] ss:$8 sm:$0x3] %vm11, %v10
    %s13 = scalar_lea.vmem %s0, 2
    %s14 = smov 3
    %v15 = vld [vmem:[%s13] ss:$4 sm:%s14]
    %16 = vrot.lane.b32.xlu0 %v15, 64
    %v17 = vpop.permute.xlu0 %16
    %vm18 = vcmask 785920
    %19 = vst.msk [vmem:[#allocation0] ss:$8 sm:$0x3] %vm18, %v17
    %s20 = scalar_lea.vmem %s0, 1
    %s21 = smov 3
    %v22 = vld [vmem:[%s20] ss:$4 sm:%s21]
    %23 = vrot.lane.b32.xlu0 %v22, 32
    %v24 = vpop.permute.xlu0 %23
    %vm25 = vcmask 523520
    %26 = vst.msk [vmem:[#allocation0] ss:$8 sm:$0x3] %vm25, %v24
    %s28 = sshllo.u32 0, 1
    %v30 = vld [vmem:[#allocation0] sm:%s28]
    %s31 = sshllo.u32 0, 1
    %32 = vst [vmem:[%s1] sm:%s31] %v30
    %s33 = scalar_lea.vmem [#allocation0], 8
    %v34 = vld [vmem:[%s33] sm:%s28]
    %s35 = sshllo.u32 0, 1
    %s36 = scalar_lea.vmem %s1, 1
    %37 = vst [vmem:[%s36] sm:%s35] %v34

// kernel: discriminator_forward.12
$region0: #{discriminator_forward.12}
  #allocation0 [shape = 'u32[]', space=smem, size = 0x4, offset = 0x4, fixed_abs, tag = 'smem constant byte address 0x4 - core index']
  #allocation1 [shape = 'u32[144,128]{1,0:T(1,128)}', space=vmem, size = 0x12000, scoped, tag = 'internal scratch']
  %s0 = inlined_call_operand.vmem [shape: bf16[2,8,256], index: 0, kind: input, shape index: {}]
  %s1 = inlined_call_operand.vmem [shape: f32[1,256], index: 1, kind: input, shape index: {}]
  %s2 = inlined_call_operand.vmem [shape: f32[1,256], index: 2, kind: input, shape index: {}]
  %s3 = inlined_call_operand.vmem [shape: bf16[2,8,256], index: 3, kind: output, shape index: {}]
  %s4 = sld [smem:[#allocation0]]
  $region22: #{discriminator_forward.12} parent=0
    _
  %s6 = ssub.s32 1, %s4
  %s7 = scalar_select 0, %s6, %s4
  // Predicated region
  $region2: #{discriminator_forward.12} parent=0 // pred_check
    _
  $region3: #{discriminator_forward.12} parent=0 // pred_check_branch
    %9 = sbr.rel (0) target = $region5
  $region4: #{discriminator_forward.12} parent=0 // pred_region
    _
  $region5: #{discriminator_forward.12} parent=0 // pred_fallthru
    _
  // Predicated region
  $region6: #{discriminator_forward.12} parent=0 // pred_check
    _
  $region7: #{discriminator_forward.12} parent=0 // pred_check_branch
    %11 = sbr.rel (0) target = $region9
  $region8: #{discriminator_forward.12} parent=0 // pred_region
    _
  $region9: #{discriminator_forward.12} parent=0 // pred_fallthru
    _
  // Predicated region
  $region10: #{discriminator_forward.12} parent=0 // pred_check
    _
  $region11: #{discriminator_forward.12} parent=0 // pred_check_branch
    %13 = sbr.rel (0) target = $region13
  $region12: #{discriminator_forward.12} parent=0 // pred_region
    _
  $region13: #{discriminator_forward.12} parent=0 // pred_fallthru
    _
  %v14 = vld [vmem:[%s1] sm:$0x3]
  %v15 = vld [vmem:[%s2] sm:$0x3]
  %v16 = vld [vmem:[%s0] sm:$0xff]
  %v17 = vunpack.c.l.bf16 %v16
  %v18 = vunpack.c.h.bf16 %v16
  %v20 = vlaneseq
  %v21 = vshrl.u32 %v20, 7
  %v22 = vsub.s32 0, %v21
  %v23 = vrot.slane %v14, %v22
  %v24 = vlaneseq
  %v25 = vshrl.u32 %v24, 7
  %v26 = vsub.s32 1, %v25
  %v27 = vrot.slane %v14, %v26
  %v30 = vmul.f32 %v17, %v23
  %v31 = vmul.f32 %v18, %v27
  %v33 = vlaneseq
  %v34 = vshrl.u32 %v33, 7
  %v35 = vsub.s32 0, %v34
  %v36 = vrot.slane %v15, %v35
  %v37 = vlaneseq
  %v38 = vshrl.u32 %v37, 7
  %v39 = vsub.s32 1, %v38
  %v40 = vrot.slane %v15, %v39
  %v43 = vadd.f32 %v30, %v36
  %v44 = vadd.f32 %v31, %v40
  %vm45 = vcmp.ge.f32.partialorder %v43, 0.0
  %vm46 = vcmp.ge.f32.partialorder %v44, 0.0
  %v47 = vmul.f32 %v43, 0.2
  %v48 = vmul.f32 %v44, 0.2
  %v49 = vsel %vm45, %v43, %v47
  %v50 = vsel %vm46, %v44, %v48
  %v51 = vpack.c.bf16 %v49, %v49
  %v52 = vpack.c.bf16 %v50, %v50
  %v55 = vunpack.c.l.b16 %v51
  %v56 = vunpack.c.l.b16 %v52
  %v57 = vpack.c.b16 %v56, %v55
  %59 = vst [vmem:[%s3] sm:$0xff] %v57
  %s60 = scalar_lea.vmem %s0, 8
  %v61 = vld [vmem:[%s60] sm:$0xff]
  %v62 = vunpack.c.l.bf16 %v61
  %v63 = vunpack.c.h.bf16 %v61
  %v64 = vmul.f32 %v62, %v23
  %v65 = vmul.f32 %v63, %v27
  %v66 = vadd.f32 %v64, %v36
  %v67 = vadd.f32 %v65, %v40
  %vm68 = vcmp.ge.f32.partialorder %v66, 0.0
  %vm69 = vcmp.ge.f32.partialorder %v67, 0.0
  %v70 = vmul.f32 %v66, 0.2
  %v71 = vmul.f32 %v67, 0.2
  %v72 = vsel %vm68, %v66, %v70
  %v73 = vsel %vm69, %v67, %v71
  %v74 = vpack.c.bf16 %v72, %v72
  %v75 = vpack.c.bf16 %v73, %v73
  %v78 = vunpack.c.l.b16 %v74
  %v79 = vunpack.c.l.b16 %v75
  %v80 = vpack.c.b16 %v79, %v78
  %s82 = scalar_lea.vmem %s3, 8
  %83 = vst [vmem:[%s82] sm:$0xff] %v80
  // Predicated region
  $region14: #{discriminator_forward.12} parent=0 // pred_check
    _
  $region15: #{discriminator_forward.12} parent=0 // pred_check_branch
    %85 = sbr.rel (0) target = $region17
  $region16: #{discriminator_forward.12} parent=0 // pred_region
    _
  $region17: #{discriminator_forward.12} parent=0 // pred_fallthru
    _
  // Predicated region
  $region18: #{discriminator_forward.12} parent=0 // pred_check
    _
  $region19: #{discriminator_forward.12} parent=0 // pred_check_branch
    %87 = sbr.rel (0) target = $region21
  $region20: #{discriminator_forward.12} parent=0 // pred_region
    _
  $region21: #{discriminator_forward.12} parent=0 // pred_fallthru
    _

// kernel: discriminator_forward.13
$region0: #{discriminator_forward.13}
  #allocation0 [shape = 'u32[]', space=smem, size = 0x4, offset = 0x4, fixed_abs, tag = 'smem constant byte address 0x4 - core index']
  #allocation1 [shape = 'u32[144,128]{1,0:T(1,128)}', space=vmem, size = 0x12000, scoped, tag = 'internal scratch']
  %s0 = inlined_call_operand.vmem [shape: bf16[2,5,320], index: 0, kind: input, shape index: {}]
  %s1 = inlined_call_operand.vmem [shape: bf16[2,5,320], index: 1, kind: input, shape index: {}]
  %s2 = inlined_call_operand.vmem [shape: bf16[4,320,256], index: 2, kind: input, shape index: {}]
  %s3 = inlined_call_operand.vmem [shape: bf16[2,4,256], index: 3, kind: output, shape index: {0}]
  %s4 = inlined_call_operand.vmem [shape: f32[1,2,256], index: 4, kind: output, shape index: {1}]
  %5 = xla_tuple %s3, %s4
  %s6 = sld [smem:[#allocation0]]
  $region30: #{discriminator_forward.13} parent=0
    _
  %s8 = ssub.s32 1, %s6
  %s9 = scalar_select 0, %s8, %s6
  // Predicated region
  $region2: #{discriminator_forward.13} parent=0 // pred_check
    _
  $region3: #{discriminator_forward.13} parent=0 // pred_check_branch
    %11 = sbr.rel (0) target = $region5
  $region4: #{discriminator_forward.13} parent=0 // pred_region
    _
  $region5: #{discriminator_forward.13} parent=0 // pred_fallthru
    _
  // Predicated region
  $region6: #{discriminator_forward.13} parent=0 // pred_check
    _
  $region7: #{discriminator_forward.13} parent=0 // pred_check_branch
    %13 = sbr.rel (0) target = $region9
  $region8: #{discriminator_forward.13} parent=0 // pred_region
    _
  $region9: #{discriminator_forward.13} parent=0 // pred_fallthru
    _
  // Predicated region
  $region10: #{discriminator_forward.13} parent=0 // pred_check
    _
  $region11: #{discriminator_forward.13} parent=0 // pred_check_branch
    %15 = sbr.rel (0) target = $region13
  $region12: #{discriminator_forward.13} parent=0 // pred_region
    _
  $region13: #{discriminator_forward.13} parent=0 // pred_fallthru
    _
  %v17 = vld [vmem:[%s0] sm:$0x77]
  %v18 = vld [vmem:[%s0 + $0x8] sm:$0x7]
  %v19 = vld [vmem:[%s1] sm:$0x77]
  %v20 = vld [vmem:[%s1 + $0x8] sm:$0x7]
  %v21 = vld [vmem:[%s2] sm:$0xff]
  %v22 = vld [vmem:[%s2 + $0x8] sm:$0xff]
  %v23 = vld [vmem:[%s2 + $0x10] sm:$0xff]
  %v24 = vld [vmem:[%s2 + $0x18] sm:$0xff]
  %v25 = vld [vmem:[%s2 + $0x20] sm:$0xff]
  %v26 = vld [vmem:[%s2 + $0x28] sm:$0xff]
  %v27 = vld [vmem:[%s2 + $0x30] sm:$0xff]
  %v28 = vld [vmem:[%s2 + $0x38] sm:$0xff]
  %v29 = vld [vmem:[%s2 + $0x40] sm:$0xff]
  %v30 = vld [vmem:[%s2 + $0x48] sm:$0xff]
  %v31 = vld [vmem:[%s2 + $0x50] sm:$0xff]
  %v32 = vld [vmem:[%s2 + $0x58] sm:$0xff]
  %v33 = vld [vmem:[%s2 + $0x60] sm:$0xff]
  %v34 = vld [vmem:[%s2 + $0x68] sm:$0xff]
  %v35 = vld [vmem:[%s2 + $0x70] sm:$0xff]
  %v36 = vld [vmem:[%s2 + $0x78] sm:$0xff]
  %v37 = vld [vmem:[%s2 + $0x80] sm:$0xff]
  %v38 = vld [vmem:[%s2 + $0x88] sm:$0xff]
  %v39 = vld [vmem:[%s2 + $0x90] sm:$0xff]
  %v40 = vld [vmem:[%s2 + $0x98] sm:$0xff]
  %v41 = vld [vmem:[%s2 + $0xa0] sm:$0xff]
  %v42 = vld [vmem:[%s2 + $0xa8] sm:$0xff]
  %v43 = vld [vmem:[%s2 + $0xb0] sm:$0xff]
  %v44 = vld [vmem:[%s2 + $0xb8] sm:$0xff]
  %v45 = vld [vmem:[%s2 + $0xc0] sm:$0xff]
  %v46 = vld [vmem:[%s2 + $0xc8] sm:$0xff]
  %v47 = vld [vmem:[%s2 + $0xd0] sm:$0xff]
  %v48 = vld [vmem:[%s2 + $0xd8] sm:$0xff]
  %v49 = vld [vmem:[%s2 + $0xe0] sm:$0xff]
  %v50 = vld [vmem:[%s2 + $0xe8] sm:$0xff]
  %v51 = vld [vmem:[%s2 + $0xf0] sm:$0xff]
  %v52 = vld [vmem:[%s2 + $0xf8] sm:$0xff]
  %v53 = vld [vmem:[%s2 + $0x100] sm:$0xff]
  %v54 = vld [vmem:[%s2 + $0x108] sm:$0xff]
  %v55 = vld [vmem:[%s2 + $0x110] sm:$0xff]
  %v56 = vld [vmem:[%s2 + $0x118] sm:$0xff]
  %v57 = vld [vmem:[%s2 + $0x120] sm:$0xff]
  %v58 = vld [vmem:[%s2 + $0x128] sm:$0xff]
  %v59 = vld [vmem:[%s2 + $0x130] sm:$0xff]
  %v60 = vld [vmem:[%s2 + $0x138] sm:$0xff]
  %s61 = scalar_lea.vmem %s2, 320
  %v62 = vld [vmem:[%s61] sm:$0xff]
  %v63 = vld [vmem:[%s61 + $0x8] sm:$0xff]
  %v64 = vld [vmem:[%s61 + $0x10] sm:$0xff]
  %v65 = vld [vmem:[%s61 + $0x18] sm:$0xff]
  %v66 = vld [vmem:[%s61 + $0x20] sm:$0xff]
  %v67 = vld [vmem:[%s61 + $0x28] sm:$0xff]
  %v68 = vld [vmem:[%s61 + $0x30] sm:$0xff]
  %v69 = vld [vmem:[%s61 + $0x38] sm:$0xff]
  %v70 = vld [vmem:[%s61 + $0x40] sm:$0xff]
  %v71 = vld [vmem:[%s61 + $0x48] sm:$0xff]
  %v72 = vld [vmem:[%s61 + $0x50] sm:$0xff]
  %v73 = vld [vmem:[%s61 + $0x58] sm:$0xff]
  %v74 = vld [vmem:[%s61 + $0x60] sm:$0xff]
  %v75 = vld [vmem:[%s61 + $0x68] sm:$0xff]
  %v76 = vld [vmem:[%s61 + $0x70] sm:$0xff]
  %v77 = vld [vmem:[%s61 + $0x78] sm:$0xff]
  %v78 = vld [vmem:[%s61 + $0x80] sm:$0xff]
  %v79 = vld [vmem:[%s61 + $0x88] sm:$0xff]
  %v80 = vld [vmem:[%s61 + $0x90] sm:$0xff]
  %v81 = vld [vmem:[%s61 + $0x98] sm:$0xff]
  %v82 = vld [vmem:[%s61 + $0xa0] sm:$0xff]
  %v83 = vld [vmem:[%s61 + $0xa8] sm:$0xff]
  %v84 = vld [vmem:[%s61 + $0xb0] sm:$0xff]
  %v85 = vld [vmem:[%s61 + $0xb8] sm:$0xff]
  %v86 = vld [vmem:[%s61 + $0xc0] sm:$0xff]
  %v87 = vld [vmem:[%s61 + $0xc8] sm:$0xff]
  %v88 = vld [vmem:[%s61 + $0xd0] sm:$0xff]
  %v89 = vld [vmem:[%s61 + $0xd8] sm:$0xff]
  %v90 = vld [vmem:[%s61 + $0xe0] sm:$0xff]
  %v91 = vld [vmem:[%s61 + $0xe8] sm:$0xff]
  %v92 = vld [vmem:[%s61 + $0xf0] sm:$0xff]
  %v93 = vld [vmem:[%s61 + $0xf8] sm:$0xff]
  %v94 = vld [vmem:[%s61 + $0x100] sm:$0xff]
  %v95 = vld [vmem:[%s61 + $0x108] sm:$0xff]
  %v96 = vld [vmem:[%s61 + $0x110] sm:$0xff]
  %v97 = vld [vmem:[%s61 + $0x118] sm:$0xff]
  %v98 = vld [vmem:[%s61 + $0x120] sm:$0xff]
  %v99 = vld [vmem:[%s61 + $0x128] sm:$0xff]
  %v100 = vld [vmem:[%s61 + $0x130] sm:$0xff]
  %v101 = vld [vmem:[%s61 + $0x138] sm:$0xff]
  %v104 = vunpack.c.l.b16 %v19
  %v105 = vunpack.c.h.b16 %v19
  %v106 = vunpack.c.l.b16 %v20
  %v107 = vpack.c.b16 %v104, %v104
  %v108 = vpack.c.b16 %v105, %v105
  %v109 = vpack.c.b16 %v106, %v106
  %v152 = vunpack.c.l.b16 %v62
  %v153 = vunpack.c.h.b16 %v62
  %v154 = vunpack.c.l.b16 %v63
  %v155 = vunpack.c.h.b16 %v63
  %v156 = vunpack.c.l.b16 %v64
  %v157 = vunpack.c.h.b16 %v64
  %v158 = vunpack.c.l.b16 %v65
  %v159 = vunpack.c.h.b16 %v65
  %v160 = vunpack.c.l.b16 %v66
  %v161 = vunpack.c.h.b16 %v66
  %v162 = vunpack.c.l.b16 %v67
  %v163 = vunpack.c.h.b16 %v67
  %v164 = vunpack.c.l.b16 %v68
  %v165 = vunpack.c.h.b16 %v68
  %v166 = vunpack.c.l.b16 %v69
  %v167 = vunpack.c.h.b16 %v69
  %v168 = vunpack.c.l.b16 %v70
  %v169 = vunpack.c.h.b16 %v70
  %v170 = vunpack.c.l.b16 %v71
  %v171 = vunpack.c.h.b16 %v71
  %v172 = vunpack.c.l.b16 %v72
  %v173 = vunpack.c.h.b16 %v72
  %v174 = vunpack.c.l.b16 %v73
  %v175 = vunpack.c.h.b16 %v73
  %v176 = vunpack.c.l.b16 %v74
  %v177 = vunpack.c.h.b16 %v74
  %v178 = vunpack.c.l.b16 %v75
  %v179 = vunpack.c.h.b16 %v75
  %v180 = vunpack.c.l.b16 %v76
  %v181 = vunpack.c.h.b16 %v76
  %v182 = vunpack.c.l.b16 %v77
  %v183 = vunpack.c.h.b16 %v77
  %v184 = vunpack.c.l.b16 %v78
  %v185 = vunpack.c.h.b16 %v78
  %v186 = vunpack.c.l.b16 %v79
  %v187 = vunpack.c.h.b16 %v79
  %v188 = vunpack.c.l.b16 %v80
  %v189 = vunpack.c.h.b16 %v80
  %v190 = vunpack.c.l.b16 %v81
  %v191 = vunpack.c.h.b16 %v81
  %v192 = vunpack.c.l.b16 %v82
  %v193 = vunpack.c.h.b16 %v82
  %v194 = vunpack.c.l.b16 %v83
  %v195 = vunpack.c.h.b16 %v83
  %v196 = vunpack.c.l.b16 %v84
  %v197 = vunpack.c.h.b16 %v84
  %v198 = vunpack.c.l.b16 %v85
  %v199 = vunpack.c.h.b16 %v85
  %v200 = vunpack.c.l.b16 %v86
  %v201 = vunpack.c.h.b16 %v86
  %v202 = vunpack.c.l.b16 %v87
  %v203 = vunpack.c.h.b16 %v87
  %v204 = vunpack.c.l.b16 %v88
  %v205 = vunpack.c.h.b16 %v88
  %v206 = vunpack.c.l.b16 %v89
  %v207 = vunpack.c.h.b16 %v89
  %v208 = vunpack.c.l.b16 %v90
  %v209 = vunpack.c.h.b16 %v90
  %v210 = vunpack.c.l.b16 %v91
  %v211 = vunpack.c.h.b16 %v91
  %v212 = vunpack.c.l.b16 %v92
  %v213 = vunpack.c.h.b16 %v92
  %v214 = vunpack.c.l.b16 %v93
  %v215 = vunpack.c.h.b16 %v93
  %v216 = vunpack.c.l.b16 %v94
  %v217 = vunpack.c.h.b16 %v94
  %v218 = vunpack.c.l.b16 %v95
  %v219 = vunpack.c.h.b16 %v95
  %v220 = vunpack.c.l.b16 %v96
  %v221 = vunpack.c.h.b16 %v96
  %v222 = vunpack.c.l.b16 %v97
  %v223 = vunpack.c.h.b16 %v97
  %v224 = vunpack.c.l.b16 %v98
  %v225 = vunpack.c.h.b16 %v98
  %v226 = vunpack.c.l.b16 %v99
  %v227 = vunpack.c.h.b16 %v99
  %v228 = vunpack.c.l.b16 %v100
  %v229 = vunpack.c.h.b16 %v100
  %v230 = vunpack.c.l.b16 %v101
  %v231 = vunpack.c.h.b16 %v101
  %v232 = vpack.c.b16 %v154, %v152
  %v233 = vpack.c.b16 %v155, %v153
  %v234 = vpack.c.b16 %v158, %v156
  %v235 = vpack.c.b16 %v159, %v157
  %v236 = vpack.c.b16 %v162, %v160
  %v237 = vpack.c.b16 %v163, %v161
  %v238 = vpack.c.b16 %v166, %v164
  %v239 = vpack.c.b16 %v167, %v165
  %v240 = vpack.c.b16 %v170, %v168
  %v241 = vpack.c.b16 %v171, %v169
  %v242 = vpack.c.b16 %v174, %v172
  %v243 = vpack.c.b16 %v175, %v173
  %v244 = vpack.c.b16 %v178, %v176
  %v245 = vpack.c.b16 %v179, %v177
  %v246 = vpack.c.b16 %v182, %v180
  %v247 = vpack.c.b16 %v183, %v181
  %v248 = vpack.c.b16 %v186, %v184
  %v249 = vpack.c.b16 %v187, %v185
  %v250 = vpack.c.b16 %v190, %v188
  %v251 = vpack.c.b16 %v191, %v189
  %v252 = vpack.c.b16 %v194, %v192
  %v253 = vpack.c.b16 %v195, %v193
  %v254 = vpack.c.b16 %v198, %v196
  %v255 = vpack.c.b16 %v199, %v197
  %v256 = vpack.c.b16 %v202, %v200
  %v257 = vpack.c.b16 %v203, %v201
  %v258 = vpack.c.b16 %v206, %v204
  %v259 = vpack.c.b16 %v207, %v205
  %v260 = vpack.c.b16 %v210, %v208
  %v261 = vpack.c.b16 %v211, %v209
  %v262 = vpack.c.b16 %v214, %v212
  %v263 = vpack.c.b16 %v215, %v213
  %v264 = vpack.c.b16 %v218, %v216
  %v265 = vpack.c.b16 %v219, %v217
  %v266 = vpack.c.b16 %v222, %v220
  %v267 = vpack.c.b16 %v223, %v221
  %v268 = vpack.c.b16 %v226, %v224
  %v269 = vpack.c.b16 %v227, %v225
  %v270 = vpack.c.b16 %v230, %v228
  %v271 = vpack.c.b16 %v231, %v229
  %vm312 = vcmask 523264
  %v314 = vsel %vm312, %v109, 0
  %316 = vmatprep.subr.bf16.mxu0 %v233
  %317 = vmatpush1.bf16.msra.mxu0 %v232
  %318 = vmatprep.subr.bf16.mxu0 %v235
  %319 = vmatpush1.bf16.msra.mxu0 %v234
  %320 = vmatprep.subr.bf16.mxu0 %v237
  %321 = vmatpush1.bf16.msra.mxu0 %v236
  %322 = vmatprep.subr.bf16.mxu0 %v239
  %323 = vmatpush1.bf16.msra.mxu0 %v238
  %324 = vmatprep.subr.bf16.mxu0 %v241
  %325 = vmatpush1.bf16.msra.mxu0 %v240
  %326 = vmatprep.subr.bf16.mxu0 %v243
  %327 = vmatpush1.bf16.msra.mxu0 %v242
  %328 = vmatprep.subr.bf16.mxu0 %v245
  %329 = vmatpush1.bf16.msra.mxu0 %v244
  %330 = vmatprep.subr.bf16.mxu0 %v247
  %331 = vmatpush1.bf16.msra.mxu0 %v246
  %332 = vmatprep.subr.bf16.mxu0 %v249
  %333 = vmatpush1.bf16.msra.mxu0 %v248
  %334 = vmatprep.subr.bf16.mxu0 %v251
  %335 = vmatpush1.bf16.msra.mxu0 %v250
  %336 = vmatprep.subr.bf16.mxu0 %v253
  %337 = vmatpush1.bf16.msra.mxu0 %v252
  %338 = vmatprep.subr.bf16.mxu0 %v255
  %339 = vmatpush1.bf16.msra.mxu0 %v254
  %340 = vmatprep.subr.bf16.mxu0 %v257
  %341 = vmatpush1.bf16.msra.mxu0 %v256
  %342 = vmatprep.subr.bf16.mxu0 %v259
  %343 = vmatpush1.bf16.msra.mxu0 %v258
  %344 = vmatprep.subr.bf16.mxu0 %v261
  %345 = vmatpush1.bf16.msra.mxu0 %v260
  %346 = vmatprep.subr.bf16.mxu0 %v263
  %347 = vmatpush1.bf16.msra.mxu0 %v262
  %348 = vmatprep.mubr.bf16.mxu0 %v108
  %349 = vmatmul.mubr.bf16.gmra.mrb[0].mxu0 %v107
  %v350 = vpop.f32.mrb[0].mxu0
  %v351 = vadd.f32 0.0, %v350
  %v352 = vpop.f32.mrb[0].mxu0
  %v353 = vadd.f32 0.0, %v352
  %v354 = vpop.f32.mrb[0].mxu0
  %v355 = vpop.f32.mrb[0].mxu0
  %356 = vdwg.mxu0
  %357 = vmatprep.subr.bf16.mxu0 %v265
  %358 = vmatpush1.bf16.msra.mxu0 %v264
  %359 = vmatprep.subr.bf16.mxu0 %v267
  %360 = vmatpush1.bf16.msra.mxu0 %v266
  %361 = vmatprep.subr.bf16.mxu0 %v269
  %362 = vmatpush1.bf16.msra.mxu0 %v268
  %363 = vmatprep.subr.bf16.mxu0 %v271
  %364 = vmatpush1.bf16.msra.mxu0 %v270
  %365 = vmatprep.subr.bf16.mxu0 0
  %366 = vmatpush1.bf16.msra.mxu0 0
  %367 = vmatprep.subr.bf16.mxu0 0
  %368 = vmatpush1.bf16.msra.mxu0 0
  %369 = vmatprep.subr.bf16.mxu0 0
  %370 = vmatpush1.bf16.msra.mxu0 0
  %371 = vmatprep.subr.bf16.mxu0 0
  %372 = vmatpush1.bf16.msra.mxu0 0
  %373 = vmatprep.subr.bf16.mxu0 0
  %374 = vmatpush1.bf16.msra.mxu0 0
  %375 = vmatprep.subr.bf16.mxu0 0
  %376 = vmatpush1.bf16.msra.mxu0 0
  %377 = vmatprep.subr.bf16.mxu0 0
  %378 = vmatpush1.bf16.msra.mxu0 0
  %379 = vmatprep.subr.bf16.mxu0 0
  %380 = vmatpush1.bf16.msra.mxu0 0
  %381 = vmatprep.subr.bf16.mxu0 0
  %382 = vmatpush1.bf16.msra.mxu0 0
  %383 = vmatprep.subr.bf16.mxu0 0
  %384 = vmatpush1.bf16.msra.mxu0 0
  %385 = vmatprep.subr.bf16.mxu0 0
  %386 = vmatpush1.bf16.msra.mxu0 0
  %387 = vmatprep.subr.bf16.mxu0 0
  %388 = vmatpush1.bf16.msra.mxu0 0
  %389 = vmatprep.mubr.bf16.mxu0 0
  %390 = vmatmul.mubr.bf16.gmra.mrb[0].mxu0 %v314
  %v391 = vpop.f32.mrb[0].mxu0
  %v392 = vadd.f32 %v351, %v391
  %v393 = vpop.f32.mrb[0].mxu0
  %v394 = vadd.f32 %v353, %v393
  %v395 = vpop.f32.mrb[0].mxu0
  %v396 = vpop.f32.mrb[0].mxu0
  %397 = vdwg.mxu0
  %v400 = vunpack.c.l.b16 %v17
  %v401 = vunpack.c.h.b16 %v17
  %v402 = vunpack.c.l.b16 %v18
  %v403 = vpack.c.b16 %v400, %v400
  %v404 = vpack.c.b16 %v401, %v401
  %v405 = vpack.c.b16 %v402, %v402
  %v448 = vunpack.c.l.b16 %v21
  %v449 = vunpack.c.h.b16 %v21
  %v450 = vunpack.c.l.b16 %v22
  %v451 = vunpack.c.h.b16 %v22
  %v452 = vunpack.c.l.b16 %v23
  %v453 = vunpack.c.h.b16 %v23
  %v454 = vunpack.c.l.b16 %v24
  %v455 = vunpack.c.h.b16 %v24
  %v456 = vunpack.c.l.b16 %v25
  %v457 = vunpack.c.h.b16 %v25
  %v458 = vunpack.c.l.b16 %v26
  %v459 = vunpack.c.h.b16 %v26
  %v460 = vunpack.c.l.b16 %v27
  %v461 = vunpack.c.h.b16 %v27
  %v462 = vunpack.c.l.b16 %v28
  %v463 = vunpack.c.h.b16 %v28
  %v464 = vunpack.c.l.b16 %v29
  %v465 = vunpack.c.h.b16 %v29
  %v466 = vunpack.c.l.b16 %v30
  %v467 = vunpack.c.h.b16 %v30
  %v468 = vunpack.c.l.b16 %v31
  %v469 = vunpack.c.h.b16 %v31
  %v470 = vunpack.c.l.b16 %v32
  %v471 = vunpack.c.h.b16 %v32
  %v472 = vunpack.c.l.b16 %v33
  %v473 = vunpack.c.h.b16 %v33
  %v474 = vunpack.c.l.b16 %v34
  %v475 = vunpack.c.h.b16 %v34
  %v476 = vunpack.c.l.b16 %v35
  %v477 = vunpack.c.h.b16 %v35
  %v478 = vunpack.c.l.b16 %v36
  %v479 = vunpack.c.h.b16 %v36
  %v480 = vunpack.c.l.b16 %v37
  %v481 = vunpack.c.h.b16 %v37
  %v482 = vunpack.c.l.b16 %v38
  %v483 = vunpack.c.h.b16 %v38
  %v484 = vunpack.c.l.b16 %v39
  %v485 = vunpack.c.h.b16 %v39
  %v486 = vunpack.c.l.b16 %v40
  %v487 = vunpack.c.h.b16 %v40
  %v488 = vunpack.c.l.b16 %v41
  %v489 = vunpack.c.h.b16 %v41
  %v490 = vunpack.c.l.b16 %v42
  %v491 = vunpack.c.h.b16 %v42
  %v492 = vunpack.c.l.b16 %v43
  %v493 = vunpack.c.h.b16 %v43
  %v494 = vunpack.c.l.b16 %v44
  %v495 = vunpack.c.h.b16 %v44
  %v496 = vunpack.c.l.b16 %v45
  %v497 = vunpack.c.h.b16 %v45
  %v498 = vunpack.c.l.b16 %v46
  %v499 = vunpack.c.h.b16 %v46
  %v500 = vunpack.c.l.b16 %v47
  %v501 = vunpack.c.h.b16 %v47
  %v502 = vunpack.c.l.b16 %v48
  %v503 = vunpack.c.h.b16 %v48
  %v504 = vunpack.c.l.b16 %v49
  %v505 = vunpack.c.h.b16 %v49
  %v506 = vunpack.c.l.b16 %v50
  %v507 = vunpack.c.h.b16 %v50
  %v508 = vunpack.c.l.b16 %v51
  %v509 = vunpack.c.h.b16 %v51
  %v510 = vunpack.c.l.b16 %v52
  %v511 = vunpack.c.h.b16 %v52
  %v512 = vunpack.c.l.b16 %v53
  %v513 = vunpack.c.h.b16 %v53
  %v514 = vunpack.c.l.b16 %v54
  %v515 = vunpack.c.h.b16 %v54
  %v516 = vunpack.c.l.b16 %v55
  %v517 = vunpack.c.h.b16 %v55
  %v518 = vunpack.c.l.b16 %v56
  %v519 = vunpack.c.h.b16 %v56
  %v520 = vunpack.c.l.b16 %v57
  %v521 = vunpack.c.h.b16 %v57
  %v522 = vunpack.c.l.b16 %v58
  %v523 = vunpack.c.h.b16 %v58
  %v524 = vunpack.c.l.b16 %v59
  %v525 = vunpack.c.h.b16 %v59
  %v526 = vunpack.c.l.b16 %v60
  %v527 = vunpack.c.h.b16 %v60
  %v528 = vpack.c.b16 %v450, %v448
  %v529 = vpack.c.b16 %v451, %v449
  %v530 = vpack.c.b16 %v454, %v452
  %v531 = vpack.c.b16 %v455, %v453
  %v532 = vpack.c.b16 %v458, %v456
  %v533 = vpack.c.b16 %v459, %v457
  %v534 = vpack.c.b16 %v462, %v460
  %v535 = vpack.c.b16 %v463, %v461
  %v536 = vpack.c.b16 %v466, %v464
  %v537 = vpack.c.b16 %v467, %v465
  %v538 = vpack.c.b16 %v470, %v468
  %v539 = vpack.c.b16 %v471, %v469
  %v540 = vpack.c.b16 %v474, %v472
  %v541 = vpack.c.b16 %v475, %v473
  %v542 = vpack.c.b16 %v478, %v476
  %v543 = vpack.c.b16 %v479, %v477
  %v544 = vpack.c.b16 %v482, %v480
  %v545 = vpack.c.b16 %v483, %v481
  %v546 = vpack.c.b16 %v486, %v484
  %v547 = vpack.c.b16 %v487, %v485
  %v548 = vpack.c.b16 %v490, %v488
  %v549 = vpack.c.b16 %v491, %v489
  %v550 = vpack.c.b16 %v494, %v492
  %v551 = vpack.c.b16 %v495, %v493
  %v552 = vpack.c.b16 %v498, %v496
  %v553 = vpack.c.b16 %v499, %v497
  %v554 = vpack.c.b16 %v502, %v500
  %v555 = vpack.c.b16 %v503, %v501
  %v556 = vpack.c.b16 %v506, %v504
  %v557 = vpack.c.b16 %v507, %v505
  %v558 = vpack.c.b16 %v510, %v508
  %v559 = vpack.c.b16 %v511, %v509
  %v560 = vpack.c.b16 %v514, %v512
  %v561 = vpack.c.b16 %v515, %v513
  %v562 = vpack.c.b16 %v518, %v516
  %v563 = vpack.c.b16 %v519, %v517
  %v564 = vpack.c.b16 %v522, %v520
  %v565 = vpack.c.b16 %v523, %v521
  %v566 = vpack.c.b16 %v526, %v524
  %v567 = vpack.c.b16 %v527, %v525
  %v609 = vsel %vm312, %v405, 0
  %611 = vmatprep.subr.bf16.mxu0 %v529
  %612 = vmatpush1.bf16.msra.mxu0 %v528
  %613 = vmatprep.subr.bf16.mxu0 %v531
  %614 = vmatpush1.bf16.msra.mxu0 %v530
  %615 = vmatprep.subr.bf16.mxu0 %v533
  %616 = vmatpush1.bf16.msra.mxu0 %v532
  %617 = vmatprep.subr.bf16.mxu0 %v535
  %618 = vmatpush1.bf16.msra.mxu0 %v534
  %619 = vmatprep.subr.bf16.mxu0 %v537
  %620 = vmatpush1.bf16.msra.mxu0 %v536
  %621 = vmatprep.subr.bf16.mxu0 %v539
  %622 = vmatpush1.bf16.msra.mxu0 %v538
  %623 = vmatprep.subr.bf16.mxu0 %v541
  %624 = vmatpush1.bf16.msra.mxu0 %v540
  %625 = vmatprep.subr.bf16.mxu0 %v543
  %626 = vmatpush1.bf16.msra.mxu0 %v542
  %627 = vmatprep.subr.bf16.mxu0 %v545
  %628 = vmatpush1.bf16.msra.mxu0 %v544
  %629 = vmatprep.subr.bf16.mxu0 %v547
  %630 = vmatpush1.bf16.msra.mxu0 %v546
  %631 = vmatprep.subr.bf16.mxu0 %v549
  %632 = vmatpush1.bf16.msra.mxu0 %v548
  %633 = vmatprep.subr.bf16.mxu0 %v551
  %634 = vmatpush1.bf16.msra.mxu0 %v550
  %635 = vmatprep.subr.bf16.mxu0 %v553
  %636 = vmatpush1.bf16.msra.mxu0 %v552
  %637 = vmatprep.subr.bf16.mxu0 %v555
  %638 = vmatpush1.bf16.msra.mxu0 %v554
  %639 = vmatprep.subr.bf16.mxu0 %v557
  %640 = vmatpush1.bf16.msra.mxu0 %v556
  %641 = vmatprep.subr.bf16.mxu0 %v559
  %642 = vmatpush1.bf16.msra.mxu0 %v558
  %643 = vmatprep.mubr.bf16.mxu0 %v404
  %644 = vmatmul.mubr.bf16.gmra.mrb[0].mxu0 %v403
  %v645 = vpop.f32.mrb[0].mxu0
  %v646 = vadd.f32 %v392, %v645
  %v647 = vpop.f32.mrb[0].mxu0
  %v648 = vadd.f32 %v394, %v647
  %v649 = vpop.f32.mrb[0].mxu0
  %v650 = vpop.f32.mrb[0].mxu0
  %651 = vdwg.mxu0
  %652 = vmatprep.subr.bf16.mxu0 %v561
  %653 = vmatpush1.bf16.msra.mxu0 %v560
  %654 = vmatprep.subr.bf16.mxu0 %v563
  %655 = vmatpush1.bf16.msra.mxu0 %v562
  %656 = vmatprep.subr.bf16.mxu0 %v565
  %657 = vmatpush1.bf16.msra.mxu0 %v564
  %658 = vmatprep.subr.bf16.mxu0 %v567
  %659 = vmatpush1.bf16.msra.mxu0 %v566
  %660 = vmatprep.subr.bf16.mxu0 0
  %661 = vmatpush1.bf16.msra.mxu0 0
  %662 = vmatprep.subr.bf16.mxu0 0
  %663 = vmatpush1.bf16.msra.mxu0 0
  %664 = vmatprep.subr.bf16.mxu0 0
  %665 = vmatpush1.bf16.msra.mxu0 0
  %666 = vmatprep.subr.bf16.mxu0 0
  %667 = vmatpush1.bf16.msra.mxu0 0
  %668 = vmatprep.subr.bf16.mxu0 0
  %669 = vmatpush1.bf16.msra.mxu0 0
  %670 = vmatprep.subr.bf16.mxu0 0
  %671 = vmatpush1.bf16.msra.mxu0 0
  %672 = vmatprep.subr.bf16.mxu0 0
  %673 = vmatpush1.bf16.msra.mxu0 0
  %674 = vmatprep.subr.bf16.mxu0 0
  %675 = vmatpush1.bf16.msra.mxu0 0
  %676 = vmatprep.subr.bf16.mxu0 0
  %677 = vmatpush1.bf16.msra.mxu0 0
  %678 = vmatprep.subr.bf16.mxu0 0
  %679 = vmatpush1.bf16.msra.mxu0 0
  %680 = vmatprep.subr.bf16.mxu0 0
  %681 = vmatpush1.bf16.msra.mxu0 0
  %682 = vmatprep.subr.bf16.mxu0 0
  %683 = vmatpush1.bf16.msra.mxu0 0
  %684 = vmatprep.mubr.bf16.mxu0 0
  %685 = vmatmul.mubr.bf16.gmra.mrb[0].mxu0 %v609
  %v686 = vpop.f32.mrb[0].mxu0
  %v687 = vadd.f32 %v646, %v686
  %v688 = vpop.f32.mrb[0].mxu0
  %v689 = vadd.f32 %v648, %v688
  %v690 = vpop.f32.mrb[0].mxu0
  %v691 = vpop.f32.mrb[0].mxu0
  %692 = vdwg.mxu0
  %s693 = scalar_lea.vmem %s2, 640
  %v694 = vld [vmem:[%s693] sm:$0xff]
  %v695 = vld [vmem:[%s693 + $0x8] sm:$0xff]
  %v696 = vld [vmem:[%s693 + $0x10] sm:$0xff]
  %v697 = vld [vmem:[%s693 + $0x18] sm:$0xff]
  %v698 = vld [vmem:[%s693 + $0x20] sm:$0xff]
  %v699 = vld [vmem:[%s693 + $0x28] sm:$0xff]
  %v700 = vld [vmem:[%s693 + $0x30] sm:$0xff]
  %v701 = vld [vmem:[%s693 + $0x38] sm:$0xff]
  %v702 = vld [vmem:[%s693 + $0x40] sm:$0xff]
  %v703 = vld [vmem:[%s693 + $0x48] sm:$0xff]
  %v704 = vld [vmem:[%s693 + $0x50] sm:$0xff]
  %v705 = vld [vmem:[%s693 + $0x58] sm:$0xff]
  %v706 = vld [vmem:[%s693 + $0x60] sm:$0xff]
  %v707 = vld [vmem:[%s693 + $0x68] sm:$0xff]
  %v708 = vld [vmem:[%s693 + $0x70] sm:$0xff]
  %v709 = vld [vmem:[%s693 + $0x78] sm:$0xff]
  %v710 = vld [vmem:[%s693 + $0x80] sm:$0xff]
  %v711 = vld [vmem:[%s693 + $0x88] sm:$0xff]
  %v712 = vld [vmem:[%s693 + $0x90] sm:$0xff]
  %v713 = vld [vmem:[%s693 + $0x98] sm:$0xff]
  %v714 = vld [vmem:[%s693 + $0xa0] sm:$0xff]
  %v715 = vld [vmem:[%s693 + $0xa8] sm:$0xff]
  %v716 = vld [vmem:[%s693 + $0xb0] sm:$0xff]
  %v717 = vld [vmem:[%s693 + $0xb8] sm:$0xff]
  %v718 = vld [vmem:[%s693 + $0xc0] sm:$0xff]
  %v719 = vld [vmem:[%s693 + $0xc8] sm:$0xff]
  %v720 = vld [vmem:[%s693 + $0xd0] sm:$0xff]
  %v721 = vld [vmem:[%s693 + $0xd8] sm:$0xff]
  %v722 = vld [vmem:[%s693 + $0xe0] sm:$0xff]
  %v723 = vld [vmem:[%s693 + $0xe8] sm:$0xff]
  %v724 = vld [vmem:[%s693 + $0xf0] sm:$0xff]
  %v725 = vld [vmem:[%s693 + $0xf8] sm:$0xff]
  %v726 = vld [vmem:[%s693 + $0x100] sm:$0xff]
  %v727 = vld [vmem:[%s693 + $0x108] sm:$0xff]
  %v728 = vld [vmem:[%s693 + $0x110] sm:$0xff]
  %v729 = vld [vmem:[%s693 + $0x118] sm:$0xff]
  %v730 = vld [vmem:[%s693 + $0x120] sm:$0xff]
  %v731 = vld [vmem:[%s693 + $0x128] sm:$0xff]
  %v732 = vld [vmem:[%s693 + $0x130] sm:$0xff]
  %v733 = vld [vmem:[%s693 + $0x138] sm:$0xff]
  %v735 = vshrl.u32 %v403, 16
  %v737 = vshll.u32 %v403, 16
  %v739 = vrot.slane %v737, 1
  %v740 = vor.u32 %v735, %v739
  %v742 = vshrl.u32 %v404, 16
  %v744 = vshll.u32 %v404, 16
  %v746 = vrot.slane %v744, 1
  %v747 = vor.u32 %v742, %v746
  %v748 = vshrl.u32 %v405, 16
  %v750 = vshll.u32 %v405, 16
  %v752 = vrot.slane %v750, 1
  %v753 = vor.u32 %v748, %v752
  %v796 = vunpack.c.l.b16 %v694
  %v797 = vunpack.c.h.b16 %v694
  %v798 = vunpack.c.l.b16 %v695
  %v799 = vunpack.c.h.b16 %v695
  %v800 = vunpack.c.l.b16 %v696
  %v801 = vunpack.c.h.b16 %v696
  %v802 = vunpack.c.l.b16 %v697
  %v803 = vunpack.c.h.b16 %v697
  %v804 = vunpack.c.l.b16 %v698
  %v805 = vunpack.c.h.b16 %v698
  %v806 = vunpack.c.l.b16 %v699
  %v807 = vunpack.c.h.b16 %v699
  %v808 = vunpack.c.l.b16 %v700
  %v809 = vunpack.c.h.b16 %v700
  %v810 = vunpack.c.l.b16 %v701
  %v811 = vunpack.c.h.b16 %v701
  %v812 = vunpack.c.l.b16 %v702
  %v813 = vunpack.c.h.b16 %v702
  %v814 = vunpack.c.l.b16 %v703
  %v815 = vunpack.c.h.b16 %v703
  %v816 = vunpack.c.l.b16 %v704
  %v817 = vunpack.c.h.b16 %v704
  %v818 = vunpack.c.l.b16 %v705
  %v819 = vunpack.c.h.b16 %v705
  %v820 = vunpack.c.l.b16 %v706
  %v821 = vunpack.c.h.b16 %v706
  %v822 = vunpack.c.l.b16 %v707
  %v823 = vunpack.c.h.b16 %v707
  %v824 = vunpack.c.l.b16 %v708
  %v825 = vunpack.c.h.b16 %v708
  %v826 = vunpack.c.l.b16 %v709
  %v827 = vunpack.c.h.b16 %v709
  %v828 = vunpack.c.l.b16 %v710
  %v829 = vunpack.c.h.b16 %v710
  %v830 = vunpack.c.l.b16 %v711
  %v831 = vunpack.c.h.b16 %v711
  %v832 = vunpack.c.l.b16 %v712
  %v833 = vunpack.c.h.b16 %v712
  %v834 = vunpack.c.l.b16 %v713
  %v835 = vunpack.c.h.b16 %v713
  %v836 = vunpack.c.l.b16 %v714
  %v837 = vunpack.c.h.b16 %v714
  %v838 = vunpack.c.l.b16 %v715
  %v839 = vunpack.c.h.b16 %v715
  %v840 = vunpack.c.l.b16 %v716
  %v841 = vunpack.c.h.b16 %v716
  %v842 = vunpack.c.l.b16 %v717
  %v843 = vunpack.c.h.b16 %v717
  %v844 = vunpack.c.l.b16 %v718
  %v845 = vunpack.c.h.b16 %v718
  %v846 = vunpack.c.l.b16 %v719
  %v847 = vunpack.c.h.b16 %v719
  %v848 = vunpack.c.l.b16 %v720
  %v849 = vunpack.c.h.b16 %v720
  %v850 = vunpack.c.l.b16 %v721
  %v851 = vunpack.c.h.b16 %v721
  %v852 = vunpack.c.l.b16 %v722
  %v853 = vunpack.c.h.b16 %v722
  %v854 = vunpack.c.l.b16 %v723
  %v855 = vunpack.c.h.b16 %v723
  %v856 = vunpack.c.l.b16 %v724
  %v857 = vunpack.c.h.b16 %v724
  %v858 = vunpack.c.l.b16 %v725
  %v859 = vunpack.c.h.b16 %v725
  %v860 = vunpack.c.l.b16 %v726
  %v861 = vunpack.c.h.b16 %v726
  %v862 = vunpack.c.l.b16 %v727
  %v863 = vunpack.c.h.b16 %v727
  %v864 = vunpack.c.l.b16 %v728
  %v865 = vunpack.c.h.b16 %v728
  %v866 = vunpack.c.l.b16 %v729
  %v867 = vunpack.c.h.b16 %v729
  %v868 = vunpack.c.l.b16 %v730
  %v869 = vunpack.c.h.b16 %v730
  %v870 = vunpack.c.l.b16 %v731
  %v871 = vunpack.c.h.b16 %v731
  %v872 = vunpack.c.l.b16 %v732
  %v873 = vunpack.c.h.b16 %v732
  %v874 = vunpack.c.l.b16 %v733
  %v875 = vunpack.c.h.b16 %v733
  %v876 = vpack.c.b16 %v798, %v796
  %v877 = vpack.c.b16 %v799, %v797
  %v878 = vpack.c.b16 %v802, %v800
  %v879 = vpack.c.b16 %v803, %v801
  %v880 = vpack.c.b16 %v806, %v804
  %v881 = vpack.c.b16 %v807, %v805
  %v882 = vpack.c.b16 %v810, %v808
  %v883 = vpack.c.b16 %v811, %v809
  %v884 = vpack.c.b16 %v814, %v812
  %v885 = vpack.c.b16 %v815, %v813
  %v886 = vpack.c.b16 %v818, %v816
  %v887 = vpack.c.b16 %v819, %v817
  %v888 = vpack.c.b16 %v822, %v820
  %v889 = vpack.c.b16 %v823, %v821
  %v890 = vpack.c.b16 %v826, %v824
  %v891 = vpack.c.b16 %v827, %v825
  %v892 = vpack.c.b16 %v830, %v828
  %v893 = vpack.c.b16 %v831, %v829
  %v894 = vpack.c.b16 %v834, %v832
  %v895 = vpack.c.b16 %v835, %v833
  %v896 = vpack.c.b16 %v838, %v836
  %v897 = vpack.c.b16 %v839, %v837
  %v898 = vpack.c.b16 %v842, %v840
  %v899 = vpack.c.b16 %v843, %v841
  %v900 = vpack.c.b16 %v846, %v844
  %v901 = vpack.c.b16 %v847, %v845
  %v902 = vpack.c.b16 %v850, %v848
  %v903 = vpack.c.b16 %v851, %v849
  %v904 = vpack.c.b16 %v854, %v852
  %v905 = vpack.c.b16 %v855, %v853
  %v906 = vpack.c.b16 %v858, %v856
  %v907 = vpack.c.b16 %v859, %v857
  %v908 = vpack.c.b16 %v862, %v860
  %v909 = vpack.c.b16 %v863, %v861
  %v910 = vpack.c.b16 %v866, %v864
  %v911 = vpack.c.b16 %v867, %v865
  %v912 = vpack.c.b16 %v870, %v868
  %v913 = vpack.c.b16 %v871, %v869
  %v914 = vpack.c.b16 %v874, %v872
  %v915 = vpack.c.b16 %v875, %v873
  %v957 = vsel %vm312, %v753, 0
  %959 = vmatprep.subr.bf16.mxu0 %v877
  %960 = vmatpush1.bf16.msra.mxu0 %v876
  %961 = vmatprep.subr.bf16.mxu0 %v879
  %962 = vmatpush1.bf16.msra.mxu0 %v878
  %963 = vmatprep.subr.bf16.mxu0 %v881
  %964 = vmatpush1.bf16.msra.mxu0 %v880
  %965 = vmatprep.subr.bf16.mxu0 %v883
  %966 = vmatpush1.bf16.msra.mxu0 %v882
  %967 = vmatprep.subr.bf16.mxu0 %v885
  %968 = vmatpush1.bf16.msra.mxu0 %v884
  %969 = vmatprep.subr.bf16.mxu0 %v887
  %970 = vmatpush1.bf16.msra.mxu0 %v886
  %971 = vmatprep.subr.bf16.mxu0 %v889
  %972 = vmatpush1.bf16.msra.mxu0 %v888
  %973 = vmatprep.subr.bf16.mxu0 %v891
  %974 = vmatpush1.bf16.msra.mxu0 %v890
  %975 = vmatprep.subr.bf16.mxu0 %v893
  %976 = vmatpush1.bf16.msra.mxu0 %v892
  %977 = vmatprep.subr.bf16.mxu0 %v895
  %978 = vmatpush1.bf16.msra.mxu0 %v894
  %979 = vmatprep.subr.bf16.mxu0 %v897
  %980 = vmatpush1.bf16.msra.mxu0 %v896
  %981 = vmatprep.subr.bf16.mxu0 %v899
  %982 = vmatpush1.bf16.msra.mxu0 %v898
  %983 = vmatprep.subr.bf16.mxu0 %v901
  %984 = vmatpush1.bf16.msra.mxu0 %v900
  %985 = vmatprep.subr.bf16.mxu0 %v903
  %986 = vmatpush1.bf16.msra.mxu0 %v902
  %987 = vmatprep.subr.bf16.mxu0 %v905
  %988 = vmatpush1.bf16.msra.mxu0 %v904
  %989 = vmatprep.subr.bf16.mxu0 %v907
  %990 = vmatpush1.bf16.msra.mxu0 %v906
  %991 = vmatprep.mubr.bf16.mxu0 %v747
  %992 = vmatmul.mubr.bf16.gmra.mrb[0].mxu0 %v740
  %v993 = vpop.f32.mrb[0].mxu0
  %v994 = vadd.f32 0.0, %v993
  %v995 = vpop.f32.mrb[0].mxu0
  %v996 = vadd.f32 0.0, %v995
  %v997 = vpop.f32.mrb[0].mxu0
  %v998 = vpop.f32.mrb[0].mxu0
  %999 = vdwg.mxu0
  %1000 = vmatprep.subr.bf16.mxu0 %v909
  %1001 = vmatpush1.bf16.msra.mxu0 %v908
  %1002 = vmatprep.subr.bf16.mxu0 %v911
  %1003 = vmatpush1.bf16.msra.mxu0 %v910
  %1004 = vmatprep.subr.bf16.mxu0 %v913
  %1005 = vmatpush1.bf16.msra.mxu0 %v912
  %1006 = vmatprep.subr.bf16.mxu0 %v915
  %1007 = vmatpush1.bf16.msra.mxu0 %v914
  %1008 = vmatprep.subr.bf16.mxu0 0
  %1009 = vmatpush1.bf16.msra.mxu0 0
  %1010 = vmatprep.subr.bf16.mxu0 0
  %1011 = vmatpush1.bf16.msra.mxu0 0
  %1012 = vmatprep.subr.bf16.mxu0 0
  %1013 = vmatpush1.bf16.msra.mxu0 0
  %1014 = vmatprep.subr.bf16.mxu0 0
  %1015 = vmatpush1.bf16.msra.mxu0 0
  %1016 = vmatprep.subr.bf16.mxu0 0
  %1017 = vmatpush1.bf16.msra.mxu0 0
  %1018 = vmatprep.subr.bf16.mxu0 0
  %1019 = vmatpush1.bf16.msra.mxu0 0
  %1020 = vmatprep.subr.bf16.mxu0 0
  %1021 = vmatpush1.bf16.msra.mxu0 0
  %1022 = vmatprep.subr.bf16.mxu0 0
  %1023 = vmatpush1.bf16.msra.mxu0 0
  %1024 = vmatprep.subr.bf16.mxu0 0
  %1025 = vmatpush1.bf16.msra.mxu0 0
  %1026 = vmatprep.subr.bf16.mxu0 0
  %1027 = vmatpush1.bf16.msra.mxu0 0
  %1028 = vmatprep.subr.bf16.mxu0 0
  %1029 = vmatpush1.bf16.msra.mxu0 0
  %1030 = vmatprep.subr.bf16.mxu0 0
  %1031 = vmatpush1.bf16.msra.mxu0 0
  %1032 = vmatprep.mubr.bf16.mxu0 0
  %1033 = vmatmul.mubr.bf16.gmra.mrb[0].mxu0 %v957
  %v1034 = vpop.f32.mrb[0].mxu0
  %v1035 = vadd.f32 %v994, %v1034
  %v1036 = vpop.f32.mrb[0].mxu0
  %v1037 = vadd.f32 %v996, %v1036
  %v1038 = vpop.f32.mrb[0].mxu0
  %v1039 = vpop.f32.mrb[0].mxu0
  %1040 = vdwg.mxu0
  %v1041 = vadd.f32 %v687, %v1035
  %v1042 = vadd.f32 %v689, %v1037
  %s1043 = scalar_lea.vmem %s2, 960
  %v1044 = vld [vmem:[%s1043] sm:$0xff]
  %v1045 = vld [vmem:[%s1043 + $0x8] sm:$0xff]
  %v1046 = vld [vmem:[%s1043 + $0x10] sm:$0xff]
  %v1047 = vld [vmem:[%s1043 + $0x18] sm:$0xff]
  %v1048 = vld [vmem:[%s1043 + $0x20] sm:$0xff]
  %v1049 = vld [vmem:[%s1043 + $0x28] sm:$0xff]
  %v1050 = vld [vmem:[%s1043 + $0x30] sm:$0xff]
  %v1051 = vld [vmem:[%s1043 + $0x38] sm:$0xff]
  %v1052 = vld [vmem:[%s1043 + $0x40] sm:$0xff]
  %v1053 = vld [vmem:[%s1043 + $0x48] sm:$0xff]
  %v1054 = vld [vmem:[%s1043 + $0x50] sm:$0xff]
  %v1055 = vld [vmem:[%s1043 + $0x58] sm:$0xff]
  %v1056 = vld [vmem:[%s1043 + $0x60] sm:$0xff]
  %v1057 = vld [vmem:[%s1043 + $0x68] sm:$0xff]
  %v1058 = vld [vmem:[%s1043 + $0x70] sm:$0xff]
  %v1059 = vld [vmem:[%s1043 + $0x78] sm:$0xff]
  %v1060 = vld [vmem:[%s1043 + $0x80] sm:$0xff]
  %v1061 = vld [vmem:[%s1043 + $0x88] sm:$0xff]
  %v1062 = vld [vmem:[%s1043 + $0x90] sm:$0xff]
  %v1063 = vld [vmem:[%s1043 + $0x98] sm:$0xff]
  %v1064 = vld [vmem:[%s1043 + $0xa0] sm:$0xff]
  %v1065 = vld [vmem:[%s1043 + $0xa8] sm:$0xff]
  %v1066 = vld [vmem:[%s1043 + $0xb0] sm:$0xff]
  %v1067 = vld [vmem:[%s1043 + $0xb8] sm:$0xff]
  %v1068 = vld [vmem:[%s1043 + $0xc0] sm:$0xff]
  %v1069 = vld [vmem:[%s1043 + $0xc8] sm:$0xff]
  %v1070 = vld [vmem:[%s1043 + $0xd0] sm:$0xff]
  %v1071 = vld [vmem:[%s1043 + $0xd8] sm:$0xff]
  %v1072 = vld [vmem:[%s1043 + $0xe0] sm:$0xff]
  %v1073 = vld [vmem:[%s1043 + $0xe8] sm:$0xff]
  %v1074 = vld [vmem:[%s1043 + $0xf0] sm:$0xff]
  %v1075 = vld [vmem:[%s1043 + $0xf8] sm:$0xff]
  %v1076 = vld [vmem:[%s1043 + $0x100] sm:$0xff]
  %v1077 = vld [vmem:[%s1043 + $0x108] sm:$0xff]
  %v1078 = vld [vmem:[%s1043 + $0x110] sm:$0xff]
  %v1079 = vld [vmem:[%s1043 + $0x118] sm:$0xff]
  %v1080 = vld [vmem:[%s1043 + $0x120] sm:$0xff]
  %v1081 = vld [vmem:[%s1043 + $0x128] sm:$0xff]
  %v1082 = vld [vmem:[%s1043 + $0x130] sm:$0xff]
  %v1083 = vld [vmem:[%s1043 + $0x138] sm:$0xff]
  %v1085 = vshrl.u32 %v107, 16
  %v1087 = vshll.u32 %v107, 16
  %v1089 = vrot.slane %v1087, 1
  %v1090 = vor.u32 %v1085, %v1089
  %v1092 = vshrl.u32 %v108, 16
  %v1094 = vshll.u32 %v108, 16
  %v1096 = vrot.slane %v1094, 1
  %v1097 = vor.u32 %v1092, %v1096
  %v1098 = vshrl.u32 %v109, 16
  %v1100 = vshll.u32 %v109, 16
  %v1102 = vrot.slane %v1100, 1
  %v1103 = vor.u32 %v1098, %v1102
  %v1146 = vunpack.c.l.b16 %v1044
  %v1147 = vunpack.c.h.b16 %v1044
  %v1148 = vunpack.c.l.b16 %v1045
  %v1149 = vunpack.c.h.b16 %v1045
  %v1150 = vunpack.c.l.b16 %v1046
  %v1151 = vunpack.c.h.b16 %v1046
  %v1152 = vunpack.c.l.b16 %v1047
  %v1153 = vunpack.c.h.b16 %v1047
  %v1154 = vunpack.c.l.b16 %v1048
  %v1155 = vunpack.c.h.b16 %v1048
  %v1156 = vunpack.c.l.b16 %v1049
  %v1157 = vunpack.c.h.b16 %v1049
  %v1158 = vunpack.c.l.b16 %v1050
  %v1159 = vunpack.c.h.b16 %v1050
  %v1160 = vunpack.c.l.b16 %v1051
  %v1161 = vunpack.c.h.b16 %v1051
  %v1162 = vunpack.c.l.b16 %v1052
  %v1163 = vunpack.c.h.b16 %v1052
  %v1164 = vunpack.c.l.b16 %v1053
  %v1165 = vunpack.c.h.b16 %v1053
  %v1166 = vunpack.c.l.b16 %v1054
  %v1167 = vunpack.c.h.b16 %v1054
  %v1168 = vunpack.c.l.b16 %v1055
  %v1169 = vunpack.c.h.b16 %v1055
  %v1170 = vunpack.c.l.b16 %v1056
  %v1171 = vunpack.c.h.b16 %v1056
  %v1172 = vunpack.c.l.b16 %v1057
  %v1173 = vunpack.c.h.b16 %v1057
  %v1174 = vunpack.c.l.b16 %v1058
  %v1175 = vunpack.c.h.b16 %v1058
  %v1176 = vunpack.c.l.b16 %v1059
  %v1177 = vunpack.c.h.b16 %v1059
  %v1178 = vunpack.c.l.b16 %v1060
  %v1179 = vunpack.c.h.b16 %v1060
  %v1180 = vunpack.c.l.b16 %v1061
  %v1181 = vunpack.c.h.b16 %v1061
  %v1182 = vunpack.c.l.b16 %v1062
  %v1183 = vunpack.c.h.b16 %v1062
  %v1184 = vunpack.c.l.b16 %v1063
  %v1185 = vunpack.c.h.b16 %v1063
  %v1186 = vunpack.c.l.b16 %v1064
  %v1187 = vunpack.c.h.b16 %v1064
  %v1188 = vunpack.c.l.b16 %v1065
  %v1189 = vunpack.c.h.b16 %v1065
  %v1190 = vunpack.c.l.b16 %v1066
  %v1191 = vunpack.c.h.b16 %v1066
  %v1192 = vunpack.c.l.b16 %v1067
  %v1193 = vunpack.c.h.b16 %v1067
  %v1194 = vunpack.c.l.b16 %v1068
  %v1195 = vunpack.c.h.b16 %v1068
  %v1196 = vunpack.c.l.b16 %v1069
  %v1197 = vunpack.c.h.b16 %v1069
  %v1198 = vunpack.c.l.b16 %v1070
  %v1199 = vunpack.c.h.b16 %v1070
  %v1200 = vunpack.c.l.b16 %v1071
  %v1201 = vunpack.c.h.b16 %v1071
  %v1202 = vunpack.c.l.b16 %v1072
  %v1203 = vunpack.c.h.b16 %v1072
  %v1204 = vunpack.c.l.b16 %v1073
  %v1205 = vunpack.c.h.b16 %v1073
  %v1206 = vunpack.c.l.b16 %v1074
  %v1207 = vunpack.c.h.b16 %v1074
  %v1208 = vunpack.c.l.b16 %v1075
  %v1209 = vunpack.c.h.b16 %v1075
  %v1210 = vunpack.c.l.b16 %v1076
  %v1211 = vunpack.c.h.b16 %v1076
  %v1212 = vunpack.c.l.b16 %v1077
  %v1213 = vunpack.c.h.b16 %v1077
  %v1214 = vunpack.c.l.b16 %v1078
  %v1215 = vunpack.c.h.b16 %v1078
  %v1216 = vunpack.c.l.b16 %v1079
  %v1217 = vunpack.c.h.b16 %v1079
  %v1218 = vunpack.c.l.b16 %v1080
  %v1219 = vunpack.c.h.b16 %v1080
  %v1220 = vunpack.c.l.b16 %v1081
  %v1221 = vunpack.c.h.b16 %v1081
  %v1222 = vunpack.c.l.b16 %v1082
  %v1223 = vunpack.c.h.b16 %v1082
  %v1224 = vunpack.c.l.b16 %v1083
  %v1225 = vunpack.c.h.b16 %v1083
  %v1226 = vpack.c.b16 %v1148, %v1146
  %v1227 = vpack.c.b16 %v1149, %v1147
  %v1228 = vpack.c.b16 %v1152, %v1150
  %v1229 = vpack.c.b16 %v1153, %v1151
  %v1230 = vpack.c.b16 %v1156, %v1154
  %v1231 = vpack.c.b16 %v1157, %v1155
  %v1232 = vpack.c.b16 %v1160, %v1158
  %v1233 = vpack.c.b16 %v1161, %v1159
  %v1234 = vpack.c.b16 %v1164, %v1162
  %v1235 = vpack.c.b16 %v1165, %v1163
  %v1236 = vpack.c.b16 %v1168, %v1166
  %v1237 = vpack.c.b16 %v1169, %v1167
  %v1238 = vpack.c.b16 %v1172, %v1170
  %v1239 = vpack.c.b16 %v1173, %v1171
  %v1240 = vpack.c.b16 %v1176, %v1174
  %v1241 = vpack.c.b16 %v1177, %v1175
  %v1242 = vpack.c.b16 %v1180, %v1178
  %v1243 = vpack.c.b16 %v1181, %v1179
  %v1244 = vpack.c.b16 %v1184, %v1182
  %v1245 = vpack.c.b16 %v1185, %v1183
  %v1246 = vpack.c.b16 %v1188, %v1186
  %v1247 = vpack.c.b16 %v1189, %v1187
  %v1248 = vpack.c.b16 %v1192, %v1190
  %v1249 = vpack.c.b16 %v1193, %v1191
  %v1250 = vpack.c.b16 %v1196, %v1194
  %v1251 = vpack.c.b16 %v1197, %v1195
  %v1252 = vpack.c.b16 %v1200, %v1198
  %v1253 = vpack.c.b16 %v1201, %v1199
  %v1254 = vpack.c.b16 %v1204, %v1202
  %v1255 = vpack.c.b16 %v1205, %v1203
  %v1256 = vpack.c.b16 %v1208, %v1206
  %v1257 = vpack.c.b16 %v1209, %v1207
  %v1258 = vpack.c.b16 %v1212, %v1210
  %v1259 = vpack.c.b16 %v1213, %v1211
  %v1260 = vpack.c.b16 %v1216, %v1214
  %v1261 = vpack.c.b16 %v1217, %v1215
  %v1262 = vpack.c.b16 %v1220, %v1218
  %v1263 = vpack.c.b16 %v1221, %v1219
  %v1264 = vpack.c.b16 %v1224, %v1222
  %v1265 = vpack.c.b16 %v1225, %v1223
  %v1307 = vsel %vm312, %v1103, 0
  %1309 = vmatprep.subr.bf16.mxu0 %v1227
  %1310 = vmatpush1.bf16.msra.mxu0 %v1226
  %1311 = vmatprep.subr.bf16.mxu0 %v1229
  %1312 = vmatpush1.bf16.msra.mxu0 %v1228
  %1313 = vmatprep.subr.bf16.mxu0 %v1231
  %1314 = vmatpush1.bf16.msra.mxu0 %v1230
  %1315 = vmatprep.subr.bf16.mxu0 %v1233
  %1316 = vmatpush1.bf16.msra.mxu0 %v1232
  %1317 = vmatprep.subr.bf16.mxu0 %v1235
  %1318 = vmatpush1.bf16.msra.mxu0 %v1234
  %1319 = vmatprep.subr.bf16.mxu0 %v1237
  %1320 = vmatpush1.bf16.msra.mxu0 %v1236
  %1321 = vmatprep.subr.bf16.mxu0 %v1239
  %1322 = vmatpush1.bf16.msra.mxu0 %v1238
  %1323 = vmatprep.subr.bf16.mxu0 %v1241
  %1324 = vmatpush1.bf16.msra.mxu0 %v1240
  %1325 = vmatprep.subr.bf16.mxu0 %v1243
  %1326 = vmatpush1.bf16.msra.mxu0 %v1242
  %1327 = vmatprep.subr.bf16.mxu0 %v1245
  %1328 = vmatpush1.bf16.msra.mxu0 %v1244
  %1329 = vmatprep.subr.bf16.mxu0 %v1247
  %1330 = vmatpush1.bf16.msra.mxu0 %v1246
  %1331 = vmatprep.subr.bf16.mxu0 %v1249
  %1332 = vmatpush1.bf16.msra.mxu0 %v1248
  %1333 = vmatprep.subr.bf16.mxu0 %v1251
  %1334 = vmatpush1.bf16.msra.mxu0 %v1250
  %1335 = vmatprep.subr.bf16.mxu0 %v1253
  %1336 = vmatpush1.bf16.msra.mxu0 %v1252
  %1337 = vmatprep.subr.bf16.mxu0 %v1255
  %1338 = vmatpush1.bf16.msra.mxu0 %v1254
  %1339 = vmatprep.subr.bf16.mxu0 %v1257
  %1340 = vmatpush1.bf16.msra.mxu0 %v1256
  %1341 = vmatprep.mubr.bf16.mxu0 %v1097
  %1342 = vmatmul.mubr.bf16.gmra.mrb[0].mxu0 %v1090
  %v1343 = vpop.f32.mrb[0].mxu0
  %v1344 = vadd.f32 0.0, %v1343
  %v1345 = vpop.f32.mrb[0].mxu0
  %v1346 = vadd.f32 0.0, %v1345
  %v1347 = vpop.f32.mrb[0].mxu0
  %v1348 = vpop.f32.mrb[0].mxu0
  %1349 = vdwg.mxu0
  %1350 = vmatprep.subr.bf16.mxu0 %v1259
  %1351 = vmatpush1.bf16.msra.mxu0 %v1258
  %1352 = vmatprep.subr.bf16.mxu0 %v1261
  %1353 = vmatpush1.bf16.msra.mxu0 %v1260
  %1354 = vmatprep.subr.bf16.mxu0 %v1263
  %1355 = vmatpush1.bf16.msra.mxu0 %v1262
  %1356 = vmatprep.subr.bf16.mxu0 %v1265
  %1357 = vmatpush1.bf16.msra.mxu0 %v1264
  %1358 = vmatprep.subr.bf16.mxu0 0
  %1359 = vmatpush1.bf16.msra.mxu0 0
  %1360 = vmatprep.subr.bf16.mxu0 0
  %1361 = vmatpush1.bf16.msra.mxu0 0
  %1362 = vmatprep.subr.bf16.mxu0 0
  %1363 = vmatpush1.bf16.msra.mxu0 0
  %1364 = vmatprep.subr.bf16.mxu0 0
  %1365 = vmatpush1.bf16.msra.mxu0 0
  %1366 = vmatprep.subr.bf16.mxu0 0
  %1367 = vmatpush1.bf16.msra.mxu0 0
  %1368 = vmatprep.subr.bf16.mxu0 0
  %1369 = vmatpush1.bf16.msra.mxu0 0
  %1370 = vmatprep.subr.bf16.mxu0 0
  %1371 = vmatpush1.bf16.msra.mxu0 0
  %1372 = vmatprep.subr.bf16.mxu0 0
  %1373 = vmatpush1.bf16.msra.mxu0 0
  %1374 = vmatprep.subr.bf16.mxu0 0
  %1375 = vmatpush1.bf16.msra.mxu0 0
  %1376 = vmatprep.subr.bf16.mxu0 0
  %1377 = vmatpush1.bf16.msra.mxu0 0
  %1378 = vmatprep.subr.bf16.mxu0 0
  %1379 = vmatpush1.bf16.msra.mxu0 0
  %1380 = vmatprep.subr.bf16.mxu0 0
  %1381 = vmatpush1.bf16.msra.mxu0 0
  %1382 = vmatprep.mubr.bf16.mxu0 0
  %1383 = vmatmul.mubr.bf16.gmra.mrb[0].mxu0 %v1307
  %v1384 = vpop.f32.mrb[0].mxu0
  %v1385 = vadd.f32 %v1344, %v1384
  %v1386 = vpop.f32.mrb[0].mxu0
  %v1387 = vadd.f32 %v1346, %v1386
  %v1388 = vpop.f32.mrb[0].mxu0
  %v1389 = vpop.f32.mrb[0].mxu0
  %1390 = vdwg.mxu0
  %v1391 = vadd.f32 %v1041, %v1385
  %v1392 = vadd.f32 %v1042, %v1387
  %v1393 = vpack.c.bf16 %v1391, %v1391
  %v1394 = vpack.c.bf16 %v1392, %v1392
  %v1397 = vcombine.low %v1393, %v1394
  %v1399 = vunpack.c.l.s4 1983009808
  %v1400 = vunpack.c.0.s8 %v1399
  %v1401 = vlaneseq
  %v1402 = vshrl.u32 %v1401, 7
  %v1403 = vsub.s32 %v1400, %v1402
  %v1404 = vrot.slane %v1397, %v1403
  %1406 = vst [vmem:[%s3] sm:$0xf] %v1404
  %vm1407 = vcmask 1043456
  %v1408 = vsel %vm1407, %v1391, 0.0
  %v1409 = vrot.slane %v1408, 4
  %v1410 = vadd.f32 %v1408, %v1409
  %v1411 = vrot.slane %v1410, 2
  %v1412 = vadd.f32 %v1410, %v1411
  %v1413 = vrot.slane %v1412, 1
  %v1414 = vadd.f32 %v1412, %v1413
  %v1415 = vsel %vm1407, %v1392, 0.0
  %v1416 = vrot.slane %v1415, 4
  %v1417 = vadd.f32 %v1415, %v1416
  %v1418 = vrot.slane %v1417, 2
  %v1419 = vadd.f32 %v1417, %v1418
  %v1420 = vrot.slane %v1419, 1
  %v1421 = vadd.f32 %v1419, %v1420
  %v1422 = vadd.f32 %v1414, 0.0
  %v1423 = vadd.f32 %v1421, 0.0
  %v1424 = vmul.f32 %v1391, %v1391
  %v1425 = vmul.f32 %v1392, %v1392
  %v1426 = vsel %vm1407, %v1424, 0.0
  %v1427 = vrot.slane %v1426, 4
  %v1428 = vadd.f32 %v1426, %v1427
  %v1429 = vrot.slane %v1428, 2
  %v1430 = vadd.f32 %v1428, %v1429
  %v1431 = vrot.slane %v1430, 1
  %v1432 = vadd.f32 %v1430, %v1431
  %v1433 = vsel %vm1407, %v1425, 0.0
  %v1434 = vrot.slane %v1433, 4
  %v1435 = vadd.f32 %v1433, %v1434
  %v1436 = vrot.slane %v1435, 2
  %v1437 = vadd.f32 %v1435, %v1436
  %v1438 = vrot.slane %v1437, 1
  %v1439 = vadd.f32 %v1437, %v1438
  %v1440 = vadd.f32 %v1432, 0.0
  %v1441 = vadd.f32 %v1439, 0.0
  %s1442 = scalar_lea.vmem %s0, 12
  %v1443 = vld [vmem:[%s1442] sm:$0x77]
  %v1444 = vld [vmem:[%s1442 + $0x8] sm:$0x7]
  %s1445 = scalar_lea.vmem %s1, 12
  %v1446 = vld [vmem:[%s1445] sm:$0x77]
  %v1447 = vld [vmem:[%s1445 + $0x8] sm:$0x7]
  %v1448 = vld [vmem:[%s2] sm:$0xff]
  %v1449 = vld [vmem:[%s2 + $0x8] sm:$0xff]
  %v1450 = vld [vmem:[%s2 + $0x10] sm:$0xff]
  %v1451 = vld [vmem:[%s2 + $0x18] sm:$0xff]
  %v1452 = vld [vmem:[%s2 + $0x20] sm:$0xff]
  %v1453 = vld [vmem:[%s2 + $0x28] sm:$0xff]
  %v1454 = vld [vmem:[%s2 + $0x30] sm:$0xff]
  %v1455 = vld [vmem:[%s2 + $0x38] sm:$0xff]
  %v1456 = vld [vmem:[%s2 + $0x40] sm:$0xff]
  %v1457 = vld [vmem:[%s2 + $0x48] sm:$0xff]
  %v1458 = vld [vmem:[%s2 + $0x50] sm:$0xff]
  %v1459 = vld [vmem:[%s2 + $0x58] sm:$0xff]
  %v1460 = vld [vmem:[%s2 + $0x60] sm:$0xff]
  %v1461 = vld [vmem:[%s2 + $0x68] sm:$0xff]
  %v1462 = vld [vmem:[%s2 + $0x70] sm:$0xff]
  %v1463 = vld [vmem:[%s2 + $0x78] sm:$0xff]
  %v1464 = vld [vmem:[%s2 + $0x80] sm:$0xff]
  %v1465 = vld [vmem:[%s2 + $0x88] sm:$0xff]
  %v1466 = vld [vmem:[%s2 + $0x90] sm:$0xff]
  %v1467 = vld [vmem:[%s2 + $0x98] sm:$0xff]
  %v1468 = vld [vmem:[%s2 + $0xa0] sm:$0xff]
  %v1469 = vld [vmem:[%s2 + $0xa8] sm:$0xff]
  %v1470 = vld [vmem:[%s2 + $0xb0] sm:$0xff]
  %v1471 = vld [vmem:[%s2 + $0xb8] sm:$0xff]
  %v1472 = vld [vmem:[%s2 + $0xc0] sm:$0xff]
  %v1473 = vld [vmem:[%s2 + $0xc8] sm:$0xff]
  %v1474 = vld [vmem:[%s2 + $0xd0] sm:$0xff]
  %v1475 = vld [vmem:[%s2 + $0xd8] sm:$0xff]
  %v1476 = vld [vmem:[%s2 + $0xe0] sm:$0xff]
  %v1477 = vld [vmem:[%s2 + $0xe8] sm:$0xff]
  %v1478 = vld [vmem:[%s2 + $0xf0] sm:$0xff]
  %v1479 = vld [vmem:[%s2 + $0xf8] sm:$0xff]
  %v1480 = vld [vmem:[%s2 + $0x100] sm:$0xff]
  %v1481 = vld [vmem:[%s2 + $0x108] sm:$0xff]
  %v1482 = vld [vmem:[%s2 + $0x110] sm:$0xff]
  %v1483 = vld [vmem:[%s2 + $0x118] sm:$0xff]
  %v1484 = vld [vmem:[%s2 + $0x120] sm:$0xff]
  %v1485 = vld [vmem:[%s2 + $0x128] sm:$0xff]
  %v1486 = vld [vmem:[%s2 + $0x130] sm:$0xff]
  %v1487 = vld [vmem:[%s2 + $0x138] sm:$0xff]
  %v1488 = vld [vmem:[%s61] sm:$0xff]
  %v1489 = vld [vmem:[%s61 + $0x8] sm:$0xff]
  %v1490 = vld [vmem:[%s61 + $0x10] sm:$0xff]
  %v1491 = vld [vmem:[%s61 + $0x18] sm:$0xff]
  %v1492 = vld [vmem:[%s61 + $0x20] sm:$0xff]
  %v1493 = vld [vmem:[%s61 + $0x28] sm:$0xff]
  %v1494 = vld [vmem:[%s61 + $0x30] sm:$0xff]
  %v1495 = vld [vmem:[%s61 + $0x38] sm:$0xff]
  %v1496 = vld [vmem:[%s61 + $0x40] sm:$0xff]
  %v1497 = vld [vmem:[%s61 + $0x48] sm:$0xff]
  %v1498 = vld [vmem:[%s61 + $0x50] sm:$0xff]
  %v1499 = vld [vmem:[%s61 + $0x58] sm:$0xff]
  %v1500 = vld [vmem:[%s61 + $0x60] sm:$0xff]
  %v1501 = vld [vmem:[%s61 + $0x68] sm:$0xff]
  %v1502 = vld [vmem:[%s61 + $0x70] sm:$0xff]
  %v1503 = vld [vmem:[%s61 + $0x78] sm:$0xff]
  %v1504 = vld [vmem:[%s61 + $0x80] sm:$0xff]
  %v1505 = vld [vmem:[%s61 + $0x88] sm:$0xff]
  %v1506 = vld [vmem:[%s61 + $0x90] sm:$0xff]
  %v1507 = vld [vmem:[%s61 + $0x98] sm:$0xff]
  %v1508 = vld [vmem:[%s61 + $0xa0] sm:$0xff]
  %v1509 = vld [vmem:[%s61 + $0xa8] sm:$0xff]
  %v1510 = vld [vmem:[%s61 + $0xb0] sm:$0xff]
  %v1511 = vld [vmem:[%s61 + $0xb8] sm:$0xff]
  %v1512 = vld [vmem:[%s61 + $0xc0] sm:$0xff]
  %v1513 = vld [vmem:[%s61 + $0xc8] sm:$0xff]
  %v1514 = vld [vmem:[%s61 + $0xd0] sm:$0xff]
  %v1515 = vld [vmem:[%s61 + $0xd8] sm:$0xff]
  %v1516 = vld [vmem:[%s61 + $0xe0] sm:$0xff]
  %v1517 = vld [vmem:[%s61 + $0xe8] sm:$0xff]
  %v1518 = vld [vmem:[%s61 + $0xf0] sm:$0xff]
  %v1519 = vld [vmem:[%s61 + $0xf8] sm:$0xff]
  %v1520 = vld [vmem:[%s61 + $0x100] sm:$0xff]
  %v1521 = vld [vmem:[%s61 + $0x108] sm:$0xff]
  %v1522 = vld [vmem:[%s61 + $0x110] sm:$0xff]
  %v1523 = vld [vmem:[%s61 + $0x118] sm:$0xff]
  %v1524 = vld [vmem:[%s61 + $0x120] sm:$0xff]
  %v1525 = vld [vmem:[%s61 + $0x128] sm:$0xff]
  %v1526 = vld [vmem:[%s61 + $0x130] sm:$0xff]
  %v1527 = vld [vmem:[%s61 + $0x138] sm:$0xff]
  %v1530 = vunpack.c.l.b16 %v1446
  %v1531 = vunpack.c.h.b16 %v1446
  %v1532 = vunpack.c.l.b16 %v1447
  %v1533 = vpack.c.b16 %v1530, %v1530
  %v1534 = vpack.c.b16 %v1531, %v1531
  %v1535 = vpack.c.b16 %v1532, %v1532
  %v1578 = vunpack.c.l.b16 %v1488
  %v1579 = vunpack.c.h.b16 %v1488
  %v1580 = vunpack.c.l.b16 %v1489
  %v1581 = vunpack.c.h.b16 %v1489
  %v1582 = vunpack.c.l.b16 %v1490
  %v1583 = vunpack.c.h.b16 %v1490
  %v1584 = vunpack.c.l.b16 %v1491
  %v1585 = vunpack.c.h.b16 %v1491
  %v1586 = vunpack.c.l.b16 %v1492
  %v1587 = vunpack.c.h.b16 %v1492
  %v1588 = vunpack.c.l.b16 %v1493
  %v1589 = vunpack.c.h.b16 %v1493
  %v1590 = vunpack.c.l.b16 %v1494
  %v1591 = vunpack.c.h.b16 %v1494
  %v1592 = vunpack.c.l.b16 %v1495
  %v1593 = vunpack.c.h.b16 %v1495
  %v1594 = vunpack.c.l.b16 %v1496
  %v1595 = vunpack.c.h.b16 %v1496
  %v1596 = vunpack.c.l.b16 %v1497
  %v1597 = vunpack.c.h.b16 %v1497
  %v1598 = vunpack.c.l.b16 %v1498
  %v1599 = vunpack.c.h.b16 %v1498
  %v1600 = vunpack.c.l.b16 %v1499
  %v1601 = vunpack.c.h.b16 %v1499
  %v1602 = vunpack.c.l.b16 %v1500
  %v1603 = vunpack.c.h.b16 %v1500
  %v1604 = vunpack.c.l.b16 %v1501
  %v1605 = vunpack.c.h.b16 %v1501
  %v1606 = vunpack.c.l.b16 %v1502
  %v1607 = vunpack.c.h.b16 %v1502
  %v1608 = vunpack.c.l.b16 %v1503
  %v1609 = vunpack.c.h.b16 %v1503
  %v1610 = vunpack.c.l.b16 %v1504
  %v1611 = vunpack.c.h.b16 %v1504
  %v1612 = vunpack.c.l.b16 %v1505
  %v1613 = vunpack.c.h.b16 %v1505
  %v1614 = vunpack.c.l.b16 %v1506
  %v1615 = vunpack.c.h.b16 %v1506
  %v1616 = vunpack.c.l.b16 %v1507
  %v1617 = vunpack.c.h.b16 %v1507
  %v1618 = vunpack.c.l.b16 %v1508
  %v1619 = vunpack.c.h.b16 %v1508
  %v1620 = vunpack.c.l.b16 %v1509
  %v1621 = vunpack.c.h.b16 %v1509
  %v1622 = vunpack.c.l.b16 %v1510
  %v1623 = vunpack.c.h.b16 %v1510
  %v1624 = vunpack.c.l.b16 %v1511
  %v1625 = vunpack.c.h.b16 %v1511
  %v1626 = vunpack.c.l.b16 %v1512
  %v1627 = vunpack.c.h.b16 %v1512
  %v1628 = vunpack.c.l.b16 %v1513
  %v1629 = vunpack.c.h.b16 %v1513
  %v1630 = vunpack.c.l.b16 %v1514
  %v1631 = vunpack.c.h.b16 %v1514
  %v1632 = vunpack.c.l.b16 %v1515
  %v1633 = vunpack.c.h.b16 %v1515
  %v1634 = vunpack.c.l.b16 %v1516
  %v1635 = vunpack.c.h.b16 %v1516
  %v1636 = vunpack.c.l.b16 %v1517
  %v1637 = vunpack.c.h.b16 %v1517
  %v1638 = vunpack.c.l.b16 %v1518
  %v1639 = vunpack.c.h.b16 %v1518
  %v1640 = vunpack.c.l.b16 %v1519
  %v1641 = vunpack.c.h.b16 %v1519
  %v1642 = vunpack.c.l.b16 %v1520
  %v1643 = vunpack.c.h.b16 %v1520
  %v1644 = vunpack.c.l.b16 %v1521
  %v1645 = vunpack.c.h.b16 %v1521
  %v1646 = vunpack.c.l.b16 %v1522
  %v1647 = vunpack.c.h.b16 %v1522
  %v1648 = vunpack.c.l.b16 %v1523
  %v1649 = vunpack.c.h.b16 %v1523
  %v1650 = vunpack.c.l.b16 %v1524
  %v1651 = vunpack.c.h.b16 %v1524
  %v1652 = vunpack.c.l.b16 %v1525
  %v1653 = vunpack.c.h.b16 %v1525
  %v1654 = vunpack.c.l.b16 %v1526
  %v1655 = vunpack.c.h.b16 %v1526
  %v1656 = vunpack.c.l.b16 %v1527
  %v1657 = vunpack.c.h.b16 %v1527
  %v1658 = vpack.c.b16 %v1580, %v1578
  %v1659 = vpack.c.b16 %v1581, %v1579
  %v1660 = vpack.c.b16 %v1584, %v1582
  %v1661 = vpack.c.b16 %v1585, %v1583
  %v1662 = vpack.c.b16 %v1588, %v1586
  %v1663 = vpack.c.b16 %v1589, %v1587
  %v1664 = vpack.c.b16 %v1592, %v1590
  %v1665 = vpack.c.b16 %v1593, %v1591
  %v1666 = vpack.c.b16 %v1596, %v1594
  %v1667 = vpack.c.b16 %v1597, %v1595
  %v1668 = vpack.c.b16 %v1600, %v1598
  %v1669 = vpack.c.b16 %v1601, %v1599
  %v1670 = vpack.c.b16 %v1604, %v1602
  %v1671 = vpack.c.b16 %v1605, %v1603
  %v1672 = vpack.c.b16 %v1608, %v1606
  %v1673 = vpack.c.b16 %v1609, %v1607
  %v1674 = vpack.c.b16 %v1612, %v1610
  %v1675 = vpack.c.b16 %v1613, %v1611
  %v1676 = vpack.c.b16 %v1616, %v1614
  %v1677 = vpack.c.b16 %v1617, %v1615
  %v1678 = vpack.c.b16 %v1620, %v1618
  %v1679 = vpack.c.b16 %v1621, %v1619
  %v1680 = vpack.c.b16 %v1624, %v1622
  %v1681 = vpack.c.b16 %v1625, %v1623
  %v1682 = vpack.c.b16 %v1628, %v1626
  %v1683 = vpack.c.b16 %v1629, %v1627
  %v1684 = vpack.c.b16 %v1632, %v1630
  %v1685 = vpack.c.b16 %v1633, %v1631
  %v1686 = vpack.c.b16 %v1636, %v1634
  %v1687 = vpack.c.b16 %v1637, %v1635
  %v1688 = vpack.c.b16 %v1640, %v1638
  %v1689 = vpack.c.b16 %v1641, %v1639
  %v1690 = vpack.c.b16 %v1644, %v1642
  %v1691 = vpack.c.b16 %v1645, %v1643
  %v1692 = vpack.c.b16 %v1648, %v1646
  %v1693 = vpack.c.b16 %v1649, %v1647
  %v1694 = vpack.c.b16 %v1652, %v1650
  %v1695 = vpack.c.b16 %v1653, %v1651
  %v1696 = vpack.c.b16 %v1656, %v1654
  %v1697 = vpack.c.b16 %v1657, %v1655
  %v1739 = vsel %vm312, %v1535, 0
  %1741 = vmatprep.subr.bf16.mxu0 %v1659
  %1742 = vmatpush1.bf16.msra.mxu0 %v1658
  %1743 = vmatprep.subr.bf16.mxu0 %v1661
  %1744 = vmatpush1.bf16.msra.mxu0 %v1660
  %1745 = vmatprep.subr.bf16.mxu0 %v1663
  %1746 = vmatpush1.bf16.msra.mxu0 %v1662
  %1747 = vmatprep.subr.bf16.mxu0 %v1665
  %1748 = vmatpush1.bf16.msra.mxu0 %v1664
  %1749 = vmatprep.subr.bf16.mxu0 %v1667
  %1750 = vmatpush1.bf16.msra.mxu0 %v1666
  %1751 = vmatprep.subr.bf16.mxu0 %v1669
  %1752 = vmatpush1.bf16.msra.mxu0 %v1668
  %1753 = vmatprep.subr.bf16.mxu0 %v1671
  %1754 = vmatpush1.bf16.msra.mxu0 %v1670
  %1755 = vmatprep.subr.bf16.mxu0 %v1673
  %1756 = vmatpush1.bf16.msra.mxu0 %v1672
  %1757 = vmatprep.subr.bf16.mxu0 %v1675
  %1758 = vmatpush1.bf16.msra.mxu0 %v1674
  %1759 = vmatprep.subr.bf16.mxu0 %v1677
  %1760 = vmatpush1.bf16.msra.mxu0 %v1676
  %1761 = vmatprep.subr.bf16.mxu0 %v1679
  %1762 = vmatpush1.bf16.msra.mxu0 %v1678
  %1763 = vmatprep.subr.bf16.mxu0 %v1681
  %1764 = vmatpush1.bf16.msra.mxu0 %v1680
  %1765 = vmatprep.subr.bf16.mxu0 %v1683
  %1766 = vmatpush1.bf16.msra.mxu0 %v1682
  %1767 = vmatprep.subr.bf16.mxu0 %v1685
  %1768 = vmatpush1.bf16.msra.mxu0 %v1684
  %1769 = vmatprep.subr.bf16.mxu0 %v1687
  %1770 = vmatpush1.bf16.msra.mxu0 %v1686
  %1771 = vmatprep.subr.bf16.mxu0 %v1689
  %1772 = vmatpush1.bf16.msra.mxu0 %v1688
  %1773 = vmatprep.mubr.bf16.mxu0 %v1534
  %1774 = vmatmul.mubr.bf16.gmra.mrb[0].mxu0 %v1533
  %v1775 = vpop.f32.mrb[0].mxu0
  %v1776 = vadd.f32 0.0, %v1775
  %v1777 = vpop.f32.mrb[0].mxu0
  %v1778 = vadd.f32 0.0, %v1777
  %v1779 = vpop.f32.mrb[0].mxu0
  %v1780 = vpop.f32.mrb[0].mxu0
  %1781 = vdwg.mxu0
  %1782 = vmatprep.subr.bf16.mxu0 %v1691
  %1783 = vmatpush1.bf16.msra.mxu0 %v1690
  %1784 = vmatprep.subr.bf16.mxu0 %v1693
  %1785 = vmatpush1.bf16.msra.mxu0 %v1692
  %1786 = vmatprep.subr.bf16.mxu0 %v1695
  %1787 = vmatpush1.bf16.msra.mxu0 %v1694
  %1788 = vmatprep.subr.bf16.mxu0 %v1697
  %1789 = vmatpush1.bf16.msra.mxu0 %v1696
  %1790 = vmatprep.subr.bf16.mxu0 0
  %1791 = vmatpush1.bf16.msra.mxu0 0
  %1792 = vmatprep.subr.bf16.mxu0 0
  %1793 = vmatpush1.bf16.msra.mxu0 0
  %1794 = vmatprep.subr.bf16.mxu0 0
  %1795 = vmatpush1.bf16.msra.mxu0 0
  %1796 = vmatprep.subr.bf16.mxu0 0
  %1797 = vmatpush1.bf16.msra.mxu0 0
  %1798 = vmatprep.subr.bf16.mxu0 0
  %1799 = vmatpush1.bf16.msra.mxu0 0
  %1800 = vmatprep.subr.bf16.mxu0 0
  %1801 = vmatpush1.bf16.msra.mxu0 0
  %1802 = vmatprep.subr.bf16.mxu0 0
  %1803 = vmatpush1.bf16.msra.mxu0 0
  %1804 = vmatprep.subr.bf16.mxu0 0
  %1805 = vmatpush1.bf16.msra.mxu0 0
  %1806 = vmatprep.subr.bf16.mxu0 0
  %1807 = vmatpush1.bf16.msra.mxu0 0
  %1808 = vmatprep.subr.bf16.mxu0 0
  %1809 = vmatpush1.bf16.msra.mxu0 0
  %1810 = vmatprep.subr.bf16.mxu0 0
  %1811 = vmatpush1.bf16.msra.mxu0 0
  %1812 = vmatprep.subr.bf16.mxu0 0
  %1813 = vmatpush1.bf16.msra.mxu0 0
  %1814 = vmatprep.mubr.bf16.mxu0 0
  %1815 = vmatmul.mubr.bf16.gmra.mrb[0].mxu0 %v1739
  %v1816 = vpop.f32.mrb[0].mxu0
  %v1817 = vadd.f32 %v1776, %v1816
  %v1818 = vpop.f32.mrb[0].mxu0
  %v1819 = vadd.f32 %v1778, %v1818
  %v1820 = vpop.f32.mrb[0].mxu0
  %v1821 = vpop.f32.mrb[0].mxu0
  %1822 = vdwg.mxu0
  %v1825 = vunpack.c.l.b16 %v1443
  %v1826 = vunpack.c.h.b16 %v1443
  %v1827 = vunpack.c.l.b16 %v1444
  %v1828 = vpack.c.b16 %v1825, %v1825
  %v1829 = vpack.c.b16 %v1826, %v1826
  %v1830 = vpack.c.b16 %v1827, %v1827
  %v1873 = vunpack.c.l.b16 %v1448
  %v1874 = vunpack.c.h.b16 %v1448
  %v1875 = vunpack.c.l.b16 %v1449
  %v1876 = vunpack.c.h.b16 %v1449
  %v1877 = vunpack.c.l.b16 %v1450
  %v1878 = vunpack.c.h.b16 %v1450
  %v1879 = vunpack.c.l.b16 %v1451
  %v1880 = vunpack.c.h.b16 %v1451
  %v1881 = vunpack.c.l.b16 %v1452
  %v1882 = vunpack.c.h.b16 %v1452
  %v1883 = vunpack.c.l.b16 %v1453
  %v1884 = vunpack.c.h.b16 %v1453
  %v1885 = vunpack.c.l.b16 %v1454
  %v1886 = vunpack.c.h.b16 %v1454
  %v1887 = vunpack.c.l.b16 %v1455
  %v1888 = vunpack.c.h.b16 %v1455
  %v1889 = vunpack.c.l.b16 %v1456
  %v1890 = vunpack.c.h.b16 %v1456
  %v1891 = vunpack.c.l.b16 %v1457
  %v1892 = vunpack.c.h.b16 %v1457
  %v1893 = vunpack.c.l.b16 %v1458
  %v1894 = vunpack.c.h.b16 %v1458
  %v1895 = vunpack.c.l.b16 %v1459
  %v1896 = vunpack.c.h.b16 %v1459
  %v1897 = vunpack.c.l.b16 %v1460
  %v1898 = vunpack.c.h.b16 %v1460
  %v1899 = vunpack.c.l.b16 %v1461
  %v1900 = vunpack.c.h.b16 %v1461
  %v1901 = vunpack.c.l.b16 %v1462
  %v1902 = vunpack.c.h.b16 %v1462
  %v1903 = vunpack.c.l.b16 %v1463
  %v1904 = vunpack.c.h.b16 %v1463
  %v1905 = vunpack.c.l.b16 %v1464
  %v1906 = vunpack.c.h.b16 %v1464
  %v1907 = vunpack.c.l.b16 %v1465
  %v1908 = vunpack.c.h.b16 %v1465
  %v1909 = vunpack.c.l.b16 %v1466
  %v1910 = vunpack.c.h.b16 %v1466
  %v1911 = vunpack.c.l.b16 %v1467
  %v1912 = vunpack.c.h.b16 %v1467
  %v1913 = vunpack.c.l.b16 %v1468
  %v1914 = vunpack.c.h.b16 %v1468
  %v1915 = vunpack.c.l.b16 %v1469
  %v1916 = vunpack.c.h.b16 %v1469
  %v1917 = vunpack.c.l.b16 %v1470
  %v1918 = vunpack.c.h.b16 %v1470
  %v1919 = vunpack.c.l.b16 %v1471
  %v1920 = vunpack.c.h.b16 %v1471
  %v1921 = vunpack.c.l.b16 %v1472
  %v1922 = vunpack.c.h.b16 %v1472
  %v1923 = vunpack.c.l.b16 %v1473
  %v1924 = vunpack.c.h.b16 %v1473
  %v1925 = vunpack.c.l.b16 %v1474
  %v1926 = vunpack.c.h.b16 %v1474
  %v1927 = vunpack.c.l.b16 %v1475
  %v1928 = vunpack.c.h.b16 %v1475
  %v1929 = vunpack.c.l.b16 %v1476
  %v1930 = vunpack.c.h.b16 %v1476
  %v1931 = vunpack.c.l.b16 %v1477
  %v1932 = vunpack.c.h.b16 %v1477
  %v1933 = vunpack.c.l.b16 %v1478
  %v1934 = vunpack.c.h.b16 %v1478
  %v1935 = vunpack.c.l.b16 %v1479
  %v1936 = vunpack.c.h.b16 %v1479
  %v1937 = vunpack.c.l.b16 %v1480
  %v1938 = vunpack.c.h.b16 %v1480
  %v1939 = vunpack.c.l.b16 %v1481
  %v1940 = vunpack.c.h.b16 %v1481
  %v1941 = vunpack.c.l.b16 %v1482
  %v1942 = vunpack.c.h.b16 %v1482
  %v1943 = vunpack.c.l.b16 %v1483
  %v1944 = vunpack.c.h.b16 %v1483
  %v1945 = vunpack.c.l.b16 %v1484
  %v1946 = vunpack.c.h.b16 %v1484
  %v1947 = vunpack.c.l.b16 %v1485
  %v1948 = vunpack.c.h.b16 %v1485
  %v1949 = vunpack.c.l.b16 %v1486
  %v1950 = vunpack.c.h.b16 %v1486
  %v1951 = vunpack.c.l.b16 %v1487
  %v1952 = vunpack.c.h.b16 %v1487
  %v1953 = vpack.c.b16 %v1875, %v1873
  %v1954 = vpack.c.b16 %v1876, %v1874
  %v1955 = vpack.c.b16 %v1879, %v1877
  %v1956 = vpack.c.b16 %v1880, %v1878
  %v1957 = vpack.c.b16 %v1883, %v1881
  %v1958 = vpack.c.b16 %v1884, %v1882
  %v1959 = vpack.c.b16 %v1887, %v1885
  %v1960 = vpack.c.b16 %v1888, %v1886
  %v1961 = vpack.c.b16 %v1891, %v1889
  %v1962 = vpack.c.b16 %v1892, %v1890
  %v1963 = vpack.c.b16 %v1895, %v1893
  %v1964 = vpack.c.b16 %v1896, %v1894
  %v1965 = vpack.c.b16 %v1899, %v1897
  %v1966 = vpack.c.b16 %v1900, %v1898
  %v1967 = vpack.c.b16 %v1903, %v1901
  %v1968 = vpack.c.b16 %v1904, %v1902
  %v1969 = vpack.c.b16 %v1907, %v1905
  %v1970 = vpack.c.b16 %v1908, %v1906
  %v1971 = vpack.c.b16 %v1911, %v1909
  %v1972 = vpack.c.b16 %v1912, %v1910
  %v1973 = vpack.c.b16 %v1915, %v1913
  %v1974 = vpack.c.b16 %v1916, %v1914
  %v1975 = vpack.c.b16 %v1919, %v1917
  %v1976 = vpack.c.b16 %v1920, %v1918
  %v1977 = vpack.c.b16 %v1923, %v1921
  %v1978 = vpack.c.b16 %v1924, %v1922
  %v1979 = vpack.c.b16 %v1927, %v1925
  %v1980 = vpack.c.b16 %v1928, %v1926
  %v1981 = vpack.c.b16 %v1931, %v1929
  %v1982 = vpack.c.b16 %v1932, %v1930
  %v1983 = vpack.c.b16 %v1935, %v1933
  %v1984 = vpack.c.b16 %v1936, %v1934
  %v1985 = vpack.c.b16 %v1939, %v1937
  %v1986 = vpack.c.b16 %v1940, %v1938
  %v1987 = vpack.c.b16 %v1943, %v1941
  %v1988 = vpack.c.b16 %v1944, %v1942
  %v1989 = vpack.c.b16 %v1947, %v1945
  %v1990 = vpack.c.b16 %v1948, %v1946
  %v1991 = vpack.c.b16 %v1951, %v1949
  %v1992 = vpack.c.b16 %v1952, %v1950
  %v2034 = vsel %vm312, %v1830, 0
  %2036 = vmatprep.subr.bf16.mxu0 %v1954
  %2037 = vmatpush1.bf16.msra.mxu0 %v1953
  %2038 = vmatprep.subr.bf16.mxu0 %v1956
  %2039 = vmatpush1.bf16.msra.mxu0 %v1955
  %2040 = vmatprep.subr.bf16.mxu0 %v1958
  %2041 = vmatpush1.bf16.msra.mxu0 %v1957
  %2042 = vmatprep.subr.bf16.mxu0 %v1960
  %2043 = vmatpush1.bf16.msra.mxu0 %v1959
  %2044 = vmatprep.subr.bf16.mxu0 %v1962
  %2045 = vmatpush1.bf16.msra.mxu0 %v1961
  %2046 = vmatprep.subr.bf16.mxu0 %v1964
  %2047 = vmatpush1.bf16.msra.mxu0 %v1963
  %2048 = vmatprep.subr.bf16.mxu0 %v1966
  %2049 = vmatpush1.bf16.msra.mxu0 %v1965
  %2050 = vmatprep.subr.bf16.mxu0 %v1968
  %2051 = vmatpush1.bf16.msra.mxu0 %v1967
  %2052 = vmatprep.subr.bf16.mxu0 %v1970
  %2053 = vmatpush1.bf16.msra.mxu0 %v1969
  %2054 = vmatprep.subr.bf16.mxu0 %v1972
  %2055 = vmatpush1.bf16.msra.mxu0 %v1971
  %2056 = vmatprep.subr.bf16.mxu0 %v1974
  %2057 = vmatpush1.bf16.msra.mxu0 %v1973
  %2058 = vmatprep.subr.bf16.mxu0 %v1976
  %2059 = vmatpush1.bf16.msra.mxu0 %v1975
  %2060 = vmatprep.subr.bf16.mxu0 %v1978
  %2061 = vmatpush1.bf16.msra.mxu0 %v1977
  %2062 = vmatprep.subr.bf16.mxu0 %v1980
  %2063 = vmatpush1.bf16.msra.mxu0 %v1979
  %2064 = vmatprep.subr.bf16.mxu0 %v1982
  %2065 = vmatpush1.bf16.msra.mxu0 %v1981
  %2066 = vmatprep.subr.bf16.mxu0 %v1984
  %2067 = vmatpush1.bf16.msra.mxu0 %v1983
  %2068 = vmatprep.mubr.bf16.mxu0 %v1829
  %2069 = vmatmul.mubr.bf16.gmra.mrb[0].mxu0 %v1828
  %v2070 = vpop.f32.mrb[0].mxu0
  %v2071 = vadd.f32 %v1817, %v2070
  %v2072 = vpop.f32.mrb[0].mxu0
  %v2073 = vadd.f32 %v1819, %v2072
  %v2074 = vpop.f32.mrb[0].mxu0
  %v2075 = vpop.f32.mrb[0].mxu0
  %2076 = vdwg.mxu0
  %2077 = vmatprep.subr.bf16.mxu0 %v1986
  %2078 = vmatpush1.bf16.msra.mxu0 %v1985
  %2079 = vmatprep.subr.bf16.mxu0 %v1988
  %2080 = vmatpush1.bf16.msra.mxu0 %v1987
  %2081 = vmatprep.subr.bf16.mxu0 %v1990
  %2082 = vmatpush1.bf16.msra.mxu0 %v1989
  %2083 = vmatprep.subr.bf16.mxu0 %v1992
  %2084 = vmatpush1.bf16.msra.mxu0 %v1991
  %2085 = vmatprep.subr.bf16.mxu0 0
  %2086 = vmatpush1.bf16.msra.mxu0 0
  %2087 = vmatprep.subr.bf16.mxu0 0
  %2088 = vmatpush1.bf16.msra.mxu0 0
  %2089 = vmatprep.subr.bf16.mxu0 0
  %2090 = vmatpush1.bf16.msra.mxu0 0
  %2091 = vmatprep.subr.bf16.mxu0 0
  %2092 = vmatpush1.bf16.msra.mxu0 0
  %2093 = vmatprep.subr.bf16.mxu0 0
  %2094 = vmatpush1.bf16.msra.mxu0 0
  %2095 = vmatprep.subr.bf16.mxu0 0
  %2096 = vmatpush1.bf16.msra.mxu0 0
  %2097 = vmatprep.subr.bf16.mxu0 0
  %2098 = vmatpush1.bf16.msra.mxu0 0
  %2099 = vmatprep.subr.bf16.mxu0 0
  %2100 = vmatpush1.bf16.msra.mxu0 0
  %2101 = vmatprep.subr.bf16.mxu0 0
  %2102 = vmatpush1.bf16.msra.mxu0 0
  %2103 = vmatprep.subr.bf16.mxu0 0
  %2104 = vmatpush1.bf16.msra.mxu0 0
  %2105 = vmatprep.subr.bf16.mxu0 0
  %2106 = vmatpush1.bf16.msra.mxu0 0
  %2107 = vmatprep.subr.bf16.mxu0 0
  %2108 = vmatpush1.bf16.msra.mxu0 0
  %2109 = vmatprep.mubr.bf16.mxu0 0
  %2110 = vmatmul.mubr.bf16.gmra.mrb[0].mxu0 %v2034
  %v2111 = vpop.f32.mrb[0].mxu0
  %v2112 = vadd.f32 %v2071, %v2111
  %v2113 = vpop.f32.mrb[0].mxu0
  %v2114 = vadd.f32 %v2073, %v2113
  %v2115 = vpop.f32.mrb[0].mxu0
  %v2116 = vpop.f32.mrb[0].mxu0
  %2117 = vdwg.mxu0
  %v2118 = vld [vmem:[%s693] sm:$0xff]
  %v2119 = vld [vmem:[%s693 + $0x8] sm:$0xff]
  %v2120 = vld [vmem:[%s693 + $0x10] sm:$0xff]
  %v2121 = vld [vmem:[%s693 + $0x18] sm:$0xff]
  %v2122 = vld [vmem:[%s693 + $0x20] sm:$0xff]
  %v2123 = vld [vmem:[%s693 + $0x28] sm:$0xff]
  %v2124 = vld [vmem:[%s693 + $0x30] sm:$0xff]
  %v2125 = vld [vmem:[%s693 + $0x38] sm:$0xff]
  %v2126 = vld [vmem:[%s693 + $0x40] sm:$0xff]
  %v2127 = vld [vmem:[%s693 + $0x48] sm:$0xff]
  %v2128 = vld [vmem:[%s693 + $0x50] sm:$0xff]
  %v2129 = vld [vmem:[%s693 + $0x58] sm:$0xff]
  %v2130 = vld [vmem:[%s693 + $0x60] sm:$0xff]
  %v2131 = vld [vmem:[%s693 + $0x68] sm:$0xff]
  %v2132 = vld [vmem:[%s693 + $0x70] sm:$0xff]
  %v2133 = vld [vmem:[%s693 + $0x78] sm:$0xff]
  %v2134 = vld [vmem:[%s693 + $0x80] sm:$0xff]
  %v2135 = vld [vmem:[%s693 + $0x88] sm:$0xff]
  %v2136 = vld [vmem:[%s693 + $0x90] sm:$0xff]
  %v2137 = vld [vmem:[%s693 + $0x98] sm:$0xff]
  %v2138 = vld [vmem:[%s693 + $0xa0] sm:$0xff]
  %v2139 = vld [vmem:[%s693 + $0xa8] sm:$0xff]
  %v2140 = vld [vmem:[%s693 + $0xb0] sm:$0xff]
  %v2141 = vld [vmem:[%s693 + $0xb8] sm:$0xff]
  %v2142 = vld [vmem:[%s693 + $0xc0] sm:$0xff]
  %v2143 = vld [vmem:[%s693 + $0xc8] sm:$0xff]
  %v2144 = vld [vmem:[%s693 + $0xd0] sm:$0xff]
  %v2145 = vld [vmem:[%s693 + $0xd8] sm:$0xff]
  %v2146 = vld [vmem:[%s693 + $0xe0] sm:$0xff]
  %v2147 = vld [vmem:[%s693 + $0xe8] sm:$0xff]
  %v2148 = vld [vmem:[%s693 + $0xf0] sm:$0xff]
  %v2149 = vld [vmem:[%s693 + $0xf8] sm:$0xff]
  %v2150 = vld [vmem:[%s693 + $0x100] sm:$0xff]
  %v2151 = vld [vmem:[%s693 + $0x108] sm:$0xff]
  %v2152 = vld [vmem:[%s693 + $0x110] sm:$0xff]
  %v2153 = vld [vmem:[%s693 + $0x118] sm:$0xff]
  %v2154 = vld [vmem:[%s693 + $0x120] sm:$0xff]
  %v2155 = vld [vmem:[%s693 + $0x128] sm:$0xff]
  %v2156 = vld [vmem:[%s693 + $0x130] sm:$0xff]
  %v2157 = vld [vmem:[%s693 + $0x138] sm:$0xff]
  %v2159 = vshrl.u32 %v1828, 16
  %v2161 = vshll.u32 %v1828, 16
  %v2163 = vrot.slane %v2161, 1
  %v2164 = vor.u32 %v2159, %v2163
  %v2166 = vshrl.u32 %v1829, 16
  %v2168 = vshll.u32 %v1829, 16
  %v2170 = vrot.slane %v2168, 1
  %v2171 = vor.u32 %v2166, %v2170
  %v2172 = vshrl.u32 %v1830, 16
  %v2174 = vshll.u32 %v1830, 16
  %v2176 = vrot.slane %v2174, 1
  %v2177 = vor.u32 %v2172, %v2176
  %v2220 = vunpack.c.l.b16 %v2118
  %v2221 = vunpack.c.h.b16 %v2118
  %v2222 = vunpack.c.l.b16 %v2119
  %v2223 = vunpack.c.h.b16 %v2119
  %v2224 = vunpack.c.l.b16 %v2120
  %v2225 = vunpack.c.h.b16 %v2120
  %v2226 = vunpack.c.l.b16 %v2121
  %v2227 = vunpack.c.h.b16 %v2121
  %v2228 = vunpack.c.l.b16 %v2122
  %v2229 = vunpack.c.h.b16 %v2122
  %v2230 = vunpack.c.l.b16 %v2123
  %v2231 = vunpack.c.h.b16 %v2123
  %v2232 = vunpack.c.l.b16 %v2124
  %v2233 = vunpack.c.h.b16 %v2124
  %v2234 = vunpack.c.l.b16 %v2125
  %v2235 = vunpack.c.h.b16 %v2125
  %v2236 = vunpack.c.l.b16 %v2126
  %v2237 = vunpack.c.h.b16 %v2126
  %v2238 = vunpack.c.l.b16 %v2127
  %v2239 = vunpack.c.h.b16 %v2127
  %v2240 = vunpack.c.l.b16 %v2128
  %v2241 = vunpack.c.h.b16 %v2128
  %v2242 = vunpack.c.l.b16 %v2129
  %v2243 = vunpack.c.h.b16 %v2129
  %v2244 = vunpack.c.l.b16 %v2130
  %v2245 = vunpack.c.h.b16 %v2130
  %v2246 = vunpack.c.l.b16 %v2131
  %v2247 = vunpack.c.h.b16 %v2131
  %v2248 = vunpack.c.l.b16 %v2132
  %v2249 = vunpack.c.h.b16 %v2132
  %v2250 = vunpack.c.l.b16 %v2133
  %v2251 = vunpack.c.h.b16 %v2133
  %v2252 = vunpack.c.l.b16 %v2134
  %v2253 = vunpack.c.h.b16 %v2134
  %v2254 = vunpack.c.l.b16 %v2135
  %v2255 = vunpack.c.h.b16 %v2135
  %v2256 = vunpack.c.l.b16 %v2136
  %v2257 = vunpack.c.h.b16 %v2136
  %v2258 = vunpack.c.l.b16 %v2137
  %v2259 = vunpack.c.h.b16 %v2137
  %v2260 = vunpack.c.l.b16 %v2138
  %v2261 = vunpack.c.h.b16 %v2138
  %v2262 = vunpack.c.l.b16 %v2139
  %v2263 = vunpack.c.h.b16 %v2139
  %v2264 = vunpack.c.l.b16 %v2140
  %v2265 = vunpack.c.h.b16 %v2140
  %v2266 = vunpack.c.l.b16 %v2141
  %v2267 = vunpack.c.h.b16 %v2141
  %v2268 = vunpack.c.l.b16 %v2142
  %v2269 = vunpack.c.h.b16 %v2142
  %v2270 = vunpack.c.l.b16 %v2143
  %v2271 = vunpack.c.h.b16 %v2143
  %v2272 = vunpack.c.l.b16 %v2144
  %v2273 = vunpack.c.h.b16 %v2144
  %v2274 = vunpack.c.l.b16 %v2145
  %v2275 = vunpack.c.h.b16 %v2145
  %v2276 = vunpack.c.l.b16 %v2146
  %v2277 = vunpack.c.h.b16 %v2146
  %v2278 = vunpack.c.l.b16 %v2147
  %v2279 = vunpack.c.h.b16 %v2147
  %v2280 = vunpack.c.l.b16 %v2148
  %v2281 = vunpack.c.h.b16 %v2148
  %v2282 = vunpack.c.l.b16 %v2149
  %v2283 = vunpack.c.h.b16 %v2149
  %v2284 = vunpack.c.l.b16 %v2150
  %v2285 = vunpack.c.h.b16 %v2150
  %v2286 = vunpack.c.l.b16 %v2151
  %v2287 = vunpack.c.h.b16 %v2151
  %v2288 = vunpack.c.l.b16 %v2152
  %v2289 = vunpack.c.h.b16 %v2152
  %v2290 = vunpack.c.l.b16 %v2153
  %v2291 = vunpack.c.h.b16 %v2153
  %v2292 = vunpack.c.l.b16 %v2154
  %v2293 = vunpack.c.h.b16 %v2154
  %v2294 = vunpack.c.l.b16 %v2155
  %v2295 = vunpack.c.h.b16 %v2155
  %v2296 = vunpack.c.l.b16 %v2156
  %v2297 = vunpack.c.h.b16 %v2156
  %v2298 = vunpack.c.l.b16 %v2157
  %v2299 = vunpack.c.h.b16 %v2157
  %v2300 = vpack.c.b16 %v2222, %v2220
  %v2301 = vpack.c.b16 %v2223, %v2221
  %v2302 = vpack.c.b16 %v2226, %v2224
  %v2303 = vpack.c.b16 %v2227, %v2225
  %v2304 = vpack.c.b16 %v2230, %v2228
  %v2305 = vpack.c.b16 %v2231, %v2229
  %v2306 = vpack.c.b16 %v2234, %v2232
  %v2307 = vpack.c.b16 %v2235, %v2233
  %v2308 = vpack.c.b16 %v2238, %v2236
  %v2309 = vpack.c.b16 %v2239, %v2237
  %v2310 = vpack.c.b16 %v2242, %v2240
  %v2311 = vpack.c.b16 %v2243, %v2241
  %v2312 = vpack.c.b16 %v2246, %v2244
  %v2313 = vpack.c.b16 %v2247, %v2245
  %v2314 = vpack.c.b16 %v2250, %v2248
  %v2315 = vpack.c.b16 %v2251, %v2249
  %v2316 = vpack.c.b16 %v2254, %v2252
  %v2317 = vpack.c.b16 %v2255, %v2253
  %v2318 = vpack.c.b16 %v2258, %v2256
  %v2319 = vpack.c.b16 %v2259, %v2257
  %v2320 = vpack.c.b16 %v2262, %v2260
  %v2321 = vpack.c.b16 %v2263, %v2261
  %v2322 = vpack.c.b16 %v2266, %v2264
  %v2323 = vpack.c.b16 %v2267, %v2265
  %v2324 = vpack.c.b16 %v2270, %v2268
  %v2325 = vpack.c.b16 %v2271, %v2269
  %v2326 = vpack.c.b16 %v2274, %v2272
  %v2327 = vpack.c.b16 %v2275, %v2273
  %v2328 = vpack.c.b16 %v2278, %v2276
  %v2329 = vpack.c.b16 %v2279, %v2277
  %v2330 = vpack.c.b16 %v2282, %v2280
  %v2331 = vpack.c.b16 %v2283, %v2281
  %v2332 = vpack.c.b16 %v2286, %v2284
  %v2333 = vpack.c.b16 %v2287, %v2285
  %v2334 = vpack.c.b16 %v2290, %v2288
  %v2335 = vpack.c.b16 %v2291, %v2289
  %v2336 = vpack.c.b16 %v2294, %v2292
  %v2337 = vpack.c.b16 %v2295, %v2293
  %v2338 = vpack.c.b16 %v2298, %v2296
  %v2339 = vpack.c.b16 %v2299, %v2297
  %v2381 = vsel %vm312, %v2177, 0
  %2383 = vmatprep.subr.bf16.mxu0 %v2301
  %2384 = vmatpush1.bf16.msra.mxu0 %v2300
  %2385 = vmatprep.subr.bf16.mxu0 %v2303
  %2386 = vmatpush1.bf16.msra.mxu0 %v2302
  %2387 = vmatprep.subr.bf16.mxu0 %v2305
  %2388 = vmatpush1.bf16.msra.mxu0 %v2304
  %2389 = vmatprep.subr.bf16.mxu0 %v2307
  %2390 = vmatpush1.bf16.msra.mxu0 %v2306
  %2391 = vmatprep.subr.bf16.mxu0 %v2309
  %2392 = vmatpush1.bf16.msra.mxu0 %v2308
  %2393 = vmatprep.subr.bf16.mxu0 %v2311
  %2394 = vmatpush1.bf16.msra.mxu0 %v2310
  %2395 = vmatprep.subr.bf16.mxu0 %v2313
  %2396 = vmatpush1.bf16.msra.mxu0 %v2312
  %2397 = vmatprep.subr.bf16.mxu0 %v2315
  %2398 = vmatpush1.bf16.msra.mxu0 %v2314
  %2399 = vmatprep.subr.bf16.mxu0 %v2317
  %2400 = vmatpush1.bf16.msra.mxu0 %v2316
  %2401 = vmatprep.subr.bf16.mxu0 %v2319
  %2402 = vmatpush1.bf16.msra.mxu0 %v2318
  %2403 = vmatprep.subr.bf16.mxu0 %v2321
  %2404 = vmatpush1.bf16.msra.mxu0 %v2320
  %2405 = vmatprep.subr.bf16.mxu0 %v2323
  %2406 = vmatpush1.bf16.msra.mxu0 %v2322
  %2407 = vmatprep.subr.bf16.mxu0 %v2325
  %2408 = vmatpush1.bf16.msra.mxu0 %v2324
  %2409 = vmatprep.subr.bf16.mxu0 %v2327
  %2410 = vmatpush1.bf16.msra.mxu0 %v2326
  %2411 = vmatprep.subr.bf16.mxu0 %v2329
  %2412 = vmatpush1.bf16.msra.mxu0 %v2328
  %2413 = vmatprep.subr.bf16.mxu0 %v2331
  %2414 = vmatpush1.bf16.msra.mxu0 %v2330
  %2415 = vmatprep.mubr.bf16.mxu0 %v2171
  %2416 = vmatmul.mubr.bf16.gmra.mrb[0].mxu0 %v2164
  %v2417 = vpop.f32.mrb[0].mxu0
  %v2418 = vadd.f32 0.0, %v2417
  %v2419 = vpop.f32.mrb[0].mxu0
  %v2420 = vadd.f32 0.0, %v2419
  %v2421 = vpop.f32.mrb[0].mxu0
  %v2422 = vpop.f32.mrb[0].mxu0
  %2423 = vdwg.mxu0
  %2424 = vmatprep.subr.bf16.mxu0 %v2333
  %2425 = vmatpush1.bf16.msra.mxu0 %v2332
  %2426 = vmatprep.subr.bf16.mxu0 %v2335
  %2427 = vmatpush1.bf16.msra.mxu0 %v2334
  %2428 = vmatprep.subr.bf16.mxu0 %v2337
  %2429 = vmatpush1.bf16.msra.mxu0 %v2336
  %2430 = vmatprep.subr.bf16.mxu0 %v2339
  %2431 = vmatpush1.bf16.msra.mxu0 %v2338
  %2432 = vmatprep.subr.bf16.mxu0 0
  %2433 = vmatpush1.bf16.msra.mxu0 0
  %2434 = vmatprep.subr.bf16.mxu0 0
  %2435 = vmatpush1.bf16.msra.mxu0 0
  %2436 = vmatprep.subr.bf16.mxu0 0
  %2437 = vmatpush1.bf16.msra.mxu0 0
  %2438 = vmatprep.subr.bf16.mxu0 0
  %2439 = vmatpush1.bf16.msra.mxu0 0
  %2440 = vmatprep.subr.bf16.mxu0 0
  %2441 = vmatpush1.bf16.msra.mxu0 0
  %2442 = vmatprep.subr.bf16.mxu0 0
  %2443 = vmatpush1.bf16.msra.mxu0 0
  %2444 = vmatprep.subr.bf16.mxu0 0
  %2445 = vmatpush1.bf16.msra.mxu0 0
  %2446 = vmatprep.subr.bf16.mxu0 0
  %2447 = vmatpush1.bf16.msra.mxu0 0
  %2448 = vmatprep.subr.bf16.mxu0 0
  %2449 = vmatpush1.bf16.msra.mxu0 0
  %2450 = vmatprep.subr.bf16.mxu0 0
  %2451 = vmatpush1.bf16.msra.mxu0 0
  %2452 = vmatprep.subr.bf16.mxu0 0
  %2453 = vmatpush1.bf16.msra.mxu0 0
  %2454 = vmatprep.subr.bf16.mxu0 0
  %2455 = vmatpush1.bf16.msra.mxu0 0
  %2456 = vmatprep.mubr.bf16.mxu0 0
  %2457 = vmatmul.mubr.bf16.gmra.mrb[0].mxu0 %v2381
  %v2458 = vpop.f32.mrb[0].mxu0
  %v2459 = vadd.f32 %v2418, %v2458
  %v2460 = vpop.f32.mrb[0].mxu0
  %v2461 = vadd.f32 %v2420, %v2460
  %v2462 = vpop.f32.mrb[0].mxu0
  %v2463 = vpop.f32.mrb[0].mxu0
  %2464 = vdwg.mxu0
  %v2465 = vadd.f32 %v2112, %v2459
  %v2466 = vadd.f32 %v2114, %v2461
  %v2467 = vld [vmem:[%s1043] sm:$0xff]
  %v2468 = vld [vmem:[%s1043 + $0x8] sm:$0xff]
  %v2469 = vld [vmem:[%s1043 + $0x10] sm:$0xff]
  %v2470 = vld [vmem:[%s1043 + $0x18] sm:$0xff]
  %v2471 = vld [vmem:[%s1043 + $0x20] sm:$0xff]
  %v2472 = vld [vmem:[%s1043 + $0x28] sm:$0xff]
  %v2473 = vld [vmem:[%s1043 + $0x30] sm:$0xff]
  %v2474 = vld [vmem:[%s1043 + $0x38] sm:$0xff]
  %v2475 = vld [vmem:[%s1043 + $0x40] sm:$0xff]
  %v2476 = vld [vmem:[%s1043 + $0x48] sm:$0xff]
  %v2477 = vld [vmem:[%s1043 + $0x50] sm:$0xff]
  %v2478 = vld [vmem:[%s1043 + $0x58] sm:$0xff]
  %v2479 = vld [vmem:[%s1043 + $0x60] sm:$0xff]
  %v2480 = vld [vmem:[%s1043 + $0x68] sm:$0xff]
  %v2481 = vld [vmem:[%s1043 + $0x70] sm:$0xff]
  %v2482 = vld [vmem:[%s1043 + $0x78] sm:$0xff]
  %v2483 = vld [vmem:[%s1043 + $0x80] sm:$0xff]
  %v2484 = vld [vmem:[%s1043 + $0x88] sm:$0xff]
  %v2485 = vld [vmem:[%s1043 + $0x90] sm:$0xff]
  %v2486 = vld [vmem:[%s1043 + $0x98] sm:$0xff]
  %v2487 = vld [vmem:[%s1043 + $0xa0] sm:$0xff]
  %v2488 = vld [vmem:[%s1043 + $0xa8] sm:$0xff]
  %v2489 = vld [vmem:[%s1043 + $0xb0] sm:$0xff]
  %v2490 = vld [vmem:[%s1043 + $0xb8] sm:$0xff]
  %v2491 = vld [vmem:[%s1043 + $0xc0] sm:$0xff]
  %v2492 = vld [vmem:[%s1043 + $0xc8] sm:$0xff]
  %v2493 = vld [vmem:[%s1043 + $0xd0] sm:$0xff]
  %v2494 = vld [vmem:[%s1043 + $0xd8] sm:$0xff]
  %v2495 = vld [vmem:[%s1043 + $0xe0] sm:$0xff]
  %v2496 = vld [vmem:[%s1043 + $0xe8] sm:$0xff]
  %v2497 = vld [vmem:[%s1043 + $0xf0] sm:$0xff]
  %v2498 = vld [vmem:[%s1043 + $0xf8] sm:$0xff]
  %v2499 = vld [vmem:[%s1043 + $0x100] sm:$0xff]
  %v2500 = vld [vmem:[%s1043 + $0x108] sm:$0xff]
  %v2501 = vld [vmem:[%s1043 + $0x110] sm:$0xff]
  %v2502 = vld [vmem:[%s1043 + $0x118] sm:$0xff]
  %v2503 = vld [vmem:[%s1043 + $0x120] sm:$0xff]
  %v2504 = vld [vmem:[%s1043 + $0x128] sm:$0xff]
  %v2505 = vld [vmem:[%s1043 + $0x130] sm:$0xff]
  %v2506 = vld [vmem:[%s1043 + $0x138] sm:$0xff]
  %v2508 = vshrl.u32 %v1533, 16
  %v2510 = vshll.u32 %v1533, 16
  %v2512 = vrot.slane %v2510, 1
  %v2513 = vor.u32 %v2508, %v2512
  %v2515 = vshrl.u32 %v1534, 16
  %v2517 = vshll.u32 %v1534, 16
  %v2519 = vrot.slane %v2517, 1
  %v2520 = vor.u32 %v2515, %v2519
  %v2521 = vshrl.u32 %v1535, 16
  %v2523 = vshll.u32 %v1535, 16
  %v2525 = vrot.slane %v2523, 1
  %v2526 = vor.u32 %v2521, %v2525
  %v2569 = vunpack.c.l.b16 %v2467
  %v2570 = vunpack.c.h.b16 %v2467
  %v2571 = vunpack.c.l.b16 %v2468
  %v2572 = vunpack.c.h.b16 %v2468
  %v2573 = vunpack.c.l.b16 %v2469
  %v2574 = vunpack.c.h.b16 %v2469
  %v2575 = vunpack.c.l.b16 %v2470
  %v2576 = vunpack.c.h.b16 %v2470
  %v2577 = vunpack.c.l.b16 %v2471
  %v2578 = vunpack.c.h.b16 %v2471
  %v2579 = vunpack.c.l.b16 %v2472
  %v2580 = vunpack.c.h.b16 %v2472
  %v2581 = vunpack.c.l.b16 %v2473
  %v2582 = vunpack.c.h.b16 %v2473
  %v2583 = vunpack.c.l.b16 %v2474
  %v2584 = vunpack.c.h.b16 %v2474
  %v2585 = vunpack.c.l.b16 %v2475
  %v2586 = vunpack.c.h.b16 %v2475
  %v2587 = vunpack.c.l.b16 %v2476
  %v2588 = vunpack.c.h.b16 %v2476
  %v2589 = vunpack.c.l.b16 %v2477
  %v2590 = vunpack.c.h.b16 %v2477
  %v2591 = vunpack.c.l.b16 %v2478
  %v2592 = vunpack.c.h.b16 %v2478
  %v2593 = vunpack.c.l.b16 %v2479
  %v2594 = vunpack.c.h.b16 %v2479
  %v2595 = vunpack.c.l.b16 %v2480
  %v2596 = vunpack.c.h.b16 %v2480
  %v2597 = vunpack.c.l.b16 %v2481
  %v2598 = vunpack.c.h.b16 %v2481
  %v2599 = vunpack.c.l.b16 %v2482
  %v2600 = vunpack.c.h.b16 %v2482
  %v2601 = vunpack.c.l.b16 %v2483
  %v2602 = vunpack.c.h.b16 %v2483
  %v2603 = vunpack.c.l.b16 %v2484
  %v2604 = vunpack.c.h.b16 %v2484
  %v2605 = vunpack.c.l.b16 %v2485
  %v2606 = vunpack.c.h.b16 %v2485
  %v2607 = vunpack.c.l.b16 %v2486
  %v2608 = vunpack.c.h.b16 %v2486
  %v2609 = vunpack.c.l.b16 %v2487
  %v2610 = vunpack.c.h.b16 %v2487
  %v2611 = vunpack.c.l.b16 %v2488
  %v2612 = vunpack.c.h.b16 %v2488
  %v2613 = vunpack.c.l.b16 %v2489
  %v2614 = vunpack.c.h.b16 %v2489
  %v2615 = vunpack.c.l.b16 %v2490
  %v2616 = vunpack.c.h.b16 %v2490
  %v2617 = vunpack.c.l.b16 %v2491
  %v2618 = vunpack.c.h.b16 %v2491
  %v2619 = vunpack.c.l.b16 %v2492
  %v2620 = vunpack.c.h.b16 %v2492
  %v2621 = vunpack.c.l.b16 %v2493
  %v2622 = vunpack.c.h.b16 %v2493
  %v2623 = vunpack.c.l.b16 %v2494
  %v2624 = vunpack.c.h.b16 %v2494
  %v2625 = vunpack.c.l.b16 %v2495
  %v2626 = vunpack.c.h.b16 %v2495
  %v2627 = vunpack.c.l.b16 %v2496
  %v2628 = vunpack.c.h.b16 %v2496
  %v2629 = vunpack.c.l.b16 %v2497
  %v2630 = vunpack.c.h.b16 %v2497
  %v2631 = vunpack.c.l.b16 %v2498
  %v2632 = vunpack.c.h.b16 %v2498
  %v2633 = vunpack.c.l.b16 %v2499
  %v2634 = vunpack.c.h.b16 %v2499
  %v2635 = vunpack.c.l.b16 %v2500
  %v2636 = vunpack.c.h.b16 %v2500
  %v2637 = vunpack.c.l.b16 %v2501
  %v2638 = vunpack.c.h.b16 %v2501
  %v2639 = vunpack.c.l.b16 %v2502
  %v2640 = vunpack.c.h.b16 %v2502
  %v2641 = vunpack.c.l.b16 %v2503
  %v2642 = vunpack.c.h.b16 %v2503
  %v2643 = vunpack.c.l.b16 %v2504
  %v2644 = vunpack.c.h.b16 %v2504
  %v2645 = vunpack.c.l.b16 %v2505
  %v2646 = vunpack.c.h.b16 %v2505
  %v2647 = vunpack.c.l.b16 %v2506
  %v2648 = vunpack.c.h.b16 %v2506
  %v2649 = vpack.c.b16 %v2571, %v2569
  %v2650 = vpack.c.b16 %v2572, %v2570
  %v2651 = vpack.c.b16 %v2575, %v2573
  %v2652 = vpack.c.b16 %v2576, %v2574
  %v2653 = vpack.c.b16 %v2579, %v2577
  %v2654 = vpack.c.b16 %v2580, %v2578
  %v2655 = vpack.c.b16 %v2583, %v2581
  %v2656 = vpack.c.b16 %v2584, %v2582
  %v2657 = vpack.c.b16 %v2587, %v2585
  %v2658 = vpack.c.b16 %v2588, %v2586
  %v2659 = vpack.c.b16 %v2591, %v2589
  %v2660 = vpack.c.b16 %v2592, %v2590
  %v2661 = vpack.c.b16 %v2595, %v2593
  %v2662 = vpack.c.b16 %v2596, %v2594
  %v2663 = vpack.c.b16 %v2599, %v2597
  %v2664 = vpack.c.b16 %v2600, %v2598
  %v2665 = vpack.c.b16 %v2603, %v2601
  %v2666 = vpack.c.b16 %v2604, %v2602
  %v2667 = vpack.c.b16 %v2607, %v2605
  %v2668 = vpack.c.b16 %v2608, %v2606
  %v2669 = vpack.c.b16 %v2611, %v2609
  %v2670 = vpack.c.b16 %v2612, %v2610
  %v2671 = vpack.c.b16 %v2615, %v2613
  %v2672 = vpack.c.b16 %v2616, %v2614
  %v2673 = vpack.c.b16 %v2619, %v2617
  %v2674 = vpack.c.b16 %v2620, %v2618
  %v2675 = vpack.c.b16 %v2623, %v2621
  %v2676 = vpack.c.b16 %v2624, %v2622
  %v2677 = vpack.c.b16 %v2627, %v2625
  %v2678 = vpack.c.b16 %v2628, %v2626
  %v2679 = vpack.c.b16 %v2631, %v2629
  %v2680 = vpack.c.b16 %v2632, %v2630
  %v2681 = vpack.c.b16 %v2635, %v2633
  %v2682 = vpack.c.b16 %v2636, %v2634
  %v2683 = vpack.c.b16 %v2639, %v2637
  %v2684 = vpack.c.b16 %v2640, %v2638
  %v2685 = vpack.c.b16 %v2643, %v2641
  %v2686 = vpack.c.b16 %v2644, %v2642
  %v2687 = vpack.c.b16 %v2647, %v2645
  %v2688 = vpack.c.b16 %v2648, %v2646
  %v2730 = vsel %vm312, %v2526, 0
  %2732 = vmatprep.subr.bf16.mxu0 %v2650
  %2733 = vmatpush1.bf16.msra.mxu0 %v2649
  %2734 = vmatprep.subr.bf16.mxu0 %v2652
  %2735 = vmatpush1.bf16.msra.mxu0 %v2651
  %2736 = vmatprep.subr.bf16.mxu0 %v2654
  %2737 = vmatpush1.bf16.msra.mxu0 %v2653
  %2738 = vmatprep.subr.bf16.mxu0 %v2656
  %2739 = vmatpush1.bf16.msra.mxu0 %v2655
  %2740 = vmatprep.subr.bf16.mxu0 %v2658
  %2741 = vmatpush1.bf16.msra.mxu0 %v2657
  %2742 = vmatprep.subr.bf16.mxu0 %v2660
  %2743 = vmatpush1.bf16.msra.mxu0 %v2659
  %2744 = vmatprep.subr.bf16.mxu0 %v2662
  %2745 = vmatpush1.bf16.msra.mxu0 %v2661
  %2746 = vmatprep.subr.bf16.mxu0 %v2664
  %2747 = vmatpush1.bf16.msra.mxu0 %v2663
  %2748 = vmatprep.subr.bf16.mxu0 %v2666
  %2749 = vmatpush1.bf16.msra.mxu0 %v2665
  %2750 = vmatprep.subr.bf16.mxu0 %v2668
  %2751 = vmatpush1.bf16.msra.mxu0 %v2667
  %2752 = vmatprep.subr.bf16.mxu0 %v2670
  %2753 = vmatpush1.bf16.msra.mxu0 %v2669
  %2754 = vmatprep.subr.bf16.mxu0 %v2672
  %2755 = vmatpush1.bf16.msra.mxu0 %v2671
  %2756 = vmatprep.subr.bf16.mxu0 %v2674
  %2757 = vmatpush1.bf16.msra.mxu0 %v2673
  %2758 = vmatprep.subr.bf16.mxu0 %v2676
  %2759 = vmatpush1.bf16.msra.mxu0 %v2675
  %2760 = vmatprep.subr.bf16.mxu0 %v2678
  %2761 = vmatpush1.bf16.msra.mxu0 %v2677
  %2762 = vmatprep.subr.bf16.mxu0 %v2680
  %2763 = vmatpush1.bf16.msra.mxu0 %v2679
  %2764 = vmatprep.mubr.bf16.mxu0 %v2520
  %2765 = vmatmul.mubr.bf16.gmra.mrb[0].mxu0 %v2513
  %v2766 = vpop.f32.mrb[0].mxu0
  %v2767 = vadd.f32 0.0, %v2766
  %v2768 = vpop.f32.mrb[0].mxu0
  %v2769 = vadd.f32 0.0, %v2768
  %v2770 = vpop.f32.mrb[0].mxu0
  %v2771 = vpop.f32.mrb[0].mxu0
  %2772 = vdwg.mxu0
  %2773 = vmatprep.subr.bf16.mxu0 %v2682
  %2774 = vmatpush1.bf16.msra.mxu0 %v2681
  %2775 = vmatprep.subr.bf16.mxu0 %v2684
  %2776 = vmatpush1.bf16.msra.mxu0 %v2683
  %2777 = vmatprep.subr.bf16.mxu0 %v2686
  %2778 = vmatpush1.bf16.msra.mxu0 %v2685
  %2779 = vmatprep.subr.bf16.mxu0 %v2688
  %2780 = vmatpush1.bf16.msra.mxu0 %v2687
  %2781 = vmatprep.subr.bf16.mxu0 0
  %2782 = vmatpush1.bf16.msra.mxu0 0
  %2783 = vmatprep.subr.bf16.mxu0 0
  %2784 = vmatpush1.bf16.msra.mxu0 0
  %2785 = vmatprep.subr.bf16.mxu0 0
  %2786 = vmatpush1.bf16.msra.mxu0 0
  %2787 = vmatprep.subr.bf16.mxu0 0
  %2788 = vmatpush1.bf16.msra.mxu0 0
  %2789 = vmatprep.subr.bf16.mxu0 0
  %2790 = vmatpush1.bf16.msra.mxu0 0
  %2791 = vmatprep.subr.bf16.mxu0 0
  %2792 = vmatpush1.bf16.msra.mxu0 0
  %2793 = vmatprep.subr.bf16.mxu0 0
  %2794 = vmatpush1.bf16.msra.mxu0 0
  %2795 = vmatprep.subr.bf16.mxu0 0
  %2796 = vmatpush1.bf16.msra.mxu0 0
  %2797 = vmatprep.subr.bf16.mxu0 0
  %2798 = vmatpush1.bf16.msra.mxu0 0
  %2799 = vmatprep.subr.bf16.mxu0 0
  %2800 = vmatpush1.bf16.msra.mxu0 0
  %2801 = vmatprep.subr.bf16.mxu0 0
  %2802 = vmatpush1.bf16.msra.mxu0 0
  %2803 = vmatprep.subr.bf16.mxu0 0
  %2804 = vmatpush1.bf16.msra.mxu0 0
  %2805 = vmatprep.mubr.bf16.mxu0 0
  %2806 = vmatmul.mubr.bf16.gmra.mrb[0].mxu0 %v2730
  %v2807 = vpop.f32.mrb[0].mxu0
  %v2808 = vadd.f32 %v2767, %v2807
  %v2809 = vpop.f32.mrb[0].mxu0
  %v2810 = vadd.f32 %v2769, %v2809
  %v2811 = vpop.f32.mrb[0].mxu0
  %v2812 = vpop.f32.mrb[0].mxu0
  %2813 = vdwg.mxu0
  %v2814 = vadd.f32 %v2465, %v2808
  %v2815 = vadd.f32 %v2466, %v2810
  %v2816 = vpack.c.bf16 %v2814, %v2814
  %v2817 = vpack.c.bf16 %v2815, %v2815
  %v2820 = vcombine.low %v2816, %v2817
  %v2822 = vunpack.c.l.s4 1983009808
  %v2823 = vunpack.c.0.s8 %v2822
  %v2824 = vlaneseq
  %v2825 = vshrl.u32 %v2824, 7
  %v2826 = vsub.s32 %v2823, %v2825
  %v2827 = vrot.slane %v2820, %v2826
  %s2829 = scalar_lea.vmem %s3, 4
  %2830 = vst [vmem:[%s2829] sm:$0xf] %v2827
  %v2831 = vsel %vm1407, %v2814, 0.0
  %v2832 = vrot.slane %v2831, 4
  %v2833 = vadd.f32 %v2831, %v2832
  %v2834 = vrot.slane %v2833, 2
  %v2835 = vadd.f32 %v2833, %v2834
  %v2836 = vrot.slane %v2835, 1
  %v2837 = vadd.f32 %v2835, %v2836
  %v2838 = vsel %vm1407, %v2815, 0.0
  %v2839 = vrot.slane %v2838, 4
  %v2840 = vadd.f32 %v2838, %v2839
  %v2841 = vrot.slane %v2840, 2
  %v2842 = vadd.f32 %v2840, %v2841
  %v2843 = vrot.slane %v2842, 1
  %v2844 = vadd.f32 %v2842, %v2843
  %v2845 = vadd.f32 %v1422, %v2837
  %v2846 = vadd.f32 %v1423, %v2844
  %v2847 = vmul.f32 %v2814, %v2814
  %v2848 = vmul.f32 %v2815, %v2815
  %v2849 = vsel %vm1407, %v2847, 0.0
  %v2850 = vrot.slane %v2849, 4
  %v2851 = vadd.f32 %v2849, %v2850
  %v2852 = vrot.slane %v2851, 2
  %v2853 = vadd.f32 %v2851, %v2852
  %v2854 = vrot.slane %v2853, 1
  %v2855 = vadd.f32 %v2853, %v2854
  %v2856 = vsel %vm1407, %v2848, 0.0
  %v2857 = vrot.slane %v2856, 4
  %v2858 = vadd.f32 %v2856, %v2857
  %v2859 = vrot.slane %v2858, 2
  %v2860 = vadd.f32 %v2858, %v2859
  %v2861 = vrot.slane %v2860, 1
  %v2862 = vadd.f32 %v2860, %v2861
  %v2863 = vadd.f32 %v1440, %v2855
  %v2864 = vadd.f32 %v1441, %v2862
  %vm2865 = vcmask 1040384
  %v2866 = vsel %vm2865, %v2845, %v2863
  %v2867 = vsel %vm2865, %v2846, %v2864
  %v2870 = vcombine.low %v2866, %v2867
  %v2872 = vunpack.c.l.s4 1983009808
  %v2873 = vunpack.c.0.s8 %v2872
  %v2874 = vlaneseq
  %v2875 = vshrl.u32 %v2874, 7
  %v2876 = vsub.s32 %v2873, %v2875
  %v2877 = vrot.slane %v2870, %v2876
  %2879 = vst [vmem:[%s4] sm:$0xf] %v2877
  // Predicated region
  $region14: #{discriminator_forward.13} parent=0 // pred_check
    _
  $region15: #{discriminator_forward.13} parent=0 // pred_check_branch
    %2881 = sbr.rel (0) target = $region17
  $region16: #{discriminator_forward.13} parent=0 // pred_region
    _
  $region17: #{discriminator_forward.13} parent=0 // pred_fallthru
    _
  // Predicated region
  $region18: #{discriminator_forward.13} parent=0 // pred_check
    _
  $region19: #{discriminator_forward.13} parent=0 // pred_check_branch
    %2883 = sbr.rel (0) target = $region21
  $region20: #{discriminator_forward.13} parent=0 // pred_region
    _
  $region21: #{discriminator_forward.13} parent=0 // pred_fallthru
    _
  // Predicated region
  $region22: #{discriminator_forward.13} parent=0 // pred_check
    _
  $region23: #{discriminator_forward.13} parent=0 // pred_check_branch
    %2885 = sbr.rel (0) target = $region25
  $region24: #{discriminator_forward.13} parent=0 // pred_region
    _
  $region25: #{discriminator_forward.13} parent=0 // pred_fallthru
    _
  // Predicated region
  $region26: #{discriminator_forward.13} parent=0 // pred_check
    _
  $region27: #{discriminator_forward.13} parent=0 // pred_check_branch
    %2887 = sbr.rel (0) target = $region29
  $region28: #{discriminator_forward.13} parent=0 // pred_region
    _
  $region29: #{discriminator_forward.13} parent=0 // pred_fallthru
    _

// kernel: tile.63
$region0: #{tile.63}
  #allocation0 [shape = 's32[1]{0}', space=sflag, size = 0x4, scoped, tag = 'scoped memory for tile.63']
  %s0 = inlined_call_operand.vmem [shape: f32[64], index: 0, kind: input, shape index: {}]
  %s1 = inlined_call_operand.vmem [shape: f32[4,64], index: 1, kind: output, shape index: {}]
  // Predicated region
  $region2: #{tile.63} parent=0 // pred_check
    _
  $region3: #{tile.63} parent=0 // pred_check_branch
    %3 = sbr.rel (0) target = $region5
  $region4: #{tile.63} parent=0 // pred_region
    _
  $region5: #{tile.63} parent=0 // pred_fallthru
    _
  %v4 = vld [vmem:[%s0] ss:$0 sm:$0xff]
  %5 = vst [vmem:[%s1] sm:$0xf] %v4

// kernel: tile.64
$region0: #{tile.64}
  %s0 = inlined_call_operand.vmem [shape: f32[4,64], index: 0, kind: input, shape index: {}]
  %s1 = inlined_call_operand.vmem [shape: f32[1,256], index: 1, kind: output, shape index: {}]
  $region1: #{tile.64} parent=0
    #allocation0 [shape = 'u8[8192]{0}', space=vmem, size = 0x2000, scoped, tag = 'scoped mem for output reshape']
    #allocation1 [shape = 'u8[4096]{0}', space=vmem, size = 0x1000, scoped, tag = 'scoped mem for input reshape']
    %s3 = sshllo.u32 0, 4
    %v4 = vld [vmem:[%s0] sm:%s3]
    %5 = vst [vmem:[#allocation1] sm:%s3] %v4
    %s6 = smov 3
    %v7 = vld [vmem:[#allocation1] ss:$2 sm:%s6]
    %vm8 = vcmask 523264
    %9 = vst.msk [vmem:[#allocation0] ss:$8 sm:$0x3] %vm8, %v7
    %s10 = scalar_lea.vmem [#allocation1], 1
    %s11 = smov 3
    %v12 = vld [vmem:[%s10] ss:$2 sm:%s11]
    %13 = vrot.lane.b32.xlu0 %v12, 64
    %v14 = vpop.permute.xlu0 %13
    %vm15 = vcmask 1048064
    %16 = vst.msk [vmem:[#allocation0] ss:$8 sm:$0x3] %vm15, %v14
    %s18 = sshllo.u32 0, 1
    %v20 = vld [vmem:[#allocation0] sm:%s18]
    %s21 = sshllo.u32 0, 1
    %22 = vst [vmem:[%s1] sm:%s21] %v20
    %s23 = scalar_lea.vmem [#allocation0], 8
    %v24 = vld [vmem:[%s23] sm:%s18]
    %s25 = sshllo.u32 0, 1
    %s26 = scalar_lea.vmem %s1, 1
    %27 = vst [vmem:[%s26] sm:%s25] %v24

// kernel: discriminator_forward.14
$region0: #{discriminator_forward.14}
  #allocation0 [shape = 'u32[]', space=smem, size = 0x4, offset = 0x4, fixed_abs, tag = 'smem constant byte address 0x4 - core index']
  #allocation1 [shape = 'u32[144,128]{1,0:T(1,128)}', space=vmem, size = 0x12000, scoped, tag = 'internal scratch']
  %s0 = inlined_call_operand.vmem [shape: bf16[2,4,256], index: 0, kind: input, shape index: {}]
  %s1 = inlined_call_operand.vmem [shape: f32[1,256], index: 1, kind: input, shape index: {}]
  %s2 = inlined_call_operand.vmem [shape: f32[1,256], index: 2, kind: input, shape index: {}]
  %s3 = inlined_call_operand.vmem [shape: bf16[2,4,256], index: 3, kind: output, shape index: {}]
  %s4 = sld [smem:[#allocation0]]
  $region22: #{discriminator_forward.14} parent=0
    _
  %s6 = ssub.s32 1, %s4
  %s7 = scalar_select 0, %s6, %s4
  // Predicated region
  $region2: #{discriminator_forward.14} parent=0 // pred_check
    _
  $region3: #{discriminator_forward.14} parent=0 // pred_check_branch
    %9 = sbr.rel (0) target = $region5
  $region4: #{discriminator_forward.14} parent=0 // pred_region
    _
  $region5: #{discriminator_forward.14} parent=0 // pred_fallthru
    _
  // Predicated region
  $region6: #{discriminator_forward.14} parent=0 // pred_check
    _
  $region7: #{discriminator_forward.14} parent=0 // pred_check_branch
    %11 = sbr.rel (0) target = $region9
  $region8: #{discriminator_forward.14} parent=0 // pred_region
    _
  $region9: #{discriminator_forward.14} parent=0 // pred_fallthru
    _
  // Predicated region
  $region10: #{discriminator_forward.14} parent=0 // pred_check
    _
  $region11: #{discriminator_forward.14} parent=0 // pred_check_branch
    %13 = sbr.rel (0) target = $region13
  $region12: #{discriminator_forward.14} parent=0 // pred_region
    _
  $region13: #{discriminator_forward.14} parent=0 // pred_fallthru
    _
  %v14 = vld [vmem:[%s1] sm:$0x3]
  %v15 = vld [vmem:[%s2] sm:$0x3]
  %v16 = vld [vmem:[%s0] sm:$0xf]
  %v17 = vunpack.c.l.bf16 %v16
  %v19 = vlaneseq
  %v20 = vshrl.u32 %v19, 7
  %v21 = vsub.s32 0, %v20
  %v22 = vrot.slane %v14, %v21
  %v23 = vlaneseq
  %v24 = vshrl.u32 %v23, 7
  %v25 = vsub.s32 1, %v24
  %v26 = vrot.slane %v14, %v25
  %v27 = vcombine.low %v22, %v26
  %v29 = vmul.f32 %v17, %v27
  %v31 = vlaneseq
  %v32 = vshrl.u32 %v31, 7
  %v33 = vsub.s32 0, %v32
  %v34 = vrot.slane %v15, %v33
  %v35 = vlaneseq
  %v36 = vshrl.u32 %v35, 7
  %v37 = vsub.s32 1, %v36
  %v38 = vrot.slane %v15, %v37
  %v39 = vcombine.low %v34, %v38
  %v41 = vadd.f32 %v29, %v39
  %vm42 = vcmp.ge.f32.partialorder %v41, 0.0
  %v43 = vmul.f32 %v41, 0.2
  %v44 = vsel %vm42, %v41, %v43
  %v46 = vcombine.high %v44, %v44
  %v48 = vpack.c.bf16 %v44, %v44
  %v49 = vpack.c.bf16 %v46, %v46
  %v52 = vcombine.low %v48, %v49
  %v54 = vunpack.c.l.s4 1983009808
  %v55 = vunpack.c.0.s8 %v54
  %v56 = vlaneseq
  %v57 = vshrl.u32 %v56, 7
  %v58 = vsub.s32 %v55, %v57
  %v59 = vrot.slane %v52, %v58
  %61 = vst [vmem:[%s3] sm:$0xf] %v59
  %s62 = scalar_lea.vmem %s0, 4
  %v63 = vld [vmem:[%s62] sm:$0xf]
  %v64 = vunpack.c.l.bf16 %v63
  %v65 = vmul.f32 %v64, %v27
  %v66 = vadd.f32 %v65, %v39
  %vm67 = vcmp.ge.f32.partialorder %v66, 0.0
  %v68 = vmul.f32 %v66, 0.2
  %v69 = vsel %vm67, %v66, %v68
  %v71 = vcombine.high %v69, %v69
  %v73 = vpack.c.bf16 %v69, %v69
  %v74 = vpack.c.bf16 %v71, %v71
  %v77 = vcombine.low %v73, %v74
  %v79 = vunpack.c.l.s4 1983009808
  %v80 = vunpack.c.0.s8 %v79
  %v81 = vlaneseq
  %v82 = vshrl.u32 %v81, 7
  %v83 = vsub.s32 %v80, %v82
  %v84 = vrot.slane %v77, %v83
  %s86 = scalar_lea.vmem %s3, 4
  %87 = vst [vmem:[%s86] sm:$0xf] %v84
  // Predicated region
  $region14: #{discriminator_forward.14} parent=0 // pred_check
    _
  $region15: #{discriminator_forward.14} parent=0 // pred_check_branch
    %89 = sbr.rel (0) target = $region17
  $region16: #{discriminator_forward.14} parent=0 // pred_region
    _
  $region17: #{discriminator_forward.14} parent=0 // pred_fallthru
    _
  // Predicated region
  $region18: #{discriminator_forward.14} parent=0 // pred_check
    _
  $region19: #{discriminator_forward.14} parent=0 // pred_check_branch
    %91 = sbr.rel (0) target = $region21
  $region20: #{discriminator_forward.14} parent=0 // pred_region
    _
  $region21: #{discriminator_forward.14} parent=0 // pred_fallthru
    _

// kernel: discriminator_forward.15
$region0: #{discriminator_forward.15}
  #allocation0 [shape = 'u32[]', space=smem, size = 0x4, offset = 0x4, fixed_abs, tag = 'smem constant byte address 0x4 - core index']
  #allocation1 [shape = 'u32[144,128]{1,0:T(1,128)}', space=vmem, size = 0x12000, scoped, tag = 'internal scratch']
  #allocation2 [shape = 'f32[1,1]{1,0:T(1,128)S(6)}', space=smem, size = 0x200, scoped, tag = 'scoped memory for discriminator_forward.15']
  %s0 = inlined_call_operand.vmem [shape: bf16[2,1024], index: 0, kind: input, shape index: {}]
  %s1 = inlined_call_operand.vmem [shape: bf16[1,1024], index: 1, kind: input, shape index: {}]
  %s2 = inlined_call_operand.<no memory space> [shape: f32[1,1], index: 2, kind: input, shape index: {}]
  %s3 = inlined_call_operand.vmem [shape: f32[2,1], index: 3, kind: output, shape index: {}]
  %s4 = sld [smem:[#allocation0]]
  $region22: #{discriminator_forward.15} parent=0
    _
  %s6 = ssub.s32 1, %s4
  %s7 = scalar_select 0, %s6, %s4
  %8 = sst [smem:[#allocation2]] %s2
  // Predicated region
  $region2: #{discriminator_forward.15} parent=0 // pred_check
    _
  $region3: #{discriminator_forward.15} parent=0 // pred_check_branch
    %10 = sbr.rel (0) target = $region5
  $region4: #{discriminator_forward.15} parent=0 // pred_region
    _
  $region5: #{discriminator_forward.15} parent=0 // pred_fallthru
    _
  // Predicated region
  $region6: #{discriminator_forward.15} parent=0 // pred_check
    _
  $region7: #{discriminator_forward.15} parent=0 // pred_check_branch
    %12 = sbr.rel (0) target = $region9
  $region8: #{discriminator_forward.15} parent=0 // pred_region
    _
  $region9: #{discriminator_forward.15} parent=0 // pred_fallthru
    _
  // Predicated region
  $region10: #{discriminator_forward.15} parent=0 // pred_check
    _
  $region11: #{discriminator_forward.15} parent=0 // pred_check_branch
    %14 = sbr.rel (0) target = $region13
  $region12: #{discriminator_forward.15} parent=0 // pred_region
    _
  $region13: #{discriminator_forward.15} parent=0 // pred_fallthru
    _
  %v15 = vld [vmem:[%s0] sm:$0xff]
  %v16 = vunpack.c.l.bf16 %v15
  %v17 = vunpack.c.h.bf16 %v15
  %v18 = vld [vmem:[%s1] sm:$0xff]
  %v19 = vunpack.c.l.bf16 %v18
  %v20 = vunpack.c.h.bf16 %v18
  %v23 = vlaneseq
  %v24 = vshrl.u32 %v23, 7
  %v25 = vsub.s32 0, %v24
  %v26 = vrot.slane %v19, %v25
  %v27 = vlaneseq
  %v28 = vshrl.u32 %v27, 7
  %v29 = vsub.s32 2, %v28
  %v30 = vrot.slane %v19, %v29
  %v31 = vlaneseq
  %v32 = vshrl.u32 %v31, 7
  %v33 = vsub.s32 4, %v32
  %v34 = vrot.slane %v19, %v33
  %v35 = vlaneseq
  %v36 = vshrl.u32 %v35, 7
  %v37 = vsub.s32 6, %v36
  %v38 = vrot.slane %v19, %v37
  %v39 = vlaneseq
  %v40 = vshrl.u32 %v39, 7
  %v41 = vsub.s32 0, %v40
  %v42 = vrot.slane %v20, %v41
  %v43 = vlaneseq
  %v44 = vshrl.u32 %v43, 7
  %v45 = vsub.s32 2, %v44
  %v46 = vrot.slane %v20, %v45
  %v47 = vlaneseq
  %v48 = vshrl.u32 %v47, 7
  %v49 = vsub.s32 4, %v48
  %v50 = vrot.slane %v20, %v49
  %v51 = vlaneseq
  %v52 = vshrl.u32 %v51, 7
  %v53 = vsub.s32 6, %v52
  %v54 = vrot.slane %v20, %v53
  %v63 = vlaneseq
  %v64 = vshrl.u32 %v63, 7
  %v65 = vsub.s32 0, %v64
  %v66 = vrot.slane %v26, %v65
  %v67 = vlaneseq
  %v68 = vshrl.u32 %v67, 7
  %v69 = vsub.s32 0, %v68
  %v70 = vrot.slane %v30, %v69
  %v71 = vlaneseq
  %v72 = vshrl.u32 %v71, 7
  %v73 = vsub.s32 0, %v72
  %v74 = vrot.slane %v34, %v73
  %v75 = vlaneseq
  %v76 = vshrl.u32 %v75, 7
  %v77 = vsub.s32 0, %v76
  %v78 = vrot.slane %v38, %v77
  %v79 = vlaneseq
  %v80 = vshrl.u32 %v79, 7
  %v81 = vsub.s32 0, %v80
  %v82 = vrot.slane %v42, %v81
  %v83 = vlaneseq
  %v84 = vshrl.u32 %v83, 7
  %v85 = vsub.s32 0, %v84
  %v86 = vrot.slane %v46, %v85
  %v87 = vlaneseq
  %v88 = vshrl.u32 %v87, 7
  %v89 = vsub.s32 0, %v88
  %v90 = vrot.slane %v50, %v89
  %v91 = vlaneseq
  %v92 = vshrl.u32 %v91, 7
  %v93 = vsub.s32 0, %v92
  %v94 = vrot.slane %v54, %v93
  %v103 = vcombine.low %v66, %v70
  %v104 = vcombine.low %v74, %v78
  %v106 = vunpack.c.l.s4 1983009808
  %v107 = vunpack.c.0.s8 %v106
  %v108 = vlaneseq
  %v109 = vshrl.u32 %v108, 7
  %v110 = vsub.s32 %v107, %v109
  %v111 = vrot.slane %v103, %v110
  %v113 = vunpack.c.l.s4 1983009808
  %v114 = vunpack.c.0.s8 %v113
  %v115 = vlaneseq
  %v116 = vshrl.u32 %v115, 7
  %v117 = vsub.s32 %v114, %v116
  %v118 = vrot.slane %v104, %v117
  %v119 = vcombine.low %v111, %v118
  %v120 = vcombine.low %v82, %v86
  %v121 = vcombine.low %v90, %v94
  %v123 = vunpack.c.l.s4 1983009808
  %v124 = vunpack.c.0.s8 %v123
  %v125 = vlaneseq
  %v126 = vshrl.u32 %v125, 7
  %v127 = vsub.s32 %v124, %v126
  %v128 = vrot.slane %v120, %v127
  %v130 = vunpack.c.l.s4 1983009808
  %v131 = vunpack.c.0.s8 %v130
  %v132 = vlaneseq
  %v133 = vshrl.u32 %v132, 7
  %v134 = vsub.s32 %v131, %v133
  %v135 = vrot.slane %v121, %v134
  %v136 = vcombine.low %v128, %v135
  %v139 = vmul.f32 %v16, %v119
  %v140 = vmul.f32 %v17, %v136
  %v143 = vcombine.high %v139, %v139
  %v145 = vunpack.c.l.s4 1983009808
  %v146 = vunpack.c.0.s8 %v145
  %v147 = vlaneseq
  %v148 = vshrl.u32 %v147, 7
  %v149 = vsub.s32 %v146, %v148
  %v150 = vrot.slane %v139, %v149
  %v152 = vunpack.c.l.s4 1983009808
  %v153 = vunpack.c.0.s8 %v152
  %v154 = vlaneseq
  %v155 = vshrl.u32 %v154, 7
  %v156 = vsub.s32 %v153, %v155
  %v157 = vrot.slane %v143, %v156
  %v158 = vcombine.high %v150, %v150
  %v159 = vcombine.high %v157, %v157
  %v160 = vcombine.high %v140, %v140
  %v162 = vunpack.c.l.s4 1983009808
  %v163 = vunpack.c.0.s8 %v162
  %v164 = vlaneseq
  %v165 = vshrl.u32 %v164, 7
  %v166 = vsub.s32 %v163, %v165
  %v167 = vrot.slane %v140, %v166
  %v169 = vunpack.c.l.s4 1983009808
  %v170 = vunpack.c.0.s8 %v169
  %v171 = vlaneseq
  %v172 = vshrl.u32 %v171, 7
  %v173 = vsub.s32 %v170, %v172
  %v174 = vrot.slane %v160, %v173
  %v175 = vcombine.high %v167, %v167
  %v176 = vcombine.high %v174, %v174
  %vm185 = vcmask 1041408
  %v186 = vsel %vm185, %v150, 0.0
  %v187 = vsel %vm185, %v158, 0.0
  %v188 = vadd.f32 %v186, %v187
  %v189 = vsel %vm185, %v157, 0.0
  %v190 = vadd.f32 %v188, %v189
  %v191 = vsel %vm185, %v159, 0.0
  %v192 = vadd.f32 %v190, %v191
  %v193 = vsel %vm185, %v167, 0.0
  %v194 = vadd.f32 %v192, %v193
  %v195 = vsel %vm185, %v175, 0.0
  %v196 = vadd.f32 %v194, %v195
  %v197 = vsel %vm185, %v174, 0.0
  %v198 = vadd.f32 %v196, %v197
  %v199 = vsel %vm185, %v176, 0.0
  %v200 = vadd.f32 %v198, %v199
  %201 = vadd.xlane.f32.xlu0 %v200
  %v202 = vpop.xlane.xlu0 %201
  %s203 = sld [smem:[#allocation2]]
  %v204 = vstv %s203
  %v205 = vadd.f32 %v202, %v204
  %v206 = vsub.f32 0.0, %v205
  %v207 = vmul.f32 %v206, 1.442695
  %v208 = vpow.pop %v207
  %v209 = vadd.f32 %v208, 1.0
  %v210 = vrcp.pop %v209
  %v211 = vmul.f32 1.0, %v210
  %vm212 = vcmask 1024
  %213 = vst.msk [vmem:[%s3] sm:$0x3] %vm212, %v211
  // Predicated region
  $region14: #{discriminator_forward.15} parent=0 // pred_check
    _
  $region15: #{discriminator_forward.15} parent=0 // pred_check_branch
    %215 = sbr.rel (0) target = $region17
  $region16: #{discriminator_forward.15} parent=0 // pred_region
    _
  $region17: #{discriminator_forward.15} parent=0 // pred_fallthru
    _
  // Predicated region
  $region18: #{discriminator_forward.15} parent=0 // pred_check
    _
  $region19: #{discriminator_forward.15} parent=0 // pred_check_branch
    %217 = sbr.rel (0) target = $region21
  $region20: #{discriminator_forward.15} parent=0 // pred_region
    _
  $region21: #{discriminator_forward.15} parent=0 // pred_fallthru
    _

</llo_original>
